<compile_context>
chip_gen: v7x
topology: tpu7x:2x2x1
jax: 0.10.0
libtpu: 0.0.40
codegen_flags: <defaults>
</compile_context>

<pallas_src>
import functools
import math

import jax
import jax.numpy as jnp
from jax.experimental import pallas as pl
from jax.experimental.pallas import tpu as pltpu

_LANE = 128
_PACK_K_MAX = 256        # pack kh*kw taps into the MXU K dim when kh*kw*cin <= this


def _round_up(x, m):
    return (x + m - 1) // m * m


def _device_kind():
    try:
        return jax.devices()[0].device_kind.lower()
    except Exception:
        return ""


def _lane_tile(cout_p):
    # v6e/v7x MXU is 2x256^2 -> prefer a 256-wide Cout tile; keep 128 on v5e.
    if cout_p % 256 == 0 and "v5" not in _device_kind():
        return 256
    return 128


def _vmem_limit_bytes():
    # v7x only has 64 MiB/TC of physical VMEM; leave more headroom there.
    return (36 if "v7" in _device_kind() else 48) * 1024 * 1024


# ---------------------------------------------------------------------------
# In-kernel helpers (operate on values / refs inside the Pallas body)
# ---------------------------------------------------------------------------
def _zero_pad_3x3(a, wpad):
    """Zero-pad an (H, W, C) tile for a 3x3 / pad=1 conv, entirely in VMEM:
    1 row top, 2 rows bottom (conv halo + slack for the flat full-width
    slices), 1 col left, wpad-W-1 cols right (wpad is a multiple of 8)."""
    H, W, C = a.shape
    dt = a.dtype
    a = jnp.concatenate(
        [jnp.zeros((H, 1, C), dt), a, jnp.zeros((H, wpad - W - 1, C), dt)],
        axis=1)
    a = jnp.concatenate(
        [jnp.zeros((1, wpad, C), dt), a, jnp.zeros((2, wpad, C), dt)], axis=0)
    return a                                            # (H + 3, wpad, C)


def _conv_fullwidth(xp, w_ref, kh, kw, h, pack):
    """Stride-1 conv of a (pre-padded) tile computed at full padded width.

    xp    : (hp, wp, cin) value; w_ref: (kh*kw*cin, tn) ref, tap-major rows.
    Every tap is a single contiguous row-window slice of the flattened tile
    (no per-tap strided (h, w) slice+reshape).  Returns a (h*wp, tn) f32
    accumulator whose columns [0, w) of each row are the valid conv outputs;
    the remaining columns are discarded by the epilogue.
    """
    hp, wp, cin = xp.shape
    tn = w_ref.shape[-1]
    xf = xp.reshape(hp * wp, cin)
    offs = [dh * wp + dw for dh in range(kh) for dw in range(kw)]
    if pack:
        # Small cin: pack all taps into K -> one deep MXU contraction.
        taps = [xf[o:o + h * wp, :] for o in offs]
        patches = taps[0] if len(taps) == 1 else jnp.concatenate(taps, axis=-1)
        return jnp.dot(patches, w_ref[...], preferred_element_type=jnp.float32)
    acc = jnp.zeros((h * wp, tn), jnp.float32)
    for t, o in enumerate(offs):
        acc = acc + jnp.dot(xf[o:o + h * wp, :],
                            w_ref[t * cin:(t + 1) * cin, :],
                            preferred_element_type=jnp.float32)
    return acc


def _epilogue(acc, bias, h, wp, w, relu, pool):
    """bias add [+relu] [+2x2 sum-pool], dropping the wp-w invalid columns.

    The avg-pool's 0.25 is folded into weights/bias by the wrapper, so pooling
    here is a plain 2x2 sum.  Returns (h[/2], w[/2], tn) in f32.
    """
    tn = acc.shape[-1]
    acc = acc + bias                                    # (h*wp, tn) f32
    if relu:
        acc = jnp.maximum(acc, 0.0)
    if not pool:
        return acc.reshape(h, wp, tn)[:, :w, :]
    t = acc.reshape(h * wp // 2, 2, tn)                 # adjacent column pairs
    t = t[:, 0, :] + t[:, 1, :]
    t = t.reshape(h // 2, 2, wp // 2, tn)               # adjacent row pairs
    t = t[:, 0] + t[:, 1]
    return t[:, :w // 2, :]                             # drop invalid columns


# ---------------------------------------------------------------------------
# Kernels
# ---------------------------------------------------------------------------
def _stage1_kernel(x_ref, w1_ref, b1_ref, w0_ref, b0_ref, y1_ref, res_ref, *,
                   wpad, pool0, pack1):
    """relu(x) -> { 3x3 conv + bias + relu -> y1 ;  1x1 conv [+pool] -> res }."""
    _, H, W, _ = x_ref.shape
    xr = jnp.maximum(x_ref[0], 0)                       # relu(x) computed once

    # main branch: 3x3 conv (in-VMEM halo pad, no HBM pad) -> bias -> relu
    xp = _zero_pad_3x3(xr, wpad)
    acc1 = _conv_fullwidth(xp, w1_ref, 3, 3, H, pack1)
    y1 = _epilogue(acc1, b1_ref[...], H, wpad, W, relu=True, pool=False)
    y1_ref[0] = y1.astype(y1_ref.dtype)

    # shortcut branch: 1x1 conv (identity weights when the module has no conv0)
    acc0 = _conv_fullwidth(xr, w0_ref, 1, 1, H, True)
    res = _epilogue(acc0, b0_ref[...], H, W, W, relu=False, pool=pool0)
    res_ref[0] = res.astype(res_ref.dtype)


def _stage2_kernel(y1_ref, w2_ref, b2_ref, res_ref, o_ref, *, wpad, pool, pack):
    """3x3 conv + bias [+2x2 pool] + residual add -> block output."""
    _, H, W, _ = y1_ref.shape
    yp = _zero_pad_3x3(y1_ref[0], wpad)
    acc = _conv_fullwidth(yp, w2_ref, 3, 3, H, pack)
    out = _epilogue(acc, b2_ref[...], H, wpad, W, relu=False, pool=pool)
    out = out + res_ref[0].astype(jnp.float32)
    o_ref[0] = out.astype(o_ref.dtype)


# ---------------------------------------------------------------------------
# Wrapper: DiscBlock forward = 2 pallas_calls
# ---------------------------------------------------------------------------
def _prep_wb(w_hwio, b, cin_p, cout_p, scale):
    """Pad channels, fold the pool scale, pack to (kh*kw*cin_p, cout_p) bf16."""
    kh, kw, cin, cout = w_hwio.shape
    w = jnp.pad(w_hwio, ((0, 0), (0, 0), (0, cin_p - cin), (0, cout_p - cout)))
    w = (w * scale).astype(jnp.bfloat16).reshape(kh * kw * cin_p, cout_p)
    bb = (jnp.pad(b, (0, cout_p - cout)) * scale).astype(jnp.float32)
    return w, bb.reshape(1, cout_p)


def disc_block_forward(x_nchw, params, downsample=True):
    x = jnp.transpose(x_nchw, (0, 2, 3, 1)).astype(jnp.bfloat16)    # NHWC bf16
    B, H, W, cin = x.shape
    cout = params["w1"].shape[-1]
    if downsample:
        assert H % 2 == 0 and W % 2 == 0, "2x2 avg-pool needs even H, W"

    cout_p = _round_up(cout, _LANE)              # lane-dense stores everywhere
    tn = _lane_tile(cout_p)
    nt = cout_p // tn
    wpad = _round_up(W + 2, 8)                   # layout-friendly padded width
    ho, wo = (H // 2, W // 2) if downsample else (H, W)
    has_conv0 = downsample or (cin != cout)
    pool_scale = 0.25 if downsample else 1.0     # fold avg-pool scale into w, b

    w1p, b1p = _prep_wb(params["w1"], params["b1"], cin, cout_p, 1.0)
    w2p, b2p = _prep_wb(params["w2"], params["b2"], cout_p, cout_p, pool_scale)
    if has_conv0:
        w0p, b0p = _prep_wb(params["w0"], params["b0"], cin, cout_p, pool_scale)
    else:
        # nn.ReLU(inplace=True) aliases x0 = relu(x); an exact identity 1x1
        # reproduces that residual with a single uniform kernel code path.
        w0p = jnp.eye(cin, cout_p, dtype=jnp.float32).astype(jnp.bfloat16)
        b0p = jnp.zeros((1, cout_p), jnp.float32)

    pack1 = 9 * cin <= _PACK_K_MAX               # deep-K packing for small cin
    pack2 = 9 * cout_p <= _PACK_K_MAX
    cparams = pltpu.CompilerParams(
        dimension_semantics=("parallel", "parallel"),
        vmem_limit_bytes=_vmem_limit_bytes())

    # ---- stage 1: fused relu -> conv1(3x3)+relu  and  1x1 shortcut [+pool]
    s1_flops = 2 * B * H * wpad * cout_p * (9 * cin) + 2 * B * H * W * cout_p * cin
    s1_bytes = (x.size * 2 + w1p.size * 2 + w0p.size * 2 + b1p.size * 4 +
                b0p.size * 4 + B * H * W * cout_p * 2 + B * ho * wo * cout_p * 2)
    kern1 = functools.partial(_stage1_kernel, wpad=wpad,
                              pool0=downsample, pack1=pack1)
    y1, res = pl.pallas_call(
        kern1,
        out_shape=(jax.ShapeDtypeStruct((B, H, W, cout_p), jnp.bfloat16),
                   jax.ShapeDtypeStruct((B, ho, wo, cout_p), jnp.bfloat16)),
        grid=(B, nt),
        in_specs=[
            pl.BlockSpec((1, H, W, cin), lambda b, j: (b, 0, 0, 0)),
            pl.BlockSpec((9 * cin, tn), lambda b, j: (0, j)),
            pl.BlockSpec((1, tn), lambda b, j: (0, j)),
            pl.BlockSpec((cin, tn), lambda b, j: (0, j)),
            pl.BlockSpec((1, tn), lambda b, j: (0, j)),
        ],
        out_specs=(
            pl.BlockSpec((1, H, W, tn), lambda b, j: (b, 0, 0, j)),
            pl.BlockSpec((1, ho, wo, tn), lambda b, j: (b, 0, 0, j)),
        ),
        compiler_params=cparams,
        cost_estimate=pl.CostEstimate(flops=int(s1_flops), transcendentals=0,
                                      bytes_accessed=int(s1_bytes)),
    )(x, w1p, b1p, w0p, b0p)

    # ---- stage 2: conv2(3x3) [+2x2 pool] + residual add
    s2_flops = 2 * B * H * wpad * cout_p * (9 * cout_p)
    s2_bytes = (y1.size * 2 + w2p.size * 2 + b2p.size * 4 + res.size * 2 +
                B * ho * wo * cout_p * 4)
    kern2 = functools.partial(_stage2_kernel, wpad=wpad,
                              pool=downsample, pack=pack2)
    out = pl.pallas_call(
        kern2,
        out_shape=jax.ShapeDtypeStruct((B, ho, wo, cout_p), jnp.float32),
        grid=(B, nt),
        in_specs=[
            pl.BlockSpec((1, H, W, cout_p), lambda b, j: (b, 0, 0, 0)),
            pl.BlockSpec((9 * cout_p, tn), lambda b, j: (0, j)),
            pl.BlockSpec((1, tn), lambda b, j: (0, j)),
            pl.BlockSpec((1, ho, wo, tn), lambda b, j: (b, 0, 0, j)),
        ],
        out_specs=pl.BlockSpec((1, ho, wo, tn), lambda b, j: (b, 0, 0, j)),
        compiler_params=cparams,
        cost_estimate=pl.CostEstimate(flops=int(s2_flops), transcendentals=0,
                                      bytes_accessed=int(s2_bytes)),
    )(y1, w2p, b2p, res)

    if cout_p != cout:
        out = out[..., :cout]                    # XLA fuses slice + transpose
    return jnp.transpose(out, (0, 3, 1, 2))      # back to NCHW, f32


# ---------------------------------------------------------------------------
# Parameter init (xavier_uniform + 1 spectral-norm power iteration), HWIO layout
# ---------------------------------------------------------------------------
def _spectral_normalize(w_oihw, key):
    w2 = w_oihw.reshape(w_oihw.shape[0], -1)
    u = jax.random.normal(key, (w2.shape[0],), jnp.float32)
    u = u / (jnp.linalg.norm(u) + 1e-12)
    v = w2.T @ u
    v = v / (jnp.linalg.norm(v) + 1e-12)
    u = w2 @ v
    u = u / (jnp.linalg.norm(u) + 1e-12)
    sigma = u @ (w2 @ v)
    return w_oihw / sigma


def _init_snconv(key, out_c, in_c, k):
    k1, k2, k3 = jax.random.split(key, 3)
    fan_in, fan_out = in_c * k * k, out_c * k * k
    bound = math.sqrt(6.0 / (fan_in + fan_out))
    w = jax.random.uniform(k1, (out_c, in_c, k, k), jnp.float32, -bound, bound)
    w = _spectral_normalize(w, k2)   # init-time XLA preprocessing, not a kernel
    b = jax.random.uniform(k3, (out_c,), jnp.float32, -0.05, 0.05)
    return jnp.transpose(w, (2, 3, 1, 0)), b                        # HWIO


def make_disc_block_params(key, in_c, out_c):
    k1, k2, k3 = jax.random.split(key, 3)
    w1, b1 = _init_snconv(k1, out_c, in_c, 3)
    w2, b2 = _init_snconv(k2, out_c, out_c, 3)
    w0, b0 = _init_snconv(k3, out_c, in_c, 1)
    return dict(w1=w1, b1=b1, w2=w2, b2=b2, w0=w0, b0=b0)


# ---------------------------------------------------------------------------
# Pure-XLA f32 reference (mirrors PyTorch DiscBlock incl. inplace-ReLU aliasing)
# ---------------------------------------------------------------------------
def _avgpool2_nhwc(v):
    B, H, W, C = v.shape
    return v.reshape(B, H // 2, 2, W // 2, 2, C).mean(axis=(2, 4))


def disc_block_reference(x_nchw, params, downsample=True):
    dn = ("NHWC", "HWIO", "NHWC")

    def conv(v, w, b, pad):
        out = jax.lax.conv_general_dilated(
            v, w, window_strides=(1, 1), padding=[(pad, pad), (pad, pad)],
            dimension_numbers=dn)
        return out + b.reshape(1, 1, 1, -1)

    x = jnp.transpose(x_nchw, (0, 2, 3, 1))
    cin = x.shape[-1]
    cout = params["w1"].shape[-1]
    xr = jnp.maximum(x, 0.0)                    # inplace ReLU: x0 aliases relu(x)
    h = conv(xr, params["w1"], params["b1"], 1)
    h = jnp.maximum(h, 0.0)
    h = conv(h, params["w2"], params["b2"], 1)
    if downsample:
        h = _avgpool2_nhwc(h)
    x0 = xr
    if downsample or cin != cout:
        x0 = conv(xr, params["w0"], params["b0"], 0)
        if downsample:
            x0 = _avgpool2_nhwc(x0)
    return jnp.transpose(h + x0, (0, 3, 1, 2))


# ---------------------------------------------------------------------------
if __name__ == "__main__":
    B, IN_C, OUT_C, S = 2, 4, 8, 16
    key = jax.random.PRNGKey(0)
    kp, kx, kp2, kx2 = jax.random.split(key, 4)

    # --- default path: downsample=True, channel mismatch (4 -> 8) ---
    params = make_disc_block_params(kp, IN_C, OUT_C)
    x = jax.random.normal(kx, (B, IN_C, S, S), jnp.float32)

    fwd = jax.jit(functools.partial(disc_block_forward, downsample=True))
    out = jax.block_until_ready(fwd(x, params))
    assert out.shape == (B, OUT_C, S // 2, S // 2) and out.dtype == jnp.float32
    ref = disc_block_reference(x, params, downsample=True)
    assert bool(jnp.allclose(out, ref, atol=1e-1, rtol=1e-1)), \
        float(jnp.max(jnp.abs(out - ref)))

    # --- no-downsample / equal-channels path (residual = relu(x), identity 1x1) ---
    params_eq = make_disc_block_params(kp2, OUT_C, OUT_C)
    x2 = jax.random.normal(kx2, (B, OUT_C, S, S), jnp.float32)
    fwd2 = jax.jit(functools.partial(disc_block_forward, downsample=False))
    out2 = jax.block_until_ready(fwd2(x2, params_eq))
    assert out2.shape == (B, OUT_C, S, S)
    ref2 = disc_block_reference(x2, params_eq, downsample=False)
    assert bool(jnp.allclose(out2, ref2, atol=1e-1, rtol=1e-1)), \
        float(jnp.max(jnp.abs(out2 - ref2)))

    print("KERNEL_OK")
</pallas_src>

<mosaic_0001>
module attributes {stable_mosaic.version = 11 : i64} {
  func.func @_stage2_kernel(%arg0: i32, %arg1: i32, %arg2: memref<1x16x16x128xbf16, #tpu.memory_space<vmem>>, %arg3: memref<1152x128xbf16, #tpu.memory_space<vmem>>, %arg4: memref<1x128xf32, #tpu.memory_space<vmem>>, %arg5: memref<1x8x8x128xbf16, #tpu.memory_space<vmem>>, %arg6: memref<1x8x8x128xf32, #tpu.memory_space<vmem>>) attributes {dimension_semantics = [#tpu.dimension_semantics<parallel>, #tpu.dimension_semantics<parallel>], iteration_bounds = array<i64: 2, 1>, scalar_prefetch = 0 : i64, scratch_operands = 0 : i64, tpu.core_type = #tpu.core_type<tc>, window_params = [{transform_indices = @transform_0, window_bounds = array<i64: 1, 16, 16, 128>}, {transform_indices = @transform_1, window_bounds = array<i64: 1152, 128>}, {transform_indices = @transform_2, window_bounds = array<i64: 1, 128>}, {transform_indices = @transform_3, window_bounds = array<i64: 1, 8, 8, 128>}, {transform_indices = @transform_4, window_bounds = array<i64: 1, 8, 8, 128>}]} {
    %c0 = arith.constant 0 : index
    %c0_0 = arith.constant 0 : index
    %c0_1 = arith.constant 0 : index
    %c0_2 = arith.constant 0 : index
    %0 = vector.load %arg2[%c0, %c0_0, %c0_1, %c0_2] : memref<1x16x16x128xbf16, #tpu.memory_space<vmem>>, vector<1x16x16x128xbf16>
    %1 = vector.shape_cast %0 : vector<1x16x16x128xbf16> to vector<16x16x128xbf16>
    %cst = arith.constant 0.000000e+00 : bf16
    %2 = vector.broadcast %cst : bf16 to vector<16x1x128xbf16>
    %cst_3 = arith.constant 0.000000e+00 : bf16
    %3 = vector.broadcast %cst_3 : bf16 to vector<16x7x128xbf16>
    %4 = tpu.concatenate %2, %1, %3 in 1 : vector<16x1x128xbf16>, vector<16x16x128xbf16>, vector<16x7x128xbf16> -> vector<16x24x128xbf16>
    %cst_4 = arith.constant 0.000000e+00 : bf16
    %5 = vector.broadcast %cst_4 : bf16 to vector<1x24x128xbf16>
    %cst_5 = arith.constant 0.000000e+00 : bf16
    %6 = vector.broadcast %cst_5 : bf16 to vector<2x24x128xbf16>
    %7 = tpu.concatenate %5, %4, %6 in 0 : vector<1x24x128xbf16>, vector<16x24x128xbf16>, vector<2x24x128xbf16> -> vector<19x24x128xbf16>
    %8 = vector.shape_cast %7 : vector<19x24x128xbf16> to vector<456x128xbf16>
    %cst_6 = arith.constant 0.000000e+00 : f32
    %9 = vector.broadcast %cst_6 : f32 to vector<384x128xf32>
    %10 = vector.extract_strided_slice %8 {offsets = [0, 0], sizes = [384, 128], strides = [1, 1]} : vector<456x128xbf16> to vector<384x128xbf16>
    %c0_7 = arith.constant 0 : index
    %c0_8 = arith.constant 0 : index
    %11 = vector.load %arg3[%c0_7, %c0_8] : memref<1152x128xbf16, #tpu.memory_space<vmem>>, vector<128x128xbf16>
    %cst_9 = arith.constant dense<0.000000e+00> : vector<384x128xf32>
    %12 = tpu.matmul %10, %11, %cst_9 {dimension_numbers = #tpu.dot_dimension_numbers<[1], [0], [0], [1], [0, 0, 1, 1], [], []>} : vector<384x128xbf16>, vector<128x128xbf16>, vector<384x128xf32> -> vector<384x128xf32>
    %13 = arith.addf %9, %12 : vector<384x128xf32>
    %14 = vector.extract_strided_slice %8 {offsets = [1, 0], sizes = [384, 128], strides = [1, 1]} : vector<456x128xbf16> to vector<384x128xbf16>
    %c128 = arith.constant 128 : index
    %c0_10 = arith.constant 0 : index
    %15 = vector.load %arg3[%c128, %c0_10] : memref<1152x128xbf16, #tpu.memory_space<vmem>>, vector<128x128xbf16>
    %cst_11 = arith.constant dense<0.000000e+00> : vector<384x128xf32>
    %16 = tpu.matmul %14, %15, %cst_11 {dimension_numbers = #tpu.dot_dimension_numbers<[1], [0], [0], [1], [0, 0, 1, 1], [], []>} : vector<384x128xbf16>, vector<128x128xbf16>, vector<384x128xf32> -> vector<384x128xf32>
    %17 = arith.addf %13, %16 : vector<384x128xf32>
    %18 = vector.extract_strided_slice %8 {offsets = [2, 0], sizes = [384, 128], strides = [1, 1]} : vector<456x128xbf16> to vector<384x128xbf16>
    %c256 = arith.constant 256 : index
    %c0_12 = arith.constant 0 : index
    %19 = vector.load %arg3[%c256, %c0_12] : memref<1152x128xbf16, #tpu.memory_space<vmem>>, vector<128x128xbf16>
    %cst_13 = arith.constant dense<0.000000e+00> : vector<384x128xf32>
    %20 = tpu.matmul %18, %19, %cst_13 {dimension_numbers = #tpu.dot_dimension_numbers<[1], [0], [0], [1], [0, 0, 1, 1], [], []>} : vector<384x128xbf16>, vector<128x128xbf16>, vector<384x128xf32> -> vector<384x128xf32>
    %21 = arith.addf %17, %20 : vector<384x128xf32>
    %22 = vector.extract_strided_slice %8 {offsets = [24, 0], sizes = [384, 128], strides = [1, 1]} : vector<456x128xbf16> to vector<384x128xbf16>
    %c384 = arith.constant 384 : index
    %c0_14 = arith.constant 0 : index
    %23 = vector.load %arg3[%c384, %c0_14] : memref<1152x128xbf16, #tpu.memory_space<vmem>>, vector<128x128xbf16>
    %cst_15 = arith.constant dense<0.000000e+00> : vector<384x128xf32>
    %24 = tpu.matmul %22, %23, %cst_15 {dimension_numbers = #tpu.dot_dimension_numbers<[1], [0], [0], [1], [0, 0, 1, 1], [], []>} : vector<384x128xbf16>, vector<128x128xbf16>, vector<384x128xf32> -> vector<384x128xf32>
    %25 = arith.addf %21, %24 : vector<384x128xf32>
    %26 = vector.extract_strided_slice %8 {offsets = [25, 0], sizes = [384, 128], strides = [1, 1]} : vector<456x128xbf16> to vector<384x128xbf16>
    %c512 = arith.constant 512 : index
    %c0_16 = arith.constant 0 : index
    %27 = vector.load %arg3[%c512, %c0_16] : memref<1152x128xbf16, #tpu.memory_space<vmem>>, vector<128x128xbf16>
    %cst_17 = arith.constant dense<0.000000e+00> : vector<384x128xf32>
    %28 = tpu.matmul %26, %27, %cst_17 {dimension_numbers = #tpu.dot_dimension_numbers<[1], [0], [0], [1], [0, 0, 1, 1], [], []>} : vector<384x128xbf16>, vector<128x128xbf16>, vector<384x128xf32> -> vector<384x128xf32>
    %29 = arith.addf %25, %28 : vector<384x128xf32>
    %30 = vector.extract_strided_slice %8 {offsets = [26, 0], sizes = [384, 128], strides = [1, 1]} : vector<456x128xbf16> to vector<384x128xbf16>
    %c640 = arith.constant 640 : index
    %c0_18 = arith.constant 0 : index
    %31 = vector.load %arg3[%c640, %c0_18] : memref<1152x128xbf16, #tpu.memory_space<vmem>>, vector<128x128xbf16>
    %cst_19 = arith.constant dense<0.000000e+00> : vector<384x128xf32>
    %32 = tpu.matmul %30, %31, %cst_19 {dimension_numbers = #tpu.dot_dimension_numbers<[1], [0], [0], [1], [0, 0, 1, 1], [], []>} : vector<384x128xbf16>, vector<128x128xbf16>, vector<384x128xf32> -> vector<384x128xf32>
    %33 = arith.addf %29, %32 : vector<384x128xf32>
    %34 = vector.extract_strided_slice %8 {offsets = [48, 0], sizes = [384, 128], strides = [1, 1]} : vector<456x128xbf16> to vector<384x128xbf16>
    %c768 = arith.constant 768 : index
    %c0_20 = arith.constant 0 : index
    %35 = vector.load %arg3[%c768, %c0_20] : memref<1152x128xbf16, #tpu.memory_space<vmem>>, vector<128x128xbf16>
    %cst_21 = arith.constant dense<0.000000e+00> : vector<384x128xf32>
    %36 = tpu.matmul %34, %35, %cst_21 {dimension_numbers = #tpu.dot_dimension_numbers<[1], [0], [0], [1], [0, 0, 1, 1], [], []>} : vector<384x128xbf16>, vector<128x128xbf16>, vector<384x128xf32> -> vector<384x128xf32>
    %37 = arith.addf %33, %36 : vector<384x128xf32>
    %38 = vector.extract_strided_slice %8 {offsets = [49, 0], sizes = [384, 128], strides = [1, 1]} : vector<456x128xbf16> to vector<384x128xbf16>
    %c896 = arith.constant 896 : index
    %c0_22 = arith.constant 0 : index
    %39 = vector.load %arg3[%c896, %c0_22] : memref<1152x128xbf16, #tpu.memory_space<vmem>>, vector<128x128xbf16>
    %cst_23 = arith.constant dense<0.000000e+00> : vector<384x128xf32>
    %40 = tpu.matmul %38, %39, %cst_23 {dimension_numbers = #tpu.dot_dimension_numbers<[1], [0], [0], [1], [0, 0, 1, 1], [], []>} : vector<384x128xbf16>, vector<128x128xbf16>, vector<384x128xf32> -> vector<384x128xf32>
    %41 = arith.addf %37, %40 : vector<384x128xf32>
    %42 = vector.extract_strided_slice %8 {offsets = [50, 0], sizes = [384, 128], strides = [1, 1]} : vector<456x128xbf16> to vector<384x128xbf16>
    %c1024 = arith.constant 1024 : index
    %c0_24 = arith.constant 0 : index
    %43 = vector.load %arg3[%c1024, %c0_24] : memref<1152x128xbf16, #tpu.memory_space<vmem>>, vector<128x128xbf16>
    %cst_25 = arith.constant dense<0.000000e+00> : vector<384x128xf32>
    %44 = tpu.matmul %42, %43, %cst_25 {dimension_numbers = #tpu.dot_dimension_numbers<[1], [0], [0], [1], [0, 0, 1, 1], [], []>} : vector<384x128xbf16>, vector<128x128xbf16>, vector<384x128xf32> -> vector<384x128xf32>
    %45 = arith.addf %41, %44 : vector<384x128xf32>
    %c0_26 = arith.constant 0 : index
    %c0_27 = arith.constant 0 : index
    %46 = vector.load %arg4[%c0_26, %c0_27] : memref<1x128xf32, #tpu.memory_space<vmem>>, vector<1x128xf32>
    %47 = vector.broadcast %46 : vector<1x128xf32> to vector<384x128xf32>
    %48 = arith.addf %45, %47 : vector<384x128xf32>
    %49 = vector.shape_cast %48 : vector<384x128xf32> to vector<192x2x128xf32>
    %50 = vector.extract_strided_slice %49 {offsets = [0, 0, 0], sizes = [192, 1, 128], strides = [1, 1, 1]} : vector<192x2x128xf32> to vector<192x1x128xf32>
    %51 = vector.shape_cast %50 : vector<192x1x128xf32> to vector<192x128xf32>
    %52 = vector.extract_strided_slice %49 {offsets = [0, 1, 0], sizes = [192, 1, 128], strides = [1, 1, 1]} : vector<192x2x128xf32> to vector<192x1x128xf32>
    %53 = vector.shape_cast %52 : vector<192x1x128xf32> to vector<192x128xf32>
    %54 = arith.addf %51, %53 : vector<192x128xf32>
    %55 = vector.shape_cast %54 : vector<192x128xf32> to vector<8x2x12x128xf32>
    %56 = vector.extract_strided_slice %55 {offsets = [0, 0, 0, 0], sizes = [8, 1, 12, 128], strides = [1, 1, 1, 1]} : vector<8x2x12x128xf32> to vector<8x1x12x128xf32>
    %57 = vector.shape_cast %56 : vector<8x1x12x128xf32> to vector<8x12x128xf32>
    %58 = vector.extract_strided_slice %55 {offsets = [0, 1, 0, 0], sizes = [8, 1, 12, 128], strides = [1, 1, 1, 1]} : vector<8x2x12x128xf32> to vector<8x1x12x128xf32>
    %59 = vector.shape_cast %58 : vector<8x1x12x128xf32> to vector<8x12x128xf32>
    %60 = arith.addf %57, %59 : vector<8x12x128xf32>
    %61 = vector.extract_strided_slice %60 {offsets = [0, 0, 0], sizes = [8, 8, 128], strides = [1, 1, 1]} : vector<8x12x128xf32> to vector<8x8x128xf32>
    %c0_28 = arith.constant 0 : index
    %c0_29 = arith.constant 0 : index
    %c0_30 = arith.constant 0 : index
    %c0_31 = arith.constant 0 : index
    %62 = vector.load %arg5[%c0_28, %c0_29, %c0_30, %c0_31] : memref<1x8x8x128xbf16, #tpu.memory_space<vmem>>, vector<1x8x8x128xbf16>
    %63 = vector.shape_cast %62 : vector<1x8x8x128xbf16> to vector<8x8x128xbf16>
    %64 = arith.extf %63 : vector<8x8x128xbf16> to vector<8x8x128xf32>
    %65 = arith.addf %61, %64 : vector<8x8x128xf32>
    %c0_32 = arith.constant 0 : index
    %c0_33 = arith.constant 0 : index
    %c0_34 = arith.constant 0 : index
    %c0_35 = arith.constant 0 : index
    %66 = vector.load %arg6[%c0_32, %c0_33, %c0_34, %c0_35] : memref<1x8x8x128xf32, #tpu.memory_space<vmem>>, vector<1x8x8x128xf32>
    %67 = vector.shape_cast %66 : vector<1x8x8x128xf32> to vector<8x8x128xf32>
    %68 = vector.shape_cast %65 : vector<8x8x128xf32> to vector<1x8x8x128xf32>
    tpu.vector_store %arg6[%c0_32, %c0_33, %c0_34, %c0_35], %68 {strides = array<i32>} : memref<1x8x8x128xf32, #tpu.memory_space<vmem>>, vector<1x8x8x128xf32>,
    return
  }
  func.func @transform_0(%arg0: i32, %arg1: i32) -> (i32, i32, i32, i32) {
    %c0_i32 = arith.constant 0 : i32
    %c0_i32_0 = arith.constant 0 : i32
    %c0_i32_1 = arith.constant 0 : i32
    %c0_i32_2 = arith.constant 0 : i32
    return %arg0, %c0_i32, %c0_i32_0, %c0_i32_1 : i32, i32, i32, i32
  }
  func.func @transform_1(%arg0: i32, %arg1: i32) -> (i32, i32) {
    %c0_i32 = arith.constant 0 : i32
    %c0_i32_0 = arith.constant 0 : i32
    return %c0_i32, %arg1 : i32, i32
  }
  func.func @transform_2(%arg0: i32, %arg1: i32) -> (i32, i32) {
    %c0_i32 = arith.constant 0 : i32
    %c0_i32_0 = arith.constant 0 : i32
    return %c0_i32, %arg1 : i32, i32
  }
  func.func @transform_3(%arg0: i32, %arg1: i32) -> (i32, i32, i32, i32) {
    %c0_i32 = arith.constant 0 : i32
    %c0_i32_0 = arith.constant 0 : i32
    %c0_i32_1 = arith.constant 0 : i32
    return %arg0, %c0_i32, %c0_i32_0, %arg1 : i32, i32, i32, i32
  }
  func.func @transform_4(%arg0: i32, %arg1: i32) -> (i32, i32, i32, i32) {
    %c0_i32 = arith.constant 0 : i32
    %c0_i32_0 = arith.constant 0 : i32
    %c0_i32_1 = arith.constant 0 : i32
    return %arg0, %c0_i32, %c0_i32_0, %arg1 : i32, i32, i32, i32
  }
}

module attributes {stable_mosaic.version = 11 : i64} {
  func.func @_stage1_kernel(%arg0: i32, %arg1: i32, %arg2: memref<1x16x16x4xbf16, #tpu.memory_space<vmem>>, %arg3: memref<36x128xbf16, #tpu.memory_space<vmem>>, %arg4: memref<1x128xf32, #tpu.memory_space<vmem>>, %arg5: memref<4x128xbf16, #tpu.memory_space<vmem>>, %arg6: memref<1x128xf32, #tpu.memory_space<vmem>>, %arg7: memref<1x16x16x128xbf16, #tpu.memory_space<vmem>>, %arg8: memref<1x8x8x128xbf16, #tpu.memory_space<vmem>>) attributes {dimension_semantics = [#tpu.dimension_semantics<parallel>, #tpu.dimension_semantics<parallel>], iteration_bounds = array<i64: 2, 1>, scalar_prefetch = 0 : i64, scratch_operands = 0 : i64, tpu.core_type = #tpu.core_type<tc>, window_params = [{transform_indices = @transform_0, window_bounds = array<i64: 1, 16, 16, 4>}, {transform_indices = @transform_1, window_bounds = array<i64: 36, 128>}, {transform_indices = @transform_2, window_bounds = array<i64: 1, 128>}, {transform_indices = @transform_3, window_bounds = array<i64: 4, 128>}, {transform_indices = @transform_4, window_bounds = array<i64: 1, 128>}, {transform_indices = @transform_5, window_bounds = array<i64: 1, 16, 16, 128>}, {transform_indices = @transform_6, window_bounds = array<i64: 1, 8, 8, 128>}]} {
    %c0 = arith.constant 0 : index
    %c0_0 = arith.constant 0 : index
    %c0_1 = arith.constant 0 : index
    %c0_2 = arith.constant 0 : index
    %0 = vector.load %arg2[%c0, %c0_0, %c0_1, %c0_2] : memref<1x16x16x4xbf16, #tpu.memory_space<vmem>>, vector<1x16x16x4xbf16>
    %1 = vector.shape_cast %0 : vector<1x16x16x4xbf16> to vector<16x16x4xbf16>
    %cst = arith.constant 0.000000e+00 : bf16
    %2 = vector.broadcast %cst : bf16 to vector<16x16x4xbf16>
    %3 = arith.maximumf %1, %2 : vector<16x16x4xbf16>
    %cst_3 = arith.constant 0.000000e+00 : bf16
    %4 = vector.broadcast %cst_3 : bf16 to vector<16x1x4xbf16>
    %cst_4 = arith.constant 0.000000e+00 : bf16
    %5 = vector.broadcast %cst_4 : bf16 to vector<16x7x4xbf16>
    %6 = tpu.concatenate %4, %3, %5 in 1 : vector<16x1x4xbf16>, vector<16x16x4xbf16>, vector<16x7x4xbf16> -> vector<16x24x4xbf16>
    %cst_5 = arith.constant 0.000000e+00 : bf16
    %7 = vector.broadcast %cst_5 : bf16 to vector<1x24x4xbf16>
    %cst_6 = arith.constant 0.000000e+00 : bf16
    %8 = vector.broadcast %cst_6 : bf16 to vector<2x24x4xbf16>
    %9 = tpu.concatenate %7, %6, %8 in 0 : vector<1x24x4xbf16>, vector<16x24x4xbf16>, vector<2x24x4xbf16> -> vector<19x24x4xbf16>
    %10 = vector.shape_cast %9 : vector<19x24x4xbf16> to vector<456x4xbf16>
    %11 = vector.extract_strided_slice %10 {offsets = [0, 0], sizes = [384, 4], strides = [1, 1]} : vector<456x4xbf16> to vector<384x4xbf16>
    %12 = vector.extract_strided_slice %10 {offsets = [1, 0], sizes = [384, 4], strides = [1, 1]} : vector<456x4xbf16> to vector<384x4xbf16>
    %13 = vector.extract_strided_slice %10 {offsets = [2, 0], sizes = [384, 4], strides = [1, 1]} : vector<456x4xbf16> to vector<384x4xbf16>
    %14 = vector.extract_strided_slice %10 {offsets = [24, 0], sizes = [384, 4], strides = [1, 1]} : vector<456x4xbf16> to vector<384x4xbf16>
    %15 = vector.extract_strided_slice %10 {offsets = [25, 0], sizes = [384, 4], strides = [1, 1]} : vector<456x4xbf16> to vector<384x4xbf16>
    %16 = vector.extract_strided_slice %10 {offsets = [26, 0], sizes = [384, 4], strides = [1, 1]} : vector<456x4xbf16> to vector<384x4xbf16>
    %17 = vector.extract_strided_slice %10 {offsets = [48, 0], sizes = [384, 4], strides = [1, 1]} : vector<456x4xbf16> to vector<384x4xbf16>
    %18 = vector.extract_strided_slice %10 {offsets = [49, 0], sizes = [384, 4], strides = [1, 1]} : vector<456x4xbf16> to vector<384x4xbf16>
    %19 = vector.extract_strided_slice %10 {offsets = [50, 0], sizes = [384, 4], strides = [1, 1]} : vector<456x4xbf16> to vector<384x4xbf16>
    %20 = tpu.concatenate %11, %12, %13, %14, %15, %16, %17, %18, %19 in 1 : vector<384x4xbf16>, vector<384x4xbf16>, vector<384x4xbf16>, vector<384x4xbf16>, vector<384x4xbf16>, vector<384x4xbf16>, vector<384x4xbf16>, vector<384x4xbf16>, vector<384x4xbf16> -> vector<384x36xbf16>
    %c0_7 = arith.constant 0 : index
    %c0_8 = arith.constant 0 : index
    %21 = vector.load %arg3[%c0_7, %c0_8] : memref<36x128xbf16, #tpu.memory_space<vmem>>, vector<36x128xbf16>
    %cst_9 = arith.constant dense<0.000000e+00> : vector<384x128xf32>
    %22 = tpu.matmul %20, %21, %cst_9 {dimension_numbers = #tpu.dot_dimension_numbers<[1], [0], [0], [1], [0, 0, 1, 1], [], []>} : vector<384x36xbf16>, vector<36x128xbf16>, vector<384x128xf32> -> vector<384x128xf32>
    %c0_10 = arith.constant 0 : index
    %c0_11 = arith.constant 0 : index
    %23 = vector.load %arg4[%c0_10, %c0_11] : memref<1x128xf32, #tpu.memory_space<vmem>>, vector<1x128xf32>
    %24 = vector.broadcast %23 : vector<1x128xf32> to vector<384x128xf32>
    %25 = arith.addf %22, %24 : vector<384x128xf32>
    %cst_12 = arith.constant 0.000000e+00 : f32
    %26 = vector.broadcast %cst_12 : f32 to vector<384x128xf32>
    %27 = arith.maximumf %25, %26 : vector<384x128xf32>
    %28 = vector.shape_cast %27 : vector<384x128xf32> to vector<16x24x128xf32>
    %29 = vector.extract_strided_slice %28 {offsets = [0, 0, 0], sizes = [16, 16, 128], strides = [1, 1, 1]} : vector<16x24x128xf32> to vector<16x16x128xf32>
    %30 = arith.truncf %29 : vector<16x16x128xf32> to vector<16x16x128xbf16>
    %c0_13 = arith.constant 0 : index
    %c0_14 = arith.constant 0 : index
    %c0_15 = arith.constant 0 : index
    %c0_16 = arith.constant 0 : index
    %31 = vector.load %arg7[%c0_13, %c0_14, %c0_15, %c0_16] : memref<1x16x16x128xbf16, #tpu.memory_space<vmem>>, vector<1x16x16x128xbf16>
    %32 = vector.shape_cast %31 : vector<1x16x16x128xbf16> to vector<16x16x128xbf16>
    %33 = vector.shape_cast %30 : vector<16x16x128xbf16> to vector<1x16x16x128xbf16>
    tpu.vector_store %arg7[%c0_13, %c0_14, %c0_15, %c0_16], %33 {strides = array<i32>} : memref<1x16x16x128xbf16, #tpu.memory_space<vmem>>, vector<1x16x16x128xbf16>,
    %34 = vector.shape_cast %3 : vector<16x16x4xbf16> to vector<256x4xbf16>
    %c0_17 = arith.constant 0 : index
    %c0_18 = arith.constant 0 : index
    %35 = vector.load %arg5[%c0_17, %c0_18] : memref<4x128xbf16, #tpu.memory_space<vmem>>, vector<4x128xbf16>
    %cst_19 = arith.constant dense<0.000000e+00> : vector<256x128xf32>
    %36 = tpu.matmul %34, %35, %cst_19 {dimension_numbers = #tpu.dot_dimension_numbers<[1], [0], [0], [1], [0, 0, 1, 1], [], []>} : vector<256x4xbf16>, vector<4x128xbf16>, vector<256x128xf32> -> vector<256x128xf32>
    %c0_20 = arith.constant 0 : index
    %c0_21 = arith.constant 0 : index
    %37 = vector.load %arg6[%c0_20, %c0_21] : memref<1x128xf32, #tpu.memory_space<vmem>>, vector<1x128xf32>
    %38 = vector.broadcast %37 : vector<1x128xf32> to vector<256x128xf32>
    %39 = arith.addf %36, %38 : vector<256x128xf32>
    %40 = vector.shape_cast %39 : vector<256x128xf32> to vector<128x2x128xf32>
    %41 = vector.extract_strided_slice %40 {offsets = [0, 0, 0], sizes = [128, 1, 128], strides = [1, 1, 1]} : vector<128x2x128xf32> to vector<128x1x128xf32>
    %42 = vector.shape_cast %41 : vector<128x1x128xf32> to vector<128x128xf32>
    %43 = vector.extract_strided_slice %40 {offsets = [0, 1, 0], sizes = [128, 1, 128], strides = [1, 1, 1]} : vector<128x2x128xf32> to vector<128x1x128xf32>
    %44 = vector.shape_cast %43 : vector<128x1x128xf32> to vector<128x128xf32>
    %45 = arith.addf %42, %44 : vector<128x128xf32>
    %46 = vector.shape_cast %45 : vector<128x128xf32> to vector<8x2x8x128xf32>
    %47 = vector.extract_strided_slice %46 {offsets = [0, 0, 0, 0], sizes = [8, 1, 8, 128], strides = [1, 1, 1, 1]} : vector<8x2x8x128xf32> to vector<8x1x8x128xf32>
    %48 = vector.shape_cast %47 : vector<8x1x8x128xf32> to vector<8x8x128xf32>
    %49 = vector.extract_strided_slice %46 {offsets = [0, 1, 0, 0], sizes = [8, 1, 8, 128], strides = [1, 1, 1, 1]} : vector<8x2x8x128xf32> to vector<8x1x8x128xf32>
    %50 = vector.shape_cast %49 : vector<8x1x8x128xf32> to vector<8x8x128xf32>
    %51 = arith.addf %48, %50 : vector<8x8x128xf32>
    %52 = arith.truncf %51 : vector<8x8x128xf32> to vector<8x8x128xbf16>
    %c0_22 = arith.constant 0 : index
    %c0_23 = arith.constant 0 : index
    %c0_24 = arith.constant 0 : index
    %c0_25 = arith.constant 0 : index
    %53 = vector.load %arg8[%c0_22, %c0_23, %c0_24, %c0_25] : memref<1x8x8x128xbf16, #tpu.memory_space<vmem>>, vector<1x8x8x128xbf16>
    %54 = vector.shape_cast %53 : vector<1x8x8x128xbf16> to vector<8x8x128xbf16>
    %55 = vector.shape_cast %52 : vector<8x8x128xbf16> to vector<1x8x8x128xbf16>
    tpu.vector_store %arg8[%c0_22, %c0_23, %c0_24, %c0_25], %55 {strides = array<i32>} : memref<1x8x8x128xbf16, #tpu.memory_space<vmem>>, vector<1x8x8x128xbf16>,
    return
  }
  func.func @transform_0(%arg0: i32, %arg1: i32) -> (i32, i32, i32, i32) {
    %c0_i32 = arith.constant 0 : i32
    %c0_i32_0 = arith.constant 0 : i32
    %c0_i32_1 = arith.constant 0 : i32
    %c0_i32_2 = arith.constant 0 : i32
    return %arg0, %c0_i32, %c0_i32_0, %c0_i32_1 : i32, i32, i32, i32
  }
  func.func @transform_1(%arg0: i32, %arg1: i32) -> (i32, i32) {
    %c0_i32 = arith.constant 0 : i32
    %c0_i32_0 = arith.constant 0 : i32
    return %c0_i32, %arg1 : i32, i32
  }
  func.func @transform_2(%arg0: i32, %arg1: i32) -> (i32, i32) {
    %c0_i32 = arith.constant 0 : i32
    %c0_i32_0 = arith.constant 0 : i32
    return %c0_i32, %arg1 : i32, i32
  }
  func.func @transform_3(%arg0: i32, %arg1: i32) -> (i32, i32) {
    %c0_i32 = arith.constant 0 : i32
    %c0_i32_0 = arith.constant 0 : i32
    return %c0_i32, %arg1 : i32, i32
  }
  func.func @transform_4(%arg0: i32, %arg1: i32) -> (i32, i32) {
    %c0_i32 = arith.constant 0 : i32
    %c0_i32_0 = arith.constant 0 : i32
    return %c0_i32, %arg1 : i32, i32
  }
  func.func @transform_5(%arg0: i32, %arg1: i32) -> (i32, i32, i32, i32) {
    %c0_i32 = arith.constant 0 : i32
    %c0_i32_0 = arith.constant 0 : i32
    %c0_i32_1 = arith.constant 0 : i32
    return %arg0, %c0_i32, %c0_i32_0, %arg1 : i32, i32, i32, i32
  }
  func.func @transform_6(%arg0: i32, %arg1: i32) -> (i32, i32, i32, i32) {
    %c0_i32 = arith.constant 0 : i32
    %c0_i32_0 = arith.constant 0 : i32
    %c0_i32_1 = arith.constant 0 : i32
    return %arg0, %c0_i32, %c0_i32_0, %arg1 : i32, i32, i32, i32
  }
}

</mosaic_0001>

<llo_original>
// kernel: disc_block_forward.2
$region0: #{disc_block_forward.2}
  #allocation0 [shape = 'u32[]', space=smem, size = 0x4, offset = 0x4, fixed_abs, tag = 'smem constant byte address 0x4 - core index']
  #allocation1 [shape = 'u32[144,128]{1,0:T(1,128)}', space=vmem, size = 0x12000, scoped, tag = 'internal scratch']
  %s0 = inlined_call_operand.vmem [shape: bf16[2,16,16,4], index: 0, kind: input, shape index: {}]
  %s1 = inlined_call_operand.vmem [shape: bf16[36,128], index: 1, kind: input, shape index: {}]
  %s2 = inlined_call_operand.vmem [shape: f32[1,128], index: 2, kind: input, shape index: {}]
  %s3 = inlined_call_operand.vmem [shape: bf16[4,128], index: 3, kind: input, shape index: {}]
  %s4 = inlined_call_operand.vmem [shape: f32[1,128], index: 4, kind: input, shape index: {}]
  %s5 = inlined_call_operand.vmem [shape: bf16[2,16,16,128], index: 5, kind: output, shape index: {0}]
  %s6 = inlined_call_operand.vmem [shape: bf16[2,8,8,128], index: 6, kind: output, shape index: {1}]
  %7 = xla_tuple %s5, %s6
  %s8 = sld [smem:[#allocation0]]
  $region61: #{disc_block_forward.2} parent=0
    _
  %s10 = ssub.s32 1, %s8
  %s11 = scalar_select 0, %s10, %s8
  loop: start=0, step=1, limit=4
  $region2: #{disc_block_forward.2} parent=0 // loop_pre_header
    _
  $region3: #{disc_block_forward.2} parent=0 // loop_header
    %s13 = sphi 0, %s17
    %p14 = scmp.ge.s32.totalorder %s13, 4
    %s20 = sphi 0, %s32
    %s21 = sphi 0, %s28
    %s22 = sphi 0, %s20
    %s23 = sphi 0, %s21
    %s24 = sphi 0, %s22
    %s25 = sphi 0, %s23
    %s35 = sphi 0, %s37
    %s38 = sphi 0, %s35
    %s39 = sphi 0, %s38
    %s55 = sphi 0, %s39
    %s61 = sphi 0, %s63
    %s64 = sphi 0, %s61
    %s65 = sphi 0, %s64
    %s81 = sphi 0, %s65
    %s87 = sphi 0, %s89
    %s90 = sphi 0, %s87
    %s91 = sphi 0, %s90
    %s107 = sphi 0, %s91
    %s113 = sphi 0, %s115
    %s116 = sphi 0, %s113
    %s117 = sphi 0, %s116
    %s133 = sphi 0, %s117
    %s139 = sphi 0, %s141
    %s142 = sphi 0, %s139
    %s143 = sphi 0, %s142
    %s159 = sphi 0, %s143
    %s167 = sphi 0, %s169
    %s170 = sphi 0, %s167
    %s171 = sphi 0, %s170
    %s187 = sphi 0, %s171
    %s195 = sphi 0, %s197
    %s198 = sphi 0, %s195
    %s199 = sphi 0, %s198
    %s215 = sphi 0, %s199
  $region4: #{disc_block_forward.2} parent=0 // loop_header_branch
    %16 = sbr.rel (%p14) target = $region8
  $region5: #{disc_block_forward.2} parent=0 // loop_body
    %s18 = ssub.s32 %s13, 1
    %s19 = ssub.s32 %s13, 2
    %s26 = sadd.s32 1, %s21
    %p27 = scmp.ge.s32.totalorder %s26, 1
    %s28 = scalar_select %p27, 0, %s26
    %s29 = sadd.s32 1, %s20
    %s30 = scalar_select %p27, %s29, %s20
    %p31 = scmp.ge.s32.totalorder %s30, 2
    %s32 = scalar_select %p31, 0, %s30
    %s33 = ssub.s32 %s20, %s32
    %p34 = scmp.eq.s32.totalorder %s33, 0
    %s36 = sadd.s32 %s35, 1
    %s37 = scalar_select %p34, %s35, %s36
    %p40 = pneg %p34
    %p41 = scmp.eq.s32.totalorder %s13, 1
    %p42 = por %p40, %p41
    %p43 = scmp.ne.s32.totalorder %s35, %s38
    %p44 = scmp.eq.s32.totalorder %s13, 0
    %p45 = por %p43, %p44
    %p46 = scmp.ne.s32.totalorder %s35, %s38
    %p47 = scmp.eq.s32.totalorder %s18, 1
    %p48 = por %p46, %p47
    %p49 = scmp.ne.s32.totalorder %s38, %s39
    %p50 = scmp.eq.s32.totalorder %s18, 0
    %p51 = por %p49, %p50
    %p52 = scmp.ne.s32.totalorder %s38, %s39
    %p53 = scmp.eq.s32.totalorder %s19, 1
    %p54 = por %p52, %p53
    %p56 = scmp.ne.s32.totalorder %s39, %s55
    %p57 = scmp.eq.s32.totalorder %s19, 0
    %p58 = por %p56, %p57
    %s59 = ssub.s32 %s21, %s28
    %p60 = scmp.eq.s32.totalorder %s59, 0
    %s62 = sadd.s32 %s61, 1
    %s63 = scalar_select %p60, %s61, %s62
    %p66 = pneg %p60
    %p67 = scmp.eq.s32.totalorder %s13, 1
    %p68 = por %p66, %p67
    %p69 = scmp.ne.s32.totalorder %s61, %s64
    %p70 = scmp.eq.s32.totalorder %s13, 0
    %p71 = por %p69, %p70
    %p72 = scmp.ne.s32.totalorder %s61, %s64
    %p73 = scmp.eq.s32.totalorder %s18, 1
    %p74 = por %p72, %p73
    %p75 = scmp.ne.s32.totalorder %s64, %s65
    %p76 = scmp.eq.s32.totalorder %s18, 0
    %p77 = por %p75, %p76
    %p78 = scmp.ne.s32.totalorder %s64, %s65
    %p79 = scmp.eq.s32.totalorder %s19, 1
    %p80 = por %p78, %p79
    %p82 = scmp.ne.s32.totalorder %s65, %s81
    %p83 = scmp.eq.s32.totalorder %s19, 0
    %p84 = por %p82, %p83
    %s85 = ssub.s32 %s21, %s28
    %p86 = scmp.eq.s32.totalorder %s85, 0
    %s88 = sadd.s32 %s87, 1
    %s89 = scalar_select %p86, %s87, %s88
    %p92 = pneg %p86
    %p93 = scmp.eq.s32.totalorder %s13, 1
    %p94 = por %p92, %p93
    %p95 = scmp.ne.s32.totalorder %s87, %s90
    %p96 = scmp.eq.s32.totalorder %s13, 0
    %p97 = por %p95, %p96
    %p98 = scmp.ne.s32.totalorder %s87, %s90
    %p99 = scmp.eq.s32.totalorder %s18, 1
    %p100 = por %p98, %p99
    %p101 = scmp.ne.s32.totalorder %s90, %s91
    %p102 = scmp.eq.s32.totalorder %s18, 0
    %p103 = por %p101, %p102
    %p104 = scmp.ne.s32.totalorder %s90, %s91
    %p105 = scmp.eq.s32.totalorder %s19, 1
    %p106 = por %p104, %p105
    %p108 = scmp.ne.s32.totalorder %s91, %s107
    %p109 = scmp.eq.s32.totalorder %s19, 0
    %p110 = por %p108, %p109
    %s111 = ssub.s32 %s21, %s28
    %p112 = scmp.eq.s32.totalorder %s111, 0
    %s114 = sadd.s32 %s113, 1
    %s115 = scalar_select %p112, %s113, %s114
    %p118 = pneg %p112
    %p119 = scmp.eq.s32.totalorder %s13, 1
    %p120 = por %p118, %p119
    %p121 = scmp.ne.s32.totalorder %s113, %s116
    %p122 = scmp.eq.s32.totalorder %s13, 0
    %p123 = por %p121, %p122
    %p124 = scmp.ne.s32.totalorder %s113, %s116
    %p125 = scmp.eq.s32.totalorder %s18, 1
    %p126 = por %p124, %p125
    %p127 = scmp.ne.s32.totalorder %s116, %s117
    %p128 = scmp.eq.s32.totalorder %s18, 0
    %p129 = por %p127, %p128
    %p130 = scmp.ne.s32.totalorder %s116, %s117
    %p131 = scmp.eq.s32.totalorder %s19, 1
    %p132 = por %p130, %p131
    %p134 = scmp.ne.s32.totalorder %s117, %s133
    %p135 = scmp.eq.s32.totalorder %s19, 0
    %p136 = por %p134, %p135
    %s137 = ssub.s32 %s21, %s28
    %p138 = scmp.eq.s32.totalorder %s137, 0
    %s140 = sadd.s32 %s139, 1
    %s141 = scalar_select %p138, %s139, %s140
    %p144 = pneg %p138
    %p145 = scmp.eq.s32.totalorder %s13, 1
    %p146 = por %p144, %p145
    %p147 = scmp.ne.s32.totalorder %s139, %s142
    %p148 = scmp.eq.s32.totalorder %s13, 0
    %p149 = por %p147, %p148
    %p150 = scmp.ne.s32.totalorder %s139, %s142
    %p151 = scmp.eq.s32.totalorder %s18, 1
    %p152 = por %p150, %p151
    %p153 = scmp.ne.s32.totalorder %s142, %s143
    %p154 = scmp.eq.s32.totalorder %s18, 0
    %p155 = por %p153, %p154
    %p156 = scmp.ne.s32.totalorder %s142, %s143
    %p157 = scmp.eq.s32.totalorder %s19, 1
    %p158 = por %p156, %p157
    %p160 = scmp.ne.s32.totalorder %s143, %s159
    %p161 = scmp.eq.s32.totalorder %s19, 0
    %p162 = por %p160, %p161
    %s163 = ssub.s32 %s20, %s32
    %s164 = ssub.s32 %s21, %s28
    %s165 = sor.u32 %s163, %s164
    %p166 = scmp.eq.s32.totalorder %s165, 0
    %s168 = sadd.s32 %s167, 1
    %s169 = scalar_select %p166, %s167, %s168
    %p172 = pneg %p166
    %p173 = scmp.eq.s32.totalorder %s13, 1
    %p174 = por %p172, %p173
    %p175 = scmp.ne.s32.totalorder %s167, %s170
    %p176 = scmp.eq.s32.totalorder %s13, 0
    %p177 = por %p175, %p176
    %p178 = scmp.ne.s32.totalorder %s167, %s170
    %p179 = scmp.eq.s32.totalorder %s18, 1
    %p180 = por %p178, %p179
    %p181 = scmp.ne.s32.totalorder %s170, %s171
    %p182 = scmp.eq.s32.totalorder %s18, 0
    %p183 = por %p181, %p182
    %p184 = scmp.ne.s32.totalorder %s170, %s171
    %p185 = scmp.eq.s32.totalorder %s19, 1
    %p186 = por %p184, %p185
    %p188 = scmp.ne.s32.totalorder %s171, %s187
    %p189 = scmp.eq.s32.totalorder %s19, 0
    %p190 = por %p188, %p189
    %s191 = ssub.s32 %s20, %s32
    %s192 = ssub.s32 %s21, %s28
    %s193 = sor.u32 %s191, %s192
    %p194 = scmp.eq.s32.totalorder %s193, 0
    %s196 = sadd.s32 %s195, 1
    %s197 = scalar_select %p194, %s195, %s196
    %p200 = pneg %p194
    %p201 = scmp.eq.s32.totalorder %s13, 1
    %p202 = por %p200, %p201
    %p203 = scmp.ne.s32.totalorder %s195, %s198
    %p204 = scmp.eq.s32.totalorder %s13, 0
    %p205 = por %p203, %p204
    %p206 = scmp.ne.s32.totalorder %s195, %s198
    %p207 = scmp.eq.s32.totalorder %s18, 1
    %p208 = por %p206, %p207
    %p209 = scmp.ne.s32.totalorder %s198, %s199
    %p210 = scmp.eq.s32.totalorder %s18, 0
    %p211 = por %p209, %p210
    %p212 = scmp.ne.s32.totalorder %s198, %s199
    %p213 = scmp.eq.s32.totalorder %s19, 1
    %p214 = por %p212, %p213
    %p216 = scmp.ne.s32.totalorder %s199, %s215
    %p217 = scmp.eq.s32.totalorder %s19, 0
    %p218 = por %p216, %p217
    %p219 = scmp.le.s32.totalorder 1, %s13
    %p220 = scmp.lt.s32.totalorder %s13, 3
    %p221 = pnand %p219, %p220
    %p222 = pneg %p221
    // Predicated region
    $region9: #{disc_block_forward.2} parent=5 // pred_check
      _
    $region10: #{disc_block_forward.2} parent=5 // pred_check_branch
      %224 = sbr.rel (%p221) target = $region12
    $region11: #{disc_block_forward.2} parent=5 // pred_region
      %s225 = ssub.s32 %s13, 1
      // Predicated region
      $region13: #{disc_block_forward.2} parent=11 // pred_check
        %p226 = pneg %p77
      $region14: #{disc_block_forward.2} parent=11 // pred_check_branch
        %228 = sbr.rel (%p226) target = $region16
      $region15: #{disc_block_forward.2} parent=11 // pred_region
        %p229 = scmp.lt.s32.totalorder %s23, 0
        %s230 = scalar_select %p229, %s23, 0
        %s231 = smul.addr %s230, 4
        %s232 = scalar_lea.vmem %s1, %s231
      $region16: #{disc_block_forward.2} parent=11 // pred_fallthru
        _
      // Predicated region
      $region17: #{disc_block_forward.2} parent=11 // pred_check
        %p233 = pneg %p103
      $region18: #{disc_block_forward.2} parent=11 // pred_check_branch
        %235 = sbr.rel (%p233) target = $region20
      $region19: #{disc_block_forward.2} parent=11 // pred_region
        %p236 = scmp.lt.s32.totalorder %s23, 0
        %s237 = scalar_select %p236, %s23, 0
        %s238 = scalar_lea.vmem %s2, %s237
      $region20: #{disc_block_forward.2} parent=11 // pred_fallthru
        _
      // Predicated region
      $region21: #{disc_block_forward.2} parent=11 // pred_check
        %p239 = pneg %p129
      $region22: #{disc_block_forward.2} parent=11 // pred_check_branch
        %241 = sbr.rel (%p239) target = $region24
      $region23: #{disc_block_forward.2} parent=11 // pred_region
        %p242 = scmp.lt.s32.totalorder %s23, 0
        %s243 = scalar_select %p242, %s23, 0
        %s244 = smul.addr %s243, 2
        %s245 = scalar_lea.vmem %s3, %s244
      $region24: #{disc_block_forward.2} parent=11 // pred_fallthru
        _
      // Predicated region
      $region25: #{disc_block_forward.2} parent=11 // pred_check
        %p246 = pneg %p155
      $region26: #{disc_block_forward.2} parent=11 // pred_check_branch
        %248 = sbr.rel (%p246) target = $region28
      $region27: #{disc_block_forward.2} parent=11 // pred_region
        %p249 = scmp.lt.s32.totalorder %s23, 0
        %s250 = scalar_select %p249, %s23, 0
        %s251 = scalar_lea.vmem %s4, %s250
      $region28: #{disc_block_forward.2} parent=11 // pred_fallthru
        _
    $region12: #{disc_block_forward.2} parent=5 // pred_fallthru
      _
    %p252 = scmp.lt.s32.totalorder %s13, 2
    // Predicated region
    $region29: #{disc_block_forward.2} parent=5 // pred_check
      %p253 = pneg %p252
    $region30: #{disc_block_forward.2} parent=5 // pred_check_branch
      %255 = sbr.rel (%p253) target = $region32
    $region31: #{disc_block_forward.2} parent=5 // pred_region
      // Predicated region
      $region33: #{disc_block_forward.2} parent=31 // pred_check
        %p256 = pneg %p45
      $region34: #{disc_block_forward.2} parent=31 // pred_check_branch
        %258 = sbr.rel (%p256) target = $region36
      $region35: #{disc_block_forward.2} parent=31 // pred_region
        %p259 = scmp.lt.s32.totalorder %s20, 1
        %s260 = scalar_select %p259, %s20, 1
        %s261 = smul.addr %s260, 32
        %s262 = smul.addr %s261, 4
        %s263 = scalar_lea.vmem %s0, %s262
      $region36: #{disc_block_forward.2} parent=31 // pred_fallthru
        _
    $region32: #{disc_block_forward.2} parent=5 // pred_fallthru
      _
    %p264 = scmp.le.s32.totalorder 1, %s13
    %p265 = scmp.lt.s32.totalorder %s13, 3
    %p266 = pnand %p264, %p265
    %p267 = pneg %p266
    // Predicated region
    $region37: #{disc_block_forward.2} parent=5 // pred_check
      _
    $region38: #{disc_block_forward.2} parent=5 // pred_check_branch
      %269 = sbr.rel (%p266) target = $region40
    $region39: #{disc_block_forward.2} parent=5 // pred_region
      %s270 = ssub.s32 %s13, 1
      %p271 = scmp.lt.s32.totalorder %s22, 1
      %s272 = scalar_select %p271, %s22, 1
      %s273 = smul.addr %s272, 32
      %s274 = smul.addr %s273, 4
      %s275 = scalar_lea.vmem %s0, %s274
      %p276 = pneg %p51
      %p277 = pneg %p48
      %p278 = scmp.lt.s32.totalorder %s23, 0
      %s279 = scalar_select %p278, %s23, 0
      %s280 = smul.addr %s279, 4
      %s281 = scalar_lea.vmem %s1, %s280
      %p282 = pneg %p77
      %p283 = pneg %p74
      %p284 = scmp.lt.s32.totalorder %s23, 0
      %s285 = scalar_select %p284, %s23, 0
      %s286 = scalar_lea.vmem %s2, %s285
      %p287 = pneg %p103
      %p288 = pneg %p100
      %p289 = scmp.lt.s32.totalorder %s23, 0
      %s290 = scalar_select %p289, %s23, 0
      %s291 = smul.addr %s290, 2
      %s292 = scalar_lea.vmem %s3, %s291
      %p293 = pneg %p129
      %p294 = pneg %p126
      %p295 = scmp.lt.s32.totalorder %s23, 0
      %s296 = scalar_select %p295, %s23, 0
      %s297 = scalar_lea.vmem %s4, %s296
      %p298 = pneg %p155
      %p299 = pneg %p152
      %p300 = pneg %p183
      %p301 = pneg %p180
      %p302 = scmp.lt.s32.totalorder %s22, 1
      %s303 = scalar_select %p302, %s22, 1
      %p304 = scmp.lt.s32.totalorder %s23, 0
      %s305 = scalar_select %p304, %s23, 0
      %s306 = smul.addr %s303, 32
      %s307 = sadd.s32 %s305, %s306
      %s308 = smul.addr %s307, 4
      %s309 = scalar_lea.vmem %s5, %s308
      %p310 = pneg %p211
      %p311 = pneg %p208
      %p312 = scmp.lt.s32.totalorder %s22, 1
      %s313 = scalar_select %p312, %s22, 1
      %p314 = scmp.lt.s32.totalorder %s23, 0
      %s315 = scalar_select %p314, %s23, 0
      %s316 = smul.addr %s313, 8
      %s317 = sadd.s32 %s315, %s316
      %s318 = smul.addr %s317, 4
      %s319 = scalar_lea.vmem %s6, %s318
      %p320 = scmp.lt.s32.totalorder %s22, 1
      %s321 = scalar_select %p320, %s22, 1
      %s322 = smul.addr %s321, 32
      %s323 = smul.addr %s322, 4
      %s324 = scalar_lea.vmem %s0, %s323
      %p325 = scmp.lt.s32.totalorder %s23, 0
      %s326 = scalar_select %p325, %s23, 0
      %s327 = smul.addr %s326, 4
      %s328 = scalar_lea.vmem %s1, %s327
      %p329 = scmp.lt.s32.totalorder %s23, 0
      %s330 = scalar_select %p329, %s23, 0
      %s331 = scalar_lea.vmem %s2, %s330
      %p332 = scmp.lt.s32.totalorder %s23, 0
      %s333 = scalar_select %p332, %s23, 0
      %s334 = smul.addr %s333, 2
      %s335 = scalar_lea.vmem %s3, %s334
      %p336 = scmp.lt.s32.totalorder %s23, 0
      %s337 = scalar_select %p336, %s23, 0
      %s338 = scalar_lea.vmem %s4, %s337
      %p339 = scmp.lt.s32.totalorder %s22, 1
      %s340 = scalar_select %p339, %s22, 1
      %p341 = scmp.lt.s32.totalorder %s23, 0
      %s342 = scalar_select %p341, %s23, 0
      %s343 = smul.addr %s340, 32
      %s344 = sadd.s32 %s342, %s343
      %s345 = smul.addr %s344, 4
      %s346 = scalar_lea.vmem %s5, %s345
      %p347 = scmp.lt.s32.totalorder %s22, 1
      %s348 = scalar_select %p347, %s22, 1
      %p349 = scmp.lt.s32.totalorder %s23, 0
      %s350 = scalar_select %p349, %s23, 0
      %s351 = smul.addr %s348, 8
      %s352 = sadd.s32 %s350, %s351
      %s353 = smul.addr %s352, 4
      %s354 = scalar_lea.vmem %s6, %s353
      %v356 = vld [vmem:[%s324] sm:$0xf]
      %v357 = vld [vmem:[%s324 + $0x4] sm:$0xf]
      %v358 = vld [vmem:[%s324 + $0x8] sm:$0xf]
      %v359 = vld [vmem:[%s324 + $0xc] sm:$0xf]
      %v360 = vld [vmem:[%s324 + $0x10] sm:$0xf]
      %v361 = vld [vmem:[%s324 + $0x14] sm:$0xf]
      %v362 = vld [vmem:[%s324 + $0x18] sm:$0xf]
      %v363 = vld [vmem:[%s324 + $0x1c] sm:$0xf]
      %v364 = vld [vmem:[%s324 + $0x20] sm:$0xf]
      %v365 = vld [vmem:[%s324 + $0x24] sm:$0xf]
      %v366 = vld [vmem:[%s324 + $0x28] sm:$0xf]
      %v367 = vld [vmem:[%s324 + $0x2c] sm:$0xf]
      %v368 = vld [vmem:[%s324 + $0x30] sm:$0xf]
      %v369 = vld [vmem:[%s324 + $0x34] sm:$0xf]
      %v370 = vld [vmem:[%s324 + $0x38] sm:$0xf]
      %v371 = vld [vmem:[%s324 + $0x3c] sm:$0xf]
      %v372 = vld [vmem:[%s324 + $0x40] sm:$0xf]
      %v373 = vld [vmem:[%s324 + $0x44] sm:$0xf]
      %v374 = vld [vmem:[%s324 + $0x48] sm:$0xf]
      %v375 = vld [vmem:[%s324 + $0x4c] sm:$0xf]
      %v376 = vld [vmem:[%s324 + $0x50] sm:$0xf]
      %v377 = vld [vmem:[%s324 + $0x54] sm:$0xf]
      %v378 = vld [vmem:[%s324 + $0x58] sm:$0xf]
      %v379 = vld [vmem:[%s324 + $0x5c] sm:$0xf]
      %v380 = vld [vmem:[%s324 + $0x60] sm:$0xf]
      %v381 = vld [vmem:[%s324 + $0x64] sm:$0xf]
      %v382 = vld [vmem:[%s324 + $0x68] sm:$0xf]
      %v383 = vld [vmem:[%s324 + $0x6c] sm:$0xf]
      %v384 = vld [vmem:[%s324 + $0x70] sm:$0xf]
      %v385 = vld [vmem:[%s324 + $0x74] sm:$0xf]
      %v386 = vld [vmem:[%s324 + $0x78] sm:$0xf]
      %v387 = vld [vmem:[%s324 + $0x7c] sm:$0xf]
      %v388 = vmax.bf16 %v356, 0
      %v389 = vmax.bf16 %v357, 0
      %v390 = vmax.bf16 %v358, 0
      %v391 = vmax.bf16 %v359, 0
      %v392 = vmax.bf16 %v360, 0
      %v393 = vmax.bf16 %v361, 0
      %v394 = vmax.bf16 %v362, 0
      %v395 = vmax.bf16 %v363, 0
      %v396 = vmax.bf16 %v364, 0
      %v397 = vmax.bf16 %v365, 0
      %v398 = vmax.bf16 %v366, 0
      %v399 = vmax.bf16 %v367, 0
      %v400 = vmax.bf16 %v368, 0
      %v401 = vmax.bf16 %v369, 0
      %v402 = vmax.bf16 %v370, 0
      %v403 = vmax.bf16 %v371, 0
      %v404 = vmax.bf16 %v372, 0
      %v405 = vmax.bf16 %v373, 0
      %v406 = vmax.bf16 %v374, 0
      %v407 = vmax.bf16 %v375, 0
      %v408 = vmax.bf16 %v376, 0
      %v409 = vmax.bf16 %v377, 0
      %v410 = vmax.bf16 %v378, 0
      %v411 = vmax.bf16 %v379, 0
      %v412 = vmax.bf16 %v380, 0
      %v413 = vmax.bf16 %v381, 0
      %v414 = vmax.bf16 %v382, 0
      %v415 = vmax.bf16 %v383, 0
      %v416 = vmax.bf16 %v384, 0
      %v417 = vmax.bf16 %v385, 0
      %v418 = vmax.bf16 %v386, 0
      %v419 = vmax.bf16 %v387, 0
      %v452 = vunpack.c.l.b16 %v388
      %v453 = vunpack.c.l.b16 %v389
      %v454 = vunpack.c.l.b16 %v390
      %v455 = vunpack.c.l.b16 %v391
      %v456 = vunpack.c.l.b16 %v392
      %v457 = vunpack.c.l.b16 %v393
      %v458 = vunpack.c.l.b16 %v394
      %v459 = vunpack.c.l.b16 %v395
      %v460 = vunpack.c.l.b16 %v396
      %v461 = vunpack.c.l.b16 %v397
      %v462 = vunpack.c.l.b16 %v398
      %v463 = vunpack.c.l.b16 %v399
      %v464 = vunpack.c.l.b16 %v400
      %v465 = vunpack.c.l.b16 %v401
      %v466 = vunpack.c.l.b16 %v402
      %v467 = vunpack.c.l.b16 %v403
      %v468 = vunpack.c.l.b16 %v404
      %v469 = vunpack.c.l.b16 %v405
      %v470 = vunpack.c.l.b16 %v406
      %v471 = vunpack.c.l.b16 %v407
      %v472 = vunpack.c.l.b16 %v408
      %v473 = vunpack.c.l.b16 %v409
      %v474 = vunpack.c.l.b16 %v410
      %v475 = vunpack.c.l.b16 %v411
      %v476 = vunpack.c.l.b16 %v412
      %v477 = vunpack.c.l.b16 %v413
      %v478 = vunpack.c.l.b16 %v414
      %v479 = vunpack.c.l.b16 %v415
      %v480 = vunpack.c.l.b16 %v416
      %v481 = vunpack.c.l.b16 %v417
      %v482 = vunpack.c.l.b16 %v418
      %v483 = vunpack.c.l.b16 %v419
      %v484 = vpack.c.b16 %v453, %v452
      %v485 = vpack.c.b16 %v455, %v454
      %v486 = vpack.c.b16 %v457, %v456
      %v487 = vpack.c.b16 %v459, %v458
      %v488 = vpack.c.b16 %v461, %v460
      %v489 = vpack.c.b16 %v463, %v462
      %v490 = vpack.c.b16 %v465, %v464
      %v491 = vpack.c.b16 %v467, %v466
      %v492 = vpack.c.b16 %v469, %v468
      %v493 = vpack.c.b16 %v471, %v470
      %v494 = vpack.c.b16 %v473, %v472
      %v495 = vpack.c.b16 %v475, %v474
      %v496 = vpack.c.b16 %v477, %v476
      %v497 = vpack.c.b16 %v479, %v478
      %v498 = vpack.c.b16 %v481, %v480
      %v499 = vpack.c.b16 %v483, %v482
      %v501 = vshrl.u32 %v484, 16
      %v503 = vrot.slane %v501, 7
      %v504 = vshll.u32 %v484, 16
      %v506 = vor.u32 %v503, %v504
      %v508 = vshrl.u32 %v485, 16
      %v510 = vrot.slane %v508, 7
      %v511 = vshll.u32 %v485, 16
      %v513 = vor.u32 %v510, %v511
      %v515 = vshrl.u32 %v486, 16
      %v517 = vrot.slane %v515, 7
      %v518 = vshll.u32 %v486, 16
      %v520 = vor.u32 %v517, %v518
      %v522 = vshrl.u32 %v487, 16
      %v524 = vrot.slane %v522, 7
      %v525 = vshll.u32 %v487, 16
      %v527 = vor.u32 %v524, %v525
      %v529 = vshrl.u32 %v488, 16
      %v531 = vrot.slane %v529, 7
      %v532 = vshll.u32 %v488, 16
      %v534 = vor.u32 %v531, %v532
      %v536 = vshrl.u32 %v489, 16
      %v538 = vrot.slane %v536, 7
      %v539 = vshll.u32 %v489, 16
      %v541 = vor.u32 %v538, %v539
      %v543 = vshrl.u32 %v490, 16
      %v545 = vrot.slane %v543, 7
      %v546 = vshll.u32 %v490, 16
      %v548 = vor.u32 %v545, %v546
      %v550 = vshrl.u32 %v491, 16
      %v552 = vrot.slane %v550, 7
      %v553 = vshll.u32 %v491, 16
      %v555 = vor.u32 %v552, %v553
      %v557 = vshrl.u32 %v492, 16
      %v559 = vrot.slane %v557, 7
      %v560 = vshll.u32 %v492, 16
      %v562 = vor.u32 %v559, %v560
      %v564 = vshrl.u32 %v493, 16
      %v566 = vrot.slane %v564, 7
      %v567 = vshll.u32 %v493, 16
      %v569 = vor.u32 %v566, %v567
      %v571 = vshrl.u32 %v494, 16
      %v573 = vrot.slane %v571, 7
      %v574 = vshll.u32 %v494, 16
      %v576 = vor.u32 %v573, %v574
      %v578 = vshrl.u32 %v495, 16
      %v580 = vrot.slane %v578, 7
      %v581 = vshll.u32 %v495, 16
      %v583 = vor.u32 %v580, %v581
      %v585 = vshrl.u32 %v496, 16
      %v587 = vrot.slane %v585, 7
      %v588 = vshll.u32 %v496, 16
      %v590 = vor.u32 %v587, %v588
      %v592 = vshrl.u32 %v497, 16
      %v594 = vrot.slane %v592, 7
      %v595 = vshll.u32 %v497, 16
      %v597 = vor.u32 %v594, %v595
      %v599 = vshrl.u32 %v498, 16
      %v601 = vrot.slane %v599, 7
      %v602 = vshll.u32 %v498, 16
      %v604 = vor.u32 %v601, %v602
      %v606 = vshrl.u32 %v499, 16
      %v608 = vrot.slane %v606, 7
      %v609 = vshll.u32 %v499, 16
      %v611 = vor.u32 %v608, %v609
      %vm644 = vcmask 1040384
      %vm645 = vsmask.f32 256
      %vm646 = vmand %vm644, %vm645
      %v647 = vsel %vm646, 0, %v506
      %v648 = vsel %vm646, 0, %v513
      %v649 = vsel %vm646, 0, %v520
      %v650 = vsel %vm646, 0, %v527
      %v651 = vsel %vm646, 0, %v534
      %v652 = vsel %vm646, 0, %v541
      %v653 = vsel %vm646, 0, %v548
      %v654 = vsel %vm646, 0, %v555
      %v655 = vsel %vm646, 0, %v562
      %v656 = vsel %vm646, 0, %v569
      %v657 = vsel %vm646, 0, %v576
      %v658 = vsel %vm646, 0, %v583
      %v659 = vsel %vm646, 0, %v590
      %v660 = vsel %vm646, 0, %v597
      %v661 = vsel %vm646, 0, %v604
      %v662 = vsel %vm646, 0, %v611
      %v663 = vsel %vm646, %v503, 0
      %v664 = vsel %vm646, %v510, 0
      %v665 = vsel %vm646, %v517, 0
      %v666 = vsel %vm646, %v524, 0
      %v667 = vsel %vm646, %v531, 0
      %v668 = vsel %vm646, %v538, 0
      %v669 = vsel %vm646, %v545, 0
      %v670 = vsel %vm646, %v552, 0
      %v671 = vsel %vm646, %v559, 0
      %v672 = vsel %vm646, %v566, 0
      %v673 = vsel %vm646, %v573, 0
      %v674 = vsel %vm646, %v580, 0
      %v675 = vsel %vm646, %v587, 0
      %v676 = vsel %vm646, %v594, 0
      %v677 = vsel %vm646, %v601, 0
      %v678 = vsel %vm646, %v608, 0
      %v712 = vunpack.c.l.b16 0
      %v713 = vunpack.c.h.b16 0
      %v714 = vunpack.c.l.b16 %v647
      %v715 = vunpack.c.h.b16 %v647
      %v716 = vunpack.c.l.b16 %v663
      %v717 = vunpack.c.l.b16 %v648
      %v718 = vunpack.c.h.b16 %v648
      %v719 = vunpack.c.l.b16 %v664
      %v720 = vunpack.c.l.b16 %v649
      %v721 = vunpack.c.h.b16 %v649
      %v722 = vunpack.c.l.b16 %v665
      %v723 = vunpack.c.l.b16 %v650
      %v724 = vunpack.c.h.b16 %v650
      %v725 = vunpack.c.l.b16 %v666
      %v726 = vunpack.c.l.b16 %v651
      %v727 = vunpack.c.h.b16 %v651
      %v728 = vunpack.c.l.b16 %v667
      %v729 = vunpack.c.l.b16 %v652
      %v730 = vunpack.c.h.b16 %v652
      %v731 = vunpack.c.l.b16 %v668
      %v732 = vunpack.c.l.b16 %v653
      %v733 = vunpack.c.h.b16 %v653
      %v734 = vunpack.c.l.b16 %v669
      %v735 = vunpack.c.l.b16 %v654
      %v736 = vunpack.c.h.b16 %v654
      %v737 = vunpack.c.l.b16 %v670
      %v738 = vunpack.c.l.b16 %v655
      %v739 = vunpack.c.h.b16 %v655
      %v740 = vunpack.c.l.b16 %v671
      %v741 = vunpack.c.l.b16 %v656
      %v742 = vunpack.c.h.b16 %v656
      %v743 = vunpack.c.l.b16 %v672
      %v744 = vunpack.c.l.b16 %v657
      %v745 = vunpack.c.h.b16 %v657
      %v746 = vunpack.c.l.b16 %v673
      %v747 = vunpack.c.l.b16 %v658
      %v748 = vunpack.c.h.b16 %v658
      %v749 = vunpack.c.l.b16 %v674
      %v750 = vunpack.c.l.b16 %v659
      %v751 = vunpack.c.h.b16 %v659
      %v752 = vunpack.c.l.b16 %v675
      %v753 = vunpack.c.l.b16 %v660
      %v754 = vunpack.c.h.b16 %v660
      %v755 = vunpack.c.l.b16 %v676
      %v756 = vunpack.c.l.b16 %v661
      %v757 = vunpack.c.h.b16 %v661
      %v758 = vunpack.c.l.b16 %v677
      %v759 = vunpack.c.l.b16 %v662
      %v760 = vunpack.c.h.b16 %v662
      %v761 = vunpack.c.l.b16 %v678
      %v762 = vpack.c.b16 %v713, %v712
      %v763 = vpack.c.b16 %v714, %v712
      %v764 = vpack.c.b16 %v716, %v715
      %v765 = vpack.c.b16 %v718, %v717
      %v766 = vpack.c.b16 %v720, %v719
      %v767 = vpack.c.b16 %v722, %v721
      %v768 = vpack.c.b16 %v724, %v723
      %v769 = vpack.c.b16 %v726, %v725
      %v770 = vpack.c.b16 %v728, %v727
      %v771 = vpack.c.b16 %v730, %v729
      %v772 = vpack.c.b16 %v732, %v731
      %v773 = vpack.c.b16 %v734, %v733
      %v774 = vpack.c.b16 %v736, %v735
      %v775 = vpack.c.b16 %v738, %v737
      %v776 = vpack.c.b16 %v740, %v739
      %v777 = vpack.c.b16 %v742, %v741
      %v778 = vpack.c.b16 %v744, %v743
      %v779 = vpack.c.b16 %v746, %v745
      %v780 = vpack.c.b16 %v748, %v747
      %v781 = vpack.c.b16 %v750, %v749
      %v782 = vpack.c.b16 %v752, %v751
      %v783 = vpack.c.b16 %v754, %v753
      %v784 = vpack.c.b16 %v756, %v755
      %v785 = vpack.c.b16 %v758, %v757
      %v786 = vpack.c.b16 %v759, %v759
      %vm787 = vsmask.f32 7424
      %v789 = vshrl.u32 %v762, 16
      %v791 = vshll.u32 %v762, 16
      %v793 = vrot.slane %v791, 1
      %v794 = vor.u32 %v789, %v793
      %v796 = vshll.u32 %v763, 16
      %v798 = vrot.slane %v796, 1
      %v799 = vsel %vm787, %v794, %v798
      %v800 = vshrl.u32 %v763, 16
      %v802 = vor.u32 %v800, %v798
      %v804 = vshll.u32 %v764, 16
      %v806 = vrot.slane %v804, 1
      %v807 = vsel %vm787, %v802, %v806
      %v808 = vshrl.u32 %v764, 16
      %v810 = vor.u32 %v808, %v806
      %v812 = vshll.u32 %v765, 16
      %v814 = vrot.slane %v812, 1
      %v815 = vsel %vm787, %v810, %v814
      %v816 = vshrl.u32 %v765, 16
      %v818 = vor.u32 %v816, %v814
      %v820 = vshll.u32 %v766, 16
      %v822 = vrot.slane %v820, 1
      %v823 = vsel %vm787, %v818, %v822
      %v824 = vshrl.u32 %v766, 16
      %v826 = vor.u32 %v824, %v822
      %v828 = vshll.u32 %v767, 16
      %v830 = vrot.slane %v828, 1
      %v831 = vsel %vm787, %v826, %v830
      %v832 = vshrl.u32 %v767, 16
      %v834 = vor.u32 %v832, %v830
      %v836 = vshll.u32 %v768, 16
      %v838 = vrot.slane %v836, 1
      %v839 = vsel %vm787, %v834, %v838
      %v840 = vshrl.u32 %v768, 16
      %v842 = vor.u32 %v840, %v838
      %v844 = vshll.u32 %v769, 16
      %v846 = vrot.slane %v844, 1
      %v847 = vsel %vm787, %v842, %v846
      %v848 = vshrl.u32 %v769, 16
      %v850 = vor.u32 %v848, %v846
      %v852 = vshll.u32 %v770, 16
      %v854 = vrot.slane %v852, 1
      %v855 = vsel %vm787, %v850, %v854
      %v856 = vshrl.u32 %v770, 16
      %v858 = vor.u32 %v856, %v854
      %v860 = vshll.u32 %v771, 16
      %v862 = vrot.slane %v860, 1
      %v863 = vsel %vm787, %v858, %v862
      %v864 = vshrl.u32 %v771, 16
      %v866 = vor.u32 %v864, %v862
      %v868 = vshll.u32 %v772, 16
      %v870 = vrot.slane %v868, 1
      %v871 = vsel %vm787, %v866, %v870
      %v872 = vshrl.u32 %v772, 16
      %v874 = vor.u32 %v872, %v870
      %v876 = vshll.u32 %v773, 16
      %v878 = vrot.slane %v876, 1
      %v879 = vsel %vm787, %v874, %v878
      %v880 = vshrl.u32 %v773, 16
      %v882 = vor.u32 %v880, %v878
      %v884 = vshll.u32 %v774, 16
      %v886 = vrot.slane %v884, 1
      %v887 = vsel %vm787, %v882, %v886
      %v888 = vshrl.u32 %v774, 16
      %v890 = vor.u32 %v888, %v886
      %v892 = vshll.u32 %v775, 16
      %v894 = vrot.slane %v892, 1
      %v895 = vsel %vm787, %v890, %v894
      %v896 = vshrl.u32 %v775, 16
      %v898 = vor.u32 %v896, %v894
      %v900 = vshll.u32 %v776, 16
      %v902 = vrot.slane %v900, 1
      %v903 = vsel %vm787, %v898, %v902
      %v904 = vshrl.u32 %v776, 16
      %v906 = vor.u32 %v904, %v902
      %v908 = vshll.u32 %v777, 16
      %v910 = vrot.slane %v908, 1
      %v911 = vsel %vm787, %v906, %v910
      %v912 = vshrl.u32 %v777, 16
      %v914 = vor.u32 %v912, %v910
      %v916 = vshll.u32 %v778, 16
      %v918 = vrot.slane %v916, 1
      %v919 = vsel %vm787, %v914, %v918
      %v920 = vshrl.u32 %v778, 16
      %v922 = vor.u32 %v920, %v918
      %v924 = vshll.u32 %v779, 16
      %v926 = vrot.slane %v924, 1
      %v927 = vsel %vm787, %v922, %v926
      %v928 = vshrl.u32 %v779, 16
      %v930 = vor.u32 %v928, %v926
      %v932 = vshll.u32 %v780, 16
      %v934 = vrot.slane %v932, 1
      %v935 = vsel %vm787, %v930, %v934
      %v936 = vshrl.u32 %v780, 16
      %v938 = vor.u32 %v936, %v934
      %v940 = vshll.u32 %v781, 16
      %v942 = vrot.slane %v940, 1
      %v943 = vsel %vm787, %v938, %v942
      %v944 = vshrl.u32 %v781, 16
      %v946 = vor.u32 %v944, %v942
      %v948 = vshll.u32 %v782, 16
      %v950 = vrot.slane %v948, 1
      %v951 = vsel %vm787, %v946, %v950
      %v952 = vshrl.u32 %v782, 16
      %v954 = vor.u32 %v952, %v950
      %v956 = vshll.u32 %v783, 16
      %v958 = vrot.slane %v956, 1
      %v959 = vsel %vm787, %v954, %v958
      %v960 = vshrl.u32 %v783, 16
      %v962 = vor.u32 %v960, %v958
      %v964 = vshll.u32 %v784, 16
      %v966 = vrot.slane %v964, 1
      %v967 = vsel %vm787, %v962, %v966
      %v968 = vshrl.u32 %v784, 16
      %v970 = vor.u32 %v968, %v966
      %v972 = vshll.u32 %v785, 16
      %v974 = vrot.slane %v972, 1
      %v975 = vsel %vm787, %v970, %v974
      %v976 = vshrl.u32 %v785, 16
      %v978 = vor.u32 %v976, %v974
      %v980 = vshll.u32 %v786, 16
      %v982 = vrot.slane %v980, 1
      %v983 = vsel %vm787, %v978, %v982
      %984 = vrot.lane.b32.xlu0 %v799, 4
      %v985 = vpop.permute.xlu0 %984
      %986 = vrot.lane.b32.xlu0 %v807, 4
      %v987 = vpop.permute.xlu0 %986
      %988 = vrot.lane.b32.xlu0 %v815, 4
      %v989 = vpop.permute.xlu0 %988
      %990 = vrot.lane.b32.xlu0 %v823, 4
      %v991 = vpop.permute.xlu0 %990
      %992 = vrot.lane.b32.xlu0 %v831, 4
      %v993 = vpop.permute.xlu0 %992
      %994 = vrot.lane.b32.xlu0 %v839, 4
      %v995 = vpop.permute.xlu0 %994
      %996 = vrot.lane.b32.xlu0 %v847, 4
      %v997 = vpop.permute.xlu0 %996
      %998 = vrot.lane.b32.xlu0 %v855, 4
      %v999 = vpop.permute.xlu0 %998
      %1000 = vrot.lane.b32.xlu0 %v863, 4
      %v1001 = vpop.permute.xlu0 %1000
      %1002 = vrot.lane.b32.xlu0 %v871, 4
      %v1003 = vpop.permute.xlu0 %1002
      %1004 = vrot.lane.b32.xlu0 %v879, 4
      %v1005 = vpop.permute.xlu0 %1004
      %1006 = vrot.lane.b32.xlu0 %v887, 4
      %v1007 = vpop.permute.xlu0 %1006
      %1008 = vrot.lane.b32.xlu0 %v895, 4
      %v1009 = vpop.permute.xlu0 %1008
      %1010 = vrot.lane.b32.xlu0 %v903, 4
      %v1011 = vpop.permute.xlu0 %1010
      %1012 = vrot.lane.b32.xlu0 %v911, 4
      %v1013 = vpop.permute.xlu0 %1012
      %1014 = vrot.lane.b32.xlu0 %v919, 4
      %v1015 = vpop.permute.xlu0 %1014
      %1016 = vrot.lane.b32.xlu0 %v927, 4
      %v1017 = vpop.permute.xlu0 %1016
      %1018 = vrot.lane.b32.xlu0 %v935, 4
      %v1019 = vpop.permute.xlu0 %1018
      %1020 = vrot.lane.b32.xlu0 %v943, 4
      %v1021 = vpop.permute.xlu0 %1020
      %1022 = vrot.lane.b32.xlu0 %v951, 4
      %v1023 = vpop.permute.xlu0 %1022
      %1024 = vrot.lane.b32.xlu0 %v959, 4
      %v1025 = vpop.permute.xlu0 %1024
      %1026 = vrot.lane.b32.xlu0 %v967, 4
      %v1027 = vpop.permute.xlu0 %1026
      %1028 = vrot.lane.b32.xlu0 %v975, 4
      %v1029 = vpop.permute.xlu0 %1028
      %1030 = vrot.lane.b32.xlu0 %v983, 4
      %v1031 = vpop.permute.xlu0 %1030
      %vm1032 = vcmask 1046528
      %v1033 = vrot.slane %v762, 1
      %v1034 = vrot.slane %v763, 1
      %v1035 = vsel %vm1032, %v1033, %v1034
      %v1036 = vrot.slane %v764, 1
      %v1037 = vsel %vm1032, %v1034, %v1036
      %v1038 = vrot.slane %v765, 1
      %v1039 = vsel %vm1032, %v1036, %v1038
      %v1040 = vrot.slane %v766, 1
      %v1041 = vsel %vm1032, %v1038, %v1040
      %v1042 = vrot.slane %v767, 1
      %v1043 = vsel %vm1032, %v1040, %v1042
      %v1044 = vrot.slane %v768, 1
      %v1045 = vsel %vm1032, %v1042, %v1044
      %v1046 = vrot.slane %v769, 1
      %v1047 = vsel %vm1032, %v1044, %v1046
      %v1048 = vrot.slane %v770, 1
      %v1049 = vsel %vm1032, %v1046, %v1048
      %v1050 = vrot.slane %v771, 1
      %v1051 = vsel %vm1032, %v1048, %v1050
      %v1052 = vrot.slane %v772, 1
      %v1053 = vsel %vm1032, %v1050, %v1052
      %v1054 = vrot.slane %v773, 1
      %v1055 = vsel %vm1032, %v1052, %v1054
      %v1056 = vrot.slane %v774, 1
      %v1057 = vsel %vm1032, %v1054, %v1056
      %v1058 = vrot.slane %v775, 1
      %v1059 = vsel %vm1032, %v1056, %v1058
      %v1060 = vrot.slane %v776, 1
      %v1061 = vsel %vm1032, %v1058, %v1060
      %v1062 = vrot.slane %v777, 1
      %v1063 = vsel %vm1032, %v1060, %v1062
      %v1064 = vrot.slane %v778, 1
      %v1065 = vsel %vm1032, %v1062, %v1064
      %v1066 = vrot.slane %v779, 1
      %v1067 = vsel %vm1032, %v1064, %v1066
      %v1068 = vrot.slane %v780, 1
      %v1069 = vsel %vm1032, %v1066, %v1068
      %v1070 = vrot.slane %v781, 1
      %v1071 = vsel %vm1032, %v1068, %v1070
      %v1072 = vrot.slane %v782, 1
      %v1073 = vsel %vm1032, %v1070, %v1072
      %v1074 = vrot.slane %v783, 1
      %v1075 = vsel %vm1032, %v1072, %v1074
      %v1076 = vrot.slane %v784, 1
      %v1077 = vsel %vm1032, %v1074, %v1076
      %v1078 = vrot.slane %v785, 1
      %v1079 = vsel %vm1032, %v1076, %v1078
      %v1080 = vrot.slane %v786, 1
      %v1081 = vsel %vm1032, %v1078, %v1080
      %1082 = vrot.lane.b32.xlu0 %v1035, 8
      %v1083 = vpop.permute.xlu0 %1082
      %1084 = vrot.lane.b32.xlu0 %v1037, 8
      %v1085 = vpop.permute.xlu0 %1084
      %1086 = vrot.lane.b32.xlu0 %v1039, 8
      %v1087 = vpop.permute.xlu0 %1086
      %1088 = vrot.lane.b32.xlu0 %v1041, 8
      %v1089 = vpop.permute.xlu0 %1088
      %1090 = vrot.lane.b32.xlu0 %v1043, 8
      %v1091 = vpop.permute.xlu0 %1090
      %1092 = vrot.lane.b32.xlu0 %v1045, 8
      %v1093 = vpop.permute.xlu0 %1092
      %1094 = vrot.lane.b32.xlu0 %v1047, 8
      %v1095 = vpop.permute.xlu0 %1094
      %1096 = vrot.lane.b32.xlu0 %v1049, 8
      %v1097 = vpop.permute.xlu0 %1096
      %1098 = vrot.lane.b32.xlu0 %v1051, 8
      %v1099 = vpop.permute.xlu0 %1098
      %1100 = vrot.lane.b32.xlu0 %v1053, 8
      %v1101 = vpop.permute.xlu0 %1100
      %1102 = vrot.lane.b32.xlu0 %v1055, 8
      %v1103 = vpop.permute.xlu0 %1102
      %1104 = vrot.lane.b32.xlu0 %v1057, 8
      %v1105 = vpop.permute.xlu0 %1104
      %1106 = vrot.lane.b32.xlu0 %v1059, 8
      %v1107 = vpop.permute.xlu0 %1106
      %1108 = vrot.lane.b32.xlu0 %v1061, 8
      %v1109 = vpop.permute.xlu0 %1108
      %1110 = vrot.lane.b32.xlu0 %v1063, 8
      %v1111 = vpop.permute.xlu0 %1110
      %1112 = vrot.lane.b32.xlu0 %v1065, 8
      %v1113 = vpop.permute.xlu0 %1112
      %1114 = vrot.lane.b32.xlu0 %v1067, 8
      %v1115 = vpop.permute.xlu0 %1114
      %1116 = vrot.lane.b32.xlu0 %v1069, 8
      %v1117 = vpop.permute.xlu0 %1116
      %1118 = vrot.lane.b32.xlu0 %v1071, 8
      %v1119 = vpop.permute.xlu0 %1118
      %1120 = vrot.lane.b32.xlu0 %v1073, 8
      %v1121 = vpop.permute.xlu0 %1120
      %1122 = vrot.lane.b32.xlu0 %v1075, 8
      %v1123 = vpop.permute.xlu0 %1122
      %1124 = vrot.lane.b32.xlu0 %v1077, 8
      %v1125 = vpop.permute.xlu0 %1124
      %1126 = vrot.lane.b32.xlu0 %v1079, 8
      %v1127 = vpop.permute.xlu0 %1126
      %1128 = vrot.lane.b32.xlu0 %v1081, 8
      %v1129 = vpop.permute.xlu0 %1128
      %v1130 = vpack.c.b16 %v715, %v714
      %v1131 = vpack.c.b16 %v717, %v716
      %v1132 = vpack.c.b16 %v719, %v718
      %v1133 = vpack.c.b16 %v721, %v720
      %v1134 = vpack.c.b16 %v723, %v722
      %v1135 = vpack.c.b16 %v725, %v724
      %v1136 = vpack.c.b16 %v727, %v726
      %v1137 = vpack.c.b16 %v729, %v728
      %v1138 = vpack.c.b16 %v731, %v730
      %v1139 = vpack.c.b16 %v733, %v732
      %v1140 = vpack.c.b16 %v735, %v734
      %v1141 = vpack.c.b16 %v737, %v736
      %v1142 = vpack.c.b16 %v739, %v738
      %v1143 = vpack.c.b16 %v741, %v740
      %v1144 = vpack.c.b16 %v743, %v742
      %v1145 = vpack.c.b16 %v745, %v744
      %v1146 = vpack.c.b16 %v747, %v746
      %v1147 = vpack.c.b16 %v749, %v748
      %v1148 = vpack.c.b16 %v751, %v750
      %v1149 = vpack.c.b16 %v753, %v752
      %v1150 = vpack.c.b16 %v755, %v754
      %v1151 = vpack.c.b16 %v757, %v756
      %v1152 = vpack.c.b16 %v759, %v758
      %v1153 = vpack.c.b16 %v761, %v760
      %1154 = vrot.lane.b32.xlu0 %v1130, 12
      %v1155 = vpop.permute.xlu0 %1154
      %1156 = vrot.lane.b32.xlu0 %v1131, 12
      %v1157 = vpop.permute.xlu0 %1156
      %1158 = vrot.lane.b32.xlu0 %v1132, 12
      %v1159 = vpop.permute.xlu0 %1158
      %1160 = vrot.lane.b32.xlu0 %v1133, 12
      %v1161 = vpop.permute.xlu0 %1160
      %1162 = vrot.lane.b32.xlu0 %v1134, 12
      %v1163 = vpop.permute.xlu0 %1162
      %1164 = vrot.lane.b32.xlu0 %v1135, 12
      %v1165 = vpop.permute.xlu0 %1164
      %1166 = vrot.lane.b32.xlu0 %v1136, 12
      %v1167 = vpop.permute.xlu0 %1166
      %1168 = vrot.lane.b32.xlu0 %v1137, 12
      %v1169 = vpop.permute.xlu0 %1168
      %1170 = vrot.lane.b32.xlu0 %v1138, 12
      %v1171 = vpop.permute.xlu0 %1170
      %1172 = vrot.lane.b32.xlu0 %v1139, 12
      %v1173 = vpop.permute.xlu0 %1172
      %1174 = vrot.lane.b32.xlu0 %v1140, 12
      %v1175 = vpop.permute.xlu0 %1174
      %1176 = vrot.lane.b32.xlu0 %v1141, 12
      %v1177 = vpop.permute.xlu0 %1176
      %1178 = vrot.lane.b32.xlu0 %v1142, 12
      %v1179 = vpop.permute.xlu0 %1178
      %1180 = vrot.lane.b32.xlu0 %v1143, 12
      %v1181 = vpop.permute.xlu0 %1180
      %1182 = vrot.lane.b32.xlu0 %v1144, 12
      %v1183 = vpop.permute.xlu0 %1182
      %1184 = vrot.lane.b32.xlu0 %v1145, 12
      %v1185 = vpop.permute.xlu0 %1184
      %1186 = vrot.lane.b32.xlu0 %v1146, 12
      %v1187 = vpop.permute.xlu0 %1186
      %1188 = vrot.lane.b32.xlu0 %v1147, 12
      %v1189 = vpop.permute.xlu0 %1188
      %1190 = vrot.lane.b32.xlu0 %v1148, 12
      %v1191 = vpop.permute.xlu0 %1190
      %1192 = vrot.lane.b32.xlu0 %v1149, 12
      %v1193 = vpop.permute.xlu0 %1192
      %1194 = vrot.lane.b32.xlu0 %v1150, 12
      %v1195 = vpop.permute.xlu0 %1194
      %1196 = vrot.lane.b32.xlu0 %v1151, 12
      %v1197 = vpop.permute.xlu0 %1196
      %1198 = vrot.lane.b32.xlu0 %v1152, 12
      %v1199 = vpop.permute.xlu0 %1198
      %1200 = vrot.lane.b32.xlu0 %v1153, 12
      %v1201 = vpop.permute.xlu0 %1200
      %v1202 = vpack.c.b16 %v712, %v712
      %v1204 = vshrl.u32 %v1130, 16
      %v1206 = vshll.u32 %v1130, 16
      %v1208 = vrot.slane %v1206, 1
      %v1209 = vor.u32 %v1204, %v1208
      %v1211 = vshll.u32 %v1131, 16
      %v1213 = vrot.slane %v1211, 1
      %v1214 = vsel %vm787, %v1209, %v1213
      %v1215 = vshrl.u32 %v1131, 16
      %v1217 = vor.u32 %v1215, %v1213
      %v1219 = vshll.u32 %v1132, 16
      %v1221 = vrot.slane %v1219, 1
      %v1222 = vsel %vm787, %v1217, %v1221
      %v1223 = vshrl.u32 %v1132, 16
      %v1225 = vor.u32 %v1223, %v1221
      %v1227 = vshll.u32 %v1133, 16
      %v1229 = vrot.slane %v1227, 1
      %v1230 = vsel %vm787, %v1225, %v1229
      %v1231 = vshrl.u32 %v1133, 16
      %v1233 = vor.u32 %v1231, %v1229
      %v1235 = vshll.u32 %v1134, 16
      %v1237 = vrot.slane %v1235, 1
      %v1238 = vsel %vm787, %v1233, %v1237
      %v1239 = vshrl.u32 %v1134, 16
      %v1241 = vor.u32 %v1239, %v1237
      %v1243 = vshll.u32 %v1135, 16
      %v1245 = vrot.slane %v1243, 1
      %v1246 = vsel %vm787, %v1241, %v1245
      %v1247 = vshrl.u32 %v1135, 16
      %v1249 = vor.u32 %v1247, %v1245
      %v1251 = vshll.u32 %v1136, 16
      %v1253 = vrot.slane %v1251, 1
      %v1254 = vsel %vm787, %v1249, %v1253
      %v1255 = vshrl.u32 %v1136, 16
      %v1257 = vor.u32 %v1255, %v1253
      %v1259 = vshll.u32 %v1137, 16
      %v1261 = vrot.slane %v1259, 1
      %v1262 = vsel %vm787, %v1257, %v1261
      %v1263 = vshrl.u32 %v1137, 16
      %v1265 = vor.u32 %v1263, %v1261
      %v1267 = vshll.u32 %v1138, 16
      %v1269 = vrot.slane %v1267, 1
      %v1270 = vsel %vm787, %v1265, %v1269
      %v1271 = vshrl.u32 %v1138, 16
      %v1273 = vor.u32 %v1271, %v1269
      %v1275 = vshll.u32 %v1139, 16
      %v1277 = vrot.slane %v1275, 1
      %v1278 = vsel %vm787, %v1273, %v1277
      %v1279 = vshrl.u32 %v1139, 16
      %v1281 = vor.u32 %v1279, %v1277
      %v1283 = vshll.u32 %v1140, 16
      %v1285 = vrot.slane %v1283, 1
      %v1286 = vsel %vm787, %v1281, %v1285
      %v1287 = vshrl.u32 %v1140, 16
      %v1289 = vor.u32 %v1287, %v1285
      %v1291 = vshll.u32 %v1141, 16
      %v1293 = vrot.slane %v1291, 1
      %v1294 = vsel %vm787, %v1289, %v1293
      %v1295 = vshrl.u32 %v1141, 16
      %v1297 = vor.u32 %v1295, %v1293
      %v1299 = vshll.u32 %v1142, 16
      %v1301 = vrot.slane %v1299, 1
      %v1302 = vsel %vm787, %v1297, %v1301
      %v1303 = vshrl.u32 %v1142, 16
      %v1305 = vor.u32 %v1303, %v1301
      %v1307 = vshll.u32 %v1143, 16
      %v1309 = vrot.slane %v1307, 1
      %v1310 = vsel %vm787, %v1305, %v1309
      %v1311 = vshrl.u32 %v1143, 16
      %v1313 = vor.u32 %v1311, %v1309
      %v1315 = vshll.u32 %v1144, 16
      %v1317 = vrot.slane %v1315, 1
      %v1318 = vsel %vm787, %v1313, %v1317
      %v1319 = vshrl.u32 %v1144, 16
      %v1321 = vor.u32 %v1319, %v1317
      %v1323 = vshll.u32 %v1145, 16
      %v1325 = vrot.slane %v1323, 1
      %v1326 = vsel %vm787, %v1321, %v1325
      %v1327 = vshrl.u32 %v1145, 16
      %v1329 = vor.u32 %v1327, %v1325
      %v1331 = vshll.u32 %v1146, 16
      %v1333 = vrot.slane %v1331, 1
      %v1334 = vsel %vm787, %v1329, %v1333
      %v1335 = vshrl.u32 %v1146, 16
      %v1337 = vor.u32 %v1335, %v1333
      %v1339 = vshll.u32 %v1147, 16
      %v1341 = vrot.slane %v1339, 1
      %v1342 = vsel %vm787, %v1337, %v1341
      %v1343 = vshrl.u32 %v1147, 16
      %v1345 = vor.u32 %v1343, %v1341
      %v1347 = vshll.u32 %v1148, 16
      %v1349 = vrot.slane %v1347, 1
      %v1350 = vsel %vm787, %v1345, %v1349
      %v1351 = vshrl.u32 %v1148, 16
      %v1353 = vor.u32 %v1351, %v1349
      %v1355 = vshll.u32 %v1149, 16
      %v1357 = vrot.slane %v1355, 1
      %v1358 = vsel %vm787, %v1353, %v1357
      %v1359 = vshrl.u32 %v1149, 16
      %v1361 = vor.u32 %v1359, %v1357
      %v1363 = vshll.u32 %v1150, 16
      %v1365 = vrot.slane %v1363, 1
      %v1366 = vsel %vm787, %v1361, %v1365
      %v1367 = vshrl.u32 %v1150, 16
      %v1369 = vor.u32 %v1367, %v1365
      %v1371 = vshll.u32 %v1151, 16
      %v1373 = vrot.slane %v1371, 1
      %v1374 = vsel %vm787, %v1369, %v1373
      %v1375 = vshrl.u32 %v1151, 16
      %v1377 = vor.u32 %v1375, %v1373
      %v1379 = vshll.u32 %v1152, 16
      %v1381 = vrot.slane %v1379, 1
      %v1382 = vsel %vm787, %v1377, %v1381
      %v1383 = vshrl.u32 %v1152, 16
      %v1385 = vor.u32 %v1383, %v1381
      %v1387 = vshll.u32 %v1153, 16
      %v1389 = vrot.slane %v1387, 1
      %v1390 = vsel %vm787, %v1385, %v1389
      %v1391 = vshrl.u32 %v1153, 16
      %v1393 = vor.u32 %v1391, %v1389
      %v1395 = vshll.u32 %v1202, 16
      %v1397 = vrot.slane %v1395, 1
      %v1398 = vsel %vm787, %v1393, %v1397
      %1399 = vrot.lane.b32.xlu0 %v1214, 16
      %v1400 = vpop.permute.xlu0 %1399
      %1401 = vrot.lane.b32.xlu0 %v1222, 16
      %v1402 = vpop.permute.xlu0 %1401
      %1403 = vrot.lane.b32.xlu0 %v1230, 16
      %v1404 = vpop.permute.xlu0 %1403
      %1405 = vrot.lane.b32.xlu0 %v1238, 16
      %v1406 = vpop.permute.xlu0 %1405
      %1407 = vrot.lane.b32.xlu0 %v1246, 16
      %v1408 = vpop.permute.xlu0 %1407
      %1409 = vrot.lane.b32.xlu0 %v1254, 16
      %v1410 = vpop.permute.xlu0 %1409
      %1411 = vrot.lane.b32.xlu0 %v1262, 16
      %v1412 = vpop.permute.xlu0 %1411
      %1413 = vrot.lane.b32.xlu0 %v1270, 16
      %v1414 = vpop.permute.xlu0 %1413
      %1415 = vrot.lane.b32.xlu0 %v1278, 16
      %v1416 = vpop.permute.xlu0 %1415
      %1417 = vrot.lane.b32.xlu0 %v1286, 16
      %v1418 = vpop.permute.xlu0 %1417
      %1419 = vrot.lane.b32.xlu0 %v1294, 16
      %v1420 = vpop.permute.xlu0 %1419
      %1421 = vrot.lane.b32.xlu0 %v1302, 16
      %v1422 = vpop.permute.xlu0 %1421
      %1423 = vrot.lane.b32.xlu0 %v1310, 16
      %v1424 = vpop.permute.xlu0 %1423
      %1425 = vrot.lane.b32.xlu0 %v1318, 16
      %v1426 = vpop.permute.xlu0 %1425
      %1427 = vrot.lane.b32.xlu0 %v1326, 16
      %v1428 = vpop.permute.xlu0 %1427
      %1429 = vrot.lane.b32.xlu0 %v1334, 16
      %v1430 = vpop.permute.xlu0 %1429
      %1431 = vrot.lane.b32.xlu0 %v1342, 16
      %v1432 = vpop.permute.xlu0 %1431
      %1433 = vrot.lane.b32.xlu0 %v1350, 16
      %v1434 = vpop.permute.xlu0 %1433
      %1435 = vrot.lane.b32.xlu0 %v1358, 16
      %v1436 = vpop.permute.xlu0 %1435
      %1437 = vrot.lane.b32.xlu0 %v1366, 16
      %v1438 = vpop.permute.xlu0 %1437
      %1439 = vrot.lane.b32.xlu0 %v1374, 16
      %v1440 = vpop.permute.xlu0 %1439
      %1441 = vrot.lane.b32.xlu0 %v1382, 16
      %v1442 = vpop.permute.xlu0 %1441
      %1443 = vrot.lane.b32.xlu0 %v1390, 16
      %v1444 = vpop.permute.xlu0 %1443
      %1445 = vrot.lane.b32.xlu0 %v1398, 16
      %v1446 = vpop.permute.xlu0 %1445
      %v1447 = vrot.slane %v1130, 1
      %v1448 = vrot.slane %v1131, 1
      %v1449 = vsel %vm1032, %v1447, %v1448
      %v1450 = vrot.slane %v1132, 1
      %v1451 = vsel %vm1032, %v1448, %v1450
      %v1452 = vrot.slane %v1133, 1
      %v1453 = vsel %vm1032, %v1450, %v1452
      %v1454 = vrot.slane %v1134, 1
      %v1455 = vsel %vm1032, %v1452, %v1454
      %v1456 = vrot.slane %v1135, 1
      %v1457 = vsel %vm1032, %v1454, %v1456
      %v1458 = vrot.slane %v1136, 1
      %v1459 = vsel %vm1032, %v1456, %v1458
      %v1460 = vrot.slane %v1137, 1
      %v1461 = vsel %vm1032, %v1458, %v1460
      %v1462 = vrot.slane %v1138, 1
      %v1463 = vsel %vm1032, %v1460, %v1462
      %v1464 = vrot.slane %v1139, 1
      %v1465 = vsel %vm1032, %v1462, %v1464
      %v1466 = vrot.slane %v1140, 1
      %v1467 = vsel %vm1032, %v1464, %v1466
      %v1468 = vrot.slane %v1141, 1
      %v1469 = vsel %vm1032, %v1466, %v1468
      %v1470 = vrot.slane %v1142, 1
      %v1471 = vsel %vm1032, %v1468, %v1470
      %v1472 = vrot.slane %v1143, 1
      %v1473 = vsel %vm1032, %v1470, %v1472
      %v1474 = vrot.slane %v1144, 1
      %v1475 = vsel %vm1032, %v1472, %v1474
      %v1476 = vrot.slane %v1145, 1
      %v1477 = vsel %vm1032, %v1474, %v1476
      %v1478 = vrot.slane %v1146, 1
      %v1479 = vsel %vm1032, %v1476, %v1478
      %v1480 = vrot.slane %v1147, 1
      %v1481 = vsel %vm1032, %v1478, %v1480
      %v1482 = vrot.slane %v1148, 1
      %v1483 = vsel %vm1032, %v1480, %v1482
      %v1484 = vrot.slane %v1149, 1
      %v1485 = vsel %vm1032, %v1482, %v1484
      %v1486 = vrot.slane %v1150, 1
      %v1487 = vsel %vm1032, %v1484, %v1486
      %v1488 = vrot.slane %v1151, 1
      %v1489 = vsel %vm1032, %v1486, %v1488
      %v1490 = vrot.slane %v1152, 1
      %v1491 = vsel %vm1032, %v1488, %v1490
      %v1492 = vrot.slane %v1153, 1
      %v1493 = vsel %vm1032, %v1490, %v1492
      %v1494 = vrot.slane %v1202, 1
      %v1495 = vsel %vm1032, %v1492, %v1494
      %1496 = vrot.lane.b32.xlu0 %v1449, 20
      %v1497 = vpop.permute.xlu0 %1496
      %1498 = vrot.lane.b32.xlu0 %v1451, 20
      %v1499 = vpop.permute.xlu0 %1498
      %1500 = vrot.lane.b32.xlu0 %v1453, 20
      %v1501 = vpop.permute.xlu0 %1500
      %1502 = vrot.lane.b32.xlu0 %v1455, 20
      %v1503 = vpop.permute.xlu0 %1502
      %1504 = vrot.lane.b32.xlu0 %v1457, 20
      %v1505 = vpop.permute.xlu0 %1504
      %1506 = vrot.lane.b32.xlu0 %v1459, 20
      %v1507 = vpop.permute.xlu0 %1506
      %1508 = vrot.lane.b32.xlu0 %v1461, 20
      %v1509 = vpop.permute.xlu0 %1508
      %1510 = vrot.lane.b32.xlu0 %v1463, 20
      %v1511 = vpop.permute.xlu0 %1510
      %1512 = vrot.lane.b32.xlu0 %v1465, 20
      %v1513 = vpop.permute.xlu0 %1512
      %1514 = vrot.lane.b32.xlu0 %v1467, 20
      %v1515 = vpop.permute.xlu0 %1514
      %1516 = vrot.lane.b32.xlu0 %v1469, 20
      %v1517 = vpop.permute.xlu0 %1516
      %1518 = vrot.lane.b32.xlu0 %v1471, 20
      %v1519 = vpop.permute.xlu0 %1518
      %1520 = vrot.lane.b32.xlu0 %v1473, 20
      %v1521 = vpop.permute.xlu0 %1520
      %1522 = vrot.lane.b32.xlu0 %v1475, 20
      %v1523 = vpop.permute.xlu0 %1522
      %1524 = vrot.lane.b32.xlu0 %v1477, 20
      %v1525 = vpop.permute.xlu0 %1524
      %1526 = vrot.lane.b32.xlu0 %v1479, 20
      %v1527 = vpop.permute.xlu0 %1526
      %1528 = vrot.lane.b32.xlu0 %v1481, 20
      %v1529 = vpop.permute.xlu0 %1528
      %1530 = vrot.lane.b32.xlu0 %v1483, 20
      %v1531 = vpop.permute.xlu0 %1530
      %1532 = vrot.lane.b32.xlu0 %v1485, 20
      %v1533 = vpop.permute.xlu0 %1532
      %1534 = vrot.lane.b32.xlu0 %v1487, 20
      %v1535 = vpop.permute.xlu0 %1534
      %1536 = vrot.lane.b32.xlu0 %v1489, 20
      %v1537 = vpop.permute.xlu0 %1536
      %1538 = vrot.lane.b32.xlu0 %v1491, 20
      %v1539 = vpop.permute.xlu0 %1538
      %1540 = vrot.lane.b32.xlu0 %v1493, 20
      %v1541 = vpop.permute.xlu0 %1540
      %1542 = vrot.lane.b32.xlu0 %v1495, 20
      %v1543 = vpop.permute.xlu0 %1542
      %v1544 = vpack.c.b16 %v760, %v759
      %v1545 = vpack.c.b16 %v712, %v761
      %v1546 = vpack.c.b16 %v712, %v713
      %1547 = vrot.lane.b32.xlu0 %v765, 24
      %v1548 = vpop.permute.xlu0 %1547
      %1549 = vrot.lane.b32.xlu0 %v766, 24
      %v1550 = vpop.permute.xlu0 %1549
      %1551 = vrot.lane.b32.xlu0 %v767, 24
      %v1552 = vpop.permute.xlu0 %1551
      %1553 = vrot.lane.b32.xlu0 %v768, 24
      %v1554 = vpop.permute.xlu0 %1553
      %1555 = vrot.lane.b32.xlu0 %v769, 24
      %v1556 = vpop.permute.xlu0 %1555
      %1557 = vrot.lane.b32.xlu0 %v770, 24
      %v1558 = vpop.permute.xlu0 %1557
      %1559 = vrot.lane.b32.xlu0 %v771, 24
      %v1560 = vpop.permute.xlu0 %1559
      %1561 = vrot.lane.b32.xlu0 %v772, 24
      %v1562 = vpop.permute.xlu0 %1561
      %1563 = vrot.lane.b32.xlu0 %v773, 24
      %v1564 = vpop.permute.xlu0 %1563
      %1565 = vrot.lane.b32.xlu0 %v774, 24
      %v1566 = vpop.permute.xlu0 %1565
      %1567 = vrot.lane.b32.xlu0 %v775, 24
      %v1568 = vpop.permute.xlu0 %1567
      %1569 = vrot.lane.b32.xlu0 %v776, 24
      %v1570 = vpop.permute.xlu0 %1569
      %1571 = vrot.lane.b32.xlu0 %v777, 24
      %v1572 = vpop.permute.xlu0 %1571
      %1573 = vrot.lane.b32.xlu0 %v778, 24
      %v1574 = vpop.permute.xlu0 %1573
      %1575 = vrot.lane.b32.xlu0 %v779, 24
      %v1576 = vpop.permute.xlu0 %1575
      %1577 = vrot.lane.b32.xlu0 %v780, 24
      %v1578 = vpop.permute.xlu0 %1577
      %1579 = vrot.lane.b32.xlu0 %v781, 24
      %v1580 = vpop.permute.xlu0 %1579
      %1581 = vrot.lane.b32.xlu0 %v782, 24
      %v1582 = vpop.permute.xlu0 %1581
      %1583 = vrot.lane.b32.xlu0 %v783, 24
      %v1584 = vpop.permute.xlu0 %1583
      %1585 = vrot.lane.b32.xlu0 %v784, 24
      %v1586 = vpop.permute.xlu0 %1585
      %1587 = vrot.lane.b32.xlu0 %v785, 24
      %v1588 = vpop.permute.xlu0 %1587
      %1589 = vrot.lane.b32.xlu0 %v1544, 24
      %v1590 = vpop.permute.xlu0 %1589
      %1591 = vrot.lane.b32.xlu0 %v1545, 24
      %v1592 = vpop.permute.xlu0 %1591
      %1593 = vrot.lane.b32.xlu0 %v1546, 24
      %v1594 = vpop.permute.xlu0 %1593
      %v1596 = vshll.u32 %v1544, 16
      %v1598 = vrot.slane %v1596, 1
      %v1599 = vsel %vm787, %v978, %v1598
      %v1600 = vshrl.u32 %v1544, 16
      %v1602 = vor.u32 %v1600, %v1598
      %v1604 = vshll.u32 %v1545, 16
      %v1606 = vrot.slane %v1604, 1
      %v1607 = vsel %vm787, %v1602, %v1606
      %v1608 = vshrl.u32 %v1545, 16
      %v1610 = vor.u32 %v1608, %v1606
      %v1612 = vshll.u32 %v1546, 16
      %v1614 = vrot.slane %v1612, 1
      %v1615 = vsel %vm787, %v1610, %v1614
      %v1616 = vshrl.u32 %v1546, 16
      %v1618 = vor.u32 %v1616, %v1614
      %v1619 = vsel %vm787, %v1618, %v1397
      %1620 = vrot.lane.b32.xlu0 %v823, 28
      %v1621 = vpop.permute.xlu0 %1620
      %1622 = vrot.lane.b32.xlu0 %v831, 28
      %v1623 = vpop.permute.xlu0 %1622
      %1624 = vrot.lane.b32.xlu0 %v839, 28
      %v1625 = vpop.permute.xlu0 %1624
      %1626 = vrot.lane.b32.xlu0 %v847, 28
      %v1627 = vpop.permute.xlu0 %1626
      %1628 = vrot.lane.b32.xlu0 %v855, 28
      %v1629 = vpop.permute.xlu0 %1628
      %1630 = vrot.lane.b32.xlu0 %v863, 28
      %v1631 = vpop.permute.xlu0 %1630
      %1632 = vrot.lane.b32.xlu0 %v871, 28
      %v1633 = vpop.permute.xlu0 %1632
      %1634 = vrot.lane.b32.xlu0 %v879, 28
      %v1635 = vpop.permute.xlu0 %1634
      %1636 = vrot.lane.b32.xlu0 %v887, 28
      %v1637 = vpop.permute.xlu0 %1636
      %1638 = vrot.lane.b32.xlu0 %v895, 28
      %v1639 = vpop.permute.xlu0 %1638
      %1640 = vrot.lane.b32.xlu0 %v903, 28
      %v1641 = vpop.permute.xlu0 %1640
      %1642 = vrot.lane.b32.xlu0 %v911, 28
      %v1643 = vpop.permute.xlu0 %1642
      %1644 = vrot.lane.b32.xlu0 %v919, 28
      %v1645 = vpop.permute.xlu0 %1644
      %1646 = vrot.lane.b32.xlu0 %v927, 28
      %v1647 = vpop.permute.xlu0 %1646
      %1648 = vrot.lane.b32.xlu0 %v935, 28
      %v1649 = vpop.permute.xlu0 %1648
      %1650 = vrot.lane.b32.xlu0 %v943, 28
      %v1651 = vpop.permute.xlu0 %1650
      %1652 = vrot.lane.b32.xlu0 %v951, 28
      %v1653 = vpop.permute.xlu0 %1652
      %1654 = vrot.lane.b32.xlu0 %v959, 28
      %v1655 = vpop.permute.xlu0 %1654
      %1656 = vrot.lane.b32.xlu0 %v967, 28
      %v1657 = vpop.permute.xlu0 %1656
      %1658 = vrot.lane.b32.xlu0 %v975, 28
      %v1659 = vpop.permute.xlu0 %1658
      %1660 = vrot.lane.b32.xlu0 %v1599, 28
      %v1661 = vpop.permute.xlu0 %1660
      %1662 = vrot.lane.b32.xlu0 %v1607, 28
      %v1663 = vpop.permute.xlu0 %1662
      %1664 = vrot.lane.b32.xlu0 %v1615, 28
      %v1665 = vpop.permute.xlu0 %1664
      %1666 = vrot.lane.b32.xlu0 %v1619, 28
      %v1667 = vpop.permute.xlu0 %1666
      %v1668 = vrot.slane %v1544, 1
      %v1669 = vsel %vm1032, %v1078, %v1668
      %v1670 = vrot.slane %v1545, 1
      %v1671 = vsel %vm1032, %v1668, %v1670
      %v1672 = vrot.slane %v1546, 1
      %v1673 = vsel %vm1032, %v1670, %v1672
      %v1674 = vsel %vm1032, %v1672, %v1494
      %1675 = vrot.lane.b32.xlu0 %v1041, 32
      %v1676 = vpop.permute.xlu0 %1675
      %1677 = vrot.lane.b32.xlu0 %v1043, 32
      %v1678 = vpop.permute.xlu0 %1677
      %1679 = vrot.lane.b32.xlu0 %v1045, 32
      %v1680 = vpop.permute.xlu0 %1679
      %1681 = vrot.lane.b32.xlu0 %v1047, 32
      %v1682 = vpop.permute.xlu0 %1681
      %1683 = vrot.lane.b32.xlu0 %v1049, 32
      %v1684 = vpop.permute.xlu0 %1683
      %1685 = vrot.lane.b32.xlu0 %v1051, 32
      %v1686 = vpop.permute.xlu0 %1685
      %1687 = vrot.lane.b32.xlu0 %v1053, 32
      %v1688 = vpop.permute.xlu0 %1687
      %1689 = vrot.lane.b32.xlu0 %v1055, 32
      %v1690 = vpop.permute.xlu0 %1689
      %1691 = vrot.lane.b32.xlu0 %v1057, 32
      %v1692 = vpop.permute.xlu0 %1691
      %1693 = vrot.lane.b32.xlu0 %v1059, 32
      %v1694 = vpop.permute.xlu0 %1693
      %1695 = vrot.lane.b32.xlu0 %v1061, 32
      %v1696 = vpop.permute.xlu0 %1695
      %1697 = vrot.lane.b32.xlu0 %v1063, 32
      %v1698 = vpop.permute.xlu0 %1697
      %1699 = vrot.lane.b32.xlu0 %v1065, 32
      %v1700 = vpop.permute.xlu0 %1699
      %1701 = vrot.lane.b32.xlu0 %v1067, 32
      %v1702 = vpop.permute.xlu0 %1701
      %1703 = vrot.lane.b32.xlu0 %v1069, 32
      %v1704 = vpop.permute.xlu0 %1703
      %1705 = vrot.lane.b32.xlu0 %v1071, 32
      %v1706 = vpop.permute.xlu0 %1705
      %1707 = vrot.lane.b32.xlu0 %v1073, 32
      %v1708 = vpop.permute.xlu0 %1707
      %1709 = vrot.lane.b32.xlu0 %v1075, 32
      %v1710 = vpop.permute.xlu0 %1709
      %1711 = vrot.lane.b32.xlu0 %v1077, 32
      %v1712 = vpop.permute.xlu0 %1711
      %1713 = vrot.lane.b32.xlu0 %v1079, 32
      %v1714 = vpop.permute.xlu0 %1713
      %1715 = vrot.lane.b32.xlu0 %v1669, 32
      %v1716 = vpop.permute.xlu0 %1715
      %1717 = vrot.lane.b32.xlu0 %v1671, 32
      %v1718 = vpop.permute.xlu0 %1717
      %1719 = vrot.lane.b32.xlu0 %v1673, 32
      %v1720 = vpop.permute.xlu0 %1719
      %1721 = vrot.lane.b32.xlu0 %v1674, 32
      %v1722 = vpop.permute.xlu0 %1721
      %vm1723 = vcmask 31744
      %v1725 = vsel %vm1723, %v762, %v985
      %v1727 = vsel %vm1723, %v763, %v987
      %v1729 = vsel %vm1723, %v764, %v989
      %v1731 = vsel %vm1723, %v765, %v991
      %v1733 = vsel %vm1723, %v766, %v993
      %v1735 = vsel %vm1723, %v767, %v995
      %v1737 = vsel %vm1723, %v768, %v997
      %v1739 = vsel %vm1723, %v769, %v999
      %v1741 = vsel %vm1723, %v770, %v1001
      %v1743 = vsel %vm1723, %v771, %v1003
      %v1745 = vsel %vm1723, %v772, %v1005
      %v1747 = vsel %vm1723, %v773, %v1007
      %v1749 = vsel %vm1723, %v774, %v1009
      %v1751 = vsel %vm1723, %v775, %v1011
      %v1753 = vsel %vm1723, %v776, %v1013
      %v1755 = vsel %vm1723, %v777, %v1015
      %v1757 = vsel %vm1723, %v778, %v1017
      %v1759 = vsel %vm1723, %v779, %v1019
      %v1761 = vsel %vm1723, %v780, %v1021
      %v1763 = vsel %vm1723, %v781, %v1023
      %v1765 = vsel %vm1723, %v782, %v1025
      %v1767 = vsel %vm1723, %v783, %v1027
      %v1769 = vsel %vm1723, %v784, %v1029
      %v1771 = vsel %vm1723, %v785, %v1031
      %vm1772 = vcmask 64512
      %v1774 = vsel %vm1772, %v1725, %v1083
      %v1776 = vsel %vm1772, %v1727, %v1085
      %v1778 = vsel %vm1772, %v1729, %v1087
      %v1780 = vsel %vm1772, %v1731, %v1089
      %v1782 = vsel %vm1772, %v1733, %v1091
      %v1784 = vsel %vm1772, %v1735, %v1093
      %v1786 = vsel %vm1772, %v1737, %v1095
      %v1788 = vsel %vm1772, %v1739, %v1097
      %v1790 = vsel %vm1772, %v1741, %v1099
      %v1792 = vsel %vm1772, %v1743, %v1101
      %v1794 = vsel %vm1772, %v1745, %v1103
      %v1796 = vsel %vm1772, %v1747, %v1105
      %v1798 = vsel %vm1772, %v1749, %v1107
      %v1800 = vsel %vm1772, %v1751, %v1109
      %v1802 = vsel %vm1772, %v1753, %v1111
      %v1804 = vsel %vm1772, %v1755, %v1113
      %v1806 = vsel %vm1772, %v1757, %v1115
      %v1808 = vsel %vm1772, %v1759, %v1117
      %v1810 = vsel %vm1772, %v1761, %v1119
      %v1812 = vsel %vm1772, %v1763, %v1121
      %v1814 = vsel %vm1772, %v1765, %v1123
      %v1816 = vsel %vm1772, %v1767, %v1125
      %v1818 = vsel %vm1772, %v1769, %v1127
      %v1820 = vsel %vm1772, %v1771, %v1129
      %vm1821 = vcmask 97280
      %v1823 = vsel %vm1821, %v1774, %v1155
      %v1825 = vsel %vm1821, %v1776, %v1157
      %v1827 = vsel %vm1821, %v1778, %v1159
      %v1829 = vsel %vm1821, %v1780, %v1161
      %v1831 = vsel %vm1821, %v1782, %v1163
      %v1833 = vsel %vm1821, %v1784, %v1165
      %v1835 = vsel %vm1821, %v1786, %v1167
      %v1837 = vsel %vm1821, %v1788, %v1169
      %v1839 = vsel %vm1821, %v1790, %v1171
      %v1841 = vsel %vm1821, %v1792, %v1173
      %v1843 = vsel %vm1821, %v1794, %v1175
      %v1845 = vsel %vm1821, %v1796, %v1177
      %v1847 = vsel %vm1821, %v1798, %v1179
      %v1849 = vsel %vm1821, %v1800, %v1181
      %v1851 = vsel %vm1821, %v1802, %v1183
      %v1853 = vsel %vm1821, %v1804, %v1185
      %v1855 = vsel %vm1821, %v1806, %v1187
      %v1857 = vsel %vm1821, %v1808, %v1189
      %v1859 = vsel %vm1821, %v1810, %v1191
      %v1861 = vsel %vm1821, %v1812, %v1193
      %v1863 = vsel %vm1821, %v1814, %v1195
      %v1865 = vsel %vm1821, %v1816, %v1197
      %v1867 = vsel %vm1821, %v1818, %v1199
      %v1869 = vsel %vm1821, %v1820, %v1201
      %vm1870 = vcmask 130048
      %v1872 = vsel %vm1870, %v1823, %v1400
      %v1874 = vsel %vm1870, %v1825, %v1402
      %v1876 = vsel %vm1870, %v1827, %v1404
      %v1878 = vsel %vm1870, %v1829, %v1406
      %v1880 = vsel %vm1870, %v1831, %v1408
      %v1882 = vsel %vm1870, %v1833, %v1410
      %v1884 = vsel %vm1870, %v1835, %v1412
      %v1886 = vsel %vm1870, %v1837, %v1414
      %v1888 = vsel %vm1870, %v1839, %v1416
      %v1890 = vsel %vm1870, %v1841, %v1418
      %v1892 = vsel %vm1870, %v1843, %v1420
      %v1894 = vsel %vm1870, %v1845, %v1422
      %v1896 = vsel %vm1870, %v1847, %v1424
      %v1898 = vsel %vm1870, %v1849, %v1426
      %v1900 = vsel %vm1870, %v1851, %v1428
      %v1902 = vsel %vm1870, %v1853, %v1430
      %v1904 = vsel %vm1870, %v1855, %v1432
      %v1906 = vsel %vm1870, %v1857, %v1434
      %v1908 = vsel %vm1870, %v1859, %v1436
      %v1910 = vsel %vm1870, %v1861, %v1438
      %v1912 = vsel %vm1870, %v1863, %v1440
      %v1914 = vsel %vm1870, %v1865, %v1442
      %v1916 = vsel %vm1870, %v1867, %v1444
      %v1918 = vsel %vm1870, %v1869, %v1446
      %vm1919 = vcmask 162816
      %v1921 = vsel %vm1919, %v1872, %v1497
      %v1923 = vsel %vm1919, %v1874, %v1499
      %v1925 = vsel %vm1919, %v1876, %v1501
      %v1927 = vsel %vm1919, %v1878, %v1503
      %v1929 = vsel %vm1919, %v1880, %v1505
      %v1931 = vsel %vm1919, %v1882, %v1507
      %v1933 = vsel %vm1919, %v1884, %v1509
      %v1935 = vsel %vm1919, %v1886, %v1511
      %v1937 = vsel %vm1919, %v1888, %v1513
      %v1939 = vsel %vm1919, %v1890, %v1515
      %v1941 = vsel %vm1919, %v1892, %v1517
      %v1943 = vsel %vm1919, %v1894, %v1519
      %v1945 = vsel %vm1919, %v1896, %v1521
      %v1947 = vsel %vm1919, %v1898, %v1523
      %v1949 = vsel %vm1919, %v1900, %v1525
      %v1951 = vsel %vm1919, %v1902, %v1527
      %v1953 = vsel %vm1919, %v1904, %v1529
      %v1955 = vsel %vm1919, %v1906, %v1531
      %v1957 = vsel %vm1919, %v1908, %v1533
      %v1959 = vsel %vm1919, %v1910, %v1535
      %v1961 = vsel %vm1919, %v1912, %v1537
      %v1963 = vsel %vm1919, %v1914, %v1539
      %v1965 = vsel %vm1919, %v1916, %v1541
      %v1967 = vsel %vm1919, %v1918, %v1543
      %vm1968 = vcmask 195584
      %v1970 = vsel %vm1968, %v1921, %v1548
      %v1972 = vsel %vm1968, %v1923, %v1550
      %v1974 = vsel %vm1968, %v1925, %v1552
      %v1976 = vsel %vm1968, %v1927, %v1554
      %v1978 = vsel %vm1968, %v1929, %v1556
      %v1980 = vsel %vm1968, %v1931, %v1558
      %v1982 = vsel %vm1968, %v1933, %v1560
      %v1984 = vsel %vm1968, %v1935, %v1562
      %v1986 = vsel %vm1968, %v1937, %v1564
      %v1988 = vsel %vm1968, %v1939, %v1566
      %v1990 = vsel %vm1968, %v1941, %v1568
      %v1992 = vsel %vm1968, %v1943, %v1570
      %v1994 = vsel %vm1968, %v1945, %v1572
      %v1996 = vsel %vm1968, %v1947, %v1574
      %v1998 = vsel %vm1968, %v1949, %v1576
      %v2000 = vsel %vm1968, %v1951, %v1578
      %v2002 = vsel %vm1968, %v1953, %v1580
      %v2004 = vsel %vm1968, %v1955, %v1582
      %v2006 = vsel %vm1968, %v1957, %v1584
      %v2008 = vsel %vm1968, %v1959, %v1586
      %v2010 = vsel %vm1968, %v1961, %v1588
      %v2012 = vsel %vm1968, %v1963, %v1590
      %v2014 = vsel %vm1968, %v1965, %v1592
      %v2016 = vsel %vm1968, %v1967, %v1594
      %vm2017 = vcmask 228352
      %v2019 = vsel %vm2017, %v1970, %v1621
      %v2021 = vsel %vm2017, %v1972, %v1623
      %v2023 = vsel %vm2017, %v1974, %v1625
      %v2025 = vsel %vm2017, %v1976, %v1627
      %v2027 = vsel %vm2017, %v1978, %v1629
      %v2029 = vsel %vm2017, %v1980, %v1631
      %v2031 = vsel %vm2017, %v1982, %v1633
      %v2033 = vsel %vm2017, %v1984, %v1635
      %v2035 = vsel %vm2017, %v1986, %v1637
      %v2037 = vsel %vm2017, %v1988, %v1639
      %v2039 = vsel %vm2017, %v1990, %v1641
      %v2041 = vsel %vm2017, %v1992, %v1643
      %v2043 = vsel %vm2017, %v1994, %v1645
      %v2045 = vsel %vm2017, %v1996, %v1647
      %v2047 = vsel %vm2017, %v1998, %v1649
      %v2049 = vsel %vm2017, %v2000, %v1651
      %v2051 = vsel %vm2017, %v2002, %v1653
      %v2053 = vsel %vm2017, %v2004, %v1655
      %v2055 = vsel %vm2017, %v2006, %v1657
      %v2057 = vsel %vm2017, %v2008, %v1659
      %v2059 = vsel %vm2017, %v2010, %v1661
      %v2061 = vsel %vm2017, %v2012, %v1663
      %v2063 = vsel %vm2017, %v2014, %v1665
      %v2065 = vsel %vm2017, %v2016, %v1667
      %vm2066 = vcmask 261120
      %v2068 = vsel %vm2066, %v2019, %v1676
      %v2070 = vsel %vm2066, %v2021, %v1678
      %v2072 = vsel %vm2066, %v2023, %v1680
      %v2074 = vsel %vm2066, %v2025, %v1682
      %v2076 = vsel %vm2066, %v2027, %v1684
      %v2078 = vsel %vm2066, %v2029, %v1686
      %v2080 = vsel %vm2066, %v2031, %v1688
      %v2082 = vsel %vm2066, %v2033, %v1690
      %v2084 = vsel %vm2066, %v2035, %v1692
      %v2086 = vsel %vm2066, %v2037, %v1694
      %v2088 = vsel %vm2066, %v2039, %v1696
      %v2090 = vsel %vm2066, %v2041, %v1698
      %v2092 = vsel %vm2066, %v2043, %v1700
      %v2094 = vsel %vm2066, %v2045, %v1702
      %v2096 = vsel %vm2066, %v2047, %v1704
      %v2098 = vsel %vm2066, %v2049, %v1706
      %v2100 = vsel %vm2066, %v2051, %v1708
      %v2102 = vsel %vm2066, %v2053, %v1710
      %v2104 = vsel %vm2066, %v2055, %v1712
      %v2106 = vsel %vm2066, %v2057, %v1714
      %v2108 = vsel %vm2066, %v2059, %v1716
      %v2110 = vsel %vm2066, %v2061, %v1718
      %v2112 = vsel %vm2066, %v2063, %v1720
      %v2114 = vsel %vm2066, %v2065, %v1722
      %v2115 = vld [vmem:[%s328] sm:$0xf]
      %v2116 = vld [vmem:[%s328 + $0x4] sm:$0xf]
      %v2117 = vld [vmem:[%s328 + $0x8] sm:$0xf]
      %v2118 = vld [vmem:[%s328 + $0xc] sm:$0xf]
      %v2119 = vld [vmem:[%s328 + $0x10] sm:$0x3]
      %v2120 = vld [vmem:[%s331] sm:$0x1]
      %v2122 = vlaneseq
      %v2123 = vshrl.u32 %v2122, 7
      %v2124 = vsub.s32 0, %v2123
      %v2125 = vrot.slane %v2120, %v2124
      %v2132 = vunpack.c.l.b16 %v2115
      %v2133 = vunpack.c.l.b16 %v2116
      %v2134 = vunpack.c.l.b16 %v2117
      %v2135 = vunpack.c.l.b16 %v2118
      %v2136 = vunpack.c.l.b16 %v2119
      %v2137 = vpack.c.b16 %v2133, %v2132
      %v2138 = vpack.c.b16 %v2135, %v2134
      %v2139 = vpack.c.b16 %v2136, %v2136
      %vm2142 = vcmask 293888
      %v2143 = vsel %vm2142, %v2068, 0
      %v2145 = vsel %vm2142, %v2070, 0
      %v2147 = vsel %vm2142, %v2072, 0
      %v2149 = vsel %vm2142, %v2074, 0
      %v2151 = vsel %vm2142, %v2076, 0
      %v2153 = vsel %vm2142, %v2078, 0
      %v2155 = vsel %vm2142, %v2080, 0
      %v2157 = vsel %vm2142, %v2082, 0
      %v2159 = vsel %vm2142, %v2084, 0
      %v2161 = vsel %vm2142, %v2086, 0
      %v2163 = vsel %vm2142, %v2088, 0
      %v2165 = vsel %vm2142, %v2090, 0
      %v2167 = vsel %vm2142, %v2092, 0
      %v2169 = vsel %vm2142, %v2094, 0
      %v2171 = vsel %vm2142, %v2096, 0
      %v2173 = vsel %vm2142, %v2098, 0
      %v2175 = vsel %vm2142, %v2100, 0
      %v2177 = vsel %vm2142, %v2102, 0
      %v2179 = vsel %vm2142, %v2104, 0
      %v2181 = vsel %vm2142, %v2106, 0
      %v2183 = vsel %vm2142, %v2108, 0
      %v2185 = vsel %vm2142, %v2110, 0
      %v2187 = vsel %vm2142, %v2112, 0
      %v2189 = vsel %vm2142, %v2114, 0
      %vm2191 = vcmask 1041408
      %v2193 = vsel %vm2191, %v2139, 0
      %2195 = vmatprep.subr.bf16.mxu0 0
      %2196 = vmatpush1.bf16.msra.mxu0 %v2137
      %2197 = vmatprep.subr.bf16.mxu0 0
      %2198 = vmatpush1.bf16.msra.mxu0 %v2138
      %2199 = vmatprep.subr.bf16.mxu0 0
      %2200 = vmatpush1.bf16.msra.mxu0 %v2193
      %2201 = vmatprep.subr.bf16.mxu0 0
      %2202 = vmatpush1.bf16.msra.mxu0 0
      %2203 = vmatprep.subr.bf16.mxu0 0
      %2204 = vmatpush1.bf16.msra.mxu0 0
      %2205 = vmatprep.subr.bf16.mxu0 0
      %2206 = vmatpush1.bf16.msra.mxu0 0
      %2207 = vmatprep.subr.bf16.mxu0 0
      %2208 = vmatpush1.bf16.msra.mxu0 0
      %2209 = vmatprep.subr.bf16.mxu0 0
      %2210 = vmatpush1.bf16.msra.mxu0 0
      %2211 = vmatprep.subr.bf16.mxu0 0
      %2212 = vmatpush1.bf16.msra.mxu0 0
      %2213 = vmatprep.subr.bf16.mxu0 0
      %2214 = vmatpush1.bf16.msra.mxu0 0
      %2215 = vmatprep.subr.bf16.mxu0 0
      %2216 = vmatpush1.bf16.msra.mxu0 0
      %2217 = vmatprep.subr.bf16.mxu0 0
      %2218 = vmatpush1.bf16.msra.mxu0 0
      %2219 = vmatprep.subr.bf16.mxu0 0
      %2220 = vmatpush1.bf16.msra.mxu0 0
      %2221 = vmatprep.subr.bf16.mxu0 0
      %2222 = vmatpush1.bf16.msra.mxu0 0
      %2223 = vmatprep.subr.bf16.mxu0 0
      %2224 = vmatpush1.bf16.msra.mxu0 0
      %2225 = vmatprep.subr.bf16.mxu0 0
      %2226 = vmatpush1.bf16.msra.mxu0 0
      %2227 = vmatprep.mubr.bf16.mxu0 0
      %2228 = vmatmul.mubr.bf16.gmra.mrb[0].mxu0 %v2143
      %v2229 = vpop.f32.mrb[0].mxu0
      %v2230 = vadd.f32 %v2125, %v2229
      %v2231 = vpop.f32.mrb[0].mxu0
      %v2232 = vpop.f32.mrb[0].mxu0
      %v2233 = vadd.f32 %v2125, %v2232
      %v2234 = vpop.f32.mrb[0].mxu0
      %2235 = vmatprep.mubr.bf16.mxu0 0
      %2236 = vmatmul.mubr.bf16.gmra.mrb[0].mxu0 %v2145
      %v2237 = vpop.f32.mrb[0].mxu0
      %v2238 = vpop.f32.mrb[0].mxu0
      %v2239 = vpop.f32.mrb[0].mxu0
      %v2240 = vadd.f32 %v2125, %v2239
      %v2241 = vpop.f32.mrb[0].mxu0
      %2242 = vmatprep.mubr.bf16.mxu0 0
      %2243 = vmatmul.mubr.bf16.gmra.mrb[0].mxu0 %v2147
      %v2244 = vpop.f32.mrb[0].mxu0
      %v2245 = vadd.f32 %v2125, %v2244
      %v2246 = vpop.f32.mrb[0].mxu0
      %v2247 = vpop.f32.mrb[0].mxu0
      %v2248 = vpop.f32.mrb[0].mxu0
      %2249 = vmatprep.mubr.bf16.mxu0 0
      %2250 = vmatmul.mubr.bf16.gmra.mrb[0].mxu0 %v2149
      %v2251 = vpop.f32.mrb[0].mxu0
      %v2252 = vadd.f32 %v2125, %v2251
      %v2253 = vpop.f32.mrb[0].mxu0
      %v2254 = vpop.f32.mrb[0].mxu0
      %v2255 = vadd.f32 %v2125, %v2254
      %v2256 = vpop.f32.mrb[0].mxu0
      %2257 = vmatprep.mubr.bf16.mxu0 0
      %2258 = vmatmul.mubr.bf16.gmra.mrb[0].mxu0 %v2151
      %v2259 = vpop.f32.mrb[0].mxu0
      %v2260 = vpop.f32.mrb[0].mxu0
      %v2261 = vpop.f32.mrb[0].mxu0
      %v2262 = vadd.f32 %v2125, %v2261
      %v2263 = vpop.f32.mrb[0].mxu0
      %2264 = vmatprep.mubr.bf16.mxu0 0
      %2265 = vmatmul.mubr.bf16.gmra.mrb[0].mxu0 %v2153
      %v2266 = vpop.f32.mrb[0].mxu0
      %v2267 = vadd.f32 %v2125, %v2266
      %v2268 = vpop.f32.mrb[0].mxu0
      %v2269 = vpop.f32.mrb[0].mxu0
      %v2270 = vpop.f32.mrb[0].mxu0
      %2271 = vmatprep.mubr.bf16.mxu0 0
      %2272 = vmatmul.mubr.bf16.gmra.mrb[0].mxu0 %v2155
      %v2273 = vpop.f32.mrb[0].mxu0
      %v2274 = vadd.f32 %v2125, %v2273
      %v2275 = vpop.f32.mrb[0].mxu0
      %v2276 = vpop.f32.mrb[0].mxu0
      %v2277 = vadd.f32 %v2125, %v2276
      %v2278 = vpop.f32.mrb[0].mxu0
      %2279 = vmatprep.mubr.bf16.mxu0 0
      %2280 = vmatmul.mubr.bf16.gmra.mrb[0].mxu0 %v2157
      %v2281 = vpop.f32.mrb[0].mxu0
      %v2282 = vpop.f32.mrb[0].mxu0
      %v2283 = vpop.f32.mrb[0].mxu0
      %v2284 = vadd.f32 %v2125, %v2283
      %v2285 = vpop.f32.mrb[0].mxu0
      %2286 = vmatprep.mubr.bf16.mxu0 0
      %2287 = vmatmul.mubr.bf16.gmra.mrb[0].mxu0 %v2159
      %v2288 = vpop.f32.mrb[0].mxu0
      %v2289 = vadd.f32 %v2125, %v2288
      %v2290 = vpop.f32.mrb[0].mxu0
      %v2291 = vpop.f32.mrb[0].mxu0
      %v2292 = vpop.f32.mrb[0].mxu0
      %2293 = vmatprep.mubr.bf16.mxu0 0
      %2294 = vmatmul.mubr.bf16.gmra.mrb[0].mxu0 %v2161
      %v2295 = vpop.f32.mrb[0].mxu0
      %v2296 = vadd.f32 %v2125, %v2295
      %v2297 = vpop.f32.mrb[0].mxu0
      %v2298 = vpop.f32.mrb[0].mxu0
      %v2299 = vadd.f32 %v2125, %v2298
      %v2300 = vpop.f32.mrb[0].mxu0
      %2301 = vmatprep.mubr.bf16.mxu0 0
      %2302 = vmatmul.mubr.bf16.gmra.mrb[0].mxu0 %v2163
      %v2303 = vpop.f32.mrb[0].mxu0
      %v2304 = vpop.f32.mrb[0].mxu0
      %v2305 = vpop.f32.mrb[0].mxu0
      %v2306 = vadd.f32 %v2125, %v2305
      %v2307 = vpop.f32.mrb[0].mxu0
      %2308 = vmatprep.mubr.bf16.mxu0 0
      %2309 = vmatmul.mubr.bf16.gmra.mrb[0].mxu0 %v2165
      %v2310 = vpop.f32.mrb[0].mxu0
      %v2311 = vadd.f32 %v2125, %v2310
      %v2312 = vpop.f32.mrb[0].mxu0
      %v2313 = vpop.f32.mrb[0].mxu0
      %v2314 = vpop.f32.mrb[0].mxu0
      %2315 = vmatprep.mubr.bf16.mxu0 0
      %2316 = vmatmul.mubr.bf16.gmra.mrb[0].mxu0 %v2167
      %v2317 = vpop.f32.mrb[0].mxu0
      %v2318 = vadd.f32 %v2125, %v2317
      %v2319 = vpop.f32.mrb[0].mxu0
      %v2320 = vpop.f32.mrb[0].mxu0
      %v2321 = vadd.f32 %v2125, %v2320
      %v2322 = vpop.f32.mrb[0].mxu0
      %2323 = vmatprep.mubr.bf16.mxu0 0
      %2324 = vmatmul.mubr.bf16.gmra.mrb[0].mxu0 %v2169
      %v2325 = vpop.f32.mrb[0].mxu0
      %v2326 = vpop.f32.mrb[0].mxu0
      %v2327 = vpop.f32.mrb[0].mxu0
      %v2328 = vadd.f32 %v2125, %v2327
      %v2329 = vpop.f32.mrb[0].mxu0
      %2330 = vmatprep.mubr.bf16.mxu0 0
      %2331 = vmatmul.mubr.bf16.gmra.mrb[0].mxu0 %v2171
      %v2332 = vpop.f32.mrb[0].mxu0
      %v2333 = vadd.f32 %v2125, %v2332
      %v2334 = vpop.f32.mrb[0].mxu0
      %v2335 = vpop.f32.mrb[0].mxu0
      %v2336 = vpop.f32.mrb[0].mxu0
      %2337 = vmatprep.mubr.bf16.mxu0 0
      %2338 = vmatmul.mubr.bf16.gmra.mrb[0].mxu0 %v2173
      %v2339 = vpop.f32.mrb[0].mxu0
      %v2340 = vadd.f32 %v2125, %v2339
      %v2341 = vpop.f32.mrb[0].mxu0
      %v2342 = vpop.f32.mrb[0].mxu0
      %v2343 = vadd.f32 %v2125, %v2342
      %v2344 = vpop.f32.mrb[0].mxu0
      %2345 = vmatprep.mubr.bf16.mxu0 0
      %2346 = vmatmul.mubr.bf16.gmra.mrb[0].mxu0 %v2175
      %v2347 = vpop.f32.mrb[0].mxu0
      %v2348 = vpop.f32.mrb[0].mxu0
      %v2349 = vpop.f32.mrb[0].mxu0
      %v2350 = vadd.f32 %v2125, %v2349
      %v2351 = vpop.f32.mrb[0].mxu0
      %2352 = vmatprep.mubr.bf16.mxu0 0
      %2353 = vmatmul.mubr.bf16.gmra.mrb[0].mxu0 %v2177
      %v2354 = vpop.f32.mrb[0].mxu0
      %v2355 = vadd.f32 %v2125, %v2354
      %v2356 = vpop.f32.mrb[0].mxu0
      %v2357 = vpop.f32.mrb[0].mxu0
      %v2358 = vpop.f32.mrb[0].mxu0
      %2359 = vmatprep.mubr.bf16.mxu0 0
      %2360 = vmatmul.mubr.bf16.gmra.mrb[0].mxu0 %v2179
      %v2361 = vpop.f32.mrb[0].mxu0
      %v2362 = vadd.f32 %v2125, %v2361
      %v2363 = vpop.f32.mrb[0].mxu0
      %v2364 = vpop.f32.mrb[0].mxu0
      %v2365 = vadd.f32 %v2125, %v2364
      %v2366 = vpop.f32.mrb[0].mxu0
      %2367 = vmatprep.mubr.bf16.mxu0 0
      %2368 = vmatmul.mubr.bf16.gmra.mrb[0].mxu0 %v2181
      %v2369 = vpop.f32.mrb[0].mxu0
      %v2370 = vpop.f32.mrb[0].mxu0
      %v2371 = vpop.f32.mrb[0].mxu0
      %v2372 = vadd.f32 %v2125, %v2371
      %v2373 = vpop.f32.mrb[0].mxu0
      %2374 = vmatprep.mubr.bf16.mxu0 0
      %2375 = vmatmul.mubr.bf16.gmra.mrb[0].mxu0 %v2183
      %v2376 = vpop.f32.mrb[0].mxu0
      %v2377 = vadd.f32 %v2125, %v2376
      %v2378 = vpop.f32.mrb[0].mxu0
      %v2379 = vpop.f32.mrb[0].mxu0
      %v2380 = vpop.f32.mrb[0].mxu0
      %2381 = vmatprep.mubr.bf16.mxu0 0
      %2382 = vmatmul.mubr.bf16.gmra.mrb[0].mxu0 %v2185
      %v2383 = vpop.f32.mrb[0].mxu0
      %v2384 = vadd.f32 %v2125, %v2383
      %v2385 = vpop.f32.mrb[0].mxu0
      %v2386 = vpop.f32.mrb[0].mxu0
      %v2387 = vadd.f32 %v2125, %v2386
      %v2388 = vpop.f32.mrb[0].mxu0
      %2389 = vmatprep.mubr.bf16.mxu0 0
      %2390 = vmatmul.mubr.bf16.gmra.mrb[0].mxu0 %v2187
      %v2391 = vpop.f32.mrb[0].mxu0
      %v2392 = vpop.f32.mrb[0].mxu0
      %v2393 = vpop.f32.mrb[0].mxu0
      %v2394 = vadd.f32 %v2125, %v2393
      %v2395 = vpop.f32.mrb[0].mxu0
      %2396 = vmatprep.mubr.bf16.mxu0 0
      %2397 = vmatmul.mubr.bf16.gmra.mrb[0].mxu0 %v2189
      %v2398 = vpop.f32.mrb[0].mxu0
      %v2399 = vadd.f32 %v2125, %v2398
      %v2400 = vpop.f32.mrb[0].mxu0
      %v2401 = vpop.f32.mrb[0].mxu0
      %v2402 = vpop.f32.mrb[0].mxu0
      %2403 = vdwg.mxu0
      %v2404 = vmax.f32 %v2230, 0.0
      %v2405 = vmax.f32 %v2233, 0.0
      %v2406 = vmax.f32 %v2240, 0.0
      %v2407 = vmax.f32 %v2245, 0.0
      %v2408 = vmax.f32 %v2252, 0.0
      %v2409 = vmax.f32 %v2255, 0.0
      %v2410 = vmax.f32 %v2262, 0.0
      %v2411 = vmax.f32 %v2267, 0.0
      %v2412 = vmax.f32 %v2274, 0.0
      %v2413 = vmax.f32 %v2277, 0.0
      %v2414 = vmax.f32 %v2284, 0.0
      %v2415 = vmax.f32 %v2289, 0.0
      %v2416 = vmax.f32 %v2296, 0.0
      %v2417 = vmax.f32 %v2299, 0.0
      %v2418 = vmax.f32 %v2306, 0.0
      %v2419 = vmax.f32 %v2311, 0.0
      %v2420 = vmax.f32 %v2318, 0.0
      %v2421 = vmax.f32 %v2321, 0.0
      %v2422 = vmax.f32 %v2328, 0.0
      %v2423 = vmax.f32 %v2333, 0.0
      %v2424 = vmax.f32 %v2340, 0.0
      %v2425 = vmax.f32 %v2343, 0.0
      %v2426 = vmax.f32 %v2350, 0.0
      %v2427 = vmax.f32 %v2355, 0.0
      %v2428 = vmax.f32 %v2362, 0.0
      %v2429 = vmax.f32 %v2365, 0.0
      %v2430 = vmax.f32 %v2372, 0.0
      %v2431 = vmax.f32 %v2377, 0.0
      %v2432 = vmax.f32 %v2384, 0.0
      %v2433 = vmax.f32 %v2387, 0.0
      %v2434 = vmax.f32 %v2394, 0.0
      %v2435 = vmax.f32 %v2399, 0.0
      %v2436 = vpack.c.bf16 %v2405, %v2404
      %v2437 = vpack.c.bf16 %v2407, %v2406
      %v2438 = vpack.c.bf16 %v2409, %v2408
      %v2439 = vpack.c.bf16 %v2411, %v2410
      %v2440 = vpack.c.bf16 %v2413, %v2412
      %v2441 = vpack.c.bf16 %v2415, %v2414
      %v2442 = vpack.c.bf16 %v2417, %v2416
      %v2443 = vpack.c.bf16 %v2419, %v2418
      %v2444 = vpack.c.bf16 %v2421, %v2420
      %v2445 = vpack.c.bf16 %v2423, %v2422
      %v2446 = vpack.c.bf16 %v2425, %v2424
      %v2447 = vpack.c.bf16 %v2427, %v2426
      %v2448 = vpack.c.bf16 %v2429, %v2428
      %v2449 = vpack.c.bf16 %v2431, %v2430
      %v2450 = vpack.c.bf16 %v2433, %v2432
      %v2451 = vpack.c.bf16 %v2435, %v2434
      %v2468 = vunpack.c.l.b16 %v2436
      %v2469 = vunpack.c.h.b16 %v2436
      %v2470 = vunpack.c.l.b16 %v2437
      %v2471 = vunpack.c.h.b16 %v2437
      %v2472 = vunpack.c.l.b16 %v2438
      %v2473 = vunpack.c.h.b16 %v2438
      %v2474 = vunpack.c.l.b16 %v2439
      %v2475 = vunpack.c.h.b16 %v2439
      %v2476 = vunpack.c.l.b16 %v2440
      %v2477 = vunpack.c.h.b16 %v2440
      %v2478 = vunpack.c.l.b16 %v2441
      %v2479 = vunpack.c.h.b16 %v2441
      %v2480 = vunpack.c.l.b16 %v2442
      %v2481 = vunpack.c.h.b16 %v2442
      %v2482 = vunpack.c.l.b16 %v2443
      %v2483 = vunpack.c.h.b16 %v2443
      %v2484 = vunpack.c.l.b16 %v2444
      %v2485 = vunpack.c.h.b16 %v2444
      %v2486 = vunpack.c.l.b16 %v2445
      %v2487 = vunpack.c.h.b16 %v2445
      %v2488 = vunpack.c.l.b16 %v2446
      %v2489 = vunpack.c.h.b16 %v2446
      %v2490 = vunpack.c.l.b16 %v2447
      %v2491 = vunpack.c.h.b16 %v2447
      %v2492 = vunpack.c.l.b16 %v2448
      %v2493 = vunpack.c.h.b16 %v2448
      %v2494 = vunpack.c.l.b16 %v2449
      %v2495 = vunpack.c.h.b16 %v2449
      %v2496 = vunpack.c.l.b16 %v2450
      %v2497 = vunpack.c.h.b16 %v2450
      %v2498 = vunpack.c.l.b16 %v2451
      %v2499 = vunpack.c.h.b16 %v2451
      %v2500 = vpack.c.b16 %v2468, %v2468
      %v2501 = vpack.c.b16 %v2469, %v2469
      %v2502 = vpack.c.b16 %v2470, %v2470
      %v2503 = vpack.c.b16 %v2471, %v2471
      %v2504 = vpack.c.b16 %v2472, %v2472
      %v2505 = vpack.c.b16 %v2473, %v2473
      %v2506 = vpack.c.b16 %v2474, %v2474
      %v2507 = vpack.c.b16 %v2475, %v2475
      %v2508 = vpack.c.b16 %v2476, %v2476
      %v2509 = vpack.c.b16 %v2477, %v2477
      %v2510 = vpack.c.b16 %v2478, %v2478
      %v2511 = vpack.c.b16 %v2479, %v2479
      %v2512 = vpack.c.b16 %v2480, %v2480
      %v2513 = vpack.c.b16 %v2481, %v2481
      %v2514 = vpack.c.b16 %v2482, %v2482
      %v2515 = vpack.c.b16 %v2483, %v2483
      %v2516 = vpack.c.b16 %v2484, %v2484
      %v2517 = vpack.c.b16 %v2485, %v2485
      %v2518 = vpack.c.b16 %v2486, %v2486
      %v2519 = vpack.c.b16 %v2487, %v2487
      %v2520 = vpack.c.b16 %v2488, %v2488
      %v2521 = vpack.c.b16 %v2489, %v2489
      %v2522 = vpack.c.b16 %v2490, %v2490
      %v2523 = vpack.c.b16 %v2491, %v2491
      %v2524 = vpack.c.b16 %v2492, %v2492
      %v2525 = vpack.c.b16 %v2493, %v2493
      %v2526 = vpack.c.b16 %v2494, %v2494
      %v2527 = vpack.c.b16 %v2495, %v2495
      %v2528 = vpack.c.b16 %v2496, %v2496
      %v2529 = vpack.c.b16 %v2497, %v2497
      %v2530 = vpack.c.b16 %v2498, %v2498
      %v2531 = vpack.c.b16 %v2499, %v2499
      %2564 = vst [vmem:[%s346] sm:$0xf] %v2500
      %2565 = vst [vmem:[%s346 + $0x4] sm:$0xf] %v2501
      %2566 = vst [vmem:[%s346 + $0x8] sm:$0xf] %v2502
      %2567 = vst [vmem:[%s346 + $0xc] sm:$0xf] %v2503
      %2568 = vst [vmem:[%s346 + $0x10] sm:$0xf] %v2504
      %2569 = vst [vmem:[%s346 + $0x14] sm:$0xf] %v2505
      %2570 = vst [vmem:[%s346 + $0x18] sm:$0xf] %v2506
      %2571 = vst [vmem:[%s346 + $0x1c] sm:$0xf] %v2507
      %2572 = vst [vmem:[%s346 + $0x20] sm:$0xf] %v2508
      %2573 = vst [vmem:[%s346 + $0x24] sm:$0xf] %v2509
      %2574 = vst [vmem:[%s346 + $0x28] sm:$0xf] %v2510
      %2575 = vst [vmem:[%s346 + $0x2c] sm:$0xf] %v2511
      %2576 = vst [vmem:[%s346 + $0x30] sm:$0xf] %v2512
      %2577 = vst [vmem:[%s346 + $0x34] sm:$0xf] %v2513
      %2578 = vst [vmem:[%s346 + $0x38] sm:$0xf] %v2514
      %2579 = vst [vmem:[%s346 + $0x3c] sm:$0xf] %v2515
      %2580 = vst [vmem:[%s346 + $0x40] sm:$0xf] %v2516
      %2581 = vst [vmem:[%s346 + $0x44] sm:$0xf] %v2517
      %2582 = vst [vmem:[%s346 + $0x48] sm:$0xf] %v2518
      %2583 = vst [vmem:[%s346 + $0x4c] sm:$0xf] %v2519
      %2584 = vst [vmem:[%s346 + $0x50] sm:$0xf] %v2520
      %2585 = vst [vmem:[%s346 + $0x54] sm:$0xf] %v2521
      %2586 = vst [vmem:[%s346 + $0x58] sm:$0xf] %v2522
      %2587 = vst [vmem:[%s346 + $0x5c] sm:$0xf] %v2523
      %2588 = vst [vmem:[%s346 + $0x60] sm:$0xf] %v2524
      %2589 = vst [vmem:[%s346 + $0x64] sm:$0xf] %v2525
      %2590 = vst [vmem:[%s346 + $0x68] sm:$0xf] %v2526
      %2591 = vst [vmem:[%s346 + $0x6c] sm:$0xf] %v2527
      %2592 = vst [vmem:[%s346 + $0x70] sm:$0xf] %v2528
      %2593 = vst [vmem:[%s346 + $0x74] sm:$0xf] %v2529
      %2594 = vst [vmem:[%s346 + $0x78] sm:$0xf] %v2530
      %2595 = vst [vmem:[%s346 + $0x7c] sm:$0xf] %v2531
      %v2596 = vld [vmem:[%s335] sm:$0x3]
      %v2597 = vld [vmem:[%s338] sm:$0x1]
      %v2599 = vlaneseq
      %v2600 = vshrl.u32 %v2599, 7
      %v2601 = vsub.s32 0, %v2600
      %v2602 = vrot.slane %v2597, %v2601
      %v2604 = vsel %vm1723, %v484, 0
      %v2606 = vsel %vm1723, %v485, 0
      %v2608 = vsel %vm1723, %v486, 0
      %v2610 = vsel %vm1723, %v487, 0
      %v2612 = vsel %vm1723, %v488, 0
      %v2614 = vsel %vm1723, %v489, 0
      %v2616 = vsel %vm1723, %v490, 0
      %v2618 = vsel %vm1723, %v491, 0
      %v2620 = vsel %vm1723, %v492, 0
      %v2622 = vsel %vm1723, %v493, 0
      %v2624 = vsel %vm1723, %v494, 0
      %v2626 = vsel %vm1723, %v495, 0
      %v2628 = vsel %vm1723, %v496, 0
      %v2630 = vsel %vm1723, %v497, 0
      %v2632 = vsel %vm1723, %v498, 0
      %v2634 = vsel %vm1723, %v499, 0
      %v2637 = vsel %vm2191, %v2596, 0
      %2639 = vmatprep.subr.bf16.mxu0 0
      %2640 = vmatpush1.bf16.msra.mxu0 %v2637
      %2641 = vmatprep.subr.bf16.mxu0 0
      %2642 = vmatpush1.bf16.msra.mxu0 0
      %2643 = vmatprep.subr.bf16.mxu0 0
      %2644 = vmatpush1.bf16.msra.mxu0 0
      %2645 = vmatprep.subr.bf16.mxu0 0
      %2646 = vmatpush1.bf16.msra.mxu0 0
      %2647 = vmatprep.subr.bf16.mxu0 0
      %2648 = vmatpush1.bf16.msra.mxu0 0
      %2649 = vmatprep.subr.bf16.mxu0 0
      %2650 = vmatpush1.bf16.msra.mxu0 0
      %2651 = vmatprep.subr.bf16.mxu0 0
      %2652 = vmatpush1.bf16.msra.mxu0 0
      %2653 = vmatprep.subr.bf16.mxu0 0
      %2654 = vmatpush1.bf16.msra.mxu0 0
      %2655 = vmatprep.subr.bf16.mxu0 0
      %2656 = vmatpush1.bf16.msra.mxu0 0
      %2657 = vmatprep.subr.bf16.mxu0 0
      %2658 = vmatpush1.bf16.msra.mxu0 0
      %2659 = vmatprep.subr.bf16.mxu0 0
      %2660 = vmatpush1.bf16.msra.mxu0 0
      %2661 = vmatprep.subr.bf16.mxu0 0
      %2662 = vmatpush1.bf16.msra.mxu0 0
      %2663 = vmatprep.subr.bf16.mxu0 0
      %2664 = vmatpush1.bf16.msra.mxu0 0
      %2665 = vmatprep.subr.bf16.mxu0 0
      %2666 = vmatpush1.bf16.msra.mxu0 0
      %2667 = vmatprep.subr.bf16.mxu0 0
      %2668 = vmatpush1.bf16.msra.mxu0 0
      %2669 = vmatprep.subr.bf16.mxu0 0
      %2670 = vmatpush1.bf16.msra.mxu0 0
      %2671 = vmatprep.mubr.bf16.mxu0 0
      %2672 = vmatmul.mubr.bf16.gmra.mrb[0].mxu0 %v2604
      %v2673 = vpop.f32.mrb[0].mxu0
      %v2674 = vadd.f32 %v2602, %v2673
      %v2675 = vpop.f32.mrb[0].mxu0
      %v2676 = vpop.f32.mrb[0].mxu0
      %v2677 = vadd.f32 %v2602, %v2676
      %v2678 = vpop.f32.mrb[0].mxu0
      %2679 = vmatprep.mubr.bf16.mxu0 0
      %2680 = vmatmul.mubr.bf16.gmra.mrb[0].mxu0 %v2606
      %v2681 = vpop.f32.mrb[0].mxu0
      %v2682 = vadd.f32 %v2602, %v2681
      %v2683 = vpop.f32.mrb[0].mxu0
      %v2684 = vpop.f32.mrb[0].mxu0
      %v2685 = vadd.f32 %v2602, %v2684
      %v2686 = vpop.f32.mrb[0].mxu0
      %2687 = vmatprep.mubr.bf16.mxu0 0
      %2688 = vmatmul.mubr.bf16.gmra.mrb[0].mxu0 %v2608
      %v2689 = vpop.f32.mrb[0].mxu0
      %v2690 = vadd.f32 %v2602, %v2689
      %v2691 = vpop.f32.mrb[0].mxu0
      %v2692 = vpop.f32.mrb[0].mxu0
      %v2693 = vadd.f32 %v2602, %v2692
      %v2694 = vpop.f32.mrb[0].mxu0
      %2695 = vmatprep.mubr.bf16.mxu0 0
      %2696 = vmatmul.mubr.bf16.gmra.mrb[0].mxu0 %v2610
      %v2697 = vpop.f32.mrb[0].mxu0
      %v2698 = vadd.f32 %v2602, %v2697
      %v2699 = vpop.f32.mrb[0].mxu0
      %v2700 = vpop.f32.mrb[0].mxu0
      %v2701 = vadd.f32 %v2602, %v2700
      %v2702 = vpop.f32.mrb[0].mxu0
      %2703 = vmatprep.mubr.bf16.mxu0 0
      %2704 = vmatmul.mubr.bf16.gmra.mrb[0].mxu0 %v2612
      %v2705 = vpop.f32.mrb[0].mxu0
      %v2706 = vadd.f32 %v2602, %v2705
      %v2707 = vpop.f32.mrb[0].mxu0
      %v2708 = vpop.f32.mrb[0].mxu0
      %v2709 = vadd.f32 %v2602, %v2708
      %v2710 = vpop.f32.mrb[0].mxu0
      %2711 = vmatprep.mubr.bf16.mxu0 0
      %2712 = vmatmul.mubr.bf16.gmra.mrb[0].mxu0 %v2614
      %v2713 = vpop.f32.mrb[0].mxu0
      %v2714 = vadd.f32 %v2602, %v2713
      %v2715 = vpop.f32.mrb[0].mxu0
      %v2716 = vpop.f32.mrb[0].mxu0
      %v2717 = vadd.f32 %v2602, %v2716
      %v2718 = vpop.f32.mrb[0].mxu0
      %2719 = vmatprep.mubr.bf16.mxu0 0
      %2720 = vmatmul.mubr.bf16.gmra.mrb[0].mxu0 %v2616
      %v2721 = vpop.f32.mrb[0].mxu0
      %v2722 = vadd.f32 %v2602, %v2721
      %v2723 = vpop.f32.mrb[0].mxu0
      %v2724 = vpop.f32.mrb[0].mxu0
      %v2725 = vadd.f32 %v2602, %v2724
      %v2726 = vpop.f32.mrb[0].mxu0
      %2727 = vmatprep.mubr.bf16.mxu0 0
      %2728 = vmatmul.mubr.bf16.gmra.mrb[0].mxu0 %v2618
      %v2729 = vpop.f32.mrb[0].mxu0
      %v2730 = vadd.f32 %v2602, %v2729
      %v2731 = vpop.f32.mrb[0].mxu0
      %v2732 = vpop.f32.mrb[0].mxu0
      %v2733 = vadd.f32 %v2602, %v2732
      %v2734 = vpop.f32.mrb[0].mxu0
      %2735 = vmatprep.mubr.bf16.mxu0 0
      %2736 = vmatmul.mubr.bf16.gmra.mrb[0].mxu0 %v2620
      %v2737 = vpop.f32.mrb[0].mxu0
      %v2738 = vadd.f32 %v2602, %v2737
      %v2739 = vpop.f32.mrb[0].mxu0
      %v2740 = vpop.f32.mrb[0].mxu0
      %v2741 = vadd.f32 %v2602, %v2740
      %v2742 = vpop.f32.mrb[0].mxu0
      %2743 = vmatprep.mubr.bf16.mxu0 0
      %2744 = vmatmul.mubr.bf16.gmra.mrb[0].mxu0 %v2622
      %v2745 = vpop.f32.mrb[0].mxu0
      %v2746 = vadd.f32 %v2602, %v2745
      %v2747 = vpop.f32.mrb[0].mxu0
      %v2748 = vpop.f32.mrb[0].mxu0
      %v2749 = vadd.f32 %v2602, %v2748
      %v2750 = vpop.f32.mrb[0].mxu0
      %2751 = vmatprep.mubr.bf16.mxu0 0
      %2752 = vmatmul.mubr.bf16.gmra.mrb[0].mxu0 %v2624
      %v2753 = vpop.f32.mrb[0].mxu0
      %v2754 = vadd.f32 %v2602, %v2753
      %v2755 = vpop.f32.mrb[0].mxu0
      %v2756 = vpop.f32.mrb[0].mxu0
      %v2757 = vadd.f32 %v2602, %v2756
      %v2758 = vpop.f32.mrb[0].mxu0
      %2759 = vmatprep.mubr.bf16.mxu0 0
      %2760 = vmatmul.mubr.bf16.gmra.mrb[0].mxu0 %v2626
      %v2761 = vpop.f32.mrb[0].mxu0
      %v2762 = vadd.f32 %v2602, %v2761
      %v2763 = vpop.f32.mrb[0].mxu0
      %v2764 = vpop.f32.mrb[0].mxu0
      %v2765 = vadd.f32 %v2602, %v2764
      %v2766 = vpop.f32.mrb[0].mxu0
      %2767 = vmatprep.mubr.bf16.mxu0 0
      %2768 = vmatmul.mubr.bf16.gmra.mrb[0].mxu0 %v2628
      %v2769 = vpop.f32.mrb[0].mxu0
      %v2770 = vadd.f32 %v2602, %v2769
      %v2771 = vpop.f32.mrb[0].mxu0
      %v2772 = vpop.f32.mrb[0].mxu0
      %v2773 = vadd.f32 %v2602, %v2772
      %v2774 = vpop.f32.mrb[0].mxu0
      %2775 = vmatprep.mubr.bf16.mxu0 0
      %2776 = vmatmul.mubr.bf16.gmra.mrb[0].mxu0 %v2630
      %v2777 = vpop.f32.mrb[0].mxu0
      %v2778 = vadd.f32 %v2602, %v2777
      %v2779 = vpop.f32.mrb[0].mxu0
      %v2780 = vpop.f32.mrb[0].mxu0
      %v2781 = vadd.f32 %v2602, %v2780
      %v2782 = vpop.f32.mrb[0].mxu0
      %2783 = vmatprep.mubr.bf16.mxu0 0
      %2784 = vmatmul.mubr.bf16.gmra.mrb[0].mxu0 %v2632
      %v2785 = vpop.f32.mrb[0].mxu0
      %v2786 = vadd.f32 %v2602, %v2785
      %v2787 = vpop.f32.mrb[0].mxu0
      %v2788 = vpop.f32.mrb[0].mxu0
      %v2789 = vadd.f32 %v2602, %v2788
      %v2790 = vpop.f32.mrb[0].mxu0
      %2791 = vmatprep.mubr.bf16.mxu0 0
      %2792 = vmatmul.mubr.bf16.gmra.mrb[0].mxu0 %v2634
      %v2793 = vpop.f32.mrb[0].mxu0
      %v2794 = vadd.f32 %v2602, %v2793
      %v2795 = vpop.f32.mrb[0].mxu0
      %v2796 = vpop.f32.mrb[0].mxu0
      %v2797 = vadd.f32 %v2602, %v2796
      %v2798 = vpop.f32.mrb[0].mxu0
      %2799 = vdwg.mxu0
      %v2832 = vcombine.high %v2674, %v2674
      %v2834 = vunpack.c.l.s4 1983009808
      %v2835 = vunpack.c.0.s8 %v2834
      %v2836 = vlaneseq
      %v2837 = vshrl.u32 %v2836, 7
      %v2838 = vsub.s32 %v2835, %v2837
      %v2839 = vrot.slane %v2674, %v2838
      %v2841 = vunpack.c.l.s4 1983009808
      %v2842 = vunpack.c.0.s8 %v2841
      %v2843 = vlaneseq
      %v2844 = vshrl.u32 %v2843, 7
      %v2845 = vsub.s32 %v2842, %v2844
      %v2846 = vrot.slane %v2832, %v2845
      %v2847 = vcombine.high %v2839, %v2839
      %v2848 = vcombine.high %v2846, %v2846
      %v2849 = vcombine.high %v2677, %v2677
      %v2851 = vunpack.c.l.s4 1983009808
      %v2852 = vunpack.c.0.s8 %v2851
      %v2853 = vlaneseq
      %v2854 = vshrl.u32 %v2853, 7
      %v2855 = vsub.s32 %v2852, %v2854
      %v2856 = vrot.slane %v2677, %v2855
      %v2858 = vunpack.c.l.s4 1983009808
      %v2859 = vunpack.c.0.s8 %v2858
      %v2860 = vlaneseq
      %v2861 = vshrl.u32 %v2860, 7
      %v2862 = vsub.s32 %v2859, %v2861
      %v2863 = vrot.slane %v2849, %v2862
      %v2864 = vcombine.high %v2856, %v2856
      %v2865 = vcombine.high %v2863, %v2863
      %v2866 = vcombine.high %v2682, %v2682
      %v2868 = vunpack.c.l.s4 1983009808
      %v2869 = vunpack.c.0.s8 %v2868
      %v2870 = vlaneseq
      %v2871 = vshrl.u32 %v2870, 7
      %v2872 = vsub.s32 %v2869, %v2871
      %v2873 = vrot.slane %v2682, %v2872
      %v2875 = vunpack.c.l.s4 1983009808
      %v2876 = vunpack.c.0.s8 %v2875
      %v2877 = vlaneseq
      %v2878 = vshrl.u32 %v2877, 7
      %v2879 = vsub.s32 %v2876, %v2878
      %v2880 = vrot.slane %v2866, %v2879
      %v2881 = vcombine.high %v2873, %v2873
      %v2882 = vcombine.high %v2880, %v2880
      %v2883 = vcombine.high %v2685, %v2685
      %v2885 = vunpack.c.l.s4 1983009808
      %v2886 = vunpack.c.0.s8 %v2885
      %v2887 = vlaneseq
      %v2888 = vshrl.u32 %v2887, 7
      %v2889 = vsub.s32 %v2886, %v2888
      %v2890 = vrot.slane %v2685, %v2889
      %v2892 = vunpack.c.l.s4 1983009808
      %v2893 = vunpack.c.0.s8 %v2892
      %v2894 = vlaneseq
      %v2895 = vshrl.u32 %v2894, 7
      %v2896 = vsub.s32 %v2893, %v2895
      %v2897 = vrot.slane %v2883, %v2896
      %v2898 = vcombine.high %v2890, %v2890
      %v2899 = vcombine.high %v2897, %v2897
      %v2900 = vcombine.high %v2690, %v2690
      %v2902 = vunpack.c.l.s4 1983009808
      %v2903 = vunpack.c.0.s8 %v2902
      %v2904 = vlaneseq
      %v2905 = vshrl.u32 %v2904, 7
      %v2906 = vsub.s32 %v2903, %v2905
      %v2907 = vrot.slane %v2690, %v2906
      %v2909 = vunpack.c.l.s4 1983009808
      %v2910 = vunpack.c.0.s8 %v2909
      %v2911 = vlaneseq
      %v2912 = vshrl.u32 %v2911, 7
      %v2913 = vsub.s32 %v2910, %v2912
      %v2914 = vrot.slane %v2900, %v2913
      %v2915 = vcombine.high %v2907, %v2907
      %v2916 = vcombine.high %v2914, %v2914
      %v2917 = vcombine.high %v2693, %v2693
      %v2919 = vunpack.c.l.s4 1983009808
      %v2920 = vunpack.c.0.s8 %v2919
      %v2921 = vlaneseq
      %v2922 = vshrl.u32 %v2921, 7
      %v2923 = vsub.s32 %v2920, %v2922
      %v2924 = vrot.slane %v2693, %v2923
      %v2926 = vunpack.c.l.s4 1983009808
      %v2927 = vunpack.c.0.s8 %v2926
      %v2928 = vlaneseq
      %v2929 = vshrl.u32 %v2928, 7
      %v2930 = vsub.s32 %v2927, %v2929
      %v2931 = vrot.slane %v2917, %v2930
      %v2932 = vcombine.high %v2924, %v2924
      %v2933 = vcombine.high %v2931, %v2931
      %v2934 = vcombine.high %v2698, %v2698
      %v2936 = vunpack.c.l.s4 1983009808
      %v2937 = vunpack.c.0.s8 %v2936
      %v2938 = vlaneseq
      %v2939 = vshrl.u32 %v2938, 7
      %v2940 = vsub.s32 %v2937, %v2939
      %v2941 = vrot.slane %v2698, %v2940
      %v2943 = vunpack.c.l.s4 1983009808
      %v2944 = vunpack.c.0.s8 %v2943
      %v2945 = vlaneseq
      %v2946 = vshrl.u32 %v2945, 7
      %v2947 = vsub.s32 %v2944, %v2946
      %v2948 = vrot.slane %v2934, %v2947
      %v2949 = vcombine.high %v2941, %v2941
      %v2950 = vcombine.high %v2948, %v2948
      %v2951 = vcombine.high %v2701, %v2701
      %v2953 = vunpack.c.l.s4 1983009808
      %v2954 = vunpack.c.0.s8 %v2953
      %v2955 = vlaneseq
      %v2956 = vshrl.u32 %v2955, 7
      %v2957 = vsub.s32 %v2954, %v2956
      %v2958 = vrot.slane %v2701, %v2957
      %v2960 = vunpack.c.l.s4 1983009808
      %v2961 = vunpack.c.0.s8 %v2960
      %v2962 = vlaneseq
      %v2963 = vshrl.u32 %v2962, 7
      %v2964 = vsub.s32 %v2961, %v2963
      %v2965 = vrot.slane %v2951, %v2964
      %v2966 = vcombine.high %v2958, %v2958
      %v2967 = vcombine.high %v2965, %v2965
      %v2968 = vcombine.high %v2706, %v2706
      %v2970 = vunpack.c.l.s4 1983009808
      %v2971 = vunpack.c.0.s8 %v2970
      %v2972 = vlaneseq
      %v2973 = vshrl.u32 %v2972, 7
      %v2974 = vsub.s32 %v2971, %v2973
      %v2975 = vrot.slane %v2706, %v2974
      %v2977 = vunpack.c.l.s4 1983009808
      %v2978 = vunpack.c.0.s8 %v2977
      %v2979 = vlaneseq
      %v2980 = vshrl.u32 %v2979, 7
      %v2981 = vsub.s32 %v2978, %v2980
      %v2982 = vrot.slane %v2968, %v2981
      %v2983 = vcombine.high %v2975, %v2975
      %v2984 = vcombine.high %v2982, %v2982
      %v2985 = vcombine.high %v2709, %v2709
      %v2987 = vunpack.c.l.s4 1983009808
      %v2988 = vunpack.c.0.s8 %v2987
      %v2989 = vlaneseq
      %v2990 = vshrl.u32 %v2989, 7
      %v2991 = vsub.s32 %v2988, %v2990
      %v2992 = vrot.slane %v2709, %v2991
      %v2994 = vunpack.c.l.s4 1983009808
      %v2995 = vunpack.c.0.s8 %v2994
      %v2996 = vlaneseq
      %v2997 = vshrl.u32 %v2996, 7
      %v2998 = vsub.s32 %v2995, %v2997
      %v2999 = vrot.slane %v2985, %v2998
      %v3000 = vcombine.high %v2992, %v2992
      %v3001 = vcombine.high %v2999, %v2999
      %v3002 = vcombine.high %v2714, %v2714
      %v3004 = vunpack.c.l.s4 1983009808
      %v3005 = vunpack.c.0.s8 %v3004
      %v3006 = vlaneseq
      %v3007 = vshrl.u32 %v3006, 7
      %v3008 = vsub.s32 %v3005, %v3007
      %v3009 = vrot.slane %v2714, %v3008
      %v3011 = vunpack.c.l.s4 1983009808
      %v3012 = vunpack.c.0.s8 %v3011
      %v3013 = vlaneseq
      %v3014 = vshrl.u32 %v3013, 7
      %v3015 = vsub.s32 %v3012, %v3014
      %v3016 = vrot.slane %v3002, %v3015
      %v3017 = vcombine.high %v3009, %v3009
      %v3018 = vcombine.high %v3016, %v3016
      %v3019 = vcombine.high %v2717, %v2717
      %v3021 = vunpack.c.l.s4 1983009808
      %v3022 = vunpack.c.0.s8 %v3021
      %v3023 = vlaneseq
      %v3024 = vshrl.u32 %v3023, 7
      %v3025 = vsub.s32 %v3022, %v3024
      %v3026 = vrot.slane %v2717, %v3025
      %v3028 = vunpack.c.l.s4 1983009808
      %v3029 = vunpack.c.0.s8 %v3028
      %v3030 = vlaneseq
      %v3031 = vshrl.u32 %v3030, 7
      %v3032 = vsub.s32 %v3029, %v3031
      %v3033 = vrot.slane %v3019, %v3032
      %v3034 = vcombine.high %v3026, %v3026
      %v3035 = vcombine.high %v3033, %v3033
      %v3036 = vcombine.high %v2722, %v2722
      %v3038 = vunpack.c.l.s4 1983009808
      %v3039 = vunpack.c.0.s8 %v3038
      %v3040 = vlaneseq
      %v3041 = vshrl.u32 %v3040, 7
      %v3042 = vsub.s32 %v3039, %v3041
      %v3043 = vrot.slane %v2722, %v3042
      %v3045 = vunpack.c.l.s4 1983009808
      %v3046 = vunpack.c.0.s8 %v3045
      %v3047 = vlaneseq
      %v3048 = vshrl.u32 %v3047, 7
      %v3049 = vsub.s32 %v3046, %v3048
      %v3050 = vrot.slane %v3036, %v3049
      %v3051 = vcombine.high %v3043, %v3043
      %v3052 = vcombine.high %v3050, %v3050
      %v3053 = vcombine.high %v2725, %v2725
      %v3055 = vunpack.c.l.s4 1983009808
      %v3056 = vunpack.c.0.s8 %v3055
      %v3057 = vlaneseq
      %v3058 = vshrl.u32 %v3057, 7
      %v3059 = vsub.s32 %v3056, %v3058
      %v3060 = vrot.slane %v2725, %v3059
      %v3062 = vunpack.c.l.s4 1983009808
      %v3063 = vunpack.c.0.s8 %v3062
      %v3064 = vlaneseq
      %v3065 = vshrl.u32 %v3064, 7
      %v3066 = vsub.s32 %v3063, %v3065
      %v3067 = vrot.slane %v3053, %v3066
      %v3068 = vcombine.high %v3060, %v3060
      %v3069 = vcombine.high %v3067, %v3067
      %v3070 = vcombine.high %v2730, %v2730
      %v3072 = vunpack.c.l.s4 1983009808
      %v3073 = vunpack.c.0.s8 %v3072
      %v3074 = vlaneseq
      %v3075 = vshrl.u32 %v3074, 7
      %v3076 = vsub.s32 %v3073, %v3075
      %v3077 = vrot.slane %v2730, %v3076
      %v3079 = vunpack.c.l.s4 1983009808
      %v3080 = vunpack.c.0.s8 %v3079
      %v3081 = vlaneseq
      %v3082 = vshrl.u32 %v3081, 7
      %v3083 = vsub.s32 %v3080, %v3082
      %v3084 = vrot.slane %v3070, %v3083
      %v3085 = vcombine.high %v3077, %v3077
      %v3086 = vcombine.high %v3084, %v3084
      %v3087 = vcombine.high %v2733, %v2733
      %v3089 = vunpack.c.l.s4 1983009808
      %v3090 = vunpack.c.0.s8 %v3089
      %v3091 = vlaneseq
      %v3092 = vshrl.u32 %v3091, 7
      %v3093 = vsub.s32 %v3090, %v3092
      %v3094 = vrot.slane %v2733, %v3093
      %v3096 = vunpack.c.l.s4 1983009808
      %v3097 = vunpack.c.0.s8 %v3096
      %v3098 = vlaneseq
      %v3099 = vshrl.u32 %v3098, 7
      %v3100 = vsub.s32 %v3097, %v3099
      %v3101 = vrot.slane %v3087, %v3100
      %v3102 = vcombine.high %v3094, %v3094
      %v3103 = vcombine.high %v3101, %v3101
      %v3104 = vcombine.high %v2738, %v2738
      %v3106 = vunpack.c.l.s4 1983009808
      %v3107 = vunpack.c.0.s8 %v3106
      %v3108 = vlaneseq
      %v3109 = vshrl.u32 %v3108, 7
      %v3110 = vsub.s32 %v3107, %v3109
      %v3111 = vrot.slane %v2738, %v3110
      %v3113 = vunpack.c.l.s4 1983009808
      %v3114 = vunpack.c.0.s8 %v3113
      %v3115 = vlaneseq
      %v3116 = vshrl.u32 %v3115, 7
      %v3117 = vsub.s32 %v3114, %v3116
      %v3118 = vrot.slane %v3104, %v3117
      %v3119 = vcombine.high %v3111, %v3111
      %v3120 = vcombine.high %v3118, %v3118
      %v3121 = vcombine.high %v2741, %v2741
      %v3123 = vunpack.c.l.s4 1983009808
      %v3124 = vunpack.c.0.s8 %v3123
      %v3125 = vlaneseq
      %v3126 = vshrl.u32 %v3125, 7
      %v3127 = vsub.s32 %v3124, %v3126
      %v3128 = vrot.slane %v2741, %v3127
      %v3130 = vunpack.c.l.s4 1983009808
      %v3131 = vunpack.c.0.s8 %v3130
      %v3132 = vlaneseq
      %v3133 = vshrl.u32 %v3132, 7
      %v3134 = vsub.s32 %v3131, %v3133
      %v3135 = vrot.slane %v3121, %v3134
      %v3136 = vcombine.high %v3128, %v3128
      %v3137 = vcombine.high %v3135, %v3135
      %v3138 = vcombine.high %v2746, %v2746
      %v3140 = vunpack.c.l.s4 1983009808
      %v3141 = vunpack.c.0.s8 %v3140
      %v3142 = vlaneseq
      %v3143 = vshrl.u32 %v3142, 7
      %v3144 = vsub.s32 %v3141, %v3143
      %v3145 = vrot.slane %v2746, %v3144
      %v3147 = vunpack.c.l.s4 1983009808
      %v3148 = vunpack.c.0.s8 %v3147
      %v3149 = vlaneseq
      %v3150 = vshrl.u32 %v3149, 7
      %v3151 = vsub.s32 %v3148, %v3150
      %v3152 = vrot.slane %v3138, %v3151
      %v3153 = vcombine.high %v3145, %v3145
      %v3154 = vcombine.high %v3152, %v3152
      %v3155 = vcombine.high %v2749, %v2749
      %v3157 = vunpack.c.l.s4 1983009808
      %v3158 = vunpack.c.0.s8 %v3157
      %v3159 = vlaneseq
      %v3160 = vshrl.u32 %v3159, 7
      %v3161 = vsub.s32 %v3158, %v3160
      %v3162 = vrot.slane %v2749, %v3161
      %v3164 = vunpack.c.l.s4 1983009808
      %v3165 = vunpack.c.0.s8 %v3164
      %v3166 = vlaneseq
      %v3167 = vshrl.u32 %v3166, 7
      %v3168 = vsub.s32 %v3165, %v3167
      %v3169 = vrot.slane %v3155, %v3168
      %v3170 = vcombine.high %v3162, %v3162
      %v3171 = vcombine.high %v3169, %v3169
      %v3172 = vcombine.high %v2754, %v2754
      %v3174 = vunpack.c.l.s4 1983009808
      %v3175 = vunpack.c.0.s8 %v3174
      %v3176 = vlaneseq
      %v3177 = vshrl.u32 %v3176, 7
      %v3178 = vsub.s32 %v3175, %v3177
      %v3179 = vrot.slane %v2754, %v3178
      %v3181 = vunpack.c.l.s4 1983009808
      %v3182 = vunpack.c.0.s8 %v3181
      %v3183 = vlaneseq
      %v3184 = vshrl.u32 %v3183, 7
      %v3185 = vsub.s32 %v3182, %v3184
      %v3186 = vrot.slane %v3172, %v3185
      %v3187 = vcombine.high %v3179, %v3179
      %v3188 = vcombine.high %v3186, %v3186
      %v3189 = vcombine.high %v2757, %v2757
      %v3191 = vunpack.c.l.s4 1983009808
      %v3192 = vunpack.c.0.s8 %v3191
      %v3193 = vlaneseq
      %v3194 = vshrl.u32 %v3193, 7
      %v3195 = vsub.s32 %v3192, %v3194
      %v3196 = vrot.slane %v2757, %v3195
      %v3198 = vunpack.c.l.s4 1983009808
      %v3199 = vunpack.c.0.s8 %v3198
      %v3200 = vlaneseq
      %v3201 = vshrl.u32 %v3200, 7
      %v3202 = vsub.s32 %v3199, %v3201
      %v3203 = vrot.slane %v3189, %v3202
      %v3204 = vcombine.high %v3196, %v3196
      %v3205 = vcombine.high %v3203, %v3203
      %v3206 = vcombine.high %v2762, %v2762
      %v3208 = vunpack.c.l.s4 1983009808
      %v3209 = vunpack.c.0.s8 %v3208
      %v3210 = vlaneseq
      %v3211 = vshrl.u32 %v3210, 7
      %v3212 = vsub.s32 %v3209, %v3211
      %v3213 = vrot.slane %v2762, %v3212
      %v3215 = vunpack.c.l.s4 1983009808
      %v3216 = vunpack.c.0.s8 %v3215
      %v3217 = vlaneseq
      %v3218 = vshrl.u32 %v3217, 7
      %v3219 = vsub.s32 %v3216, %v3218
      %v3220 = vrot.slane %v3206, %v3219
      %v3221 = vcombine.high %v3213, %v3213
      %v3222 = vcombine.high %v3220, %v3220
      %v3223 = vcombine.high %v2765, %v2765
      %v3225 = vunpack.c.l.s4 1983009808
      %v3226 = vunpack.c.0.s8 %v3225
      %v3227 = vlaneseq
      %v3228 = vshrl.u32 %v3227, 7
      %v3229 = vsub.s32 %v3226, %v3228
      %v3230 = vrot.slane %v2765, %v3229
      %v3232 = vunpack.c.l.s4 1983009808
      %v3233 = vunpack.c.0.s8 %v3232
      %v3234 = vlaneseq
      %v3235 = vshrl.u32 %v3234, 7
      %v3236 = vsub.s32 %v3233, %v3235
      %v3237 = vrot.slane %v3223, %v3236
      %v3238 = vcombine.high %v3230, %v3230
      %v3239 = vcombine.high %v3237, %v3237
      %v3240 = vcombine.high %v2770, %v2770
      %v3242 = vunpack.c.l.s4 1983009808
      %v3243 = vunpack.c.0.s8 %v3242
      %v3244 = vlaneseq
      %v3245 = vshrl.u32 %v3244, 7
      %v3246 = vsub.s32 %v3243, %v3245
      %v3247 = vrot.slane %v2770, %v3246
      %v3249 = vunpack.c.l.s4 1983009808
      %v3250 = vunpack.c.0.s8 %v3249
      %v3251 = vlaneseq
      %v3252 = vshrl.u32 %v3251, 7
      %v3253 = vsub.s32 %v3250, %v3252
      %v3254 = vrot.slane %v3240, %v3253
      %v3255 = vcombine.high %v3247, %v3247
      %v3256 = vcombine.high %v3254, %v3254
      %v3257 = vcombine.high %v2773, %v2773
      %v3259 = vunpack.c.l.s4 1983009808
      %v3260 = vunpack.c.0.s8 %v3259
      %v3261 = vlaneseq
      %v3262 = vshrl.u32 %v3261, 7
      %v3263 = vsub.s32 %v3260, %v3262
      %v3264 = vrot.slane %v2773, %v3263
      %v3266 = vunpack.c.l.s4 1983009808
      %v3267 = vunpack.c.0.s8 %v3266
      %v3268 = vlaneseq
      %v3269 = vshrl.u32 %v3268, 7
      %v3270 = vsub.s32 %v3267, %v3269
      %v3271 = vrot.slane %v3257, %v3270
      %v3272 = vcombine.high %v3264, %v3264
      %v3273 = vcombine.high %v3271, %v3271
      %v3274 = vcombine.high %v2778, %v2778
      %v3276 = vunpack.c.l.s4 1983009808
      %v3277 = vunpack.c.0.s8 %v3276
      %v3278 = vlaneseq
      %v3279 = vshrl.u32 %v3278, 7
      %v3280 = vsub.s32 %v3277, %v3279
      %v3281 = vrot.slane %v2778, %v3280
      %v3283 = vunpack.c.l.s4 1983009808
      %v3284 = vunpack.c.0.s8 %v3283
      %v3285 = vlaneseq
      %v3286 = vshrl.u32 %v3285, 7
      %v3287 = vsub.s32 %v3284, %v3286
      %v3288 = vrot.slane %v3274, %v3287
      %v3289 = vcombine.high %v3281, %v3281
      %v3290 = vcombine.high %v3288, %v3288
      %v3291 = vcombine.high %v2781, %v2781
      %v3293 = vunpack.c.l.s4 1983009808
      %v3294 = vunpack.c.0.s8 %v3293
      %v3295 = vlaneseq
      %v3296 = vshrl.u32 %v3295, 7
      %v3297 = vsub.s32 %v3294, %v3296
      %v3298 = vrot.slane %v2781, %v3297
      %v3300 = vunpack.c.l.s4 1983009808
      %v3301 = vunpack.c.0.s8 %v3300
      %v3302 = vlaneseq
      %v3303 = vshrl.u32 %v3302, 7
      %v3304 = vsub.s32 %v3301, %v3303
      %v3305 = vrot.slane %v3291, %v3304
      %v3306 = vcombine.high %v3298, %v3298
      %v3307 = vcombine.high %v3305, %v3305
      %v3308 = vcombine.high %v2786, %v2786
      %v3310 = vunpack.c.l.s4 1983009808
      %v3311 = vunpack.c.0.s8 %v3310
      %v3312 = vlaneseq
      %v3313 = vshrl.u32 %v3312, 7
      %v3314 = vsub.s32 %v3311, %v3313
      %v3315 = vrot.slane %v2786, %v3314
      %v3317 = vunpack.c.l.s4 1983009808
      %v3318 = vunpack.c.0.s8 %v3317
      %v3319 = vlaneseq
      %v3320 = vshrl.u32 %v3319, 7
      %v3321 = vsub.s32 %v3318, %v3320
      %v3322 = vrot.slane %v3308, %v3321
      %v3323 = vcombine.high %v3315, %v3315
      %v3324 = vcombine.high %v3322, %v3322
      %v3325 = vcombine.high %v2789, %v2789
      %v3327 = vunpack.c.l.s4 1983009808
      %v3328 = vunpack.c.0.s8 %v3327
      %v3329 = vlaneseq
      %v3330 = vshrl.u32 %v3329, 7
      %v3331 = vsub.s32 %v3328, %v3330
      %v3332 = vrot.slane %v2789, %v3331
      %v3334 = vunpack.c.l.s4 1983009808
      %v3335 = vunpack.c.0.s8 %v3334
      %v3336 = vlaneseq
      %v3337 = vshrl.u32 %v3336, 7
      %v3338 = vsub.s32 %v3335, %v3337
      %v3339 = vrot.slane %v3325, %v3338
      %v3340 = vcombine.high %v3332, %v3332
      %v3341 = vcombine.high %v3339, %v3339
      %v3342 = vcombine.high %v2794, %v2794
      %v3344 = vunpack.c.l.s4 1983009808
      %v3345 = vunpack.c.0.s8 %v3344
      %v3346 = vlaneseq
      %v3347 = vshrl.u32 %v3346, 7
      %v3348 = vsub.s32 %v3345, %v3347
      %v3349 = vrot.slane %v2794, %v3348
      %v3351 = vunpack.c.l.s4 1983009808
      %v3352 = vunpack.c.0.s8 %v3351
      %v3353 = vlaneseq
      %v3354 = vshrl.u32 %v3353, 7
      %v3355 = vsub.s32 %v3352, %v3354
      %v3356 = vrot.slane %v3342, %v3355
      %v3357 = vcombine.high %v3349, %v3349
      %v3358 = vcombine.high %v3356, %v3356
      %v3359 = vcombine.high %v2797, %v2797
      %v3361 = vunpack.c.l.s4 1983009808
      %v3362 = vunpack.c.0.s8 %v3361
      %v3363 = vlaneseq
      %v3364 = vshrl.u32 %v3363, 7
      %v3365 = vsub.s32 %v3362, %v3364
      %v3366 = vrot.slane %v2797, %v3365
      %v3368 = vunpack.c.l.s4 1983009808
      %v3369 = vunpack.c.0.s8 %v3368
      %v3370 = vlaneseq
      %v3371 = vshrl.u32 %v3370, 7
      %v3372 = vsub.s32 %v3369, %v3371
      %v3373 = vrot.slane %v3359, %v3372
      %v3374 = vcombine.high %v3366, %v3366
      %v3375 = vcombine.high %v3373, %v3373
      %v3504 = vrot.slane %v2839, 7
      %v3505 = vrot.slane %v3504, 2
      %v3506 = vrot.slane %v2847, 7
      %v3507 = vrot.slane %v3506, 2
      %v3508 = vrot.slane %v2846, 7
      %v3509 = vrot.slane %v3508, 2
      %v3510 = vrot.slane %v2848, 7
      %v3511 = vrot.slane %v3510, 2
      %v3512 = vrot.slane %v2856, 7
      %v3513 = vrot.slane %v3512, 2
      %v3514 = vrot.slane %v2864, 7
      %v3515 = vrot.slane %v3514, 2
      %v3516 = vrot.slane %v2863, 7
      %v3517 = vrot.slane %v3516, 2
      %v3518 = vrot.slane %v2865, 7
      %v3519 = vrot.slane %v3518, 2
      %v3520 = vrot.slane %v2873, 7
      %v3521 = vrot.slane %v3520, 2
      %v3522 = vrot.slane %v2881, 7
      %v3523 = vrot.slane %v3522, 2
      %v3524 = vrot.slane %v2880, 7
      %v3525 = vrot.slane %v3524, 2
      %v3526 = vrot.slane %v2882, 7
      %v3527 = vrot.slane %v3526, 2
      %v3528 = vrot.slane %v2890, 7
      %v3529 = vrot.slane %v3528, 2
      %v3530 = vrot.slane %v2898, 7
      %v3531 = vrot.slane %v3530, 2
      %v3532 = vrot.slane %v2897, 7
      %v3533 = vrot.slane %v3532, 2
      %v3534 = vrot.slane %v2899, 7
      %v3535 = vrot.slane %v3534, 2
      %v3536 = vrot.slane %v2907, 7
      %v3537 = vrot.slane %v3536, 2
      %v3538 = vrot.slane %v2915, 7
      %v3539 = vrot.slane %v3538, 2
      %v3540 = vrot.slane %v2914, 7
      %v3541 = vrot.slane %v3540, 2
      %v3542 = vrot.slane %v2916, 7
      %v3543 = vrot.slane %v3542, 2
      %v3544 = vrot.slane %v2924, 7
      %v3545 = vrot.slane %v3544, 2
      %v3546 = vrot.slane %v2932, 7
      %v3547 = vrot.slane %v3546, 2
      %v3548 = vrot.slane %v2931, 7
      %v3549 = vrot.slane %v3548, 2
      %v3550 = vrot.slane %v2933, 7
      %v3551 = vrot.slane %v3550, 2
      %v3552 = vrot.slane %v2941, 7
      %v3553 = vrot.slane %v3552, 2
      %v3554 = vrot.slane %v2949, 7
      %v3555 = vrot.slane %v3554, 2
      %v3556 = vrot.slane %v2948, 7
      %v3557 = vrot.slane %v3556, 2
      %v3558 = vrot.slane %v2950, 7
      %v3559 = vrot.slane %v3558, 2
      %v3560 = vrot.slane %v2958, 7
      %v3561 = vrot.slane %v3560, 2
      %v3562 = vrot.slane %v2966, 7
      %v3563 = vrot.slane %v3562, 2
      %v3564 = vrot.slane %v2965, 7
      %v3565 = vrot.slane %v3564, 2
      %v3566 = vrot.slane %v2967, 7
      %v3567 = vrot.slane %v3566, 2
      %v3568 = vrot.slane %v2975, 7
      %v3569 = vrot.slane %v3568, 2
      %v3570 = vrot.slane %v2983, 7
      %v3571 = vrot.slane %v3570, 2
      %v3572 = vrot.slane %v2982, 7
      %v3573 = vrot.slane %v3572, 2
      %v3574 = vrot.slane %v2984, 7
      %v3575 = vrot.slane %v3574, 2
      %v3576 = vrot.slane %v2992, 7
      %v3577 = vrot.slane %v3576, 2
      %v3578 = vrot.slane %v3000, 7
      %v3579 = vrot.slane %v3578, 2
      %v3580 = vrot.slane %v2999, 7
      %v3581 = vrot.slane %v3580, 2
      %v3582 = vrot.slane %v3001, 7
      %v3583 = vrot.slane %v3582, 2
      %v3584 = vrot.slane %v3009, 7
      %v3585 = vrot.slane %v3584, 2
      %v3586 = vrot.slane %v3017, 7
      %v3587 = vrot.slane %v3586, 2
      %v3588 = vrot.slane %v3016, 7
      %v3589 = vrot.slane %v3588, 2
      %v3590 = vrot.slane %v3018, 7
      %v3591 = vrot.slane %v3590, 2
      %v3592 = vrot.slane %v3026, 7
      %v3593 = vrot.slane %v3592, 2
      %v3594 = vrot.slane %v3034, 7
      %v3595 = vrot.slane %v3594, 2
      %v3596 = vrot.slane %v3033, 7
      %v3597 = vrot.slane %v3596, 2
      %v3598 = vrot.slane %v3035, 7
      %v3599 = vrot.slane %v3598, 2
      %v3600 = vrot.slane %v3043, 7
      %v3601 = vrot.slane %v3600, 2
      %v3602 = vrot.slane %v3051, 7
      %v3603 = vrot.slane %v3602, 2
      %v3604 = vrot.slane %v3050, 7
      %v3605 = vrot.slane %v3604, 2
      %v3606 = vrot.slane %v3052, 7
      %v3607 = vrot.slane %v3606, 2
      %v3608 = vrot.slane %v3060, 7
      %v3609 = vrot.slane %v3608, 2
      %v3610 = vrot.slane %v3068, 7
      %v3611 = vrot.slane %v3610, 2
      %v3612 = vrot.slane %v3067, 7
      %v3613 = vrot.slane %v3612, 2
      %v3614 = vrot.slane %v3069, 7
      %v3615 = vrot.slane %v3614, 2
      %v3616 = vrot.slane %v3077, 7
      %v3617 = vrot.slane %v3616, 2
      %v3618 = vrot.slane %v3085, 7
      %v3619 = vrot.slane %v3618, 2
      %v3620 = vrot.slane %v3084, 7
      %v3621 = vrot.slane %v3620, 2
      %v3622 = vrot.slane %v3086, 7
      %v3623 = vrot.slane %v3622, 2
      %v3624 = vrot.slane %v3094, 7
      %v3625 = vrot.slane %v3624, 2
      %v3626 = vrot.slane %v3102, 7
      %v3627 = vrot.slane %v3626, 2
      %v3628 = vrot.slane %v3101, 7
      %v3629 = vrot.slane %v3628, 2
      %v3630 = vrot.slane %v3103, 7
      %v3631 = vrot.slane %v3630, 2
      %v3632 = vrot.slane %v3111, 7
      %v3633 = vrot.slane %v3632, 2
      %v3634 = vrot.slane %v3119, 7
      %v3635 = vrot.slane %v3634, 2
      %v3636 = vrot.slane %v3118, 7
      %v3637 = vrot.slane %v3636, 2
      %v3638 = vrot.slane %v3120, 7
      %v3639 = vrot.slane %v3638, 2
      %v3640 = vrot.slane %v3128, 7
      %v3641 = vrot.slane %v3640, 2
      %v3642 = vrot.slane %v3136, 7
      %v3643 = vrot.slane %v3642, 2
      %v3644 = vrot.slane %v3135, 7
      %v3645 = vrot.slane %v3644, 2
      %v3646 = vrot.slane %v3137, 7
      %v3647 = vrot.slane %v3646, 2
      %v3648 = vrot.slane %v3145, 7
      %v3649 = vrot.slane %v3648, 2
      %v3650 = vrot.slane %v3153, 7
      %v3651 = vrot.slane %v3650, 2
      %v3652 = vrot.slane %v3152, 7
      %v3653 = vrot.slane %v3652, 2
      %v3654 = vrot.slane %v3154, 7
      %v3655 = vrot.slane %v3654, 2
      %v3656 = vrot.slane %v3162, 7
      %v3657 = vrot.slane %v3656, 2
      %v3658 = vrot.slane %v3170, 7
      %v3659 = vrot.slane %v3658, 2
      %v3660 = vrot.slane %v3169, 7
      %v3661 = vrot.slane %v3660, 2
      %v3662 = vrot.slane %v3171, 7
      %v3663 = vrot.slane %v3662, 2
      %v3664 = vrot.slane %v3179, 7
      %v3665 = vrot.slane %v3664, 2
      %v3666 = vrot.slane %v3187, 7
      %v3667 = vrot.slane %v3666, 2
      %v3668 = vrot.slane %v3186, 7
      %v3669 = vrot.slane %v3668, 2
      %v3670 = vrot.slane %v3188, 7
      %v3671 = vrot.slane %v3670, 2
      %v3672 = vrot.slane %v3196, 7
      %v3673 = vrot.slane %v3672, 2
      %v3674 = vrot.slane %v3204, 7
      %v3675 = vrot.slane %v3674, 2
      %v3676 = vrot.slane %v3203, 7
      %v3677 = vrot.slane %v3676, 2
      %v3678 = vrot.slane %v3205, 7
      %v3679 = vrot.slane %v3678, 2
      %v3680 = vrot.slane %v3213, 7
      %v3681 = vrot.slane %v3680, 2
      %v3682 = vrot.slane %v3221, 7
      %v3683 = vrot.slane %v3682, 2
      %v3684 = vrot.slane %v3220, 7
      %v3685 = vrot.slane %v3684, 2
      %v3686 = vrot.slane %v3222, 7
      %v3687 = vrot.slane %v3686, 2
      %v3688 = vrot.slane %v3230, 7
      %v3689 = vrot.slane %v3688, 2
      %v3690 = vrot.slane %v3238, 7
      %v3691 = vrot.slane %v3690, 2
      %v3692 = vrot.slane %v3237, 7
      %v3693 = vrot.slane %v3692, 2
      %v3694 = vrot.slane %v3239, 7
      %v3695 = vrot.slane %v3694, 2
      %v3696 = vrot.slane %v3247, 7
      %v3697 = vrot.slane %v3696, 2
      %v3698 = vrot.slane %v3255, 7
      %v3699 = vrot.slane %v3698, 2
      %v3700 = vrot.slane %v3254, 7
      %v3701 = vrot.slane %v3700, 2
      %v3702 = vrot.slane %v3256, 7
      %v3703 = vrot.slane %v3702, 2
      %v3704 = vrot.slane %v3264, 7
      %v3705 = vrot.slane %v3704, 2
      %v3706 = vrot.slane %v3272, 7
      %v3707 = vrot.slane %v3706, 2
      %v3708 = vrot.slane %v3271, 7
      %v3709 = vrot.slane %v3708, 2
      %v3710 = vrot.slane %v3273, 7
      %v3711 = vrot.slane %v3710, 2
      %v3712 = vrot.slane %v3281, 7
      %v3713 = vrot.slane %v3712, 2
      %v3714 = vrot.slane %v3289, 7
      %v3715 = vrot.slane %v3714, 2
      %v3716 = vrot.slane %v3288, 7
      %v3717 = vrot.slane %v3716, 2
      %v3718 = vrot.slane %v3290, 7
      %v3719 = vrot.slane %v3718, 2
      %v3720 = vrot.slane %v3298, 7
      %v3721 = vrot.slane %v3720, 2
      %v3722 = vrot.slane %v3306, 7
      %v3723 = vrot.slane %v3722, 2
      %v3724 = vrot.slane %v3305, 7
      %v3725 = vrot.slane %v3724, 2
      %v3726 = vrot.slane %v3307, 7
      %v3727 = vrot.slane %v3726, 2
      %v3728 = vrot.slane %v3315, 7
      %v3729 = vrot.slane %v3728, 2
      %v3730 = vrot.slane %v3323, 7
      %v3731 = vrot.slane %v3730, 2
      %v3732 = vrot.slane %v3322, 7
      %v3733 = vrot.slane %v3732, 2
      %v3734 = vrot.slane %v3324, 7
      %v3735 = vrot.slane %v3734, 2
      %v3736 = vrot.slane %v3332, 7
      %v3737 = vrot.slane %v3736, 2
      %v3738 = vrot.slane %v3340, 7
      %v3739 = vrot.slane %v3738, 2
      %v3740 = vrot.slane %v3339, 7
      %v3741 = vrot.slane %v3740, 2
      %v3742 = vrot.slane %v3341, 7
      %v3743 = vrot.slane %v3742, 2
      %v3744 = vrot.slane %v3349, 7
      %v3745 = vrot.slane %v3744, 2
      %v3746 = vrot.slane %v3357, 7
      %v3747 = vrot.slane %v3746, 2
      %v3748 = vrot.slane %v3356, 7
      %v3749 = vrot.slane %v3748, 2
      %v3750 = vrot.slane %v3358, 7
      %v3751 = vrot.slane %v3750, 2
      %v3752 = vrot.slane %v3366, 7
      %v3753 = vrot.slane %v3752, 2
      %v3754 = vrot.slane %v3374, 7
      %v3755 = vrot.slane %v3754, 2
      %v3756 = vrot.slane %v3373, 7
      %v3757 = vrot.slane %v3756, 2
      %v3758 = vrot.slane %v3375, 7
      %v3759 = vrot.slane %v3758, 2
      %v3888 = vadd.f32 %v2839, %v3505
      %v3889 = vadd.f32 %v2847, %v3507
      %v3890 = vadd.f32 %v2846, %v3509
      %v3891 = vadd.f32 %v2848, %v3511
      %v3892 = vadd.f32 %v2856, %v3513
      %v3893 = vadd.f32 %v2864, %v3515
      %v3894 = vadd.f32 %v2863, %v3517
      %v3895 = vadd.f32 %v2865, %v3519
      %v3896 = vadd.f32 %v2873, %v3521
      %v3897 = vadd.f32 %v2881, %v3523
      %v3898 = vadd.f32 %v2880, %v3525
      %v3899 = vadd.f32 %v2882, %v3527
      %v3900 = vadd.f32 %v2890, %v3529
      %v3901 = vadd.f32 %v2898, %v3531
      %v3902 = vadd.f32 %v2897, %v3533
      %v3903 = vadd.f32 %v2899, %v3535
      %v3904 = vadd.f32 %v2907, %v3537
      %v3905 = vadd.f32 %v2915, %v3539
      %v3906 = vadd.f32 %v2914, %v3541
      %v3907 = vadd.f32 %v2916, %v3543
      %v3908 = vadd.f32 %v2924, %v3545
      %v3909 = vadd.f32 %v2932, %v3547
      %v3910 = vadd.f32 %v2931, %v3549
      %v3911 = vadd.f32 %v2933, %v3551
      %v3912 = vadd.f32 %v2941, %v3553
      %v3913 = vadd.f32 %v2949, %v3555
      %v3914 = vadd.f32 %v2948, %v3557
      %v3915 = vadd.f32 %v2950, %v3559
      %v3916 = vadd.f32 %v2958, %v3561
      %v3917 = vadd.f32 %v2966, %v3563
      %v3918 = vadd.f32 %v2965, %v3565
      %v3919 = vadd.f32 %v2967, %v3567
      %v3920 = vadd.f32 %v2975, %v3569
      %v3921 = vadd.f32 %v2983, %v3571
      %v3922 = vadd.f32 %v2982, %v3573
      %v3923 = vadd.f32 %v2984, %v3575
      %v3924 = vadd.f32 %v2992, %v3577
      %v3925 = vadd.f32 %v3000, %v3579
      %v3926 = vadd.f32 %v2999, %v3581
      %v3927 = vadd.f32 %v3001, %v3583
      %v3928 = vadd.f32 %v3009, %v3585
      %v3929 = vadd.f32 %v3017, %v3587
      %v3930 = vadd.f32 %v3016, %v3589
      %v3931 = vadd.f32 %v3018, %v3591
      %v3932 = vadd.f32 %v3026, %v3593
      %v3933 = vadd.f32 %v3034, %v3595
      %v3934 = vadd.f32 %v3033, %v3597
      %v3935 = vadd.f32 %v3035, %v3599
      %v3936 = vadd.f32 %v3043, %v3601
      %v3937 = vadd.f32 %v3051, %v3603
      %v3938 = vadd.f32 %v3050, %v3605
      %v3939 = vadd.f32 %v3052, %v3607
      %v3940 = vadd.f32 %v3060, %v3609
      %v3941 = vadd.f32 %v3068, %v3611
      %v3942 = vadd.f32 %v3067, %v3613
      %v3943 = vadd.f32 %v3069, %v3615
      %v3944 = vadd.f32 %v3077, %v3617
      %v3945 = vadd.f32 %v3085, %v3619
      %v3946 = vadd.f32 %v3084, %v3621
      %v3947 = vadd.f32 %v3086, %v3623
      %v3948 = vadd.f32 %v3094, %v3625
      %v3949 = vadd.f32 %v3102, %v3627
      %v3950 = vadd.f32 %v3101, %v3629
      %v3951 = vadd.f32 %v3103, %v3631
      %v3952 = vadd.f32 %v3111, %v3633
      %v3953 = vadd.f32 %v3119, %v3635
      %v3954 = vadd.f32 %v3118, %v3637
      %v3955 = vadd.f32 %v3120, %v3639
      %v3956 = vadd.f32 %v3128, %v3641
      %v3957 = vadd.f32 %v3136, %v3643
      %v3958 = vadd.f32 %v3135, %v3645
      %v3959 = vadd.f32 %v3137, %v3647
      %v3960 = vadd.f32 %v3145, %v3649
      %v3961 = vadd.f32 %v3153, %v3651
      %v3962 = vadd.f32 %v3152, %v3653
      %v3963 = vadd.f32 %v3154, %v3655
      %v3964 = vadd.f32 %v3162, %v3657
      %v3965 = vadd.f32 %v3170, %v3659
      %v3966 = vadd.f32 %v3169, %v3661
      %v3967 = vadd.f32 %v3171, %v3663
      %v3968 = vadd.f32 %v3179, %v3665
      %v3969 = vadd.f32 %v3187, %v3667
      %v3970 = vadd.f32 %v3186, %v3669
      %v3971 = vadd.f32 %v3188, %v3671
      %v3972 = vadd.f32 %v3196, %v3673
      %v3973 = vadd.f32 %v3204, %v3675
      %v3974 = vadd.f32 %v3203, %v3677
      %v3975 = vadd.f32 %v3205, %v3679
      %v3976 = vadd.f32 %v3213, %v3681
      %v3977 = vadd.f32 %v3221, %v3683
      %v3978 = vadd.f32 %v3220, %v3685
      %v3979 = vadd.f32 %v3222, %v3687
      %v3980 = vadd.f32 %v3230, %v3689
      %v3981 = vadd.f32 %v3238, %v3691
      %v3982 = vadd.f32 %v3237, %v3693
      %v3983 = vadd.f32 %v3239, %v3695
      %v3984 = vadd.f32 %v3247, %v3697
      %v3985 = vadd.f32 %v3255, %v3699
      %v3986 = vadd.f32 %v3254, %v3701
      %v3987 = vadd.f32 %v3256, %v3703
      %v3988 = vadd.f32 %v3264, %v3705
      %v3989 = vadd.f32 %v3272, %v3707
      %v3990 = vadd.f32 %v3271, %v3709
      %v3991 = vadd.f32 %v3273, %v3711
      %v3992 = vadd.f32 %v3281, %v3713
      %v3993 = vadd.f32 %v3289, %v3715
      %v3994 = vadd.f32 %v3288, %v3717
      %v3995 = vadd.f32 %v3290, %v3719
      %v3996 = vadd.f32 %v3298, %v3721
      %v3997 = vadd.f32 %v3306, %v3723
      %v3998 = vadd.f32 %v3305, %v3725
      %v3999 = vadd.f32 %v3307, %v3727
      %v4000 = vadd.f32 %v3315, %v3729
      %v4001 = vadd.f32 %v3323, %v3731
      %v4002 = vadd.f32 %v3322, %v3733
      %v4003 = vadd.f32 %v3324, %v3735
      %v4004 = vadd.f32 %v3332, %v3737
      %v4005 = vadd.f32 %v3340, %v3739
      %v4006 = vadd.f32 %v3339, %v3741
      %v4007 = vadd.f32 %v3341, %v3743
      %v4008 = vadd.f32 %v3349, %v3745
      %v4009 = vadd.f32 %v3357, %v3747
      %v4010 = vadd.f32 %v3356, %v3749
      %v4011 = vadd.f32 %v3358, %v3751
      %v4012 = vadd.f32 %v3366, %v3753
      %v4013 = vadd.f32 %v3374, %v3755
      %v4014 = vadd.f32 %v3373, %v3757
      %v4015 = vadd.f32 %v3375, %v3759
      %v4016 = vadd.f32 %v3888, %v3896
      %v4017 = vadd.f32 %v3889, %v3897
      %v4018 = vadd.f32 %v3890, %v3898
      %v4019 = vadd.f32 %v3891, %v3899
      %v4020 = vadd.f32 %v3892, %v3900
      %v4021 = vadd.f32 %v3893, %v3901
      %v4022 = vadd.f32 %v3894, %v3902
      %v4023 = vadd.f32 %v3895, %v3903
      %v4024 = vadd.f32 %v3904, %v3912
      %v4025 = vadd.f32 %v3905, %v3913
      %v4026 = vadd.f32 %v3906, %v3914
      %v4027 = vadd.f32 %v3907, %v3915
      %v4028 = vadd.f32 %v3908, %v3916
      %v4029 = vadd.f32 %v3909, %v3917
      %v4030 = vadd.f32 %v3910, %v3918
      %v4031 = vadd.f32 %v3911, %v3919
      %v4032 = vadd.f32 %v3920, %v3928
      %v4033 = vadd.f32 %v3921, %v3929
      %v4034 = vadd.f32 %v3922, %v3930
      %v4035 = vadd.f32 %v3923, %v3931
      %v4036 = vadd.f32 %v3924, %v3932
      %v4037 = vadd.f32 %v3925, %v3933
      %v4038 = vadd.f32 %v3926, %v3934
      %v4039 = vadd.f32 %v3927, %v3935
      %v4040 = vadd.f32 %v3936, %v3944
      %v4041 = vadd.f32 %v3937, %v3945
      %v4042 = vadd.f32 %v3938, %v3946
      %v4043 = vadd.f32 %v3939, %v3947
      %v4044 = vadd.f32 %v3940, %v3948
      %v4045 = vadd.f32 %v3941, %v3949
      %v4046 = vadd.f32 %v3942, %v3950
      %v4047 = vadd.f32 %v3943, %v3951
      %v4048 = vadd.f32 %v3952, %v3960
      %v4049 = vadd.f32 %v3953, %v3961
      %v4050 = vadd.f32 %v3954, %v3962
      %v4051 = vadd.f32 %v3955, %v3963
      %v4052 = vadd.f32 %v3956, %v3964
      %v4053 = vadd.f32 %v3957, %v3965
      %v4054 = vadd.f32 %v3958, %v3966
      %v4055 = vadd.f32 %v3959, %v3967
      %v4056 = vadd.f32 %v3968, %v3976
      %v4057 = vadd.f32 %v3969, %v3977
      %v4058 = vadd.f32 %v3970, %v3978
      %v4059 = vadd.f32 %v3971, %v3979
      %v4060 = vadd.f32 %v3972, %v3980
      %v4061 = vadd.f32 %v3973, %v3981
      %v4062 = vadd.f32 %v3974, %v3982
      %v4063 = vadd.f32 %v3975, %v3983
      %v4064 = vadd.f32 %v3984, %v3992
      %v4065 = vadd.f32 %v3985, %v3993
      %v4066 = vadd.f32 %v3986, %v3994
      %v4067 = vadd.f32 %v3987, %v3995
      %v4068 = vadd.f32 %v3988, %v3996
      %v4069 = vadd.f32 %v3989, %v3997
      %v4070 = vadd.f32 %v3990, %v3998
      %v4071 = vadd.f32 %v3991, %v3999
      %v4072 = vadd.f32 %v4000, %v4008
      %v4073 = vadd.f32 %v4001, %v4009
      %v4074 = vadd.f32 %v4002, %v4010
      %v4075 = vadd.f32 %v4003, %v4011
      %v4076 = vadd.f32 %v4004, %v4012
      %v4077 = vadd.f32 %v4005, %v4013
      %v4078 = vadd.f32 %v4006, %v4014
      %v4079 = vadd.f32 %v4007, %v4015
      %v4080 = vpack.c.bf16 %v4016, %v4016
      %v4081 = vpack.c.bf16 %v4017, %v4017
      %v4082 = vpack.c.bf16 %v4018, %v4018
      %v4083 = vpack.c.bf16 %v4019, %v4019
      %v4084 = vpack.c.bf16 %v4020, %v4020
      %v4085 = vpack.c.bf16 %v4021, %v4021
      %v4086 = vpack.c.bf16 %v4022, %v4022
      %v4087 = vpack.c.bf16 %v4023, %v4023
      %v4088 = vpack.c.bf16 %v4024, %v4024
      %v4089 = vpack.c.bf16 %v4025, %v4025
      %v4090 = vpack.c.bf16 %v4026, %v4026
      %v4091 = vpack.c.bf16 %v4027, %v4027
      %v4092 = vpack.c.bf16 %v4028, %v4028
      %v4093 = vpack.c.bf16 %v4029, %v4029
      %v4094 = vpack.c.bf16 %v4030, %v4030
      %v4095 = vpack.c.bf16 %v4031, %v4031
      %v4096 = vpack.c.bf16 %v4032, %v4032
      %v4097 = vpack.c.bf16 %v4033, %v4033
      %v4098 = vpack.c.bf16 %v4034, %v4034
      %v4099 = vpack.c.bf16 %v4035, %v4035
      %v4100 = vpack.c.bf16 %v4036, %v4036
      %v4101 = vpack.c.bf16 %v4037, %v4037
      %v4102 = vpack.c.bf16 %v4038, %v4038
      %v4103 = vpack.c.bf16 %v4039, %v4039
      %v4104 = vpack.c.bf16 %v4040, %v4040
      %v4105 = vpack.c.bf16 %v4041, %v4041
      %v4106 = vpack.c.bf16 %v4042, %v4042
      %v4107 = vpack.c.bf16 %v4043, %v4043
      %v4108 = vpack.c.bf16 %v4044, %v4044
      %v4109 = vpack.c.bf16 %v4045, %v4045
      %v4110 = vpack.c.bf16 %v4046, %v4046
      %v4111 = vpack.c.bf16 %v4047, %v4047
      %v4112 = vpack.c.bf16 %v4048, %v4048
      %v4113 = vpack.c.bf16 %v4049, %v4049
      %v4114 = vpack.c.bf16 %v4050, %v4050
      %v4115 = vpack.c.bf16 %v4051, %v4051
      %v4116 = vpack.c.bf16 %v4052, %v4052
      %v4117 = vpack.c.bf16 %v4053, %v4053
      %v4118 = vpack.c.bf16 %v4054, %v4054
      %v4119 = vpack.c.bf16 %v4055, %v4055
      %v4120 = vpack.c.bf16 %v4056, %v4056
      %v4121 = vpack.c.bf16 %v4057, %v4057
      %v4122 = vpack.c.bf16 %v4058, %v4058
      %v4123 = vpack.c.bf16 %v4059, %v4059
      %v4124 = vpack.c.bf16 %v4060, %v4060
      %v4125 = vpack.c.bf16 %v4061, %v4061
      %v4126 = vpack.c.bf16 %v4062, %v4062
      %v4127 = vpack.c.bf16 %v4063, %v4063
      %v4128 = vpack.c.bf16 %v4064, %v4064
      %v4129 = vpack.c.bf16 %v4065, %v4065
      %v4130 = vpack.c.bf16 %v4066, %v4066
      %v4131 = vpack.c.bf16 %v4067, %v4067
      %v4132 = vpack.c.bf16 %v4068, %v4068
      %v4133 = vpack.c.bf16 %v4069, %v4069
      %v4134 = vpack.c.bf16 %v4070, %v4070
      %v4135 = vpack.c.bf16 %v4071, %v4071
      %v4136 = vpack.c.bf16 %v4072, %v4072
      %v4137 = vpack.c.bf16 %v4073, %v4073
      %v4138 = vpack.c.bf16 %v4074, %v4074
      %v4139 = vpack.c.bf16 %v4075, %v4075
      %v4140 = vpack.c.bf16 %v4076, %v4076
      %v4141 = vpack.c.bf16 %v4077, %v4077
      %v4142 = vpack.c.bf16 %v4078, %v4078
      %v4143 = vpack.c.bf16 %v4079, %v4079
      %v4208 = vunpack.c.l.b16 %v4080
      %v4209 = vunpack.c.l.b16 %v4081
      %v4210 = vunpack.c.l.b16 %v4082
      %v4211 = vunpack.c.l.b16 %v4083
      %v4212 = vunpack.c.l.b16 %v4084
      %v4213 = vunpack.c.l.b16 %v4085
      %v4214 = vunpack.c.l.b16 %v4086
      %v4215 = vunpack.c.l.b16 %v4087
      %v4216 = vunpack.c.l.b16 %v4088
      %v4217 = vunpack.c.l.b16 %v4089
      %v4218 = vunpack.c.l.b16 %v4090
      %v4219 = vunpack.c.l.b16 %v4091
      %v4220 = vunpack.c.l.b16 %v4092
      %v4221 = vunpack.c.l.b16 %v4093
      %v4222 = vunpack.c.l.b16 %v4094
      %v4223 = vunpack.c.l.b16 %v4095
      %v4224 = vunpack.c.l.b16 %v4096
      %v4225 = vunpack.c.l.b16 %v4097
      %v4226 = vunpack.c.l.b16 %v4098
      %v4227 = vunpack.c.l.b16 %v4099
      %v4228 = vunpack.c.l.b16 %v4100
      %v4229 = vunpack.c.l.b16 %v4101
      %v4230 = vunpack.c.l.b16 %v4102
      %v4231 = vunpack.c.l.b16 %v4103
      %v4232 = vunpack.c.l.b16 %v4104
      %v4233 = vunpack.c.l.b16 %v4105
      %v4234 = vunpack.c.l.b16 %v4106
      %v4235 = vunpack.c.l.b16 %v4107
      %v4236 = vunpack.c.l.b16 %v4108
      %v4237 = vunpack.c.l.b16 %v4109
      %v4238 = vunpack.c.l.b16 %v4110
      %v4239 = vunpack.c.l.b16 %v4111
      %v4240 = vunpack.c.l.b16 %v4112
      %v4241 = vunpack.c.l.b16 %v4113
      %v4242 = vunpack.c.l.b16 %v4114
      %v4243 = vunpack.c.l.b16 %v4115
      %v4244 = vunpack.c.l.b16 %v4116
      %v4245 = vunpack.c.l.b16 %v4117
      %v4246 = vunpack.c.l.b16 %v4118
      %v4247 = vunpack.c.l.b16 %v4119
      %v4248 = vunpack.c.l.b16 %v4120
      %v4249 = vunpack.c.l.b16 %v4121
      %v4250 = vunpack.c.l.b16 %v4122
      %v4251 = vunpack.c.l.b16 %v4123
      %v4252 = vunpack.c.l.b16 %v4124
      %v4253 = vunpack.c.l.b16 %v4125
      %v4254 = vunpack.c.l.b16 %v4126
      %v4255 = vunpack.c.l.b16 %v4127
      %v4256 = vunpack.c.l.b16 %v4128
      %v4257 = vunpack.c.l.b16 %v4129
      %v4258 = vunpack.c.l.b16 %v4130
      %v4259 = vunpack.c.l.b16 %v4131
      %v4260 = vunpack.c.l.b16 %v4132
      %v4261 = vunpack.c.l.b16 %v4133
      %v4262 = vunpack.c.l.b16 %v4134
      %v4263 = vunpack.c.l.b16 %v4135
      %v4264 = vunpack.c.l.b16 %v4136
      %v4265 = vunpack.c.l.b16 %v4137
      %v4266 = vunpack.c.l.b16 %v4138
      %v4267 = vunpack.c.l.b16 %v4139
      %v4268 = vunpack.c.l.b16 %v4140
      %v4269 = vunpack.c.l.b16 %v4141
      %v4270 = vunpack.c.l.b16 %v4142
      %v4271 = vunpack.c.l.b16 %v4143
      %v4272 = vpack.c.b16 %v4208, %v4208
      %v4273 = vpack.c.b16 %v4209, %v4209
      %v4274 = vpack.c.b16 %v4210, %v4210
      %v4275 = vpack.c.b16 %v4211, %v4211
      %v4276 = vpack.c.b16 %v4212, %v4212
      %v4277 = vpack.c.b16 %v4213, %v4213
      %v4278 = vpack.c.b16 %v4214, %v4214
      %v4279 = vpack.c.b16 %v4215, %v4215
      %v4280 = vpack.c.b16 %v4216, %v4216
      %v4281 = vpack.c.b16 %v4217, %v4217
      %v4282 = vpack.c.b16 %v4218, %v4218
      %v4283 = vpack.c.b16 %v4219, %v4219
      %v4284 = vpack.c.b16 %v4220, %v4220
      %v4285 = vpack.c.b16 %v4221, %v4221
      %v4286 = vpack.c.b16 %v4222, %v4222
      %v4287 = vpack.c.b16 %v4223, %v4223
      %v4288 = vpack.c.b16 %v4224, %v4224
      %v4289 = vpack.c.b16 %v4225, %v4225
      %v4290 = vpack.c.b16 %v4226, %v4226
      %v4291 = vpack.c.b16 %v4227, %v4227
      %v4292 = vpack.c.b16 %v4228, %v4228
      %v4293 = vpack.c.b16 %v4229, %v4229
      %v4294 = vpack.c.b16 %v4230, %v4230
      %v4295 = vpack.c.b16 %v4231, %v4231
      %v4296 = vpack.c.b16 %v4232, %v4232
      %v4297 = vpack.c.b16 %v4233, %v4233
      %v4298 = vpack.c.b16 %v4234, %v4234
      %v4299 = vpack.c.b16 %v4235, %v4235
      %v4300 = vpack.c.b16 %v4236, %v4236
      %v4301 = vpack.c.b16 %v4237, %v4237
      %v4302 = vpack.c.b16 %v4238, %v4238
      %v4303 = vpack.c.b16 %v4239, %v4239
      %v4304 = vpack.c.b16 %v4240, %v4240
      %v4305 = vpack.c.b16 %v4241, %v4241
      %v4306 = vpack.c.b16 %v4242, %v4242
      %v4307 = vpack.c.b16 %v4243, %v4243
      %v4308 = vpack.c.b16 %v4244, %v4244
      %v4309 = vpack.c.b16 %v4245, %v4245
      %v4310 = vpack.c.b16 %v4246, %v4246
      %v4311 = vpack.c.b16 %v4247, %v4247
      %v4312 = vpack.c.b16 %v4248, %v4248
      %v4313 = vpack.c.b16 %v4249, %v4249
      %v4314 = vpack.c.b16 %v4250, %v4250
      %v4315 = vpack.c.b16 %v4251, %v4251
      %v4316 = vpack.c.b16 %v4252, %v4252
      %v4317 = vpack.c.b16 %v4253, %v4253
      %v4318 = vpack.c.b16 %v4254, %v4254
      %v4319 = vpack.c.b16 %v4255, %v4255
      %v4320 = vpack.c.b16 %v4256, %v4256
      %v4321 = vpack.c.b16 %v4257, %v4257
      %v4322 = vpack.c.b16 %v4258, %v4258
      %v4323 = vpack.c.b16 %v4259, %v4259
      %v4324 = vpack.c.b16 %v4260, %v4260
      %v4325 = vpack.c.b16 %v4261, %v4261
      %v4326 = vpack.c.b16 %v4262, %v4262
      %v4327 = vpack.c.b16 %v4263, %v4263
      %v4328 = vpack.c.b16 %v4264, %v4264
      %v4329 = vpack.c.b16 %v4265, %v4265
      %v4330 = vpack.c.b16 %v4266, %v4266
      %v4331 = vpack.c.b16 %v4267, %v4267
      %v4332 = vpack.c.b16 %v4268, %v4268
      %v4333 = vpack.c.b16 %v4269, %v4269
      %v4334 = vpack.c.b16 %v4270, %v4270
      %v4335 = vpack.c.b16 %v4271, %v4271
      %v4336 = vunpack.c.l.b16 %v4272
      %v4337 = vunpack.c.l.b16 %v4273
      %v4338 = vunpack.c.l.b16 %v4274
      %v4339 = vunpack.c.l.b16 %v4275
      %v4340 = vunpack.c.l.b16 %v4276
      %v4341 = vunpack.c.l.b16 %v4277
      %v4342 = vunpack.c.l.b16 %v4278
      %v4343 = vunpack.c.l.b16 %v4279
      %v4344 = vunpack.c.l.b16 %v4280
      %v4345 = vunpack.c.l.b16 %v4281
      %v4346 = vunpack.c.l.b16 %v4282
      %v4347 = vunpack.c.l.b16 %v4283
      %v4348 = vunpack.c.l.b16 %v4284
      %v4349 = vunpack.c.l.b16 %v4285
      %v4350 = vunpack.c.l.b16 %v4286
      %v4351 = vunpack.c.l.b16 %v4287
      %v4352 = vunpack.c.l.b16 %v4288
      %v4353 = vunpack.c.l.b16 %v4289
      %v4354 = vunpack.c.l.b16 %v4290
      %v4355 = vunpack.c.l.b16 %v4291
      %v4356 = vunpack.c.l.b16 %v4292
      %v4357 = vunpack.c.l.b16 %v4293
      %v4358 = vunpack.c.l.b16 %v4294
      %v4359 = vunpack.c.l.b16 %v4295
      %v4360 = vunpack.c.l.b16 %v4296
      %v4361 = vunpack.c.l.b16 %v4297
      %v4362 = vunpack.c.l.b16 %v4298
      %v4363 = vunpack.c.l.b16 %v4299
      %v4364 = vunpack.c.l.b16 %v4300
      %v4365 = vunpack.c.l.b16 %v4301
      %v4366 = vunpack.c.l.b16 %v4302
      %v4367 = vunpack.c.l.b16 %v4303
      %v4368 = vunpack.c.l.b16 %v4304
      %v4369 = vunpack.c.l.b16 %v4305
      %v4370 = vunpack.c.l.b16 %v4306
      %v4371 = vunpack.c.l.b16 %v4307
      %v4372 = vunpack.c.l.b16 %v4308
      %v4373 = vunpack.c.l.b16 %v4309
      %v4374 = vunpack.c.l.b16 %v4310
      %v4375 = vunpack.c.l.b16 %v4311
      %v4376 = vunpack.c.l.b16 %v4312
      %v4377 = vunpack.c.l.b16 %v4313
      %v4378 = vunpack.c.l.b16 %v4314
      %v4379 = vunpack.c.l.b16 %v4315
      %v4380 = vunpack.c.l.b16 %v4316
      %v4381 = vunpack.c.l.b16 %v4317
      %v4382 = vunpack.c.l.b16 %v4318
      %v4383 = vunpack.c.l.b16 %v4319
      %v4384 = vunpack.c.l.b16 %v4320
      %v4385 = vunpack.c.l.b16 %v4321
      %v4386 = vunpack.c.l.b16 %v4322
      %v4387 = vunpack.c.l.b16 %v4323
      %v4388 = vunpack.c.l.b16 %v4324
      %v4389 = vunpack.c.l.b16 %v4325
      %v4390 = vunpack.c.l.b16 %v4326
      %v4391 = vunpack.c.l.b16 %v4327
      %v4392 = vunpack.c.l.b16 %v4328
      %v4393 = vunpack.c.l.b16 %v4329
      %v4394 = vunpack.c.l.b16 %v4330
      %v4395 = vunpack.c.l.b16 %v4331
      %v4396 = vunpack.c.l.b16 %v4332
      %v4397 = vunpack.c.l.b16 %v4333
      %v4398 = vunpack.c.l.b16 %v4334
      %v4399 = vunpack.c.l.b16 %v4335
      %v4400 = vrot.slane %v4337, 7
      %vm4401 = vcmask 1041409
      %v4402 = vsel %vm4401, %v4400, %v4336
      %v4403 = vrot.slane %v4338, 6
      %vm4404 = vcmask 1042434
      %v4405 = vsel %vm4404, %v4403, %v4402
      %v4406 = vrot.slane %v4339, 5
      %vm4407 = vcmask 1043459
      %v4408 = vsel %vm4407, %v4406, %v4405
      %v4409 = vrot.slane %v4340, 4
      %vm4410 = vcmask 1044484
      %v4411 = vsel %vm4410, %v4409, %v4408
      %v4412 = vrot.slane %v4341, 3
      %vm4413 = vcmask 1045509
      %v4414 = vsel %vm4413, %v4412, %v4411
      %v4415 = vrot.slane %v4342, 2
      %vm4416 = vcmask 1046534
      %v4417 = vsel %vm4416, %v4415, %v4414
      %v4418 = vrot.slane %v4343, 1
      %vm4419 = vcmask 1047559
      %v4420 = vsel %vm4419, %v4418, %v4417
      %v4421 = vrot.slane %v4345, 7
      %v4422 = vsel %vm4401, %v4421, %v4344
      %v4423 = vrot.slane %v4346, 6
      %v4424 = vsel %vm4404, %v4423, %v4422
      %v4425 = vrot.slane %v4347, 5
      %v4426 = vsel %vm4407, %v4425, %v4424
      %v4427 = vrot.slane %v4348, 4
      %v4428 = vsel %vm4410, %v4427, %v4426
      %v4429 = vrot.slane %v4349, 3
      %v4430 = vsel %vm4413, %v4429, %v4428
      %v4431 = vrot.slane %v4350, 2
      %v4432 = vsel %vm4416, %v4431, %v4430
      %v4433 = vrot.slane %v4351, 1
      %v4434 = vsel %vm4419, %v4433, %v4432
      %v4435 = vrot.slane %v4353, 7
      %v4436 = vsel %vm4401, %v4435, %v4352
      %v4437 = vrot.slane %v4354, 6
      %v4438 = vsel %vm4404, %v4437, %v4436
      %v4439 = vrot.slane %v4355, 5
      %v4440 = vsel %vm4407, %v4439, %v4438
      %v4441 = vrot.slane %v4356, 4
      %v4442 = vsel %vm4410, %v4441, %v4440
      %v4443 = vrot.slane %v4357, 3
      %v4444 = vsel %vm4413, %v4443, %v4442
      %v4445 = vrot.slane %v4358, 2
      %v4446 = vsel %vm4416, %v4445, %v4444
      %v4447 = vrot.slane %v4359, 1
      %v4448 = vsel %vm4419, %v4447, %v4446
      %v4449 = vrot.slane %v4361, 7
      %v4450 = vsel %vm4401, %v4449, %v4360
      %v4451 = vrot.slane %v4362, 6
      %v4452 = vsel %vm4404, %v4451, %v4450
      %v4453 = vrot.slane %v4363, 5
      %v4454 = vsel %vm4407, %v4453, %v4452
      %v4455 = vrot.slane %v4364, 4
      %v4456 = vsel %vm4410, %v4455, %v4454
      %v4457 = vrot.slane %v4365, 3
      %v4458 = vsel %vm4413, %v4457, %v4456
      %v4459 = vrot.slane %v4366, 2
      %v4460 = vsel %vm4416, %v4459, %v4458
      %v4461 = vrot.slane %v4367, 1
      %v4462 = vsel %vm4419, %v4461, %v4460
      %v4463 = vrot.slane %v4369, 7
      %v4464 = vsel %vm4401, %v4463, %v4368
      %v4465 = vrot.slane %v4370, 6
      %v4466 = vsel %vm4404, %v4465, %v4464
      %v4467 = vrot.slane %v4371, 5
      %v4468 = vsel %vm4407, %v4467, %v4466
      %v4469 = vrot.slane %v4372, 4
      %v4470 = vsel %vm4410, %v4469, %v4468
      %v4471 = vrot.slane %v4373, 3
      %v4472 = vsel %vm4413, %v4471, %v4470
      %v4473 = vrot.slane %v4374, 2
      %v4474 = vsel %vm4416, %v4473, %v4472
      %v4475 = vrot.slane %v4375, 1
      %v4476 = vsel %vm4419, %v4475, %v4474
      %v4477 = vrot.slane %v4377, 7
      %v4478 = vsel %vm4401, %v4477, %v4376
      %v4479 = vrot.slane %v4378, 6
      %v4480 = vsel %vm4404, %v4479, %v4478
      %v4481 = vrot.slane %v4379, 5
      %v4482 = vsel %vm4407, %v4481, %v4480
      %v4483 = vrot.slane %v4380, 4
      %v4484 = vsel %vm4410, %v4483, %v4482
      %v4485 = vrot.slane %v4381, 3
      %v4486 = vsel %vm4413, %v4485, %v4484
      %v4487 = vrot.slane %v4382, 2
      %v4488 = vsel %vm4416, %v4487, %v4486
      %v4489 = vrot.slane %v4383, 1
      %v4490 = vsel %vm4419, %v4489, %v4488
      %v4491 = vrot.slane %v4385, 7
      %v4492 = vsel %vm4401, %v4491, %v4384
      %v4493 = vrot.slane %v4386, 6
      %v4494 = vsel %vm4404, %v4493, %v4492
      %v4495 = vrot.slane %v4387, 5
      %v4496 = vsel %vm4407, %v4495, %v4494
      %v4497 = vrot.slane %v4388, 4
      %v4498 = vsel %vm4410, %v4497, %v4496
      %v4499 = vrot.slane %v4389, 3
      %v4500 = vsel %vm4413, %v4499, %v4498
      %v4501 = vrot.slane %v4390, 2
      %v4502 = vsel %vm4416, %v4501, %v4500
      %v4503 = vrot.slane %v4391, 1
      %v4504 = vsel %vm4419, %v4503, %v4502
      %v4505 = vrot.slane %v4393, 7
      %v4506 = vsel %vm4401, %v4505, %v4392
      %v4507 = vrot.slane %v4394, 6
      %v4508 = vsel %vm4404, %v4507, %v4506
      %v4509 = vrot.slane %v4395, 5
      %v4510 = vsel %vm4407, %v4509, %v4508
      %v4511 = vrot.slane %v4396, 4
      %v4512 = vsel %vm4410, %v4511, %v4510
      %v4513 = vrot.slane %v4397, 3
      %v4514 = vsel %vm4413, %v4513, %v4512
      %v4515 = vrot.slane %v4398, 2
      %v4516 = vsel %vm4416, %v4515, %v4514
      %v4517 = vrot.slane %v4399, 1
      %v4518 = vsel %vm4419, %v4517, %v4516
      %v4519 = vpack.c.b16 %v4420, %v4420
      %v4520 = vpack.c.b16 %v4434, %v4434
      %v4521 = vpack.c.b16 %v4448, %v4448
      %v4522 = vpack.c.b16 %v4462, %v4462
      %v4523 = vpack.c.b16 %v4476, %v4476
      %v4524 = vpack.c.b16 %v4490, %v4490
      %v4525 = vpack.c.b16 %v4504, %v4504
      %v4526 = vpack.c.b16 %v4518, %v4518
      %4535 = vst [vmem:[%s354] sm:$0xf] %v4519
      %4536 = vst [vmem:[%s354 + $0x4] sm:$0xf] %v4520
      %4537 = vst [vmem:[%s354 + $0x8] sm:$0xf] %v4521
      %4538 = vst [vmem:[%s354 + $0xc] sm:$0xf] %v4522
      %4539 = vst [vmem:[%s354 + $0x10] sm:$0xf] %v4523
      %4540 = vst [vmem:[%s354 + $0x14] sm:$0xf] %v4524
      %4541 = vst [vmem:[%s354 + $0x18] sm:$0xf] %v4525
      %4542 = vst [vmem:[%s354 + $0x1c] sm:$0xf] %v4526
      %p4543 = scmp.lt.s32.totalorder %s22, 1
      %s4544 = scalar_select %p4543, %s22, 1
      %p4545 = scmp.lt.s32.totalorder %s23, 0
      %s4546 = scalar_select %p4545, %s23, 0
      %s4547 = smul.addr %s4544, 32
      %s4548 = sadd.s32 %s4546, %s4547
      %s4549 = smul.addr %s4548, 4
      %s4550 = scalar_lea.vmem %s5, %s4549
      %p4551 = scmp.lt.s32.totalorder %s22, 1
      %s4552 = scalar_select %p4551, %s22, 1
      %p4553 = scmp.lt.s32.totalorder %s23, 0
      %s4554 = scalar_select %p4553, %s23, 0
      %s4555 = smul.addr %s4552, 8
      %s4556 = sadd.s32 %s4554, %s4555
      %s4557 = smul.addr %s4556, 4
      %s4558 = scalar_lea.vmem %s6, %s4557
      // Predicated region
      $region41: #{disc_block_forward.2} parent=39 // pred_check
        %p4559 = pneg %p180
      $region42: #{disc_block_forward.2} parent=39 // pred_check_branch
        %4561 = sbr.rel (%p4559) target = $region44
      $region43: #{disc_block_forward.2} parent=39 // pred_region
        _
      $region44: #{disc_block_forward.2} parent=39 // pred_fallthru
        _
      // Predicated region
      $region45: #{disc_block_forward.2} parent=39 // pred_check
        %p4562 = pneg %p208
      $region46: #{disc_block_forward.2} parent=39 // pred_check_branch
        %4564 = sbr.rel (%p4562) target = $region48
      $region47: #{disc_block_forward.2} parent=39 // pred_region
        _
      $region48: #{disc_block_forward.2} parent=39 // pred_fallthru
        _
    $region40: #{disc_block_forward.2} parent=5 // pred_fallthru
      _
    %p4565 = scmp.le.s32.totalorder 2, %s13
    // Predicated region
    $region49: #{disc_block_forward.2} parent=5 // pred_check
      %p4566 = pneg %p4565
    $region50: #{disc_block_forward.2} parent=5 // pred_check_branch
      %4568 = sbr.rel (%p4566) target = $region52
    $region51: #{disc_block_forward.2} parent=5 // pred_region
      %s4569 = ssub.s32 %s13, 2
      // Predicated region
      $region53: #{disc_block_forward.2} parent=51 // pred_check
        %p4570 = pneg %p186
      $region54: #{disc_block_forward.2} parent=51 // pred_check_branch
        %4572 = sbr.rel (%p4570) target = $region56
      $region55: #{disc_block_forward.2} parent=51 // pred_region
        %p4573 = scmp.lt.s32.totalorder %s24, 1
        %s4574 = scalar_select %p4573, %s24, 1
        %p4575 = scmp.lt.s32.totalorder %s25, 0
        %s4576 = scalar_select %p4575, %s25, 0
        %s4577 = smul.addr %s4574, 32
        %s4578 = sadd.s32 %s4576, %s4577
        %s4579 = smul.addr %s4578, 4
        %s4580 = scalar_lea.vmem %s5, %s4579
      $region56: #{disc_block_forward.2} parent=51 // pred_fallthru
        _
      // Predicated region
      $region57: #{disc_block_forward.2} parent=51 // pred_check
        %p4581 = pneg %p214
      $region58: #{disc_block_forward.2} parent=51 // pred_check_branch
        %4583 = sbr.rel (%p4581) target = $region60
      $region59: #{disc_block_forward.2} parent=51 // pred_region
        %p4584 = scmp.lt.s32.totalorder %s24, 1
        %s4585 = scalar_select %p4584, %s24, 1
        %p4586 = scmp.lt.s32.totalorder %s25, 0
        %s4587 = scalar_select %p4586, %s25, 0
        %s4588 = smul.addr %s4585, 8
        %s4589 = sadd.s32 %s4587, %s4588
        %s4590 = smul.addr %s4589, 4
        %s4591 = scalar_lea.vmem %s6, %s4590
      $region60: #{disc_block_forward.2} parent=51 // pred_fallthru
        _
    $region52: #{disc_block_forward.2} parent=5 // pred_fallthru
      _
  $region6: #{disc_block_forward.2} parent=0 // loop_footer
    %s17 = sadd.s32 1, %s13
  $region7: #{disc_block_forward.2} parent=0 // loop_footer_branch
    %12 = sbr.rel target = $region3
  $region8: #{disc_block_forward.2} parent=0 // loop_exit
    _

// kernel: disc_block_forward.3
$region0: #{disc_block_forward.3}
  #allocation0 [shape = 'u32[]', space=smem, size = 0x4, offset = 0x4, fixed_abs, tag = 'smem constant byte address 0x4 - core index']
  #allocation1 [shape = 'u32[144,128]{1,0:T(1,128)}', space=vmem, size = 0x12000, scoped, tag = 'internal scratch']
  %s0 = inlined_call_operand.vmem [shape: bf16[2,16,16,128], index: 0, kind: input, shape index: {}]
  %s1 = inlined_call_operand.vmem [shape: bf16[1152,128], index: 1, kind: input, shape index: {}]
  %s2 = inlined_call_operand.vmem [shape: f32[1,128], index: 2, kind: input, shape index: {}]
  %s3 = inlined_call_operand.vmem [shape: bf16[2,8,8,128], index: 3, kind: input, shape index: {}]
  %s4 = inlined_call_operand.vmem [shape: f32[2,8,8,128], index: 4, kind: output, shape index: {}]
  %s5 = sld [smem:[#allocation0]]
  $region49: #{disc_block_forward.3} parent=0
    _
  %s7 = ssub.s32 1, %s5
  %s8 = scalar_select 0, %s7, %s5
  loop: start=0, step=1, limit=4
  $region2: #{disc_block_forward.3} parent=0 // loop_pre_header
    _
  $region3: #{disc_block_forward.3} parent=0 // loop_header
    %s10 = sphi 0, %s14
    %p11 = scmp.ge.s32.totalorder %s10, 4
    %s17 = sphi 0, %s29
    %s18 = sphi 0, %s25
    %s19 = sphi 0, %s17
    %s20 = sphi 0, %s18
    %s21 = sphi 0, %s19
    %s22 = sphi 0, %s20
    %s32 = sphi 0, %s34
    %s35 = sphi 0, %s32
    %s36 = sphi 0, %s35
    %s52 = sphi 0, %s36
    %s58 = sphi 0, %s60
    %s61 = sphi 0, %s58
    %s62 = sphi 0, %s61
    %s78 = sphi 0, %s62
    %s84 = sphi 0, %s86
    %s87 = sphi 0, %s84
    %s88 = sphi 0, %s87
    %s104 = sphi 0, %s88
    %s112 = sphi 0, %s114
    %s115 = sphi 0, %s112
    %s116 = sphi 0, %s115
    %s132 = sphi 0, %s116
    %s140 = sphi 0, %s142
    %s143 = sphi 0, %s140
    %s144 = sphi 0, %s143
    %s160 = sphi 0, %s144
  $region4: #{disc_block_forward.3} parent=0 // loop_header_branch
    %13 = sbr.rel (%p11) target = $region8
  $region5: #{disc_block_forward.3} parent=0 // loop_body
    %s15 = ssub.s32 %s10, 1
    %s16 = ssub.s32 %s10, 2
    %s23 = sadd.s32 1, %s18
    %p24 = scmp.ge.s32.totalorder %s23, 1
    %s25 = scalar_select %p24, 0, %s23
    %s26 = sadd.s32 1, %s17
    %s27 = scalar_select %p24, %s26, %s17
    %p28 = scmp.ge.s32.totalorder %s27, 2
    %s29 = scalar_select %p28, 0, %s27
    %s30 = ssub.s32 %s17, %s29
    %p31 = scmp.eq.s32.totalorder %s30, 0
    %s33 = sadd.s32 %s32, 1
    %s34 = scalar_select %p31, %s32, %s33
    %p37 = pneg %p31
    %p38 = scmp.eq.s32.totalorder %s10, 1
    %p39 = por %p37, %p38
    %p40 = scmp.ne.s32.totalorder %s32, %s35
    %p41 = scmp.eq.s32.totalorder %s10, 0
    %p42 = por %p40, %p41
    %p43 = scmp.ne.s32.totalorder %s32, %s35
    %p44 = scmp.eq.s32.totalorder %s15, 1
    %p45 = por %p43, %p44
    %p46 = scmp.ne.s32.totalorder %s35, %s36
    %p47 = scmp.eq.s32.totalorder %s15, 0
    %p48 = por %p46, %p47
    %p49 = scmp.ne.s32.totalorder %s35, %s36
    %p50 = scmp.eq.s32.totalorder %s16, 1
    %p51 = por %p49, %p50
    %p53 = scmp.ne.s32.totalorder %s36, %s52
    %p54 = scmp.eq.s32.totalorder %s16, 0
    %p55 = por %p53, %p54
    %s56 = ssub.s32 %s18, %s25
    %p57 = scmp.eq.s32.totalorder %s56, 0
    %s59 = sadd.s32 %s58, 1
    %s60 = scalar_select %p57, %s58, %s59
    %p63 = pneg %p57
    %p64 = scmp.eq.s32.totalorder %s10, 1
    %p65 = por %p63, %p64
    %p66 = scmp.ne.s32.totalorder %s58, %s61
    %p67 = scmp.eq.s32.totalorder %s10, 0
    %p68 = por %p66, %p67
    %p69 = scmp.ne.s32.totalorder %s58, %s61
    %p70 = scmp.eq.s32.totalorder %s15, 1
    %p71 = por %p69, %p70
    %p72 = scmp.ne.s32.totalorder %s61, %s62
    %p73 = scmp.eq.s32.totalorder %s15, 0
    %p74 = por %p72, %p73
    %p75 = scmp.ne.s32.totalorder %s61, %s62
    %p76 = scmp.eq.s32.totalorder %s16, 1
    %p77 = por %p75, %p76
    %p79 = scmp.ne.s32.totalorder %s62, %s78
    %p80 = scmp.eq.s32.totalorder %s16, 0
    %p81 = por %p79, %p80
    %s82 = ssub.s32 %s18, %s25
    %p83 = scmp.eq.s32.totalorder %s82, 0
    %s85 = sadd.s32 %s84, 1
    %s86 = scalar_select %p83, %s84, %s85
    %p89 = pneg %p83
    %p90 = scmp.eq.s32.totalorder %s10, 1
    %p91 = por %p89, %p90
    %p92 = scmp.ne.s32.totalorder %s84, %s87
    %p93 = scmp.eq.s32.totalorder %s10, 0
    %p94 = por %p92, %p93
    %p95 = scmp.ne.s32.totalorder %s84, %s87
    %p96 = scmp.eq.s32.totalorder %s15, 1
    %p97 = por %p95, %p96
    %p98 = scmp.ne.s32.totalorder %s87, %s88
    %p99 = scmp.eq.s32.totalorder %s15, 0
    %p100 = por %p98, %p99
    %p101 = scmp.ne.s32.totalorder %s87, %s88
    %p102 = scmp.eq.s32.totalorder %s16, 1
    %p103 = por %p101, %p102
    %p105 = scmp.ne.s32.totalorder %s88, %s104
    %p106 = scmp.eq.s32.totalorder %s16, 0
    %p107 = por %p105, %p106
    %s108 = ssub.s32 %s17, %s29
    %s109 = ssub.s32 %s18, %s25
    %s110 = sor.u32 %s108, %s109
    %p111 = scmp.eq.s32.totalorder %s110, 0
    %s113 = sadd.s32 %s112, 1
    %s114 = scalar_select %p111, %s112, %s113
    %p117 = pneg %p111
    %p118 = scmp.eq.s32.totalorder %s10, 1
    %p119 = por %p117, %p118
    %p120 = scmp.ne.s32.totalorder %s112, %s115
    %p121 = scmp.eq.s32.totalorder %s10, 0
    %p122 = por %p120, %p121
    %p123 = scmp.ne.s32.totalorder %s112, %s115
    %p124 = scmp.eq.s32.totalorder %s15, 1
    %p125 = por %p123, %p124
    %p126 = scmp.ne.s32.totalorder %s115, %s116
    %p127 = scmp.eq.s32.totalorder %s15, 0
    %p128 = por %p126, %p127
    %p129 = scmp.ne.s32.totalorder %s115, %s116
    %p130 = scmp.eq.s32.totalorder %s16, 1
    %p131 = por %p129, %p130
    %p133 = scmp.ne.s32.totalorder %s116, %s132
    %p134 = scmp.eq.s32.totalorder %s16, 0
    %p135 = por %p133, %p134
    %s136 = ssub.s32 %s17, %s29
    %s137 = ssub.s32 %s18, %s25
    %s138 = sor.u32 %s136, %s137
    %p139 = scmp.eq.s32.totalorder %s138, 0
    %s141 = sadd.s32 %s140, 1
    %s142 = scalar_select %p139, %s140, %s141
    %p145 = pneg %p139
    %p146 = scmp.eq.s32.totalorder %s10, 1
    %p147 = por %p145, %p146
    %p148 = scmp.ne.s32.totalorder %s140, %s143
    %p149 = scmp.eq.s32.totalorder %s10, 0
    %p150 = por %p148, %p149
    %p151 = scmp.ne.s32.totalorder %s140, %s143
    %p152 = scmp.eq.s32.totalorder %s15, 1
    %p153 = por %p151, %p152
    %p154 = scmp.ne.s32.totalorder %s143, %s144
    %p155 = scmp.eq.s32.totalorder %s15, 0
    %p156 = por %p154, %p155
    %p157 = scmp.ne.s32.totalorder %s143, %s144
    %p158 = scmp.eq.s32.totalorder %s16, 1
    %p159 = por %p157, %p158
    %p161 = scmp.ne.s32.totalorder %s144, %s160
    %p162 = scmp.eq.s32.totalorder %s16, 0
    %p163 = por %p161, %p162
    %p164 = scmp.le.s32.totalorder 1, %s10
    %p165 = scmp.lt.s32.totalorder %s10, 3
    %p166 = pnand %p164, %p165
    %p167 = pneg %p166
    // Predicated region
    $region9: #{disc_block_forward.3} parent=5 // pred_check
      _
    $region10: #{disc_block_forward.3} parent=5 // pred_check_branch
      %169 = sbr.rel (%p166) target = $region12
    $region11: #{disc_block_forward.3} parent=5 // pred_region
      %s170 = ssub.s32 %s10, 1
      // Predicated region
      $region13: #{disc_block_forward.3} parent=11 // pred_check
        %p171 = pneg %p74
      $region14: #{disc_block_forward.3} parent=11 // pred_check_branch
        %173 = sbr.rel (%p171) target = $region16
      $region15: #{disc_block_forward.3} parent=11 // pred_region
        %p174 = scmp.lt.s32.totalorder %s20, 0
        %s175 = scalar_select %p174, %s20, 0
        %s176 = smul.addr %s175, 4
        %s177 = scalar_lea.vmem %s1, %s176
      $region16: #{disc_block_forward.3} parent=11 // pred_fallthru
        _
      // Predicated region
      $region17: #{disc_block_forward.3} parent=11 // pred_check
        %p178 = pneg %p100
      $region18: #{disc_block_forward.3} parent=11 // pred_check_branch
        %180 = sbr.rel (%p178) target = $region20
      $region19: #{disc_block_forward.3} parent=11 // pred_region
        %p181 = scmp.lt.s32.totalorder %s20, 0
        %s182 = scalar_select %p181, %s20, 0
        %s183 = scalar_lea.vmem %s2, %s182
      $region20: #{disc_block_forward.3} parent=11 // pred_fallthru
        _
    $region12: #{disc_block_forward.3} parent=5 // pred_fallthru
      _
    %p184 = scmp.lt.s32.totalorder %s10, 2
    // Predicated region
    $region21: #{disc_block_forward.3} parent=5 // pred_check
      %p185 = pneg %p184
    $region22: #{disc_block_forward.3} parent=5 // pred_check_branch
      %187 = sbr.rel (%p185) target = $region24
    $region23: #{disc_block_forward.3} parent=5 // pred_region
      // Predicated region
      $region25: #{disc_block_forward.3} parent=23 // pred_check
        %p188 = pneg %p42
      $region26: #{disc_block_forward.3} parent=23 // pred_check_branch
        %190 = sbr.rel (%p188) target = $region28
      $region27: #{disc_block_forward.3} parent=23 // pred_region
        %p191 = scmp.lt.s32.totalorder %s17, 1
        %s192 = scalar_select %p191, %s17, 1
        %s193 = smul.addr %s192, 32
        %s194 = smul.addr %s193, 4
        %s195 = scalar_lea.vmem %s0, %s194
      $region28: #{disc_block_forward.3} parent=23 // pred_fallthru
        _
      // Predicated region
      $region29: #{disc_block_forward.3} parent=23 // pred_check
        %p196 = pneg %p122
      $region30: #{disc_block_forward.3} parent=23 // pred_check_branch
        %198 = sbr.rel (%p196) target = $region32
      $region31: #{disc_block_forward.3} parent=23 // pred_region
        %p199 = scmp.lt.s32.totalorder %s17, 1
        %s200 = scalar_select %p199, %s17, 1
        %p201 = scmp.lt.s32.totalorder %s18, 0
        %s202 = scalar_select %p201, %s18, 0
        %s203 = smul.addr %s200, 8
        %s204 = sadd.s32 %s202, %s203
        %s205 = smul.addr %s204, 4
        %s206 = scalar_lea.vmem %s3, %s205
      $region32: #{disc_block_forward.3} parent=23 // pred_fallthru
        _
    $region24: #{disc_block_forward.3} parent=5 // pred_fallthru
      _
    %p207 = scmp.le.s32.totalorder 1, %s10
    %p208 = scmp.lt.s32.totalorder %s10, 3
    %p209 = pnand %p207, %p208
    %p210 = pneg %p209
    // Predicated region
    $region33: #{disc_block_forward.3} parent=5 // pred_check
      _
    $region34: #{disc_block_forward.3} parent=5 // pred_check_branch
      %212 = sbr.rel (%p209) target = $region36
    $region35: #{disc_block_forward.3} parent=5 // pred_region
      %s213 = ssub.s32 %s10, 1
      %p214 = scmp.lt.s32.totalorder %s19, 1
      %s215 = scalar_select %p214, %s19, 1
      %s216 = smul.addr %s215, 32
      %s217 = smul.addr %s216, 4
      %s218 = scalar_lea.vmem %s0, %s217
      %p219 = pneg %p48
      %p220 = pneg %p45
      %p221 = scmp.lt.s32.totalorder %s20, 0
      %s222 = scalar_select %p221, %s20, 0
      %s223 = smul.addr %s222, 4
      %s224 = scalar_lea.vmem %s1, %s223
      %p225 = pneg %p74
      %p226 = pneg %p71
      %p227 = scmp.lt.s32.totalorder %s20, 0
      %s228 = scalar_select %p227, %s20, 0
      %s229 = scalar_lea.vmem %s2, %s228
      %p230 = pneg %p100
      %p231 = pneg %p97
      %p232 = scmp.lt.s32.totalorder %s19, 1
      %s233 = scalar_select %p232, %s19, 1
      %p234 = scmp.lt.s32.totalorder %s20, 0
      %s235 = scalar_select %p234, %s20, 0
      %s236 = smul.addr %s233, 8
      %s237 = sadd.s32 %s235, %s236
      %s238 = smul.addr %s237, 4
      %s239 = scalar_lea.vmem %s3, %s238
      %p240 = pneg %p128
      %p241 = pneg %p125
      %p242 = pneg %p156
      %p243 = pneg %p153
      %p244 = scmp.lt.s32.totalorder %s19, 1
      %s245 = scalar_select %p244, %s19, 1
      %p246 = scmp.lt.s32.totalorder %s20, 0
      %s247 = scalar_select %p246, %s20, 0
      %s248 = smul.addr %s245, 8
      %s249 = sadd.s32 %s247, %s248
      %s250 = smul.addr %s249, 8
      %s251 = scalar_lea.vmem %s4, %s250
      %p252 = scmp.lt.s32.totalorder %s19, 1
      %s253 = scalar_select %p252, %s19, 1
      %s254 = smul.addr %s253, 32
      %s255 = smul.addr %s254, 4
      %s256 = scalar_lea.vmem %s0, %s255
      %p257 = scmp.lt.s32.totalorder %s20, 0
      %s258 = scalar_select %p257, %s20, 0
      %s259 = smul.addr %s258, 4
      %s260 = scalar_lea.vmem %s1, %s259
      %p261 = scmp.lt.s32.totalorder %s20, 0
      %s262 = scalar_select %p261, %s20, 0
      %s263 = scalar_lea.vmem %s2, %s262
      %p264 = scmp.lt.s32.totalorder %s19, 1
      %s265 = scalar_select %p264, %s19, 1
      %p266 = scmp.lt.s32.totalorder %s20, 0
      %s267 = scalar_select %p266, %s20, 0
      %s268 = smul.addr %s265, 8
      %s269 = sadd.s32 %s267, %s268
      %s270 = smul.addr %s269, 4
      %s271 = scalar_lea.vmem %s3, %s270
      %p272 = scmp.lt.s32.totalorder %s19, 1
      %s273 = scalar_select %p272, %s19, 1
      %p274 = scmp.lt.s32.totalorder %s20, 0
      %s275 = scalar_select %p274, %s20, 0
      %s276 = smul.addr %s273, 8
      %s277 = sadd.s32 %s275, %s276
      %s278 = smul.addr %s277, 8
      %s279 = scalar_lea.vmem %s4, %s278
      %v281 = vld [vmem:[%s256] sm:$0xf]
      %v282 = vld [vmem:[%s256 + $0x4] sm:$0xf]
      %v283 = vld [vmem:[%s256 + $0x8] sm:$0xf]
      %v284 = vld [vmem:[%s256 + $0xc] sm:$0xf]
      %v285 = vld [vmem:[%s256 + $0x10] sm:$0xf]
      %v286 = vld [vmem:[%s256 + $0x14] sm:$0xf]
      %v287 = vld [vmem:[%s256 + $0x18] sm:$0xf]
      %v288 = vld [vmem:[%s256 + $0x1c] sm:$0xf]
      %v289 = vld [vmem:[%s256 + $0x20] sm:$0xf]
      %v290 = vld [vmem:[%s256 + $0x24] sm:$0xf]
      %v291 = vld [vmem:[%s256 + $0x28] sm:$0xf]
      %v292 = vld [vmem:[%s256 + $0x2c] sm:$0xf]
      %v293 = vld [vmem:[%s256 + $0x30] sm:$0xf]
      %v294 = vld [vmem:[%s256 + $0x34] sm:$0xf]
      %v295 = vld [vmem:[%s256 + $0x38] sm:$0xf]
      %v296 = vld [vmem:[%s256 + $0x3c] sm:$0xf]
      %v297 = vld [vmem:[%s256 + $0x40] sm:$0xf]
      %v298 = vld [vmem:[%s256 + $0x44] sm:$0xf]
      %v299 = vld [vmem:[%s256 + $0x48] sm:$0xf]
      %v300 = vld [vmem:[%s256 + $0x4c] sm:$0xf]
      %v301 = vld [vmem:[%s256 + $0x50] sm:$0xf]
      %v302 = vld [vmem:[%s256 + $0x54] sm:$0xf]
      %v303 = vld [vmem:[%s256 + $0x58] sm:$0xf]
      %v304 = vld [vmem:[%s256 + $0x5c] sm:$0xf]
      %v305 = vld [vmem:[%s256 + $0x60] sm:$0xf]
      %v306 = vld [vmem:[%s256 + $0x64] sm:$0xf]
      %v307 = vld [vmem:[%s256 + $0x68] sm:$0xf]
      %v308 = vld [vmem:[%s256 + $0x6c] sm:$0xf]
      %v309 = vld [vmem:[%s256 + $0x70] sm:$0xf]
      %v310 = vld [vmem:[%s256 + $0x74] sm:$0xf]
      %v311 = vld [vmem:[%s256 + $0x78] sm:$0xf]
      %v312 = vld [vmem:[%s256 + $0x7c] sm:$0xf]
      %v345 = vunpack.c.l.b16 %v281
      %v346 = vunpack.c.l.b16 %v282
      %v347 = vunpack.c.l.b16 %v283
      %v348 = vunpack.c.l.b16 %v284
      %v349 = vunpack.c.l.b16 %v285
      %v350 = vunpack.c.l.b16 %v286
      %v351 = vunpack.c.l.b16 %v287
      %v352 = vunpack.c.l.b16 %v288
      %v353 = vunpack.c.l.b16 %v289
      %v354 = vunpack.c.l.b16 %v290
      %v355 = vunpack.c.l.b16 %v291
      %v356 = vunpack.c.l.b16 %v292
      %v357 = vunpack.c.l.b16 %v293
      %v358 = vunpack.c.l.b16 %v294
      %v359 = vunpack.c.l.b16 %v295
      %v360 = vunpack.c.l.b16 %v296
      %v361 = vunpack.c.l.b16 %v297
      %v362 = vunpack.c.l.b16 %v298
      %v363 = vunpack.c.l.b16 %v299
      %v364 = vunpack.c.l.b16 %v300
      %v365 = vunpack.c.l.b16 %v301
      %v366 = vunpack.c.l.b16 %v302
      %v367 = vunpack.c.l.b16 %v303
      %v368 = vunpack.c.l.b16 %v304
      %v369 = vunpack.c.l.b16 %v305
      %v370 = vunpack.c.l.b16 %v306
      %v371 = vunpack.c.l.b16 %v307
      %v372 = vunpack.c.l.b16 %v308
      %v373 = vunpack.c.l.b16 %v309
      %v374 = vunpack.c.l.b16 %v310
      %v375 = vunpack.c.l.b16 %v311
      %v376 = vunpack.c.l.b16 %v312
      %v377 = vpack.c.b16 %v346, %v345
      %v378 = vpack.c.b16 %v348, %v347
      %v379 = vpack.c.b16 %v350, %v349
      %v380 = vpack.c.b16 %v352, %v351
      %v381 = vpack.c.b16 %v354, %v353
      %v382 = vpack.c.b16 %v356, %v355
      %v383 = vpack.c.b16 %v358, %v357
      %v384 = vpack.c.b16 %v360, %v359
      %v385 = vpack.c.b16 %v362, %v361
      %v386 = vpack.c.b16 %v364, %v363
      %v387 = vpack.c.b16 %v366, %v365
      %v388 = vpack.c.b16 %v368, %v367
      %v389 = vpack.c.b16 %v370, %v369
      %v390 = vpack.c.b16 %v372, %v371
      %v391 = vpack.c.b16 %v374, %v373
      %v392 = vpack.c.b16 %v376, %v375
      %v394 = vshrl.u32 %v377, 16
      %v396 = vrot.slane %v394, 7
      %v397 = vshll.u32 %v377, 16
      %v399 = vor.u32 %v396, %v397
      %v401 = vshrl.u32 %v378, 16
      %v403 = vrot.slane %v401, 7
      %v404 = vshll.u32 %v378, 16
      %v406 = vor.u32 %v403, %v404
      %v408 = vshrl.u32 %v379, 16
      %v410 = vrot.slane %v408, 7
      %v411 = vshll.u32 %v379, 16
      %v413 = vor.u32 %v410, %v411
      %v415 = vshrl.u32 %v380, 16
      %v417 = vrot.slane %v415, 7
      %v418 = vshll.u32 %v380, 16
      %v420 = vor.u32 %v417, %v418
      %v422 = vshrl.u32 %v381, 16
      %v424 = vrot.slane %v422, 7
      %v425 = vshll.u32 %v381, 16
      %v427 = vor.u32 %v424, %v425
      %v429 = vshrl.u32 %v382, 16
      %v431 = vrot.slane %v429, 7
      %v432 = vshll.u32 %v382, 16
      %v434 = vor.u32 %v431, %v432
      %v436 = vshrl.u32 %v383, 16
      %v438 = vrot.slane %v436, 7
      %v439 = vshll.u32 %v383, 16
      %v441 = vor.u32 %v438, %v439
      %v443 = vshrl.u32 %v384, 16
      %v445 = vrot.slane %v443, 7
      %v446 = vshll.u32 %v384, 16
      %v448 = vor.u32 %v445, %v446
      %v450 = vshrl.u32 %v385, 16
      %v452 = vrot.slane %v450, 7
      %v453 = vshll.u32 %v385, 16
      %v455 = vor.u32 %v452, %v453
      %v457 = vshrl.u32 %v386, 16
      %v459 = vrot.slane %v457, 7
      %v460 = vshll.u32 %v386, 16
      %v462 = vor.u32 %v459, %v460
      %v464 = vshrl.u32 %v387, 16
      %v466 = vrot.slane %v464, 7
      %v467 = vshll.u32 %v387, 16
      %v469 = vor.u32 %v466, %v467
      %v471 = vshrl.u32 %v388, 16
      %v473 = vrot.slane %v471, 7
      %v474 = vshll.u32 %v388, 16
      %v476 = vor.u32 %v473, %v474
      %v478 = vshrl.u32 %v389, 16
      %v480 = vrot.slane %v478, 7
      %v481 = vshll.u32 %v389, 16
      %v483 = vor.u32 %v480, %v481
      %v485 = vshrl.u32 %v390, 16
      %v487 = vrot.slane %v485, 7
      %v488 = vshll.u32 %v390, 16
      %v490 = vor.u32 %v487, %v488
      %v492 = vshrl.u32 %v391, 16
      %v494 = vrot.slane %v492, 7
      %v495 = vshll.u32 %v391, 16
      %v497 = vor.u32 %v494, %v495
      %v499 = vshrl.u32 %v392, 16
      %v501 = vrot.slane %v499, 7
      %v502 = vshll.u32 %v392, 16
      %v504 = vor.u32 %v501, %v502
      %vm537 = vcmask 1040384
      %vm538 = vsmask.f32 256
      %vm539 = vmand %vm537, %vm538
      %v540 = vsel %vm539, 0, %v399
      %v541 = vsel %vm539, 0, %v406
      %v542 = vsel %vm539, 0, %v413
      %v543 = vsel %vm539, 0, %v420
      %v544 = vsel %vm539, 0, %v427
      %v545 = vsel %vm539, 0, %v434
      %v546 = vsel %vm539, 0, %v441
      %v547 = vsel %vm539, 0, %v448
      %v548 = vsel %vm539, 0, %v455
      %v549 = vsel %vm539, 0, %v462
      %v550 = vsel %vm539, 0, %v469
      %v551 = vsel %vm539, 0, %v476
      %v552 = vsel %vm539, 0, %v483
      %v553 = vsel %vm539, 0, %v490
      %v554 = vsel %vm539, 0, %v497
      %v555 = vsel %vm539, 0, %v504
      %v556 = vsel %vm539, %v396, 0
      %v557 = vsel %vm539, %v403, 0
      %v558 = vsel %vm539, %v410, 0
      %v559 = vsel %vm539, %v417, 0
      %v560 = vsel %vm539, %v424, 0
      %v561 = vsel %vm539, %v431, 0
      %v562 = vsel %vm539, %v438, 0
      %v563 = vsel %vm539, %v445, 0
      %v564 = vsel %vm539, %v452, 0
      %v565 = vsel %vm539, %v459, 0
      %v566 = vsel %vm539, %v466, 0
      %v567 = vsel %vm539, %v473, 0
      %v568 = vsel %vm539, %v480, 0
      %v569 = vsel %vm539, %v487, 0
      %v570 = vsel %vm539, %v494, 0
      %v571 = vsel %vm539, %v501, 0
      %v605 = vunpack.c.l.b16 0
      %v606 = vunpack.c.h.b16 0
      %v607 = vunpack.c.l.b16 %v540
      %v608 = vunpack.c.h.b16 %v540
      %v609 = vunpack.c.l.b16 %v556
      %v610 = vunpack.c.l.b16 %v541
      %v611 = vunpack.c.h.b16 %v541
      %v612 = vunpack.c.l.b16 %v557
      %v613 = vunpack.c.l.b16 %v542
      %v614 = vunpack.c.h.b16 %v542
      %v615 = vunpack.c.l.b16 %v558
      %v616 = vunpack.c.l.b16 %v543
      %v617 = vunpack.c.h.b16 %v543
      %v618 = vunpack.c.l.b16 %v559
      %v619 = vunpack.c.l.b16 %v544
      %v620 = vunpack.c.h.b16 %v544
      %v621 = vunpack.c.l.b16 %v560
      %v622 = vunpack.c.l.b16 %v545
      %v623 = vunpack.c.h.b16 %v545
      %v624 = vunpack.c.l.b16 %v561
      %v625 = vunpack.c.l.b16 %v546
      %v626 = vunpack.c.h.b16 %v546
      %v627 = vunpack.c.l.b16 %v562
      %v628 = vunpack.c.l.b16 %v547
      %v629 = vunpack.c.h.b16 %v547
      %v630 = vunpack.c.l.b16 %v563
      %v631 = vunpack.c.l.b16 %v548
      %v632 = vunpack.c.h.b16 %v548
      %v633 = vunpack.c.l.b16 %v564
      %v634 = vunpack.c.l.b16 %v549
      %v635 = vunpack.c.h.b16 %v549
      %v636 = vunpack.c.l.b16 %v565
      %v637 = vunpack.c.l.b16 %v550
      %v638 = vunpack.c.h.b16 %v550
      %v639 = vunpack.c.l.b16 %v566
      %v640 = vunpack.c.l.b16 %v551
      %v641 = vunpack.c.h.b16 %v551
      %v642 = vunpack.c.l.b16 %v567
      %v643 = vunpack.c.l.b16 %v552
      %v644 = vunpack.c.h.b16 %v552
      %v645 = vunpack.c.l.b16 %v568
      %v646 = vunpack.c.l.b16 %v553
      %v647 = vunpack.c.h.b16 %v553
      %v648 = vunpack.c.l.b16 %v569
      %v649 = vunpack.c.l.b16 %v554
      %v650 = vunpack.c.h.b16 %v554
      %v651 = vunpack.c.l.b16 %v570
      %v652 = vunpack.c.l.b16 %v555
      %v653 = vunpack.c.h.b16 %v555
      %v654 = vunpack.c.l.b16 %v571
      %v655 = vld [vmem:[%s260] sm:$0xf]
      %v656 = vld [vmem:[%s260 + $0x4] sm:$0xf]
      %v657 = vld [vmem:[%s260 + $0x8] sm:$0xf]
      %v658 = vld [vmem:[%s260 + $0xc] sm:$0xf]
      %v659 = vld [vmem:[%s260 + $0x10] sm:$0xf]
      %v660 = vld [vmem:[%s260 + $0x14] sm:$0xf]
      %v661 = vld [vmem:[%s260 + $0x18] sm:$0xf]
      %v662 = vld [vmem:[%s260 + $0x1c] sm:$0xf]
      %v663 = vld [vmem:[%s260 + $0x20] sm:$0xf]
      %v664 = vld [vmem:[%s260 + $0x24] sm:$0xf]
      %v665 = vld [vmem:[%s260 + $0x28] sm:$0xf]
      %v666 = vld [vmem:[%s260 + $0x2c] sm:$0xf]
      %v667 = vld [vmem:[%s260 + $0x30] sm:$0xf]
      %v668 = vld [vmem:[%s260 + $0x34] sm:$0xf]
      %v669 = vld [vmem:[%s260 + $0x38] sm:$0xf]
      %v670 = vld [vmem:[%s260 + $0x3c] sm:$0xf]
      %v671 = vld [vmem:[%s260 + $0x40] sm:$0xf]
      %v672 = vld [vmem:[%s260 + $0x44] sm:$0xf]
      %v673 = vld [vmem:[%s260 + $0x48] sm:$0xf]
      %v674 = vld [vmem:[%s260 + $0x4c] sm:$0xf]
      %v675 = vld [vmem:[%s260 + $0x50] sm:$0xf]
      %v676 = vld [vmem:[%s260 + $0x54] sm:$0xf]
      %v677 = vld [vmem:[%s260 + $0x58] sm:$0xf]
      %v678 = vld [vmem:[%s260 + $0x5c] sm:$0xf]
      %v679 = vld [vmem:[%s260 + $0x60] sm:$0xf]
      %v680 = vld [vmem:[%s260 + $0x64] sm:$0xf]
      %v681 = vld [vmem:[%s260 + $0x68] sm:$0xf]
      %v682 = vld [vmem:[%s260 + $0x6c] sm:$0xf]
      %v683 = vld [vmem:[%s260 + $0x70] sm:$0xf]
      %v684 = vld [vmem:[%s260 + $0x74] sm:$0xf]
      %v685 = vld [vmem:[%s260 + $0x78] sm:$0xf]
      %v686 = vld [vmem:[%s260 + $0x7c] sm:$0xf]
      %v687 = vpack.c.b16 %v606, %v605
      %v688 = vpack.c.b16 %v607, %v605
      %v689 = vpack.c.b16 %v609, %v608
      %v690 = vpack.c.b16 %v611, %v610
      %v691 = vpack.c.b16 %v613, %v612
      %v692 = vpack.c.b16 %v615, %v614
      %v693 = vpack.c.b16 %v617, %v616
      %v694 = vpack.c.b16 %v619, %v618
      %v695 = vpack.c.b16 %v621, %v620
      %v696 = vpack.c.b16 %v623, %v622
      %v697 = vpack.c.b16 %v625, %v624
      %v698 = vpack.c.b16 %v627, %v626
      %v699 = vpack.c.b16 %v629, %v628
      %v700 = vpack.c.b16 %v631, %v630
      %v701 = vpack.c.b16 %v633, %v632
      %v702 = vpack.c.b16 %v635, %v634
      %v703 = vpack.c.b16 %v637, %v636
      %v704 = vpack.c.b16 %v639, %v638
      %v705 = vpack.c.b16 %v641, %v640
      %v706 = vpack.c.b16 %v643, %v642
      %v707 = vpack.c.b16 %v645, %v644
      %v708 = vpack.c.b16 %v647, %v646
      %v709 = vpack.c.b16 %v649, %v648
      %v710 = vpack.c.b16 %v651, %v650
      %v711 = vpack.c.b16 %v652, %v652
      %vm712 = vsmask.f32 7424
      %v714 = vshrl.u32 %v687, 16
      %v716 = vshll.u32 %v687, 16
      %v718 = vrot.slane %v716, 1
      %v719 = vor.u32 %v714, %v718
      %v721 = vshll.u32 %v688, 16
      %v723 = vrot.slane %v721, 1
      %v724 = vsel %vm712, %v719, %v723
      %v725 = vshrl.u32 %v688, 16
      %v727 = vor.u32 %v725, %v723
      %v729 = vshll.u32 %v689, 16
      %v731 = vrot.slane %v729, 1
      %v732 = vsel %vm712, %v727, %v731
      %v733 = vshrl.u32 %v689, 16
      %v735 = vor.u32 %v733, %v731
      %v737 = vshll.u32 %v690, 16
      %v739 = vrot.slane %v737, 1
      %v740 = vsel %vm712, %v735, %v739
      %v741 = vshrl.u32 %v690, 16
      %v743 = vor.u32 %v741, %v739
      %v745 = vshll.u32 %v691, 16
      %v747 = vrot.slane %v745, 1
      %v748 = vsel %vm712, %v743, %v747
      %v749 = vshrl.u32 %v691, 16
      %v751 = vor.u32 %v749, %v747
      %v753 = vshll.u32 %v692, 16
      %v755 = vrot.slane %v753, 1
      %v756 = vsel %vm712, %v751, %v755
      %v757 = vshrl.u32 %v692, 16
      %v759 = vor.u32 %v757, %v755
      %v761 = vshll.u32 %v693, 16
      %v763 = vrot.slane %v761, 1
      %v764 = vsel %vm712, %v759, %v763
      %v765 = vshrl.u32 %v693, 16
      %v767 = vor.u32 %v765, %v763
      %v769 = vshll.u32 %v694, 16
      %v771 = vrot.slane %v769, 1
      %v772 = vsel %vm712, %v767, %v771
      %v773 = vshrl.u32 %v694, 16
      %v775 = vor.u32 %v773, %v771
      %v777 = vshll.u32 %v695, 16
      %v779 = vrot.slane %v777, 1
      %v780 = vsel %vm712, %v775, %v779
      %v781 = vshrl.u32 %v695, 16
      %v783 = vor.u32 %v781, %v779
      %v785 = vshll.u32 %v696, 16
      %v787 = vrot.slane %v785, 1
      %v788 = vsel %vm712, %v783, %v787
      %v789 = vshrl.u32 %v696, 16
      %v791 = vor.u32 %v789, %v787
      %v793 = vshll.u32 %v697, 16
      %v795 = vrot.slane %v793, 1
      %v796 = vsel %vm712, %v791, %v795
      %v797 = vshrl.u32 %v697, 16
      %v799 = vor.u32 %v797, %v795
      %v801 = vshll.u32 %v698, 16
      %v803 = vrot.slane %v801, 1
      %v804 = vsel %vm712, %v799, %v803
      %v805 = vshrl.u32 %v698, 16
      %v807 = vor.u32 %v805, %v803
      %v809 = vshll.u32 %v699, 16
      %v811 = vrot.slane %v809, 1
      %v812 = vsel %vm712, %v807, %v811
      %v813 = vshrl.u32 %v699, 16
      %v815 = vor.u32 %v813, %v811
      %v817 = vshll.u32 %v700, 16
      %v819 = vrot.slane %v817, 1
      %v820 = vsel %vm712, %v815, %v819
      %v821 = vshrl.u32 %v700, 16
      %v823 = vor.u32 %v821, %v819
      %v825 = vshll.u32 %v701, 16
      %v827 = vrot.slane %v825, 1
      %v828 = vsel %vm712, %v823, %v827
      %v829 = vshrl.u32 %v701, 16
      %v831 = vor.u32 %v829, %v827
      %v833 = vshll.u32 %v702, 16
      %v835 = vrot.slane %v833, 1
      %v836 = vsel %vm712, %v831, %v835
      %v837 = vshrl.u32 %v702, 16
      %v839 = vor.u32 %v837, %v835
      %v841 = vshll.u32 %v703, 16
      %v843 = vrot.slane %v841, 1
      %v844 = vsel %vm712, %v839, %v843
      %v845 = vshrl.u32 %v703, 16
      %v847 = vor.u32 %v845, %v843
      %v849 = vshll.u32 %v704, 16
      %v851 = vrot.slane %v849, 1
      %v852 = vsel %vm712, %v847, %v851
      %v853 = vshrl.u32 %v704, 16
      %v855 = vor.u32 %v853, %v851
      %v857 = vshll.u32 %v705, 16
      %v859 = vrot.slane %v857, 1
      %v860 = vsel %vm712, %v855, %v859
      %v861 = vshrl.u32 %v705, 16
      %v863 = vor.u32 %v861, %v859
      %v865 = vshll.u32 %v706, 16
      %v867 = vrot.slane %v865, 1
      %v868 = vsel %vm712, %v863, %v867
      %v869 = vshrl.u32 %v706, 16
      %v871 = vor.u32 %v869, %v867
      %v873 = vshll.u32 %v707, 16
      %v875 = vrot.slane %v873, 1
      %v876 = vsel %vm712, %v871, %v875
      %v877 = vshrl.u32 %v707, 16
      %v879 = vor.u32 %v877, %v875
      %v881 = vshll.u32 %v708, 16
      %v883 = vrot.slane %v881, 1
      %v884 = vsel %vm712, %v879, %v883
      %v885 = vshrl.u32 %v708, 16
      %v887 = vor.u32 %v885, %v883
      %v889 = vshll.u32 %v709, 16
      %v891 = vrot.slane %v889, 1
      %v892 = vsel %vm712, %v887, %v891
      %v893 = vshrl.u32 %v709, 16
      %v895 = vor.u32 %v893, %v891
      %v897 = vshll.u32 %v710, 16
      %v899 = vrot.slane %v897, 1
      %v900 = vsel %vm712, %v895, %v899
      %v901 = vshrl.u32 %v710, 16
      %v903 = vor.u32 %v901, %v899
      %v905 = vshll.u32 %v711, 16
      %v907 = vrot.slane %v905, 1
      %v908 = vsel %vm712, %v903, %v907
      %v949 = vunpack.c.l.b16 %v671
      %v950 = vunpack.c.l.b16 %v672
      %v951 = vunpack.c.l.b16 %v673
      %v952 = vunpack.c.l.b16 %v674
      %v953 = vunpack.c.l.b16 %v675
      %v954 = vunpack.c.l.b16 %v676
      %v955 = vunpack.c.l.b16 %v677
      %v956 = vunpack.c.l.b16 %v678
      %v957 = vunpack.c.l.b16 %v679
      %v958 = vunpack.c.l.b16 %v680
      %v959 = vunpack.c.l.b16 %v681
      %v960 = vunpack.c.l.b16 %v682
      %v961 = vunpack.c.l.b16 %v683
      %v962 = vunpack.c.l.b16 %v684
      %v963 = vunpack.c.l.b16 %v685
      %v964 = vunpack.c.l.b16 %v686
      %v965 = vpack.c.b16 %v950, %v949
      %v966 = vpack.c.b16 %v952, %v951
      %v967 = vpack.c.b16 %v954, %v953
      %v968 = vpack.c.b16 %v956, %v955
      %v969 = vpack.c.b16 %v958, %v957
      %v970 = vpack.c.b16 %v960, %v959
      %v971 = vpack.c.b16 %v962, %v961
      %v972 = vpack.c.b16 %v964, %v963
      %981 = vmatprep.subr.bf16.mxu0 0
      %982 = vmatpush1.bf16.msra.mxu0 %v965
      %983 = vmatprep.subr.bf16.mxu0 0
      %984 = vmatpush1.bf16.msra.mxu0 %v966
      %985 = vmatprep.subr.bf16.mxu0 0
      %986 = vmatpush1.bf16.msra.mxu0 %v967
      %987 = vmatprep.subr.bf16.mxu0 0
      %988 = vmatpush1.bf16.msra.mxu0 %v968
      %989 = vmatprep.subr.bf16.mxu0 0
      %990 = vmatpush1.bf16.msra.mxu0 %v969
      %991 = vmatprep.subr.bf16.mxu0 0
      %992 = vmatpush1.bf16.msra.mxu0 %v970
      %993 = vmatprep.subr.bf16.mxu0 0
      %994 = vmatpush1.bf16.msra.mxu0 %v971
      %995 = vmatprep.subr.bf16.mxu0 0
      %996 = vmatpush1.bf16.msra.mxu0 %v972
      %997 = vmatprep.subr.bf16.mxu0 0
      %998 = vmatpush1.bf16.msra.mxu0 0
      %999 = vmatprep.subr.bf16.mxu0 0
      %1000 = vmatpush1.bf16.msra.mxu0 0
      %1001 = vmatprep.subr.bf16.mxu0 0
      %1002 = vmatpush1.bf16.msra.mxu0 0
      %1003 = vmatprep.subr.bf16.mxu0 0
      %1004 = vmatpush1.bf16.msra.mxu0 0
      %1005 = vmatprep.subr.bf16.mxu0 0
      %1006 = vmatpush1.bf16.msra.mxu0 0
      %1007 = vmatprep.subr.bf16.mxu0 0
      %1008 = vmatpush1.bf16.msra.mxu0 0
      %1009 = vmatprep.subr.bf16.mxu0 0
      %1010 = vmatpush1.bf16.msra.mxu0 0
      %1011 = vmatprep.subr.bf16.mxu0 0
      %1012 = vmatpush1.bf16.msra.mxu0 0
      %1013 = vmatprep.mubr.bf16.mxu0 0
      %1014 = vmatmul.mubr.bf16.gmra.mrb[0].mxu0 %v724
      %v1015 = vpop.f32.mrb[0].mxu0
      %v1016 = vadd.f32 0.0, %v1015
      %v1017 = vpop.f32.mrb[0].mxu0
      %v1018 = vpop.f32.mrb[0].mxu0
      %v1019 = vadd.f32 0.0, %v1018
      %v1020 = vpop.f32.mrb[0].mxu0
      %1021 = vmatprep.mubr.bf16.mxu0 0
      %1022 = vmatmul.mubr.bf16.gmra.mrb[0].mxu0 %v732
      %v1023 = vpop.f32.mrb[0].mxu0
      %v1024 = vpop.f32.mrb[0].mxu0
      %v1025 = vpop.f32.mrb[0].mxu0
      %v1026 = vadd.f32 0.0, %v1025
      %v1027 = vpop.f32.mrb[0].mxu0
      %1028 = vmatprep.mubr.bf16.mxu0 0
      %1029 = vmatmul.mubr.bf16.gmra.mrb[0].mxu0 %v740
      %v1030 = vpop.f32.mrb[0].mxu0
      %v1031 = vadd.f32 0.0, %v1030
      %v1032 = vpop.f32.mrb[0].mxu0
      %v1033 = vpop.f32.mrb[0].mxu0
      %v1034 = vpop.f32.mrb[0].mxu0
      %1035 = vmatprep.mubr.bf16.mxu0 0
      %1036 = vmatmul.mubr.bf16.gmra.mrb[0].mxu0 %v748
      %v1037 = vpop.f32.mrb[0].mxu0
      %v1038 = vadd.f32 0.0, %v1037
      %v1039 = vpop.f32.mrb[0].mxu0
      %v1040 = vpop.f32.mrb[0].mxu0
      %v1041 = vadd.f32 0.0, %v1040
      %v1042 = vpop.f32.mrb[0].mxu0
      %1043 = vmatprep.mubr.bf16.mxu0 0
      %1044 = vmatmul.mubr.bf16.gmra.mrb[0].mxu0 %v756
      %v1045 = vpop.f32.mrb[0].mxu0
      %v1046 = vpop.f32.mrb[0].mxu0
      %v1047 = vpop.f32.mrb[0].mxu0
      %v1048 = vadd.f32 0.0, %v1047
      %v1049 = vpop.f32.mrb[0].mxu0
      %1050 = vmatprep.mubr.bf16.mxu0 0
      %1051 = vmatmul.mubr.bf16.gmra.mrb[0].mxu0 %v764
      %v1052 = vpop.f32.mrb[0].mxu0
      %v1053 = vadd.f32 0.0, %v1052
      %v1054 = vpop.f32.mrb[0].mxu0
      %v1055 = vpop.f32.mrb[0].mxu0
      %v1056 = vpop.f32.mrb[0].mxu0
      %1057 = vmatprep.mubr.bf16.mxu0 0
      %1058 = vmatmul.mubr.bf16.gmra.mrb[0].mxu0 %v772
      %v1059 = vpop.f32.mrb[0].mxu0
      %v1060 = vadd.f32 0.0, %v1059
      %v1061 = vpop.f32.mrb[0].mxu0
      %v1062 = vpop.f32.mrb[0].mxu0
      %v1063 = vadd.f32 0.0, %v1062
      %v1064 = vpop.f32.mrb[0].mxu0
      %1065 = vmatprep.mubr.bf16.mxu0 0
      %1066 = vmatmul.mubr.bf16.gmra.mrb[0].mxu0 %v780
      %v1067 = vpop.f32.mrb[0].mxu0
      %v1068 = vpop.f32.mrb[0].mxu0
      %v1069 = vpop.f32.mrb[0].mxu0
      %v1070 = vadd.f32 0.0, %v1069
      %v1071 = vpop.f32.mrb[0].mxu0
      %1072 = vmatprep.mubr.bf16.mxu0 0
      %1073 = vmatmul.mubr.bf16.gmra.mrb[0].mxu0 %v788
      %v1074 = vpop.f32.mrb[0].mxu0
      %v1075 = vadd.f32 0.0, %v1074
      %v1076 = vpop.f32.mrb[0].mxu0
      %v1077 = vpop.f32.mrb[0].mxu0
      %v1078 = vpop.f32.mrb[0].mxu0
      %1079 = vmatprep.mubr.bf16.mxu0 0
      %1080 = vmatmul.mubr.bf16.gmra.mrb[0].mxu0 %v796
      %v1081 = vpop.f32.mrb[0].mxu0
      %v1082 = vadd.f32 0.0, %v1081
      %v1083 = vpop.f32.mrb[0].mxu0
      %v1084 = vpop.f32.mrb[0].mxu0
      %v1085 = vadd.f32 0.0, %v1084
      %v1086 = vpop.f32.mrb[0].mxu0
      %1087 = vmatprep.mubr.bf16.mxu0 0
      %1088 = vmatmul.mubr.bf16.gmra.mrb[0].mxu0 %v804
      %v1089 = vpop.f32.mrb[0].mxu0
      %v1090 = vpop.f32.mrb[0].mxu0
      %v1091 = vpop.f32.mrb[0].mxu0
      %v1092 = vadd.f32 0.0, %v1091
      %v1093 = vpop.f32.mrb[0].mxu0
      %1094 = vmatprep.mubr.bf16.mxu0 0
      %1095 = vmatmul.mubr.bf16.gmra.mrb[0].mxu0 %v812
      %v1096 = vpop.f32.mrb[0].mxu0
      %v1097 = vadd.f32 0.0, %v1096
      %v1098 = vpop.f32.mrb[0].mxu0
      %v1099 = vpop.f32.mrb[0].mxu0
      %v1100 = vpop.f32.mrb[0].mxu0
      %1101 = vmatprep.mubr.bf16.mxu0 0
      %1102 = vmatmul.mubr.bf16.gmra.mrb[0].mxu0 %v820
      %v1103 = vpop.f32.mrb[0].mxu0
      %v1104 = vadd.f32 0.0, %v1103
      %v1105 = vpop.f32.mrb[0].mxu0
      %v1106 = vpop.f32.mrb[0].mxu0
      %v1107 = vadd.f32 0.0, %v1106
      %v1108 = vpop.f32.mrb[0].mxu0
      %1109 = vmatprep.mubr.bf16.mxu0 0
      %1110 = vmatmul.mubr.bf16.gmra.mrb[0].mxu0 %v828
      %v1111 = vpop.f32.mrb[0].mxu0
      %v1112 = vpop.f32.mrb[0].mxu0
      %v1113 = vpop.f32.mrb[0].mxu0
      %v1114 = vadd.f32 0.0, %v1113
      %v1115 = vpop.f32.mrb[0].mxu0
      %1116 = vmatprep.mubr.bf16.mxu0 0
      %1117 = vmatmul.mubr.bf16.gmra.mrb[0].mxu0 %v836
      %v1118 = vpop.f32.mrb[0].mxu0
      %v1119 = vadd.f32 0.0, %v1118
      %v1120 = vpop.f32.mrb[0].mxu0
      %v1121 = vpop.f32.mrb[0].mxu0
      %v1122 = vpop.f32.mrb[0].mxu0
      %1123 = vmatprep.mubr.bf16.mxu0 0
      %1124 = vmatmul.mubr.bf16.gmra.mrb[0].mxu0 %v844
      %v1125 = vpop.f32.mrb[0].mxu0
      %v1126 = vadd.f32 0.0, %v1125
      %v1127 = vpop.f32.mrb[0].mxu0
      %v1128 = vpop.f32.mrb[0].mxu0
      %v1129 = vadd.f32 0.0, %v1128
      %v1130 = vpop.f32.mrb[0].mxu0
      %1131 = vmatprep.mubr.bf16.mxu0 0
      %1132 = vmatmul.mubr.bf16.gmra.mrb[0].mxu0 %v852
      %v1133 = vpop.f32.mrb[0].mxu0
      %v1134 = vpop.f32.mrb[0].mxu0
      %v1135 = vpop.f32.mrb[0].mxu0
      %v1136 = vadd.f32 0.0, %v1135
      %v1137 = vpop.f32.mrb[0].mxu0
      %1138 = vmatprep.mubr.bf16.mxu0 0
      %1139 = vmatmul.mubr.bf16.gmra.mrb[0].mxu0 %v860
      %v1140 = vpop.f32.mrb[0].mxu0
      %v1141 = vadd.f32 0.0, %v1140
      %v1142 = vpop.f32.mrb[0].mxu0
      %v1143 = vpop.f32.mrb[0].mxu0
      %v1144 = vpop.f32.mrb[0].mxu0
      %1145 = vmatprep.mubr.bf16.mxu0 0
      %1146 = vmatmul.mubr.bf16.gmra.mrb[0].mxu0 %v868
      %v1147 = vpop.f32.mrb[0].mxu0
      %v1148 = vadd.f32 0.0, %v1147
      %v1149 = vpop.f32.mrb[0].mxu0
      %v1150 = vpop.f32.mrb[0].mxu0
      %v1151 = vadd.f32 0.0, %v1150
      %v1152 = vpop.f32.mrb[0].mxu0
      %1153 = vmatprep.mubr.bf16.mxu0 0
      %1154 = vmatmul.mubr.bf16.gmra.mrb[0].mxu0 %v876
      %v1155 = vpop.f32.mrb[0].mxu0
      %v1156 = vpop.f32.mrb[0].mxu0
      %v1157 = vpop.f32.mrb[0].mxu0
      %v1158 = vadd.f32 0.0, %v1157
      %v1159 = vpop.f32.mrb[0].mxu0
      %1160 = vmatprep.mubr.bf16.mxu0 0
      %1161 = vmatmul.mubr.bf16.gmra.mrb[0].mxu0 %v884
      %v1162 = vpop.f32.mrb[0].mxu0
      %v1163 = vadd.f32 0.0, %v1162
      %v1164 = vpop.f32.mrb[0].mxu0
      %v1165 = vpop.f32.mrb[0].mxu0
      %v1166 = vpop.f32.mrb[0].mxu0
      %1167 = vmatprep.mubr.bf16.mxu0 0
      %1168 = vmatmul.mubr.bf16.gmra.mrb[0].mxu0 %v892
      %v1169 = vpop.f32.mrb[0].mxu0
      %v1170 = vadd.f32 0.0, %v1169
      %v1171 = vpop.f32.mrb[0].mxu0
      %v1172 = vpop.f32.mrb[0].mxu0
      %v1173 = vadd.f32 0.0, %v1172
      %v1174 = vpop.f32.mrb[0].mxu0
      %1175 = vmatprep.mubr.bf16.mxu0 0
      %1176 = vmatmul.mubr.bf16.gmra.mrb[0].mxu0 %v900
      %v1177 = vpop.f32.mrb[0].mxu0
      %v1178 = vpop.f32.mrb[0].mxu0
      %v1179 = vpop.f32.mrb[0].mxu0
      %v1180 = vadd.f32 0.0, %v1179
      %v1181 = vpop.f32.mrb[0].mxu0
      %1182 = vmatprep.mubr.bf16.mxu0 0
      %1183 = vmatmul.mubr.bf16.gmra.mrb[0].mxu0 %v908
      %v1184 = vpop.f32.mrb[0].mxu0
      %v1185 = vadd.f32 0.0, %v1184
      %v1186 = vpop.f32.mrb[0].mxu0
      %v1187 = vpop.f32.mrb[0].mxu0
      %v1188 = vpop.f32.mrb[0].mxu0
      %1189 = vdwg.mxu0
      %v1230 = vunpack.c.l.b16 %v655
      %v1231 = vunpack.c.l.b16 %v656
      %v1232 = vunpack.c.l.b16 %v657
      %v1233 = vunpack.c.l.b16 %v658
      %v1234 = vunpack.c.l.b16 %v659
      %v1235 = vunpack.c.l.b16 %v660
      %v1236 = vunpack.c.l.b16 %v661
      %v1237 = vunpack.c.l.b16 %v662
      %v1238 = vunpack.c.l.b16 %v663
      %v1239 = vunpack.c.l.b16 %v664
      %v1240 = vunpack.c.l.b16 %v665
      %v1241 = vunpack.c.l.b16 %v666
      %v1242 = vunpack.c.l.b16 %v667
      %v1243 = vunpack.c.l.b16 %v668
      %v1244 = vunpack.c.l.b16 %v669
      %v1245 = vunpack.c.l.b16 %v670
      %v1246 = vpack.c.b16 %v1231, %v1230
      %v1247 = vpack.c.b16 %v1233, %v1232
      %v1248 = vpack.c.b16 %v1235, %v1234
      %v1249 = vpack.c.b16 %v1237, %v1236
      %v1250 = vpack.c.b16 %v1239, %v1238
      %v1251 = vpack.c.b16 %v1241, %v1240
      %v1252 = vpack.c.b16 %v1243, %v1242
      %v1253 = vpack.c.b16 %v1245, %v1244
      %1262 = vmatprep.subr.bf16.mxu0 0
      %1263 = vmatpush1.bf16.msra.mxu0 %v1246
      %1264 = vmatprep.subr.bf16.mxu0 0
      %1265 = vmatpush1.bf16.msra.mxu0 %v1247
      %1266 = vmatprep.subr.bf16.mxu0 0
      %1267 = vmatpush1.bf16.msra.mxu0 %v1248
      %1268 = vmatprep.subr.bf16.mxu0 0
      %1269 = vmatpush1.bf16.msra.mxu0 %v1249
      %1270 = vmatprep.subr.bf16.mxu0 0
      %1271 = vmatpush1.bf16.msra.mxu0 %v1250
      %1272 = vmatprep.subr.bf16.mxu0 0
      %1273 = vmatpush1.bf16.msra.mxu0 %v1251
      %1274 = vmatprep.subr.bf16.mxu0 0
      %1275 = vmatpush1.bf16.msra.mxu0 %v1252
      %1276 = vmatprep.subr.bf16.mxu0 0
      %1277 = vmatpush1.bf16.msra.mxu0 %v1253
      %1278 = vmatprep.subr.bf16.mxu0 0
      %1279 = vmatpush1.bf16.msra.mxu0 0
      %1280 = vmatprep.subr.bf16.mxu0 0
      %1281 = vmatpush1.bf16.msra.mxu0 0
      %1282 = vmatprep.subr.bf16.mxu0 0
      %1283 = vmatpush1.bf16.msra.mxu0 0
      %1284 = vmatprep.subr.bf16.mxu0 0
      %1285 = vmatpush1.bf16.msra.mxu0 0
      %1286 = vmatprep.subr.bf16.mxu0 0
      %1287 = vmatpush1.bf16.msra.mxu0 0
      %1288 = vmatprep.subr.bf16.mxu0 0
      %1289 = vmatpush1.bf16.msra.mxu0 0
      %1290 = vmatprep.subr.bf16.mxu0 0
      %1291 = vmatpush1.bf16.msra.mxu0 0
      %1292 = vmatprep.subr.bf16.mxu0 0
      %1293 = vmatpush1.bf16.msra.mxu0 0
      %1294 = vmatprep.mubr.bf16.mxu0 0
      %1295 = vmatmul.mubr.bf16.gmra.mrb[0].mxu0 %v687
      %v1296 = vpop.f32.mrb[0].mxu0
      %v1297 = vadd.f32 %v1016, %v1296
      %v1298 = vpop.f32.mrb[0].mxu0
      %v1299 = vpop.f32.mrb[0].mxu0
      %v1300 = vadd.f32 %v1019, %v1299
      %v1301 = vpop.f32.mrb[0].mxu0
      %1302 = vmatprep.mubr.bf16.mxu0 0
      %1303 = vmatmul.mubr.bf16.gmra.mrb[0].mxu0 %v688
      %v1304 = vpop.f32.mrb[0].mxu0
      %v1305 = vpop.f32.mrb[0].mxu0
      %v1306 = vpop.f32.mrb[0].mxu0
      %v1307 = vadd.f32 %v1026, %v1306
      %v1308 = vpop.f32.mrb[0].mxu0
      %1309 = vmatprep.mubr.bf16.mxu0 0
      %1310 = vmatmul.mubr.bf16.gmra.mrb[0].mxu0 %v689
      %v1311 = vpop.f32.mrb[0].mxu0
      %v1312 = vadd.f32 %v1031, %v1311
      %v1313 = vpop.f32.mrb[0].mxu0
      %v1314 = vpop.f32.mrb[0].mxu0
      %v1315 = vpop.f32.mrb[0].mxu0
      %1316 = vmatprep.mubr.bf16.mxu0 0
      %1317 = vmatmul.mubr.bf16.gmra.mrb[0].mxu0 %v690
      %v1318 = vpop.f32.mrb[0].mxu0
      %v1319 = vadd.f32 %v1038, %v1318
      %v1320 = vpop.f32.mrb[0].mxu0
      %v1321 = vpop.f32.mrb[0].mxu0
      %v1322 = vadd.f32 %v1041, %v1321
      %v1323 = vpop.f32.mrb[0].mxu0
      %1324 = vmatprep.mubr.bf16.mxu0 0
      %1325 = vmatmul.mubr.bf16.gmra.mrb[0].mxu0 %v691
      %v1326 = vpop.f32.mrb[0].mxu0
      %v1327 = vpop.f32.mrb[0].mxu0
      %v1328 = vpop.f32.mrb[0].mxu0
      %v1329 = vadd.f32 %v1048, %v1328
      %v1330 = vpop.f32.mrb[0].mxu0
      %1331 = vmatprep.mubr.bf16.mxu0 0
      %1332 = vmatmul.mubr.bf16.gmra.mrb[0].mxu0 %v692
      %v1333 = vpop.f32.mrb[0].mxu0
      %v1334 = vadd.f32 %v1053, %v1333
      %v1335 = vpop.f32.mrb[0].mxu0
      %v1336 = vpop.f32.mrb[0].mxu0
      %v1337 = vpop.f32.mrb[0].mxu0
      %1338 = vmatprep.mubr.bf16.mxu0 0
      %1339 = vmatmul.mubr.bf16.gmra.mrb[0].mxu0 %v693
      %v1340 = vpop.f32.mrb[0].mxu0
      %v1341 = vadd.f32 %v1060, %v1340
      %v1342 = vpop.f32.mrb[0].mxu0
      %v1343 = vpop.f32.mrb[0].mxu0
      %v1344 = vadd.f32 %v1063, %v1343
      %v1345 = vpop.f32.mrb[0].mxu0
      %1346 = vmatprep.mubr.bf16.mxu0 0
      %1347 = vmatmul.mubr.bf16.gmra.mrb[0].mxu0 %v694
      %v1348 = vpop.f32.mrb[0].mxu0
      %v1349 = vpop.f32.mrb[0].mxu0
      %v1350 = vpop.f32.mrb[0].mxu0
      %v1351 = vadd.f32 %v1070, %v1350
      %v1352 = vpop.f32.mrb[0].mxu0
      %1353 = vmatprep.mubr.bf16.mxu0 0
      %1354 = vmatmul.mubr.bf16.gmra.mrb[0].mxu0 %v695
      %v1355 = vpop.f32.mrb[0].mxu0
      %v1356 = vadd.f32 %v1075, %v1355
      %v1357 = vpop.f32.mrb[0].mxu0
      %v1358 = vpop.f32.mrb[0].mxu0
      %v1359 = vpop.f32.mrb[0].mxu0
      %1360 = vmatprep.mubr.bf16.mxu0 0
      %1361 = vmatmul.mubr.bf16.gmra.mrb[0].mxu0 %v696
      %v1362 = vpop.f32.mrb[0].mxu0
      %v1363 = vadd.f32 %v1082, %v1362
      %v1364 = vpop.f32.mrb[0].mxu0
      %v1365 = vpop.f32.mrb[0].mxu0
      %v1366 = vadd.f32 %v1085, %v1365
      %v1367 = vpop.f32.mrb[0].mxu0
      %1368 = vmatprep.mubr.bf16.mxu0 0
      %1369 = vmatmul.mubr.bf16.gmra.mrb[0].mxu0 %v697
      %v1370 = vpop.f32.mrb[0].mxu0
      %v1371 = vpop.f32.mrb[0].mxu0
      %v1372 = vpop.f32.mrb[0].mxu0
      %v1373 = vadd.f32 %v1092, %v1372
      %v1374 = vpop.f32.mrb[0].mxu0
      %1375 = vmatprep.mubr.bf16.mxu0 0
      %1376 = vmatmul.mubr.bf16.gmra.mrb[0].mxu0 %v698
      %v1377 = vpop.f32.mrb[0].mxu0
      %v1378 = vadd.f32 %v1097, %v1377
      %v1379 = vpop.f32.mrb[0].mxu0
      %v1380 = vpop.f32.mrb[0].mxu0
      %v1381 = vpop.f32.mrb[0].mxu0
      %1382 = vmatprep.mubr.bf16.mxu0 0
      %1383 = vmatmul.mubr.bf16.gmra.mrb[0].mxu0 %v699
      %v1384 = vpop.f32.mrb[0].mxu0
      %v1385 = vadd.f32 %v1104, %v1384
      %v1386 = vpop.f32.mrb[0].mxu0
      %v1387 = vpop.f32.mrb[0].mxu0
      %v1388 = vadd.f32 %v1107, %v1387
      %v1389 = vpop.f32.mrb[0].mxu0
      %1390 = vmatprep.mubr.bf16.mxu0 0
      %1391 = vmatmul.mubr.bf16.gmra.mrb[0].mxu0 %v700
      %v1392 = vpop.f32.mrb[0].mxu0
      %v1393 = vpop.f32.mrb[0].mxu0
      %v1394 = vpop.f32.mrb[0].mxu0
      %v1395 = vadd.f32 %v1114, %v1394
      %v1396 = vpop.f32.mrb[0].mxu0
      %1397 = vmatprep.mubr.bf16.mxu0 0
      %1398 = vmatmul.mubr.bf16.gmra.mrb[0].mxu0 %v701
      %v1399 = vpop.f32.mrb[0].mxu0
      %v1400 = vadd.f32 %v1119, %v1399
      %v1401 = vpop.f32.mrb[0].mxu0
      %v1402 = vpop.f32.mrb[0].mxu0
      %v1403 = vpop.f32.mrb[0].mxu0
      %1404 = vmatprep.mubr.bf16.mxu0 0
      %1405 = vmatmul.mubr.bf16.gmra.mrb[0].mxu0 %v702
      %v1406 = vpop.f32.mrb[0].mxu0
      %v1407 = vadd.f32 %v1126, %v1406
      %v1408 = vpop.f32.mrb[0].mxu0
      %v1409 = vpop.f32.mrb[0].mxu0
      %v1410 = vadd.f32 %v1129, %v1409
      %v1411 = vpop.f32.mrb[0].mxu0
      %1412 = vmatprep.mubr.bf16.mxu0 0
      %1413 = vmatmul.mubr.bf16.gmra.mrb[0].mxu0 %v703
      %v1414 = vpop.f32.mrb[0].mxu0
      %v1415 = vpop.f32.mrb[0].mxu0
      %v1416 = vpop.f32.mrb[0].mxu0
      %v1417 = vadd.f32 %v1136, %v1416
      %v1418 = vpop.f32.mrb[0].mxu0
      %1419 = vmatprep.mubr.bf16.mxu0 0
      %1420 = vmatmul.mubr.bf16.gmra.mrb[0].mxu0 %v704
      %v1421 = vpop.f32.mrb[0].mxu0
      %v1422 = vadd.f32 %v1141, %v1421
      %v1423 = vpop.f32.mrb[0].mxu0
      %v1424 = vpop.f32.mrb[0].mxu0
      %v1425 = vpop.f32.mrb[0].mxu0
      %1426 = vmatprep.mubr.bf16.mxu0 0
      %1427 = vmatmul.mubr.bf16.gmra.mrb[0].mxu0 %v705
      %v1428 = vpop.f32.mrb[0].mxu0
      %v1429 = vadd.f32 %v1148, %v1428
      %v1430 = vpop.f32.mrb[0].mxu0
      %v1431 = vpop.f32.mrb[0].mxu0
      %v1432 = vadd.f32 %v1151, %v1431
      %v1433 = vpop.f32.mrb[0].mxu0
      %1434 = vmatprep.mubr.bf16.mxu0 0
      %1435 = vmatmul.mubr.bf16.gmra.mrb[0].mxu0 %v706
      %v1436 = vpop.f32.mrb[0].mxu0
      %v1437 = vpop.f32.mrb[0].mxu0
      %v1438 = vpop.f32.mrb[0].mxu0
      %v1439 = vadd.f32 %v1158, %v1438
      %v1440 = vpop.f32.mrb[0].mxu0
      %1441 = vmatprep.mubr.bf16.mxu0 0
      %1442 = vmatmul.mubr.bf16.gmra.mrb[0].mxu0 %v707
      %v1443 = vpop.f32.mrb[0].mxu0
      %v1444 = vadd.f32 %v1163, %v1443
      %v1445 = vpop.f32.mrb[0].mxu0
      %v1446 = vpop.f32.mrb[0].mxu0
      %v1447 = vpop.f32.mrb[0].mxu0
      %1448 = vmatprep.mubr.bf16.mxu0 0
      %1449 = vmatmul.mubr.bf16.gmra.mrb[0].mxu0 %v708
      %v1450 = vpop.f32.mrb[0].mxu0
      %v1451 = vadd.f32 %v1170, %v1450
      %v1452 = vpop.f32.mrb[0].mxu0
      %v1453 = vpop.f32.mrb[0].mxu0
      %v1454 = vadd.f32 %v1173, %v1453
      %v1455 = vpop.f32.mrb[0].mxu0
      %1456 = vmatprep.mubr.bf16.mxu0 0
      %1457 = vmatmul.mubr.bf16.gmra.mrb[0].mxu0 %v709
      %v1458 = vpop.f32.mrb[0].mxu0
      %v1459 = vpop.f32.mrb[0].mxu0
      %v1460 = vpop.f32.mrb[0].mxu0
      %v1461 = vadd.f32 %v1180, %v1460
      %v1462 = vpop.f32.mrb[0].mxu0
      %1463 = vmatprep.mubr.bf16.mxu0 0
      %1464 = vmatmul.mubr.bf16.gmra.mrb[0].mxu0 %v710
      %v1465 = vpop.f32.mrb[0].mxu0
      %v1466 = vadd.f32 %v1185, %v1465
      %v1467 = vpop.f32.mrb[0].mxu0
      %v1468 = vpop.f32.mrb[0].mxu0
      %v1469 = vpop.f32.mrb[0].mxu0
      %1470 = vdwg.mxu0
      %v1471 = vld [vmem:[%s260 + $0x80] sm:$0xf]
      %v1472 = vld [vmem:[%s260 + $0x84] sm:$0xf]
      %v1473 = vld [vmem:[%s260 + $0x88] sm:$0xf]
      %v1474 = vld [vmem:[%s260 + $0x8c] sm:$0xf]
      %v1475 = vld [vmem:[%s260 + $0x90] sm:$0xf]
      %v1476 = vld [vmem:[%s260 + $0x94] sm:$0xf]
      %v1477 = vld [vmem:[%s260 + $0x98] sm:$0xf]
      %v1478 = vld [vmem:[%s260 + $0x9c] sm:$0xf]
      %v1479 = vld [vmem:[%s260 + $0xa0] sm:$0xf]
      %v1480 = vld [vmem:[%s260 + $0xa4] sm:$0xf]
      %v1481 = vld [vmem:[%s260 + $0xa8] sm:$0xf]
      %v1482 = vld [vmem:[%s260 + $0xac] sm:$0xf]
      %v1483 = vld [vmem:[%s260 + $0xb0] sm:$0xf]
      %v1484 = vld [vmem:[%s260 + $0xb4] sm:$0xf]
      %v1485 = vld [vmem:[%s260 + $0xb8] sm:$0xf]
      %v1486 = vld [vmem:[%s260 + $0xbc] sm:$0xf]
      %vm1487 = vcmask 1046528
      %v1488 = vrot.slane %v687, 1
      %v1489 = vrot.slane %v688, 1
      %v1490 = vsel %vm1487, %v1488, %v1489
      %v1491 = vrot.slane %v689, 1
      %v1492 = vsel %vm1487, %v1489, %v1491
      %v1493 = vrot.slane %v690, 1
      %v1494 = vsel %vm1487, %v1491, %v1493
      %v1495 = vrot.slane %v691, 1
      %v1496 = vsel %vm1487, %v1493, %v1495
      %v1497 = vrot.slane %v692, 1
      %v1498 = vsel %vm1487, %v1495, %v1497
      %v1499 = vrot.slane %v693, 1
      %v1500 = vsel %vm1487, %v1497, %v1499
      %v1501 = vrot.slane %v694, 1
      %v1502 = vsel %vm1487, %v1499, %v1501
      %v1503 = vrot.slane %v695, 1
      %v1504 = vsel %vm1487, %v1501, %v1503
      %v1505 = vrot.slane %v696, 1
      %v1506 = vsel %vm1487, %v1503, %v1505
      %v1507 = vrot.slane %v697, 1
      %v1508 = vsel %vm1487, %v1505, %v1507
      %v1509 = vrot.slane %v698, 1
      %v1510 = vsel %vm1487, %v1507, %v1509
      %v1511 = vrot.slane %v699, 1
      %v1512 = vsel %vm1487, %v1509, %v1511
      %v1513 = vrot.slane %v700, 1
      %v1514 = vsel %vm1487, %v1511, %v1513
      %v1515 = vrot.slane %v701, 1
      %v1516 = vsel %vm1487, %v1513, %v1515
      %v1517 = vrot.slane %v702, 1
      %v1518 = vsel %vm1487, %v1515, %v1517
      %v1519 = vrot.slane %v703, 1
      %v1520 = vsel %vm1487, %v1517, %v1519
      %v1521 = vrot.slane %v704, 1
      %v1522 = vsel %vm1487, %v1519, %v1521
      %v1523 = vrot.slane %v705, 1
      %v1524 = vsel %vm1487, %v1521, %v1523
      %v1525 = vrot.slane %v706, 1
      %v1526 = vsel %vm1487, %v1523, %v1525
      %v1527 = vrot.slane %v707, 1
      %v1528 = vsel %vm1487, %v1525, %v1527
      %v1529 = vrot.slane %v708, 1
      %v1530 = vsel %vm1487, %v1527, %v1529
      %v1531 = vrot.slane %v709, 1
      %v1532 = vsel %vm1487, %v1529, %v1531
      %v1533 = vrot.slane %v710, 1
      %v1534 = vsel %vm1487, %v1531, %v1533
      %v1535 = vrot.slane %v711, 1
      %v1536 = vsel %vm1487, %v1533, %v1535
      %v1577 = vunpack.c.l.b16 %v1471
      %v1578 = vunpack.c.l.b16 %v1472
      %v1579 = vunpack.c.l.b16 %v1473
      %v1580 = vunpack.c.l.b16 %v1474
      %v1581 = vunpack.c.l.b16 %v1475
      %v1582 = vunpack.c.l.b16 %v1476
      %v1583 = vunpack.c.l.b16 %v1477
      %v1584 = vunpack.c.l.b16 %v1478
      %v1585 = vunpack.c.l.b16 %v1479
      %v1586 = vunpack.c.l.b16 %v1480
      %v1587 = vunpack.c.l.b16 %v1481
      %v1588 = vunpack.c.l.b16 %v1482
      %v1589 = vunpack.c.l.b16 %v1483
      %v1590 = vunpack.c.l.b16 %v1484
      %v1591 = vunpack.c.l.b16 %v1485
      %v1592 = vunpack.c.l.b16 %v1486
      %v1593 = vpack.c.b16 %v1578, %v1577
      %v1594 = vpack.c.b16 %v1580, %v1579
      %v1595 = vpack.c.b16 %v1582, %v1581
      %v1596 = vpack.c.b16 %v1584, %v1583
      %v1597 = vpack.c.b16 %v1586, %v1585
      %v1598 = vpack.c.b16 %v1588, %v1587
      %v1599 = vpack.c.b16 %v1590, %v1589
      %v1600 = vpack.c.b16 %v1592, %v1591
      %1609 = vmatprep.subr.bf16.mxu0 0
      %1610 = vmatpush1.bf16.msra.mxu0 %v1593
      %1611 = vmatprep.subr.bf16.mxu0 0
      %1612 = vmatpush1.bf16.msra.mxu0 %v1594
      %1613 = vmatprep.subr.bf16.mxu0 0
      %1614 = vmatpush1.bf16.msra.mxu0 %v1595
      %1615 = vmatprep.subr.bf16.mxu0 0
      %1616 = vmatpush1.bf16.msra.mxu0 %v1596
      %1617 = vmatprep.subr.bf16.mxu0 0
      %1618 = vmatpush1.bf16.msra.mxu0 %v1597
      %1619 = vmatprep.subr.bf16.mxu0 0
      %1620 = vmatpush1.bf16.msra.mxu0 %v1598
      %1621 = vmatprep.subr.bf16.mxu0 0
      %1622 = vmatpush1.bf16.msra.mxu0 %v1599
      %1623 = vmatprep.subr.bf16.mxu0 0
      %1624 = vmatpush1.bf16.msra.mxu0 %v1600
      %1625 = vmatprep.subr.bf16.mxu0 0
      %1626 = vmatpush1.bf16.msra.mxu0 0
      %1627 = vmatprep.subr.bf16.mxu0 0
      %1628 = vmatpush1.bf16.msra.mxu0 0
      %1629 = vmatprep.subr.bf16.mxu0 0
      %1630 = vmatpush1.bf16.msra.mxu0 0
      %1631 = vmatprep.subr.bf16.mxu0 0
      %1632 = vmatpush1.bf16.msra.mxu0 0
      %1633 = vmatprep.subr.bf16.mxu0 0
      %1634 = vmatpush1.bf16.msra.mxu0 0
      %1635 = vmatprep.subr.bf16.mxu0 0
      %1636 = vmatpush1.bf16.msra.mxu0 0
      %1637 = vmatprep.subr.bf16.mxu0 0
      %1638 = vmatpush1.bf16.msra.mxu0 0
      %1639 = vmatprep.subr.bf16.mxu0 0
      %1640 = vmatpush1.bf16.msra.mxu0 0
      %1641 = vmatprep.mubr.bf16.mxu0 0
      %1642 = vmatmul.mubr.bf16.gmra.mrb[0].mxu0 %v1490
      %v1643 = vpop.f32.mrb[0].mxu0
      %v1644 = vadd.f32 0.0, %v1643
      %v1645 = vpop.f32.mrb[0].mxu0
      %v1646 = vpop.f32.mrb[0].mxu0
      %v1647 = vadd.f32 0.0, %v1646
      %v1648 = vpop.f32.mrb[0].mxu0
      %1649 = vmatprep.mubr.bf16.mxu0 0
      %1650 = vmatmul.mubr.bf16.gmra.mrb[0].mxu0 %v1492
      %v1651 = vpop.f32.mrb[0].mxu0
      %v1652 = vpop.f32.mrb[0].mxu0
      %v1653 = vpop.f32.mrb[0].mxu0
      %v1654 = vadd.f32 0.0, %v1653
      %v1655 = vpop.f32.mrb[0].mxu0
      %1656 = vmatprep.mubr.bf16.mxu0 0
      %1657 = vmatmul.mubr.bf16.gmra.mrb[0].mxu0 %v1494
      %v1658 = vpop.f32.mrb[0].mxu0
      %v1659 = vadd.f32 0.0, %v1658
      %v1660 = vpop.f32.mrb[0].mxu0
      %v1661 = vpop.f32.mrb[0].mxu0
      %v1662 = vpop.f32.mrb[0].mxu0
      %1663 = vmatprep.mubr.bf16.mxu0 0
      %1664 = vmatmul.mubr.bf16.gmra.mrb[0].mxu0 %v1496
      %v1665 = vpop.f32.mrb[0].mxu0
      %v1666 = vadd.f32 0.0, %v1665
      %v1667 = vpop.f32.mrb[0].mxu0
      %v1668 = vpop.f32.mrb[0].mxu0
      %v1669 = vadd.f32 0.0, %v1668
      %v1670 = vpop.f32.mrb[0].mxu0
      %1671 = vmatprep.mubr.bf16.mxu0 0
      %1672 = vmatmul.mubr.bf16.gmra.mrb[0].mxu0 %v1498
      %v1673 = vpop.f32.mrb[0].mxu0
      %v1674 = vpop.f32.mrb[0].mxu0
      %v1675 = vpop.f32.mrb[0].mxu0
      %v1676 = vadd.f32 0.0, %v1675
      %v1677 = vpop.f32.mrb[0].mxu0
      %1678 = vmatprep.mubr.bf16.mxu0 0
      %1679 = vmatmul.mubr.bf16.gmra.mrb[0].mxu0 %v1500
      %v1680 = vpop.f32.mrb[0].mxu0
      %v1681 = vadd.f32 0.0, %v1680
      %v1682 = vpop.f32.mrb[0].mxu0
      %v1683 = vpop.f32.mrb[0].mxu0
      %v1684 = vpop.f32.mrb[0].mxu0
      %1685 = vmatprep.mubr.bf16.mxu0 0
      %1686 = vmatmul.mubr.bf16.gmra.mrb[0].mxu0 %v1502
      %v1687 = vpop.f32.mrb[0].mxu0
      %v1688 = vadd.f32 0.0, %v1687
      %v1689 = vpop.f32.mrb[0].mxu0
      %v1690 = vpop.f32.mrb[0].mxu0
      %v1691 = vadd.f32 0.0, %v1690
      %v1692 = vpop.f32.mrb[0].mxu0
      %1693 = vmatprep.mubr.bf16.mxu0 0
      %1694 = vmatmul.mubr.bf16.gmra.mrb[0].mxu0 %v1504
      %v1695 = vpop.f32.mrb[0].mxu0
      %v1696 = vpop.f32.mrb[0].mxu0
      %v1697 = vpop.f32.mrb[0].mxu0
      %v1698 = vadd.f32 0.0, %v1697
      %v1699 = vpop.f32.mrb[0].mxu0
      %1700 = vmatprep.mubr.bf16.mxu0 0
      %1701 = vmatmul.mubr.bf16.gmra.mrb[0].mxu0 %v1506
      %v1702 = vpop.f32.mrb[0].mxu0
      %v1703 = vadd.f32 0.0, %v1702
      %v1704 = vpop.f32.mrb[0].mxu0
      %v1705 = vpop.f32.mrb[0].mxu0
      %v1706 = vpop.f32.mrb[0].mxu0
      %1707 = vmatprep.mubr.bf16.mxu0 0
      %1708 = vmatmul.mubr.bf16.gmra.mrb[0].mxu0 %v1508
      %v1709 = vpop.f32.mrb[0].mxu0
      %v1710 = vadd.f32 0.0, %v1709
      %v1711 = vpop.f32.mrb[0].mxu0
      %v1712 = vpop.f32.mrb[0].mxu0
      %v1713 = vadd.f32 0.0, %v1712
      %v1714 = vpop.f32.mrb[0].mxu0
      %1715 = vmatprep.mubr.bf16.mxu0 0
      %1716 = vmatmul.mubr.bf16.gmra.mrb[0].mxu0 %v1510
      %v1717 = vpop.f32.mrb[0].mxu0
      %v1718 = vpop.f32.mrb[0].mxu0
      %v1719 = vpop.f32.mrb[0].mxu0
      %v1720 = vadd.f32 0.0, %v1719
      %v1721 = vpop.f32.mrb[0].mxu0
      %1722 = vmatprep.mubr.bf16.mxu0 0
      %1723 = vmatmul.mubr.bf16.gmra.mrb[0].mxu0 %v1512
      %v1724 = vpop.f32.mrb[0].mxu0
      %v1725 = vadd.f32 0.0, %v1724
      %v1726 = vpop.f32.mrb[0].mxu0
      %v1727 = vpop.f32.mrb[0].mxu0
      %v1728 = vpop.f32.mrb[0].mxu0
      %1729 = vmatprep.mubr.bf16.mxu0 0
      %1730 = vmatmul.mubr.bf16.gmra.mrb[0].mxu0 %v1514
      %v1731 = vpop.f32.mrb[0].mxu0
      %v1732 = vadd.f32 0.0, %v1731
      %v1733 = vpop.f32.mrb[0].mxu0
      %v1734 = vpop.f32.mrb[0].mxu0
      %v1735 = vadd.f32 0.0, %v1734
      %v1736 = vpop.f32.mrb[0].mxu0
      %1737 = vmatprep.mubr.bf16.mxu0 0
      %1738 = vmatmul.mubr.bf16.gmra.mrb[0].mxu0 %v1516
      %v1739 = vpop.f32.mrb[0].mxu0
      %v1740 = vpop.f32.mrb[0].mxu0
      %v1741 = vpop.f32.mrb[0].mxu0
      %v1742 = vadd.f32 0.0, %v1741
      %v1743 = vpop.f32.mrb[0].mxu0
      %1744 = vmatprep.mubr.bf16.mxu0 0
      %1745 = vmatmul.mubr.bf16.gmra.mrb[0].mxu0 %v1518
      %v1746 = vpop.f32.mrb[0].mxu0
      %v1747 = vadd.f32 0.0, %v1746
      %v1748 = vpop.f32.mrb[0].mxu0
      %v1749 = vpop.f32.mrb[0].mxu0
      %v1750 = vpop.f32.mrb[0].mxu0
      %1751 = vmatprep.mubr.bf16.mxu0 0
      %1752 = vmatmul.mubr.bf16.gmra.mrb[0].mxu0 %v1520
      %v1753 = vpop.f32.mrb[0].mxu0
      %v1754 = vadd.f32 0.0, %v1753
      %v1755 = vpop.f32.mrb[0].mxu0
      %v1756 = vpop.f32.mrb[0].mxu0
      %v1757 = vadd.f32 0.0, %v1756
      %v1758 = vpop.f32.mrb[0].mxu0
      %1759 = vmatprep.mubr.bf16.mxu0 0
      %1760 = vmatmul.mubr.bf16.gmra.mrb[0].mxu0 %v1522
      %v1761 = vpop.f32.mrb[0].mxu0
      %v1762 = vpop.f32.mrb[0].mxu0
      %v1763 = vpop.f32.mrb[0].mxu0
      %v1764 = vadd.f32 0.0, %v1763
      %v1765 = vpop.f32.mrb[0].mxu0
      %1766 = vmatprep.mubr.bf16.mxu0 0
      %1767 = vmatmul.mubr.bf16.gmra.mrb[0].mxu0 %v1524
      %v1768 = vpop.f32.mrb[0].mxu0
      %v1769 = vadd.f32 0.0, %v1768
      %v1770 = vpop.f32.mrb[0].mxu0
      %v1771 = vpop.f32.mrb[0].mxu0
      %v1772 = vpop.f32.mrb[0].mxu0
      %1773 = vmatprep.mubr.bf16.mxu0 0
      %1774 = vmatmul.mubr.bf16.gmra.mrb[0].mxu0 %v1526
      %v1775 = vpop.f32.mrb[0].mxu0
      %v1776 = vadd.f32 0.0, %v1775
      %v1777 = vpop.f32.mrb[0].mxu0
      %v1778 = vpop.f32.mrb[0].mxu0
      %v1779 = vadd.f32 0.0, %v1778
      %v1780 = vpop.f32.mrb[0].mxu0
      %1781 = vmatprep.mubr.bf16.mxu0 0
      %1782 = vmatmul.mubr.bf16.gmra.mrb[0].mxu0 %v1528
      %v1783 = vpop.f32.mrb[0].mxu0
      %v1784 = vpop.f32.mrb[0].mxu0
      %v1785 = vpop.f32.mrb[0].mxu0
      %v1786 = vadd.f32 0.0, %v1785
      %v1787 = vpop.f32.mrb[0].mxu0
      %1788 = vmatprep.mubr.bf16.mxu0 0
      %1789 = vmatmul.mubr.bf16.gmra.mrb[0].mxu0 %v1530
      %v1790 = vpop.f32.mrb[0].mxu0
      %v1791 = vadd.f32 0.0, %v1790
      %v1792 = vpop.f32.mrb[0].mxu0
      %v1793 = vpop.f32.mrb[0].mxu0
      %v1794 = vpop.f32.mrb[0].mxu0
      %1795 = vmatprep.mubr.bf16.mxu0 0
      %1796 = vmatmul.mubr.bf16.gmra.mrb[0].mxu0 %v1532
      %v1797 = vpop.f32.mrb[0].mxu0
      %v1798 = vadd.f32 0.0, %v1797
      %v1799 = vpop.f32.mrb[0].mxu0
      %v1800 = vpop.f32.mrb[0].mxu0
      %v1801 = vadd.f32 0.0, %v1800
      %v1802 = vpop.f32.mrb[0].mxu0
      %1803 = vmatprep.mubr.bf16.mxu0 0
      %1804 = vmatmul.mubr.bf16.gmra.mrb[0].mxu0 %v1534
      %v1805 = vpop.f32.mrb[0].mxu0
      %v1806 = vpop.f32.mrb[0].mxu0
      %v1807 = vpop.f32.mrb[0].mxu0
      %v1808 = vadd.f32 0.0, %v1807
      %v1809 = vpop.f32.mrb[0].mxu0
      %1810 = vmatprep.mubr.bf16.mxu0 0
      %1811 = vmatmul.mubr.bf16.gmra.mrb[0].mxu0 %v1536
      %v1812 = vpop.f32.mrb[0].mxu0
      %v1813 = vadd.f32 0.0, %v1812
      %v1814 = vpop.f32.mrb[0].mxu0
      %v1815 = vpop.f32.mrb[0].mxu0
      %v1816 = vpop.f32.mrb[0].mxu0
      %1817 = vdwg.mxu0
      %v1818 = vadd.f32 %v1297, %v1644
      %v1819 = vadd.f32 %v1300, %v1647
      %v1820 = vadd.f32 %v1307, %v1654
      %v1821 = vadd.f32 %v1312, %v1659
      %v1822 = vadd.f32 %v1319, %v1666
      %v1823 = vadd.f32 %v1322, %v1669
      %v1824 = vadd.f32 %v1329, %v1676
      %v1825 = vadd.f32 %v1334, %v1681
      %v1826 = vadd.f32 %v1341, %v1688
      %v1827 = vadd.f32 %v1344, %v1691
      %v1828 = vadd.f32 %v1351, %v1698
      %v1829 = vadd.f32 %v1356, %v1703
      %v1830 = vadd.f32 %v1363, %v1710
      %v1831 = vadd.f32 %v1366, %v1713
      %v1832 = vadd.f32 %v1373, %v1720
      %v1833 = vadd.f32 %v1378, %v1725
      %v1834 = vadd.f32 %v1385, %v1732
      %v1835 = vadd.f32 %v1388, %v1735
      %v1836 = vadd.f32 %v1395, %v1742
      %v1837 = vadd.f32 %v1400, %v1747
      %v1838 = vadd.f32 %v1407, %v1754
      %v1839 = vadd.f32 %v1410, %v1757
      %v1840 = vadd.f32 %v1417, %v1764
      %v1841 = vadd.f32 %v1422, %v1769
      %v1842 = vadd.f32 %v1429, %v1776
      %v1843 = vadd.f32 %v1432, %v1779
      %v1844 = vadd.f32 %v1439, %v1786
      %v1845 = vadd.f32 %v1444, %v1791
      %v1846 = vadd.f32 %v1451, %v1798
      %v1847 = vadd.f32 %v1454, %v1801
      %v1848 = vadd.f32 %v1461, %v1808
      %v1849 = vadd.f32 %v1466, %v1813
      %v1850 = vld [vmem:[%s260 + $0xc0] sm:$0xf]
      %v1851 = vld [vmem:[%s260 + $0xc4] sm:$0xf]
      %v1852 = vld [vmem:[%s260 + $0xc8] sm:$0xf]
      %v1853 = vld [vmem:[%s260 + $0xcc] sm:$0xf]
      %v1854 = vld [vmem:[%s260 + $0xd0] sm:$0xf]
      %v1855 = vld [vmem:[%s260 + $0xd4] sm:$0xf]
      %v1856 = vld [vmem:[%s260 + $0xd8] sm:$0xf]
      %v1857 = vld [vmem:[%s260 + $0xdc] sm:$0xf]
      %v1858 = vld [vmem:[%s260 + $0xe0] sm:$0xf]
      %v1859 = vld [vmem:[%s260 + $0xe4] sm:$0xf]
      %v1860 = vld [vmem:[%s260 + $0xe8] sm:$0xf]
      %v1861 = vld [vmem:[%s260 + $0xec] sm:$0xf]
      %v1862 = vld [vmem:[%s260 + $0xf0] sm:$0xf]
      %v1863 = vld [vmem:[%s260 + $0xf4] sm:$0xf]
      %v1864 = vld [vmem:[%s260 + $0xf8] sm:$0xf]
      %v1865 = vld [vmem:[%s260 + $0xfc] sm:$0xf]
      %v1866 = vpack.c.b16 %v608, %v607
      %v1867 = vpack.c.b16 %v610, %v609
      %v1868 = vpack.c.b16 %v612, %v611
      %v1869 = vpack.c.b16 %v614, %v613
      %v1870 = vpack.c.b16 %v616, %v615
      %v1871 = vpack.c.b16 %v618, %v617
      %v1872 = vpack.c.b16 %v620, %v619
      %v1873 = vpack.c.b16 %v622, %v621
      %v1874 = vpack.c.b16 %v624, %v623
      %v1875 = vpack.c.b16 %v626, %v625
      %v1876 = vpack.c.b16 %v628, %v627
      %v1877 = vpack.c.b16 %v630, %v629
      %v1878 = vpack.c.b16 %v632, %v631
      %v1879 = vpack.c.b16 %v634, %v633
      %v1880 = vpack.c.b16 %v636, %v635
      %v1881 = vpack.c.b16 %v638, %v637
      %v1882 = vpack.c.b16 %v640, %v639
      %v1883 = vpack.c.b16 %v642, %v641
      %v1884 = vpack.c.b16 %v644, %v643
      %v1885 = vpack.c.b16 %v646, %v645
      %v1886 = vpack.c.b16 %v648, %v647
      %v1887 = vpack.c.b16 %v650, %v649
      %v1888 = vpack.c.b16 %v652, %v651
      %v1889 = vpack.c.b16 %v654, %v653
      %v1930 = vunpack.c.l.b16 %v1850
      %v1931 = vunpack.c.l.b16 %v1851
      %v1932 = vunpack.c.l.b16 %v1852
      %v1933 = vunpack.c.l.b16 %v1853
      %v1934 = vunpack.c.l.b16 %v1854
      %v1935 = vunpack.c.l.b16 %v1855
      %v1936 = vunpack.c.l.b16 %v1856
      %v1937 = vunpack.c.l.b16 %v1857
      %v1938 = vunpack.c.l.b16 %v1858
      %v1939 = vunpack.c.l.b16 %v1859
      %v1940 = vunpack.c.l.b16 %v1860
      %v1941 = vunpack.c.l.b16 %v1861
      %v1942 = vunpack.c.l.b16 %v1862
      %v1943 = vunpack.c.l.b16 %v1863
      %v1944 = vunpack.c.l.b16 %v1864
      %v1945 = vunpack.c.l.b16 %v1865
      %v1946 = vpack.c.b16 %v1931, %v1930
      %v1947 = vpack.c.b16 %v1933, %v1932
      %v1948 = vpack.c.b16 %v1935, %v1934
      %v1949 = vpack.c.b16 %v1937, %v1936
      %v1950 = vpack.c.b16 %v1939, %v1938
      %v1951 = vpack.c.b16 %v1941, %v1940
      %v1952 = vpack.c.b16 %v1943, %v1942
      %v1953 = vpack.c.b16 %v1945, %v1944
      %1962 = vmatprep.subr.bf16.mxu0 0
      %1963 = vmatpush1.bf16.msra.mxu0 %v1946
      %1964 = vmatprep.subr.bf16.mxu0 0
      %1965 = vmatpush1.bf16.msra.mxu0 %v1947
      %1966 = vmatprep.subr.bf16.mxu0 0
      %1967 = vmatpush1.bf16.msra.mxu0 %v1948
      %1968 = vmatprep.subr.bf16.mxu0 0
      %1969 = vmatpush1.bf16.msra.mxu0 %v1949
      %1970 = vmatprep.subr.bf16.mxu0 0
      %1971 = vmatpush1.bf16.msra.mxu0 %v1950
      %1972 = vmatprep.subr.bf16.mxu0 0
      %1973 = vmatpush1.bf16.msra.mxu0 %v1951
      %1974 = vmatprep.subr.bf16.mxu0 0
      %1975 = vmatpush1.bf16.msra.mxu0 %v1952
      %1976 = vmatprep.subr.bf16.mxu0 0
      %1977 = vmatpush1.bf16.msra.mxu0 %v1953
      %1978 = vmatprep.subr.bf16.mxu0 0
      %1979 = vmatpush1.bf16.msra.mxu0 0
      %1980 = vmatprep.subr.bf16.mxu0 0
      %1981 = vmatpush1.bf16.msra.mxu0 0
      %1982 = vmatprep.subr.bf16.mxu0 0
      %1983 = vmatpush1.bf16.msra.mxu0 0
      %1984 = vmatprep.subr.bf16.mxu0 0
      %1985 = vmatpush1.bf16.msra.mxu0 0
      %1986 = vmatprep.subr.bf16.mxu0 0
      %1987 = vmatpush1.bf16.msra.mxu0 0
      %1988 = vmatprep.subr.bf16.mxu0 0
      %1989 = vmatpush1.bf16.msra.mxu0 0
      %1990 = vmatprep.subr.bf16.mxu0 0
      %1991 = vmatpush1.bf16.msra.mxu0 0
      %1992 = vmatprep.subr.bf16.mxu0 0
      %1993 = vmatpush1.bf16.msra.mxu0 0
      %1994 = vmatprep.mubr.bf16.mxu0 0
      %1995 = vmatmul.mubr.bf16.gmra.mrb[0].mxu0 %v1866
      %v1996 = vpop.f32.mrb[0].mxu0
      %v1997 = vadd.f32 0.0, %v1996
      %v1998 = vpop.f32.mrb[0].mxu0
      %v1999 = vpop.f32.mrb[0].mxu0
      %v2000 = vadd.f32 0.0, %v1999
      %v2001 = vpop.f32.mrb[0].mxu0
      %2002 = vmatprep.mubr.bf16.mxu0 0
      %2003 = vmatmul.mubr.bf16.gmra.mrb[0].mxu0 %v1867
      %v2004 = vpop.f32.mrb[0].mxu0
      %v2005 = vpop.f32.mrb[0].mxu0
      %v2006 = vpop.f32.mrb[0].mxu0
      %v2007 = vadd.f32 0.0, %v2006
      %v2008 = vpop.f32.mrb[0].mxu0
      %2009 = vmatprep.mubr.bf16.mxu0 0
      %2010 = vmatmul.mubr.bf16.gmra.mrb[0].mxu0 %v1868
      %v2011 = vpop.f32.mrb[0].mxu0
      %v2012 = vadd.f32 0.0, %v2011
      %v2013 = vpop.f32.mrb[0].mxu0
      %v2014 = vpop.f32.mrb[0].mxu0
      %v2015 = vpop.f32.mrb[0].mxu0
      %2016 = vmatprep.mubr.bf16.mxu0 0
      %2017 = vmatmul.mubr.bf16.gmra.mrb[0].mxu0 %v1869
      %v2018 = vpop.f32.mrb[0].mxu0
      %v2019 = vadd.f32 0.0, %v2018
      %v2020 = vpop.f32.mrb[0].mxu0
      %v2021 = vpop.f32.mrb[0].mxu0
      %v2022 = vadd.f32 0.0, %v2021
      %v2023 = vpop.f32.mrb[0].mxu0
      %2024 = vmatprep.mubr.bf16.mxu0 0
      %2025 = vmatmul.mubr.bf16.gmra.mrb[0].mxu0 %v1870
      %v2026 = vpop.f32.mrb[0].mxu0
      %v2027 = vpop.f32.mrb[0].mxu0
      %v2028 = vpop.f32.mrb[0].mxu0
      %v2029 = vadd.f32 0.0, %v2028
      %v2030 = vpop.f32.mrb[0].mxu0
      %2031 = vmatprep.mubr.bf16.mxu0 0
      %2032 = vmatmul.mubr.bf16.gmra.mrb[0].mxu0 %v1871
      %v2033 = vpop.f32.mrb[0].mxu0
      %v2034 = vadd.f32 0.0, %v2033
      %v2035 = vpop.f32.mrb[0].mxu0
      %v2036 = vpop.f32.mrb[0].mxu0
      %v2037 = vpop.f32.mrb[0].mxu0
      %2038 = vmatprep.mubr.bf16.mxu0 0
      %2039 = vmatmul.mubr.bf16.gmra.mrb[0].mxu0 %v1872
      %v2040 = vpop.f32.mrb[0].mxu0
      %v2041 = vadd.f32 0.0, %v2040
      %v2042 = vpop.f32.mrb[0].mxu0
      %v2043 = vpop.f32.mrb[0].mxu0
      %v2044 = vadd.f32 0.0, %v2043
      %v2045 = vpop.f32.mrb[0].mxu0
      %2046 = vmatprep.mubr.bf16.mxu0 0
      %2047 = vmatmul.mubr.bf16.gmra.mrb[0].mxu0 %v1873
      %v2048 = vpop.f32.mrb[0].mxu0
      %v2049 = vpop.f32.mrb[0].mxu0
      %v2050 = vpop.f32.mrb[0].mxu0
      %v2051 = vadd.f32 0.0, %v2050
      %v2052 = vpop.f32.mrb[0].mxu0
      %2053 = vmatprep.mubr.bf16.mxu0 0
      %2054 = vmatmul.mubr.bf16.gmra.mrb[0].mxu0 %v1874
      %v2055 = vpop.f32.mrb[0].mxu0
      %v2056 = vadd.f32 0.0, %v2055
      %v2057 = vpop.f32.mrb[0].mxu0
      %v2058 = vpop.f32.mrb[0].mxu0
      %v2059 = vpop.f32.mrb[0].mxu0
      %2060 = vmatprep.mubr.bf16.mxu0 0
      %2061 = vmatmul.mubr.bf16.gmra.mrb[0].mxu0 %v1875
      %v2062 = vpop.f32.mrb[0].mxu0
      %v2063 = vadd.f32 0.0, %v2062
      %v2064 = vpop.f32.mrb[0].mxu0
      %v2065 = vpop.f32.mrb[0].mxu0
      %v2066 = vadd.f32 0.0, %v2065
      %v2067 = vpop.f32.mrb[0].mxu0
      %2068 = vmatprep.mubr.bf16.mxu0 0
      %2069 = vmatmul.mubr.bf16.gmra.mrb[0].mxu0 %v1876
      %v2070 = vpop.f32.mrb[0].mxu0
      %v2071 = vpop.f32.mrb[0].mxu0
      %v2072 = vpop.f32.mrb[0].mxu0
      %v2073 = vadd.f32 0.0, %v2072
      %v2074 = vpop.f32.mrb[0].mxu0
      %2075 = vmatprep.mubr.bf16.mxu0 0
      %2076 = vmatmul.mubr.bf16.gmra.mrb[0].mxu0 %v1877
      %v2077 = vpop.f32.mrb[0].mxu0
      %v2078 = vadd.f32 0.0, %v2077
      %v2079 = vpop.f32.mrb[0].mxu0
      %v2080 = vpop.f32.mrb[0].mxu0
      %v2081 = vpop.f32.mrb[0].mxu0
      %2082 = vmatprep.mubr.bf16.mxu0 0
      %2083 = vmatmul.mubr.bf16.gmra.mrb[0].mxu0 %v1878
      %v2084 = vpop.f32.mrb[0].mxu0
      %v2085 = vadd.f32 0.0, %v2084
      %v2086 = vpop.f32.mrb[0].mxu0
      %v2087 = vpop.f32.mrb[0].mxu0
      %v2088 = vadd.f32 0.0, %v2087
      %v2089 = vpop.f32.mrb[0].mxu0
      %2090 = vmatprep.mubr.bf16.mxu0 0
      %2091 = vmatmul.mubr.bf16.gmra.mrb[0].mxu0 %v1879
      %v2092 = vpop.f32.mrb[0].mxu0
      %v2093 = vpop.f32.mrb[0].mxu0
      %v2094 = vpop.f32.mrb[0].mxu0
      %v2095 = vadd.f32 0.0, %v2094
      %v2096 = vpop.f32.mrb[0].mxu0
      %2097 = vmatprep.mubr.bf16.mxu0 0
      %2098 = vmatmul.mubr.bf16.gmra.mrb[0].mxu0 %v1880
      %v2099 = vpop.f32.mrb[0].mxu0
      %v2100 = vadd.f32 0.0, %v2099
      %v2101 = vpop.f32.mrb[0].mxu0
      %v2102 = vpop.f32.mrb[0].mxu0
      %v2103 = vpop.f32.mrb[0].mxu0
      %2104 = vmatprep.mubr.bf16.mxu0 0
      %2105 = vmatmul.mubr.bf16.gmra.mrb[0].mxu0 %v1881
      %v2106 = vpop.f32.mrb[0].mxu0
      %v2107 = vadd.f32 0.0, %v2106
      %v2108 = vpop.f32.mrb[0].mxu0
      %v2109 = vpop.f32.mrb[0].mxu0
      %v2110 = vadd.f32 0.0, %v2109
      %v2111 = vpop.f32.mrb[0].mxu0
      %2112 = vmatprep.mubr.bf16.mxu0 0
      %2113 = vmatmul.mubr.bf16.gmra.mrb[0].mxu0 %v1882
      %v2114 = vpop.f32.mrb[0].mxu0
      %v2115 = vpop.f32.mrb[0].mxu0
      %v2116 = vpop.f32.mrb[0].mxu0
      %v2117 = vadd.f32 0.0, %v2116
      %v2118 = vpop.f32.mrb[0].mxu0
      %2119 = vmatprep.mubr.bf16.mxu0 0
      %2120 = vmatmul.mubr.bf16.gmra.mrb[0].mxu0 %v1883
      %v2121 = vpop.f32.mrb[0].mxu0
      %v2122 = vadd.f32 0.0, %v2121
      %v2123 = vpop.f32.mrb[0].mxu0
      %v2124 = vpop.f32.mrb[0].mxu0
      %v2125 = vpop.f32.mrb[0].mxu0
      %2126 = vmatprep.mubr.bf16.mxu0 0
      %2127 = vmatmul.mubr.bf16.gmra.mrb[0].mxu0 %v1884
      %v2128 = vpop.f32.mrb[0].mxu0
      %v2129 = vadd.f32 0.0, %v2128
      %v2130 = vpop.f32.mrb[0].mxu0
      %v2131 = vpop.f32.mrb[0].mxu0
      %v2132 = vadd.f32 0.0, %v2131
      %v2133 = vpop.f32.mrb[0].mxu0
      %2134 = vmatprep.mubr.bf16.mxu0 0
      %2135 = vmatmul.mubr.bf16.gmra.mrb[0].mxu0 %v1885
      %v2136 = vpop.f32.mrb[0].mxu0
      %v2137 = vpop.f32.mrb[0].mxu0
      %v2138 = vpop.f32.mrb[0].mxu0
      %v2139 = vadd.f32 0.0, %v2138
      %v2140 = vpop.f32.mrb[0].mxu0
      %2141 = vmatprep.mubr.bf16.mxu0 0
      %2142 = vmatmul.mubr.bf16.gmra.mrb[0].mxu0 %v1886
      %v2143 = vpop.f32.mrb[0].mxu0
      %v2144 = vadd.f32 0.0, %v2143
      %v2145 = vpop.f32.mrb[0].mxu0
      %v2146 = vpop.f32.mrb[0].mxu0
      %v2147 = vpop.f32.mrb[0].mxu0
      %2148 = vmatprep.mubr.bf16.mxu0 0
      %2149 = vmatmul.mubr.bf16.gmra.mrb[0].mxu0 %v1887
      %v2150 = vpop.f32.mrb[0].mxu0
      %v2151 = vadd.f32 0.0, %v2150
      %v2152 = vpop.f32.mrb[0].mxu0
      %v2153 = vpop.f32.mrb[0].mxu0
      %v2154 = vadd.f32 0.0, %v2153
      %v2155 = vpop.f32.mrb[0].mxu0
      %2156 = vmatprep.mubr.bf16.mxu0 0
      %2157 = vmatmul.mubr.bf16.gmra.mrb[0].mxu0 %v1888
      %v2158 = vpop.f32.mrb[0].mxu0
      %v2159 = vpop.f32.mrb[0].mxu0
      %v2160 = vpop.f32.mrb[0].mxu0
      %v2161 = vadd.f32 0.0, %v2160
      %v2162 = vpop.f32.mrb[0].mxu0
      %2163 = vmatprep.mubr.bf16.mxu0 0
      %2164 = vmatmul.mubr.bf16.gmra.mrb[0].mxu0 %v1889
      %v2165 = vpop.f32.mrb[0].mxu0
      %v2166 = vadd.f32 0.0, %v2165
      %v2167 = vpop.f32.mrb[0].mxu0
      %v2168 = vpop.f32.mrb[0].mxu0
      %v2169 = vpop.f32.mrb[0].mxu0
      %2170 = vdwg.mxu0
      %v2171 = vadd.f32 %v1818, %v1997
      %v2172 = vadd.f32 %v1819, %v2000
      %v2173 = vadd.f32 %v1820, %v2007
      %v2174 = vadd.f32 %v1821, %v2012
      %v2175 = vadd.f32 %v1822, %v2019
      %v2176 = vadd.f32 %v1823, %v2022
      %v2177 = vadd.f32 %v1824, %v2029
      %v2178 = vadd.f32 %v1825, %v2034
      %v2179 = vadd.f32 %v1826, %v2041
      %v2180 = vadd.f32 %v1827, %v2044
      %v2181 = vadd.f32 %v1828, %v2051
      %v2182 = vadd.f32 %v1829, %v2056
      %v2183 = vadd.f32 %v1830, %v2063
      %v2184 = vadd.f32 %v1831, %v2066
      %v2185 = vadd.f32 %v1832, %v2073
      %v2186 = vadd.f32 %v1833, %v2078
      %v2187 = vadd.f32 %v1834, %v2085
      %v2188 = vadd.f32 %v1835, %v2088
      %v2189 = vadd.f32 %v1836, %v2095
      %v2190 = vadd.f32 %v1837, %v2100
      %v2191 = vadd.f32 %v1838, %v2107
      %v2192 = vadd.f32 %v1839, %v2110
      %v2193 = vadd.f32 %v1840, %v2117
      %v2194 = vadd.f32 %v1841, %v2122
      %v2195 = vadd.f32 %v1842, %v2129
      %v2196 = vadd.f32 %v1843, %v2132
      %v2197 = vadd.f32 %v1844, %v2139
      %v2198 = vadd.f32 %v1845, %v2144
      %v2199 = vadd.f32 %v1846, %v2151
      %v2200 = vadd.f32 %v1847, %v2154
      %v2201 = vadd.f32 %v1848, %v2161
      %v2202 = vadd.f32 %v1849, %v2166
      %v2203 = vld [vmem:[%s260 + $0x100] sm:$0xf]
      %v2204 = vld [vmem:[%s260 + $0x104] sm:$0xf]
      %v2205 = vld [vmem:[%s260 + $0x108] sm:$0xf]
      %v2206 = vld [vmem:[%s260 + $0x10c] sm:$0xf]
      %v2207 = vld [vmem:[%s260 + $0x110] sm:$0xf]
      %v2208 = vld [vmem:[%s260 + $0x114] sm:$0xf]
      %v2209 = vld [vmem:[%s260 + $0x118] sm:$0xf]
      %v2210 = vld [vmem:[%s260 + $0x11c] sm:$0xf]
      %v2211 = vld [vmem:[%s260 + $0x120] sm:$0xf]
      %v2212 = vld [vmem:[%s260 + $0x124] sm:$0xf]
      %v2213 = vld [vmem:[%s260 + $0x128] sm:$0xf]
      %v2214 = vld [vmem:[%s260 + $0x12c] sm:$0xf]
      %v2215 = vld [vmem:[%s260 + $0x130] sm:$0xf]
      %v2216 = vld [vmem:[%s260 + $0x134] sm:$0xf]
      %v2217 = vld [vmem:[%s260 + $0x138] sm:$0xf]
      %v2218 = vld [vmem:[%s260 + $0x13c] sm:$0xf]
      %v2219 = vpack.c.b16 %v605, %v605
      %v2221 = vshrl.u32 %v1866, 16
      %v2223 = vshll.u32 %v1866, 16
      %v2225 = vrot.slane %v2223, 1
      %v2226 = vor.u32 %v2221, %v2225
      %v2228 = vshll.u32 %v1867, 16
      %v2230 = vrot.slane %v2228, 1
      %v2231 = vsel %vm712, %v2226, %v2230
      %v2232 = vshrl.u32 %v1867, 16
      %v2234 = vor.u32 %v2232, %v2230
      %v2236 = vshll.u32 %v1868, 16
      %v2238 = vrot.slane %v2236, 1
      %v2239 = vsel %vm712, %v2234, %v2238
      %v2240 = vshrl.u32 %v1868, 16
      %v2242 = vor.u32 %v2240, %v2238
      %v2244 = vshll.u32 %v1869, 16
      %v2246 = vrot.slane %v2244, 1
      %v2247 = vsel %vm712, %v2242, %v2246
      %v2248 = vshrl.u32 %v1869, 16
      %v2250 = vor.u32 %v2248, %v2246
      %v2252 = vshll.u32 %v1870, 16
      %v2254 = vrot.slane %v2252, 1
      %v2255 = vsel %vm712, %v2250, %v2254
      %v2256 = vshrl.u32 %v1870, 16
      %v2258 = vor.u32 %v2256, %v2254
      %v2260 = vshll.u32 %v1871, 16
      %v2262 = vrot.slane %v2260, 1
      %v2263 = vsel %vm712, %v2258, %v2262
      %v2264 = vshrl.u32 %v1871, 16
      %v2266 = vor.u32 %v2264, %v2262
      %v2268 = vshll.u32 %v1872, 16
      %v2270 = vrot.slane %v2268, 1
      %v2271 = vsel %vm712, %v2266, %v2270
      %v2272 = vshrl.u32 %v1872, 16
      %v2274 = vor.u32 %v2272, %v2270
      %v2276 = vshll.u32 %v1873, 16
      %v2278 = vrot.slane %v2276, 1
      %v2279 = vsel %vm712, %v2274, %v2278
      %v2280 = vshrl.u32 %v1873, 16
      %v2282 = vor.u32 %v2280, %v2278
      %v2284 = vshll.u32 %v1874, 16
      %v2286 = vrot.slane %v2284, 1
      %v2287 = vsel %vm712, %v2282, %v2286
      %v2288 = vshrl.u32 %v1874, 16
      %v2290 = vor.u32 %v2288, %v2286
      %v2292 = vshll.u32 %v1875, 16
      %v2294 = vrot.slane %v2292, 1
      %v2295 = vsel %vm712, %v2290, %v2294
      %v2296 = vshrl.u32 %v1875, 16
      %v2298 = vor.u32 %v2296, %v2294
      %v2300 = vshll.u32 %v1876, 16
      %v2302 = vrot.slane %v2300, 1
      %v2303 = vsel %vm712, %v2298, %v2302
      %v2304 = vshrl.u32 %v1876, 16
      %v2306 = vor.u32 %v2304, %v2302
      %v2308 = vshll.u32 %v1877, 16
      %v2310 = vrot.slane %v2308, 1
      %v2311 = vsel %vm712, %v2306, %v2310
      %v2312 = vshrl.u32 %v1877, 16
      %v2314 = vor.u32 %v2312, %v2310
      %v2316 = vshll.u32 %v1878, 16
      %v2318 = vrot.slane %v2316, 1
      %v2319 = vsel %vm712, %v2314, %v2318
      %v2320 = vshrl.u32 %v1878, 16
      %v2322 = vor.u32 %v2320, %v2318
      %v2324 = vshll.u32 %v1879, 16
      %v2326 = vrot.slane %v2324, 1
      %v2327 = vsel %vm712, %v2322, %v2326
      %v2328 = vshrl.u32 %v1879, 16
      %v2330 = vor.u32 %v2328, %v2326
      %v2332 = vshll.u32 %v1880, 16
      %v2334 = vrot.slane %v2332, 1
      %v2335 = vsel %vm712, %v2330, %v2334
      %v2336 = vshrl.u32 %v1880, 16
      %v2338 = vor.u32 %v2336, %v2334
      %v2340 = vshll.u32 %v1881, 16
      %v2342 = vrot.slane %v2340, 1
      %v2343 = vsel %vm712, %v2338, %v2342
      %v2344 = vshrl.u32 %v1881, 16
      %v2346 = vor.u32 %v2344, %v2342
      %v2348 = vshll.u32 %v1882, 16
      %v2350 = vrot.slane %v2348, 1
      %v2351 = vsel %vm712, %v2346, %v2350
      %v2352 = vshrl.u32 %v1882, 16
      %v2354 = vor.u32 %v2352, %v2350
      %v2356 = vshll.u32 %v1883, 16
      %v2358 = vrot.slane %v2356, 1
      %v2359 = vsel %vm712, %v2354, %v2358
      %v2360 = vshrl.u32 %v1883, 16
      %v2362 = vor.u32 %v2360, %v2358
      %v2364 = vshll.u32 %v1884, 16
      %v2366 = vrot.slane %v2364, 1
      %v2367 = vsel %vm712, %v2362, %v2366
      %v2368 = vshrl.u32 %v1884, 16
      %v2370 = vor.u32 %v2368, %v2366
      %v2372 = vshll.u32 %v1885, 16
      %v2374 = vrot.slane %v2372, 1
      %v2375 = vsel %vm712, %v2370, %v2374
      %v2376 = vshrl.u32 %v1885, 16
      %v2378 = vor.u32 %v2376, %v2374
      %v2380 = vshll.u32 %v1886, 16
      %v2382 = vrot.slane %v2380, 1
      %v2383 = vsel %vm712, %v2378, %v2382
      %v2384 = vshrl.u32 %v1886, 16
      %v2386 = vor.u32 %v2384, %v2382
      %v2388 = vshll.u32 %v1887, 16
      %v2390 = vrot.slane %v2388, 1
      %v2391 = vsel %vm712, %v2386, %v2390
      %v2392 = vshrl.u32 %v1887, 16
      %v2394 = vor.u32 %v2392, %v2390
      %v2396 = vshll.u32 %v1888, 16
      %v2398 = vrot.slane %v2396, 1
      %v2399 = vsel %vm712, %v2394, %v2398
      %v2400 = vshrl.u32 %v1888, 16
      %v2402 = vor.u32 %v2400, %v2398
      %v2404 = vshll.u32 %v1889, 16
      %v2406 = vrot.slane %v2404, 1
      %v2407 = vsel %vm712, %v2402, %v2406
      %v2408 = vshrl.u32 %v1889, 16
      %v2410 = vor.u32 %v2408, %v2406
      %v2412 = vshll.u32 %v2219, 16
      %v2414 = vrot.slane %v2412, 1
      %v2415 = vsel %vm712, %v2410, %v2414
      %v2456 = vunpack.c.l.b16 %v2203
      %v2457 = vunpack.c.l.b16 %v2204
      %v2458 = vunpack.c.l.b16 %v2205
      %v2459 = vunpack.c.l.b16 %v2206
      %v2460 = vunpack.c.l.b16 %v2207
      %v2461 = vunpack.c.l.b16 %v2208
      %v2462 = vunpack.c.l.b16 %v2209
      %v2463 = vunpack.c.l.b16 %v2210
      %v2464 = vunpack.c.l.b16 %v2211
      %v2465 = vunpack.c.l.b16 %v2212
      %v2466 = vunpack.c.l.b16 %v2213
      %v2467 = vunpack.c.l.b16 %v2214
      %v2468 = vunpack.c.l.b16 %v2215
      %v2469 = vunpack.c.l.b16 %v2216
      %v2470 = vunpack.c.l.b16 %v2217
      %v2471 = vunpack.c.l.b16 %v2218
      %v2472 = vpack.c.b16 %v2457, %v2456
      %v2473 = vpack.c.b16 %v2459, %v2458
      %v2474 = vpack.c.b16 %v2461, %v2460
      %v2475 = vpack.c.b16 %v2463, %v2462
      %v2476 = vpack.c.b16 %v2465, %v2464
      %v2477 = vpack.c.b16 %v2467, %v2466
      %v2478 = vpack.c.b16 %v2469, %v2468
      %v2479 = vpack.c.b16 %v2471, %v2470
      %2488 = vmatprep.subr.bf16.mxu0 0
      %2489 = vmatpush1.bf16.msra.mxu0 %v2472
      %2490 = vmatprep.subr.bf16.mxu0 0
      %2491 = vmatpush1.bf16.msra.mxu0 %v2473
      %2492 = vmatprep.subr.bf16.mxu0 0
      %2493 = vmatpush1.bf16.msra.mxu0 %v2474
      %2494 = vmatprep.subr.bf16.mxu0 0
      %2495 = vmatpush1.bf16.msra.mxu0 %v2475
      %2496 = vmatprep.subr.bf16.mxu0 0
      %2497 = vmatpush1.bf16.msra.mxu0 %v2476
      %2498 = vmatprep.subr.bf16.mxu0 0
      %2499 = vmatpush1.bf16.msra.mxu0 %v2477
      %2500 = vmatprep.subr.bf16.mxu0 0
      %2501 = vmatpush1.bf16.msra.mxu0 %v2478
      %2502 = vmatprep.subr.bf16.mxu0 0
      %2503 = vmatpush1.bf16.msra.mxu0 %v2479
      %2504 = vmatprep.subr.bf16.mxu0 0
      %2505 = vmatpush1.bf16.msra.mxu0 0
      %2506 = vmatprep.subr.bf16.mxu0 0
      %2507 = vmatpush1.bf16.msra.mxu0 0
      %2508 = vmatprep.subr.bf16.mxu0 0
      %2509 = vmatpush1.bf16.msra.mxu0 0
      %2510 = vmatprep.subr.bf16.mxu0 0
      %2511 = vmatpush1.bf16.msra.mxu0 0
      %2512 = vmatprep.subr.bf16.mxu0 0
      %2513 = vmatpush1.bf16.msra.mxu0 0
      %2514 = vmatprep.subr.bf16.mxu0 0
      %2515 = vmatpush1.bf16.msra.mxu0 0
      %2516 = vmatprep.subr.bf16.mxu0 0
      %2517 = vmatpush1.bf16.msra.mxu0 0
      %2518 = vmatprep.subr.bf16.mxu0 0
      %2519 = vmatpush1.bf16.msra.mxu0 0
      %2520 = vmatprep.mubr.bf16.mxu0 0
      %2521 = vmatmul.mubr.bf16.gmra.mrb[0].mxu0 %v2231
      %v2522 = vpop.f32.mrb[0].mxu0
      %v2523 = vadd.f32 0.0, %v2522
      %v2524 = vpop.f32.mrb[0].mxu0
      %v2525 = vpop.f32.mrb[0].mxu0
      %v2526 = vadd.f32 0.0, %v2525
      %v2527 = vpop.f32.mrb[0].mxu0
      %2528 = vmatprep.mubr.bf16.mxu0 0
      %2529 = vmatmul.mubr.bf16.gmra.mrb[0].mxu0 %v2239
      %v2530 = vpop.f32.mrb[0].mxu0
      %v2531 = vpop.f32.mrb[0].mxu0
      %v2532 = vpop.f32.mrb[0].mxu0
      %v2533 = vadd.f32 0.0, %v2532
      %v2534 = vpop.f32.mrb[0].mxu0
      %2535 = vmatprep.mubr.bf16.mxu0 0
      %2536 = vmatmul.mubr.bf16.gmra.mrb[0].mxu0 %v2247
      %v2537 = vpop.f32.mrb[0].mxu0
      %v2538 = vadd.f32 0.0, %v2537
      %v2539 = vpop.f32.mrb[0].mxu0
      %v2540 = vpop.f32.mrb[0].mxu0
      %v2541 = vpop.f32.mrb[0].mxu0
      %2542 = vmatprep.mubr.bf16.mxu0 0
      %2543 = vmatmul.mubr.bf16.gmra.mrb[0].mxu0 %v2255
      %v2544 = vpop.f32.mrb[0].mxu0
      %v2545 = vadd.f32 0.0, %v2544
      %v2546 = vpop.f32.mrb[0].mxu0
      %v2547 = vpop.f32.mrb[0].mxu0
      %v2548 = vadd.f32 0.0, %v2547
      %v2549 = vpop.f32.mrb[0].mxu0
      %2550 = vmatprep.mubr.bf16.mxu0 0
      %2551 = vmatmul.mubr.bf16.gmra.mrb[0].mxu0 %v2263
      %v2552 = vpop.f32.mrb[0].mxu0
      %v2553 = vpop.f32.mrb[0].mxu0
      %v2554 = vpop.f32.mrb[0].mxu0
      %v2555 = vadd.f32 0.0, %v2554
      %v2556 = vpop.f32.mrb[0].mxu0
      %2557 = vmatprep.mubr.bf16.mxu0 0
      %2558 = vmatmul.mubr.bf16.gmra.mrb[0].mxu0 %v2271
      %v2559 = vpop.f32.mrb[0].mxu0
      %v2560 = vadd.f32 0.0, %v2559
      %v2561 = vpop.f32.mrb[0].mxu0
      %v2562 = vpop.f32.mrb[0].mxu0
      %v2563 = vpop.f32.mrb[0].mxu0
      %2564 = vmatprep.mubr.bf16.mxu0 0
      %2565 = vmatmul.mubr.bf16.gmra.mrb[0].mxu0 %v2279
      %v2566 = vpop.f32.mrb[0].mxu0
      %v2567 = vadd.f32 0.0, %v2566
      %v2568 = vpop.f32.mrb[0].mxu0
      %v2569 = vpop.f32.mrb[0].mxu0
      %v2570 = vadd.f32 0.0, %v2569
      %v2571 = vpop.f32.mrb[0].mxu0
      %2572 = vmatprep.mubr.bf16.mxu0 0
      %2573 = vmatmul.mubr.bf16.gmra.mrb[0].mxu0 %v2287
      %v2574 = vpop.f32.mrb[0].mxu0
      %v2575 = vpop.f32.mrb[0].mxu0
      %v2576 = vpop.f32.mrb[0].mxu0
      %v2577 = vadd.f32 0.0, %v2576
      %v2578 = vpop.f32.mrb[0].mxu0
      %2579 = vmatprep.mubr.bf16.mxu0 0
      %2580 = vmatmul.mubr.bf16.gmra.mrb[0].mxu0 %v2295
      %v2581 = vpop.f32.mrb[0].mxu0
      %v2582 = vadd.f32 0.0, %v2581
      %v2583 = vpop.f32.mrb[0].mxu0
      %v2584 = vpop.f32.mrb[0].mxu0
      %v2585 = vpop.f32.mrb[0].mxu0
      %2586 = vmatprep.mubr.bf16.mxu0 0
      %2587 = vmatmul.mubr.bf16.gmra.mrb[0].mxu0 %v2303
      %v2588 = vpop.f32.mrb[0].mxu0
      %v2589 = vadd.f32 0.0, %v2588
      %v2590 = vpop.f32.mrb[0].mxu0
      %v2591 = vpop.f32.mrb[0].mxu0
      %v2592 = vadd.f32 0.0, %v2591
      %v2593 = vpop.f32.mrb[0].mxu0
      %2594 = vmatprep.mubr.bf16.mxu0 0
      %2595 = vmatmul.mubr.bf16.gmra.mrb[0].mxu0 %v2311
      %v2596 = vpop.f32.mrb[0].mxu0
      %v2597 = vpop.f32.mrb[0].mxu0
      %v2598 = vpop.f32.mrb[0].mxu0
      %v2599 = vadd.f32 0.0, %v2598
      %v2600 = vpop.f32.mrb[0].mxu0
      %2601 = vmatprep.mubr.bf16.mxu0 0
      %2602 = vmatmul.mubr.bf16.gmra.mrb[0].mxu0 %v2319
      %v2603 = vpop.f32.mrb[0].mxu0
      %v2604 = vadd.f32 0.0, %v2603
      %v2605 = vpop.f32.mrb[0].mxu0
      %v2606 = vpop.f32.mrb[0].mxu0
      %v2607 = vpop.f32.mrb[0].mxu0
      %2608 = vmatprep.mubr.bf16.mxu0 0
      %2609 = vmatmul.mubr.bf16.gmra.mrb[0].mxu0 %v2327
      %v2610 = vpop.f32.mrb[0].mxu0
      %v2611 = vadd.f32 0.0, %v2610
      %v2612 = vpop.f32.mrb[0].mxu0
      %v2613 = vpop.f32.mrb[0].mxu0
      %v2614 = vadd.f32 0.0, %v2613
      %v2615 = vpop.f32.mrb[0].mxu0
      %2616 = vmatprep.mubr.bf16.mxu0 0
      %2617 = vmatmul.mubr.bf16.gmra.mrb[0].mxu0 %v2335
      %v2618 = vpop.f32.mrb[0].mxu0
      %v2619 = vpop.f32.mrb[0].mxu0
      %v2620 = vpop.f32.mrb[0].mxu0
      %v2621 = vadd.f32 0.0, %v2620
      %v2622 = vpop.f32.mrb[0].mxu0
      %2623 = vmatprep.mubr.bf16.mxu0 0
      %2624 = vmatmul.mubr.bf16.gmra.mrb[0].mxu0 %v2343
      %v2625 = vpop.f32.mrb[0].mxu0
      %v2626 = vadd.f32 0.0, %v2625
      %v2627 = vpop.f32.mrb[0].mxu0
      %v2628 = vpop.f32.mrb[0].mxu0
      %v2629 = vpop.f32.mrb[0].mxu0
      %2630 = vmatprep.mubr.bf16.mxu0 0
      %2631 = vmatmul.mubr.bf16.gmra.mrb[0].mxu0 %v2351
      %v2632 = vpop.f32.mrb[0].mxu0
      %v2633 = vadd.f32 0.0, %v2632
      %v2634 = vpop.f32.mrb[0].mxu0
      %v2635 = vpop.f32.mrb[0].mxu0
      %v2636 = vadd.f32 0.0, %v2635
      %v2637 = vpop.f32.mrb[0].mxu0
      %2638 = vmatprep.mubr.bf16.mxu0 0
      %2639 = vmatmul.mubr.bf16.gmra.mrb[0].mxu0 %v2359
      %v2640 = vpop.f32.mrb[0].mxu0
      %v2641 = vpop.f32.mrb[0].mxu0
      %v2642 = vpop.f32.mrb[0].mxu0
      %v2643 = vadd.f32 0.0, %v2642
      %v2644 = vpop.f32.mrb[0].mxu0
      %2645 = vmatprep.mubr.bf16.mxu0 0
      %2646 = vmatmul.mubr.bf16.gmra.mrb[0].mxu0 %v2367
      %v2647 = vpop.f32.mrb[0].mxu0
      %v2648 = vadd.f32 0.0, %v2647
      %v2649 = vpop.f32.mrb[0].mxu0
      %v2650 = vpop.f32.mrb[0].mxu0
      %v2651 = vpop.f32.mrb[0].mxu0
      %2652 = vmatprep.mubr.bf16.mxu0 0
      %2653 = vmatmul.mubr.bf16.gmra.mrb[0].mxu0 %v2375
      %v2654 = vpop.f32.mrb[0].mxu0
      %v2655 = vadd.f32 0.0, %v2654
      %v2656 = vpop.f32.mrb[0].mxu0
      %v2657 = vpop.f32.mrb[0].mxu0
      %v2658 = vadd.f32 0.0, %v2657
      %v2659 = vpop.f32.mrb[0].mxu0
      %2660 = vmatprep.mubr.bf16.mxu0 0
      %2661 = vmatmul.mubr.bf16.gmra.mrb[0].mxu0 %v2383
      %v2662 = vpop.f32.mrb[0].mxu0
      %v2663 = vpop.f32.mrb[0].mxu0
      %v2664 = vpop.f32.mrb[0].mxu0
      %v2665 = vadd.f32 0.0, %v2664
      %v2666 = vpop.f32.mrb[0].mxu0
      %2667 = vmatprep.mubr.bf16.mxu0 0
      %2668 = vmatmul.mubr.bf16.gmra.mrb[0].mxu0 %v2391
      %v2669 = vpop.f32.mrb[0].mxu0
      %v2670 = vadd.f32 0.0, %v2669
      %v2671 = vpop.f32.mrb[0].mxu0
      %v2672 = vpop.f32.mrb[0].mxu0
      %v2673 = vpop.f32.mrb[0].mxu0
      %2674 = vmatprep.mubr.bf16.mxu0 0
      %2675 = vmatmul.mubr.bf16.gmra.mrb[0].mxu0 %v2399
      %v2676 = vpop.f32.mrb[0].mxu0
      %v2677 = vadd.f32 0.0, %v2676
      %v2678 = vpop.f32.mrb[0].mxu0
      %v2679 = vpop.f32.mrb[0].mxu0
      %v2680 = vadd.f32 0.0, %v2679
      %v2681 = vpop.f32.mrb[0].mxu0
      %2682 = vmatprep.mubr.bf16.mxu0 0
      %2683 = vmatmul.mubr.bf16.gmra.mrb[0].mxu0 %v2407
      %v2684 = vpop.f32.mrb[0].mxu0
      %v2685 = vpop.f32.mrb[0].mxu0
      %v2686 = vpop.f32.mrb[0].mxu0
      %v2687 = vadd.f32 0.0, %v2686
      %v2688 = vpop.f32.mrb[0].mxu0
      %2689 = vmatprep.mubr.bf16.mxu0 0
      %2690 = vmatmul.mubr.bf16.gmra.mrb[0].mxu0 %v2415
      %v2691 = vpop.f32.mrb[0].mxu0
      %v2692 = vadd.f32 0.0, %v2691
      %v2693 = vpop.f32.mrb[0].mxu0
      %v2694 = vpop.f32.mrb[0].mxu0
      %v2695 = vpop.f32.mrb[0].mxu0
      %2696 = vdwg.mxu0
      %v2697 = vadd.f32 %v2171, %v2523
      %v2698 = vadd.f32 %v2172, %v2526
      %v2699 = vadd.f32 %v2173, %v2533
      %v2700 = vadd.f32 %v2174, %v2538
      %v2701 = vadd.f32 %v2175, %v2545
      %v2702 = vadd.f32 %v2176, %v2548
      %v2703 = vadd.f32 %v2177, %v2555
      %v2704 = vadd.f32 %v2178, %v2560
      %v2705 = vadd.f32 %v2179, %v2567
      %v2706 = vadd.f32 %v2180, %v2570
      %v2707 = vadd.f32 %v2181, %v2577
      %v2708 = vadd.f32 %v2182, %v2582
      %v2709 = vadd.f32 %v2183, %v2589
      %v2710 = vadd.f32 %v2184, %v2592
      %v2711 = vadd.f32 %v2185, %v2599
      %v2712 = vadd.f32 %v2186, %v2604
      %v2713 = vadd.f32 %v2187, %v2611
      %v2714 = vadd.f32 %v2188, %v2614
      %v2715 = vadd.f32 %v2189, %v2621
      %v2716 = vadd.f32 %v2190, %v2626
      %v2717 = vadd.f32 %v2191, %v2633
      %v2718 = vadd.f32 %v2192, %v2636
      %v2719 = vadd.f32 %v2193, %v2643
      %v2720 = vadd.f32 %v2194, %v2648
      %v2721 = vadd.f32 %v2195, %v2655
      %v2722 = vadd.f32 %v2196, %v2658
      %v2723 = vadd.f32 %v2197, %v2665
      %v2724 = vadd.f32 %v2198, %v2670
      %v2725 = vadd.f32 %v2199, %v2677
      %v2726 = vadd.f32 %v2200, %v2680
      %v2727 = vadd.f32 %v2201, %v2687
      %v2728 = vadd.f32 %v2202, %v2692
      %v2729 = vld [vmem:[%s260 + $0x140] sm:$0xf]
      %v2730 = vld [vmem:[%s260 + $0x144] sm:$0xf]
      %v2731 = vld [vmem:[%s260 + $0x148] sm:$0xf]
      %v2732 = vld [vmem:[%s260 + $0x14c] sm:$0xf]
      %v2733 = vld [vmem:[%s260 + $0x150] sm:$0xf]
      %v2734 = vld [vmem:[%s260 + $0x154] sm:$0xf]
      %v2735 = vld [vmem:[%s260 + $0x158] sm:$0xf]
      %v2736 = vld [vmem:[%s260 + $0x15c] sm:$0xf]
      %v2737 = vld [vmem:[%s260 + $0x160] sm:$0xf]
      %v2738 = vld [vmem:[%s260 + $0x164] sm:$0xf]
      %v2739 = vld [vmem:[%s260 + $0x168] sm:$0xf]
      %v2740 = vld [vmem:[%s260 + $0x16c] sm:$0xf]
      %v2741 = vld [vmem:[%s260 + $0x170] sm:$0xf]
      %v2742 = vld [vmem:[%s260 + $0x174] sm:$0xf]
      %v2743 = vld [vmem:[%s260 + $0x178] sm:$0xf]
      %v2744 = vld [vmem:[%s260 + $0x17c] sm:$0xf]
      %v2745 = vrot.slane %v1866, 1
      %v2746 = vrot.slane %v1867, 1
      %v2747 = vsel %vm1487, %v2745, %v2746
      %v2748 = vrot.slane %v1868, 1
      %v2749 = vsel %vm1487, %v2746, %v2748
      %v2750 = vrot.slane %v1869, 1
      %v2751 = vsel %vm1487, %v2748, %v2750
      %v2752 = vrot.slane %v1870, 1
      %v2753 = vsel %vm1487, %v2750, %v2752
      %v2754 = vrot.slane %v1871, 1
      %v2755 = vsel %vm1487, %v2752, %v2754
      %v2756 = vrot.slane %v1872, 1
      %v2757 = vsel %vm1487, %v2754, %v2756
      %v2758 = vrot.slane %v1873, 1
      %v2759 = vsel %vm1487, %v2756, %v2758
      %v2760 = vrot.slane %v1874, 1
      %v2761 = vsel %vm1487, %v2758, %v2760
      %v2762 = vrot.slane %v1875, 1
      %v2763 = vsel %vm1487, %v2760, %v2762
      %v2764 = vrot.slane %v1876, 1
      %v2765 = vsel %vm1487, %v2762, %v2764
      %v2766 = vrot.slane %v1877, 1
      %v2767 = vsel %vm1487, %v2764, %v2766
      %v2768 = vrot.slane %v1878, 1
      %v2769 = vsel %vm1487, %v2766, %v2768
      %v2770 = vrot.slane %v1879, 1
      %v2771 = vsel %vm1487, %v2768, %v2770
      %v2772 = vrot.slane %v1880, 1
      %v2773 = vsel %vm1487, %v2770, %v2772
      %v2774 = vrot.slane %v1881, 1
      %v2775 = vsel %vm1487, %v2772, %v2774
      %v2776 = vrot.slane %v1882, 1
      %v2777 = vsel %vm1487, %v2774, %v2776
      %v2778 = vrot.slane %v1883, 1
      %v2779 = vsel %vm1487, %v2776, %v2778
      %v2780 = vrot.slane %v1884, 1
      %v2781 = vsel %vm1487, %v2778, %v2780
      %v2782 = vrot.slane %v1885, 1
      %v2783 = vsel %vm1487, %v2780, %v2782
      %v2784 = vrot.slane %v1886, 1
      %v2785 = vsel %vm1487, %v2782, %v2784
      %v2786 = vrot.slane %v1887, 1
      %v2787 = vsel %vm1487, %v2784, %v2786
      %v2788 = vrot.slane %v1888, 1
      %v2789 = vsel %vm1487, %v2786, %v2788
      %v2790 = vrot.slane %v1889, 1
      %v2791 = vsel %vm1487, %v2788, %v2790
      %v2792 = vrot.slane %v2219, 1
      %v2793 = vsel %vm1487, %v2790, %v2792
      %v2834 = vunpack.c.l.b16 %v2729
      %v2835 = vunpack.c.l.b16 %v2730
      %v2836 = vunpack.c.l.b16 %v2731
      %v2837 = vunpack.c.l.b16 %v2732
      %v2838 = vunpack.c.l.b16 %v2733
      %v2839 = vunpack.c.l.b16 %v2734
      %v2840 = vunpack.c.l.b16 %v2735
      %v2841 = vunpack.c.l.b16 %v2736
      %v2842 = vunpack.c.l.b16 %v2737
      %v2843 = vunpack.c.l.b16 %v2738
      %v2844 = vunpack.c.l.b16 %v2739
      %v2845 = vunpack.c.l.b16 %v2740
      %v2846 = vunpack.c.l.b16 %v2741
      %v2847 = vunpack.c.l.b16 %v2742
      %v2848 = vunpack.c.l.b16 %v2743
      %v2849 = vunpack.c.l.b16 %v2744
      %v2850 = vpack.c.b16 %v2835, %v2834
      %v2851 = vpack.c.b16 %v2837, %v2836
      %v2852 = vpack.c.b16 %v2839, %v2838
      %v2853 = vpack.c.b16 %v2841, %v2840
      %v2854 = vpack.c.b16 %v2843, %v2842
      %v2855 = vpack.c.b16 %v2845, %v2844
      %v2856 = vpack.c.b16 %v2847, %v2846
      %v2857 = vpack.c.b16 %v2849, %v2848
      %2866 = vmatprep.subr.bf16.mxu0 0
      %2867 = vmatpush1.bf16.msra.mxu0 %v2850
      %2868 = vmatprep.subr.bf16.mxu0 0
      %2869 = vmatpush1.bf16.msra.mxu0 %v2851
      %2870 = vmatprep.subr.bf16.mxu0 0
      %2871 = vmatpush1.bf16.msra.mxu0 %v2852
      %2872 = vmatprep.subr.bf16.mxu0 0
      %2873 = vmatpush1.bf16.msra.mxu0 %v2853
      %2874 = vmatprep.subr.bf16.mxu0 0
      %2875 = vmatpush1.bf16.msra.mxu0 %v2854
      %2876 = vmatprep.subr.bf16.mxu0 0
      %2877 = vmatpush1.bf16.msra.mxu0 %v2855
      %2878 = vmatprep.subr.bf16.mxu0 0
      %2879 = vmatpush1.bf16.msra.mxu0 %v2856
      %2880 = vmatprep.subr.bf16.mxu0 0
      %2881 = vmatpush1.bf16.msra.mxu0 %v2857
      %2882 = vmatprep.subr.bf16.mxu0 0
      %2883 = vmatpush1.bf16.msra.mxu0 0
      %2884 = vmatprep.subr.bf16.mxu0 0
      %2885 = vmatpush1.bf16.msra.mxu0 0
      %2886 = vmatprep.subr.bf16.mxu0 0
      %2887 = vmatpush1.bf16.msra.mxu0 0
      %2888 = vmatprep.subr.bf16.mxu0 0
      %2889 = vmatpush1.bf16.msra.mxu0 0
      %2890 = vmatprep.subr.bf16.mxu0 0
      %2891 = vmatpush1.bf16.msra.mxu0 0
      %2892 = vmatprep.subr.bf16.mxu0 0
      %2893 = vmatpush1.bf16.msra.mxu0 0
      %2894 = vmatprep.subr.bf16.mxu0 0
      %2895 = vmatpush1.bf16.msra.mxu0 0
      %2896 = vmatprep.subr.bf16.mxu0 0
      %2897 = vmatpush1.bf16.msra.mxu0 0
      %2898 = vmatprep.mubr.bf16.mxu0 0
      %2899 = vmatmul.mubr.bf16.gmra.mrb[0].mxu0 %v2747
      %v2900 = vpop.f32.mrb[0].mxu0
      %v2901 = vadd.f32 0.0, %v2900
      %v2902 = vpop.f32.mrb[0].mxu0
      %v2903 = vpop.f32.mrb[0].mxu0
      %v2904 = vadd.f32 0.0, %v2903
      %v2905 = vpop.f32.mrb[0].mxu0
      %2906 = vmatprep.mubr.bf16.mxu0 0
      %2907 = vmatmul.mubr.bf16.gmra.mrb[0].mxu0 %v2749
      %v2908 = vpop.f32.mrb[0].mxu0
      %v2909 = vpop.f32.mrb[0].mxu0
      %v2910 = vpop.f32.mrb[0].mxu0
      %v2911 = vadd.f32 0.0, %v2910
      %v2912 = vpop.f32.mrb[0].mxu0
      %2913 = vmatprep.mubr.bf16.mxu0 0
      %2914 = vmatmul.mubr.bf16.gmra.mrb[0].mxu0 %v2751
      %v2915 = vpop.f32.mrb[0].mxu0
      %v2916 = vadd.f32 0.0, %v2915
      %v2917 = vpop.f32.mrb[0].mxu0
      %v2918 = vpop.f32.mrb[0].mxu0
      %v2919 = vpop.f32.mrb[0].mxu0
      %2920 = vmatprep.mubr.bf16.mxu0 0
      %2921 = vmatmul.mubr.bf16.gmra.mrb[0].mxu0 %v2753
      %v2922 = vpop.f32.mrb[0].mxu0
      %v2923 = vadd.f32 0.0, %v2922
      %v2924 = vpop.f32.mrb[0].mxu0
      %v2925 = vpop.f32.mrb[0].mxu0
      %v2926 = vadd.f32 0.0, %v2925
      %v2927 = vpop.f32.mrb[0].mxu0
      %2928 = vmatprep.mubr.bf16.mxu0 0
      %2929 = vmatmul.mubr.bf16.gmra.mrb[0].mxu0 %v2755
      %v2930 = vpop.f32.mrb[0].mxu0
      %v2931 = vpop.f32.mrb[0].mxu0
      %v2932 = vpop.f32.mrb[0].mxu0
      %v2933 = vadd.f32 0.0, %v2932
      %v2934 = vpop.f32.mrb[0].mxu0
      %2935 = vmatprep.mubr.bf16.mxu0 0
      %2936 = vmatmul.mubr.bf16.gmra.mrb[0].mxu0 %v2757
      %v2937 = vpop.f32.mrb[0].mxu0
      %v2938 = vadd.f32 0.0, %v2937
      %v2939 = vpop.f32.mrb[0].mxu0
      %v2940 = vpop.f32.mrb[0].mxu0
      %v2941 = vpop.f32.mrb[0].mxu0
      %2942 = vmatprep.mubr.bf16.mxu0 0
      %2943 = vmatmul.mubr.bf16.gmra.mrb[0].mxu0 %v2759
      %v2944 = vpop.f32.mrb[0].mxu0
      %v2945 = vadd.f32 0.0, %v2944
      %v2946 = vpop.f32.mrb[0].mxu0
      %v2947 = vpop.f32.mrb[0].mxu0
      %v2948 = vadd.f32 0.0, %v2947
      %v2949 = vpop.f32.mrb[0].mxu0
      %2950 = vmatprep.mubr.bf16.mxu0 0
      %2951 = vmatmul.mubr.bf16.gmra.mrb[0].mxu0 %v2761
      %v2952 = vpop.f32.mrb[0].mxu0
      %v2953 = vpop.f32.mrb[0].mxu0
      %v2954 = vpop.f32.mrb[0].mxu0
      %v2955 = vadd.f32 0.0, %v2954
      %v2956 = vpop.f32.mrb[0].mxu0
      %2957 = vmatprep.mubr.bf16.mxu0 0
      %2958 = vmatmul.mubr.bf16.gmra.mrb[0].mxu0 %v2763
      %v2959 = vpop.f32.mrb[0].mxu0
      %v2960 = vadd.f32 0.0, %v2959
      %v2961 = vpop.f32.mrb[0].mxu0
      %v2962 = vpop.f32.mrb[0].mxu0
      %v2963 = vpop.f32.mrb[0].mxu0
      %2964 = vmatprep.mubr.bf16.mxu0 0
      %2965 = vmatmul.mubr.bf16.gmra.mrb[0].mxu0 %v2765
      %v2966 = vpop.f32.mrb[0].mxu0
      %v2967 = vadd.f32 0.0, %v2966
      %v2968 = vpop.f32.mrb[0].mxu0
      %v2969 = vpop.f32.mrb[0].mxu0
      %v2970 = vadd.f32 0.0, %v2969
      %v2971 = vpop.f32.mrb[0].mxu0
      %2972 = vmatprep.mubr.bf16.mxu0 0
      %2973 = vmatmul.mubr.bf16.gmra.mrb[0].mxu0 %v2767
      %v2974 = vpop.f32.mrb[0].mxu0
      %v2975 = vpop.f32.mrb[0].mxu0
      %v2976 = vpop.f32.mrb[0].mxu0
      %v2977 = vadd.f32 0.0, %v2976
      %v2978 = vpop.f32.mrb[0].mxu0
      %2979 = vmatprep.mubr.bf16.mxu0 0
      %2980 = vmatmul.mubr.bf16.gmra.mrb[0].mxu0 %v2769
      %v2981 = vpop.f32.mrb[0].mxu0
      %v2982 = vadd.f32 0.0, %v2981
      %v2983 = vpop.f32.mrb[0].mxu0
      %v2984 = vpop.f32.mrb[0].mxu0
      %v2985 = vpop.f32.mrb[0].mxu0
      %2986 = vmatprep.mubr.bf16.mxu0 0
      %2987 = vmatmul.mubr.bf16.gmra.mrb[0].mxu0 %v2771
      %v2988 = vpop.f32.mrb[0].mxu0
      %v2989 = vadd.f32 0.0, %v2988
      %v2990 = vpop.f32.mrb[0].mxu0
      %v2991 = vpop.f32.mrb[0].mxu0
      %v2992 = vadd.f32 0.0, %v2991
      %v2993 = vpop.f32.mrb[0].mxu0
      %2994 = vmatprep.mubr.bf16.mxu0 0
      %2995 = vmatmul.mubr.bf16.gmra.mrb[0].mxu0 %v2773
      %v2996 = vpop.f32.mrb[0].mxu0
      %v2997 = vpop.f32.mrb[0].mxu0
      %v2998 = vpop.f32.mrb[0].mxu0
      %v2999 = vadd.f32 0.0, %v2998
      %v3000 = vpop.f32.mrb[0].mxu0
      %3001 = vmatprep.mubr.bf16.mxu0 0
      %3002 = vmatmul.mubr.bf16.gmra.mrb[0].mxu0 %v2775
      %v3003 = vpop.f32.mrb[0].mxu0
      %v3004 = vadd.f32 0.0, %v3003
      %v3005 = vpop.f32.mrb[0].mxu0
      %v3006 = vpop.f32.mrb[0].mxu0
      %v3007 = vpop.f32.mrb[0].mxu0
      %3008 = vmatprep.mubr.bf16.mxu0 0
      %3009 = vmatmul.mubr.bf16.gmra.mrb[0].mxu0 %v2777
      %v3010 = vpop.f32.mrb[0].mxu0
      %v3011 = vadd.f32 0.0, %v3010
      %v3012 = vpop.f32.mrb[0].mxu0
      %v3013 = vpop.f32.mrb[0].mxu0
      %v3014 = vadd.f32 0.0, %v3013
      %v3015 = vpop.f32.mrb[0].mxu0
      %3016 = vmatprep.mubr.bf16.mxu0 0
      %3017 = vmatmul.mubr.bf16.gmra.mrb[0].mxu0 %v2779
      %v3018 = vpop.f32.mrb[0].mxu0
      %v3019 = vpop.f32.mrb[0].mxu0
      %v3020 = vpop.f32.mrb[0].mxu0
      %v3021 = vadd.f32 0.0, %v3020
      %v3022 = vpop.f32.mrb[0].mxu0
      %3023 = vmatprep.mubr.bf16.mxu0 0
      %3024 = vmatmul.mubr.bf16.gmra.mrb[0].mxu0 %v2781
      %v3025 = vpop.f32.mrb[0].mxu0
      %v3026 = vadd.f32 0.0, %v3025
      %v3027 = vpop.f32.mrb[0].mxu0
      %v3028 = vpop.f32.mrb[0].mxu0
      %v3029 = vpop.f32.mrb[0].mxu0
      %3030 = vmatprep.mubr.bf16.mxu0 0
      %3031 = vmatmul.mubr.bf16.gmra.mrb[0].mxu0 %v2783
      %v3032 = vpop.f32.mrb[0].mxu0
      %v3033 = vadd.f32 0.0, %v3032
      %v3034 = vpop.f32.mrb[0].mxu0
      %v3035 = vpop.f32.mrb[0].mxu0
      %v3036 = vadd.f32 0.0, %v3035
      %v3037 = vpop.f32.mrb[0].mxu0
      %3038 = vmatprep.mubr.bf16.mxu0 0
      %3039 = vmatmul.mubr.bf16.gmra.mrb[0].mxu0 %v2785
      %v3040 = vpop.f32.mrb[0].mxu0
      %v3041 = vpop.f32.mrb[0].mxu0
      %v3042 = vpop.f32.mrb[0].mxu0
      %v3043 = vadd.f32 0.0, %v3042
      %v3044 = vpop.f32.mrb[0].mxu0
      %3045 = vmatprep.mubr.bf16.mxu0 0
      %3046 = vmatmul.mubr.bf16.gmra.mrb[0].mxu0 %v2787
      %v3047 = vpop.f32.mrb[0].mxu0
      %v3048 = vadd.f32 0.0, %v3047
      %v3049 = vpop.f32.mrb[0].mxu0
      %v3050 = vpop.f32.mrb[0].mxu0
      %v3051 = vpop.f32.mrb[0].mxu0
      %3052 = vmatprep.mubr.bf16.mxu0 0
      %3053 = vmatmul.mubr.bf16.gmra.mrb[0].mxu0 %v2789
      %v3054 = vpop.f32.mrb[0].mxu0
      %v3055 = vadd.f32 0.0, %v3054
      %v3056 = vpop.f32.mrb[0].mxu0
      %v3057 = vpop.f32.mrb[0].mxu0
      %v3058 = vadd.f32 0.0, %v3057
      %v3059 = vpop.f32.mrb[0].mxu0
      %3060 = vmatprep.mubr.bf16.mxu0 0
      %3061 = vmatmul.mubr.bf16.gmra.mrb[0].mxu0 %v2791
      %v3062 = vpop.f32.mrb[0].mxu0
      %v3063 = vpop.f32.mrb[0].mxu0
      %v3064 = vpop.f32.mrb[0].mxu0
      %v3065 = vadd.f32 0.0, %v3064
      %v3066 = vpop.f32.mrb[0].mxu0
      %3067 = vmatprep.mubr.bf16.mxu0 0
      %3068 = vmatmul.mubr.bf16.gmra.mrb[0].mxu0 %v2793
      %v3069 = vpop.f32.mrb[0].mxu0
      %v3070 = vadd.f32 0.0, %v3069
      %v3071 = vpop.f32.mrb[0].mxu0
      %v3072 = vpop.f32.mrb[0].mxu0
      %v3073 = vpop.f32.mrb[0].mxu0
      %3074 = vdwg.mxu0
      %v3075 = vadd.f32 %v2697, %v2901
      %v3076 = vadd.f32 %v2698, %v2904
      %v3077 = vadd.f32 %v2699, %v2911
      %v3078 = vadd.f32 %v2700, %v2916
      %v3079 = vadd.f32 %v2701, %v2923
      %v3080 = vadd.f32 %v2702, %v2926
      %v3081 = vadd.f32 %v2703, %v2933
      %v3082 = vadd.f32 %v2704, %v2938
      %v3083 = vadd.f32 %v2705, %v2945
      %v3084 = vadd.f32 %v2706, %v2948
      %v3085 = vadd.f32 %v2707, %v2955
      %v3086 = vadd.f32 %v2708, %v2960
      %v3087 = vadd.f32 %v2709, %v2967
      %v3088 = vadd.f32 %v2710, %v2970
      %v3089 = vadd.f32 %v2711, %v2977
      %v3090 = vadd.f32 %v2712, %v2982
      %v3091 = vadd.f32 %v2713, %v2989
      %v3092 = vadd.f32 %v2714, %v2992
      %v3093 = vadd.f32 %v2715, %v2999
      %v3094 = vadd.f32 %v2716, %v3004
      %v3095 = vadd.f32 %v2717, %v3011
      %v3096 = vadd.f32 %v2718, %v3014
      %v3097 = vadd.f32 %v2719, %v3021
      %v3098 = vadd.f32 %v2720, %v3026
      %v3099 = vadd.f32 %v2721, %v3033
      %v3100 = vadd.f32 %v2722, %v3036
      %v3101 = vadd.f32 %v2723, %v3043
      %v3102 = vadd.f32 %v2724, %v3048
      %v3103 = vadd.f32 %v2725, %v3055
      %v3104 = vadd.f32 %v2726, %v3058
      %v3105 = vadd.f32 %v2727, %v3065
      %v3106 = vadd.f32 %v2728, %v3070
      %v3107 = vld [vmem:[%s260 + $0x180] sm:$0xf]
      %v3108 = vld [vmem:[%s260 + $0x184] sm:$0xf]
      %v3109 = vld [vmem:[%s260 + $0x188] sm:$0xf]
      %v3110 = vld [vmem:[%s260 + $0x18c] sm:$0xf]
      %v3111 = vld [vmem:[%s260 + $0x190] sm:$0xf]
      %v3112 = vld [vmem:[%s260 + $0x194] sm:$0xf]
      %v3113 = vld [vmem:[%s260 + $0x198] sm:$0xf]
      %v3114 = vld [vmem:[%s260 + $0x19c] sm:$0xf]
      %v3115 = vld [vmem:[%s260 + $0x1a0] sm:$0xf]
      %v3116 = vld [vmem:[%s260 + $0x1a4] sm:$0xf]
      %v3117 = vld [vmem:[%s260 + $0x1a8] sm:$0xf]
      %v3118 = vld [vmem:[%s260 + $0x1ac] sm:$0xf]
      %v3119 = vld [vmem:[%s260 + $0x1b0] sm:$0xf]
      %v3120 = vld [vmem:[%s260 + $0x1b4] sm:$0xf]
      %v3121 = vld [vmem:[%s260 + $0x1b8] sm:$0xf]
      %v3122 = vld [vmem:[%s260 + $0x1bc] sm:$0xf]
      %v3123 = vpack.c.b16 %v653, %v652
      %v3124 = vpack.c.b16 %v605, %v654
      %v3125 = vpack.c.b16 %v605, %v606
      %v3145 = vunpack.c.l.b16 %v3107
      %v3146 = vunpack.c.l.b16 %v3108
      %v3147 = vunpack.c.l.b16 %v3109
      %v3148 = vunpack.c.l.b16 %v3110
      %v3149 = vunpack.c.l.b16 %v3111
      %v3150 = vunpack.c.l.b16 %v3112
      %v3151 = vunpack.c.l.b16 %v3113
      %v3152 = vunpack.c.l.b16 %v3114
      %v3153 = vunpack.c.l.b16 %v3115
      %v3154 = vunpack.c.l.b16 %v3116
      %v3155 = vunpack.c.l.b16 %v3117
      %v3156 = vunpack.c.l.b16 %v3118
      %v3157 = vunpack.c.l.b16 %v3119
      %v3158 = vunpack.c.l.b16 %v3120
      %v3159 = vunpack.c.l.b16 %v3121
      %v3160 = vunpack.c.l.b16 %v3122
      %v3161 = vpack.c.b16 %v3146, %v3145
      %v3162 = vpack.c.b16 %v3148, %v3147
      %v3163 = vpack.c.b16 %v3150, %v3149
      %v3164 = vpack.c.b16 %v3152, %v3151
      %v3165 = vpack.c.b16 %v3154, %v3153
      %v3166 = vpack.c.b16 %v3156, %v3155
      %v3167 = vpack.c.b16 %v3158, %v3157
      %v3168 = vpack.c.b16 %v3160, %v3159
      %3177 = vmatprep.subr.bf16.mxu0 0
      %3178 = vmatpush1.bf16.msra.mxu0 %v3161
      %3179 = vmatprep.subr.bf16.mxu0 0
      %3180 = vmatpush1.bf16.msra.mxu0 %v3162
      %3181 = vmatprep.subr.bf16.mxu0 0
      %3182 = vmatpush1.bf16.msra.mxu0 %v3163
      %3183 = vmatprep.subr.bf16.mxu0 0
      %3184 = vmatpush1.bf16.msra.mxu0 %v3164
      %3185 = vmatprep.subr.bf16.mxu0 0
      %3186 = vmatpush1.bf16.msra.mxu0 %v3165
      %3187 = vmatprep.subr.bf16.mxu0 0
      %3188 = vmatpush1.bf16.msra.mxu0 %v3166
      %3189 = vmatprep.subr.bf16.mxu0 0
      %3190 = vmatpush1.bf16.msra.mxu0 %v3167
      %3191 = vmatprep.subr.bf16.mxu0 0
      %3192 = vmatpush1.bf16.msra.mxu0 %v3168
      %3193 = vmatprep.subr.bf16.mxu0 0
      %3194 = vmatpush1.bf16.msra.mxu0 0
      %3195 = vmatprep.subr.bf16.mxu0 0
      %3196 = vmatpush1.bf16.msra.mxu0 0
      %3197 = vmatprep.subr.bf16.mxu0 0
      %3198 = vmatpush1.bf16.msra.mxu0 0
      %3199 = vmatprep.subr.bf16.mxu0 0
      %3200 = vmatpush1.bf16.msra.mxu0 0
      %3201 = vmatprep.subr.bf16.mxu0 0
      %3202 = vmatpush1.bf16.msra.mxu0 0
      %3203 = vmatprep.subr.bf16.mxu0 0
      %3204 = vmatpush1.bf16.msra.mxu0 0
      %3205 = vmatprep.subr.bf16.mxu0 0
      %3206 = vmatpush1.bf16.msra.mxu0 0
      %3207 = vmatprep.subr.bf16.mxu0 0
      %3208 = vmatpush1.bf16.msra.mxu0 0
      %3209 = vmatprep.mubr.bf16.mxu0 0
      %3210 = vmatmul.mubr.bf16.gmra.mrb[0].mxu0 %v690
      %v3211 = vpop.f32.mrb[0].mxu0
      %v3212 = vadd.f32 0.0, %v3211
      %v3213 = vpop.f32.mrb[0].mxu0
      %v3214 = vpop.f32.mrb[0].mxu0
      %v3215 = vadd.f32 0.0, %v3214
      %v3216 = vpop.f32.mrb[0].mxu0
      %3217 = vmatprep.mubr.bf16.mxu0 0
      %3218 = vmatmul.mubr.bf16.gmra.mrb[0].mxu0 %v691
      %v3219 = vpop.f32.mrb[0].mxu0
      %v3220 = vpop.f32.mrb[0].mxu0
      %v3221 = vpop.f32.mrb[0].mxu0
      %v3222 = vadd.f32 0.0, %v3221
      %v3223 = vpop.f32.mrb[0].mxu0
      %3224 = vmatprep.mubr.bf16.mxu0 0
      %3225 = vmatmul.mubr.bf16.gmra.mrb[0].mxu0 %v692
      %v3226 = vpop.f32.mrb[0].mxu0
      %v3227 = vadd.f32 0.0, %v3226
      %v3228 = vpop.f32.mrb[0].mxu0
      %v3229 = vpop.f32.mrb[0].mxu0
      %v3230 = vpop.f32.mrb[0].mxu0
      %3231 = vmatprep.mubr.bf16.mxu0 0
      %3232 = vmatmul.mubr.bf16.gmra.mrb[0].mxu0 %v693
      %v3233 = vpop.f32.mrb[0].mxu0
      %v3234 = vadd.f32 0.0, %v3233
      %v3235 = vpop.f32.mrb[0].mxu0
      %v3236 = vpop.f32.mrb[0].mxu0
      %v3237 = vadd.f32 0.0, %v3236
      %v3238 = vpop.f32.mrb[0].mxu0
      %3239 = vmatprep.mubr.bf16.mxu0 0
      %3240 = vmatmul.mubr.bf16.gmra.mrb[0].mxu0 %v694
      %v3241 = vpop.f32.mrb[0].mxu0
      %v3242 = vpop.f32.mrb[0].mxu0
      %v3243 = vpop.f32.mrb[0].mxu0
      %v3244 = vadd.f32 0.0, %v3243
      %v3245 = vpop.f32.mrb[0].mxu0
      %3246 = vmatprep.mubr.bf16.mxu0 0
      %3247 = vmatmul.mubr.bf16.gmra.mrb[0].mxu0 %v695
      %v3248 = vpop.f32.mrb[0].mxu0
      %v3249 = vadd.f32 0.0, %v3248
      %v3250 = vpop.f32.mrb[0].mxu0
      %v3251 = vpop.f32.mrb[0].mxu0
      %v3252 = vpop.f32.mrb[0].mxu0
      %3253 = vmatprep.mubr.bf16.mxu0 0
      %3254 = vmatmul.mubr.bf16.gmra.mrb[0].mxu0 %v696
      %v3255 = vpop.f32.mrb[0].mxu0
      %v3256 = vadd.f32 0.0, %v3255
      %v3257 = vpop.f32.mrb[0].mxu0
      %v3258 = vpop.f32.mrb[0].mxu0
      %v3259 = vadd.f32 0.0, %v3258
      %v3260 = vpop.f32.mrb[0].mxu0
      %3261 = vmatprep.mubr.bf16.mxu0 0
      %3262 = vmatmul.mubr.bf16.gmra.mrb[0].mxu0 %v697
      %v3263 = vpop.f32.mrb[0].mxu0
      %v3264 = vpop.f32.mrb[0].mxu0
      %v3265 = vpop.f32.mrb[0].mxu0
      %v3266 = vadd.f32 0.0, %v3265
      %v3267 = vpop.f32.mrb[0].mxu0
      %3268 = vmatprep.mubr.bf16.mxu0 0
      %3269 = vmatmul.mubr.bf16.gmra.mrb[0].mxu0 %v698
      %v3270 = vpop.f32.mrb[0].mxu0
      %v3271 = vadd.f32 0.0, %v3270
      %v3272 = vpop.f32.mrb[0].mxu0
      %v3273 = vpop.f32.mrb[0].mxu0
      %v3274 = vpop.f32.mrb[0].mxu0
      %3275 = vmatprep.mubr.bf16.mxu0 0
      %3276 = vmatmul.mubr.bf16.gmra.mrb[0].mxu0 %v699
      %v3277 = vpop.f32.mrb[0].mxu0
      %v3278 = vadd.f32 0.0, %v3277
      %v3279 = vpop.f32.mrb[0].mxu0
      %v3280 = vpop.f32.mrb[0].mxu0
      %v3281 = vadd.f32 0.0, %v3280
      %v3282 = vpop.f32.mrb[0].mxu0
      %3283 = vmatprep.mubr.bf16.mxu0 0
      %3284 = vmatmul.mubr.bf16.gmra.mrb[0].mxu0 %v700
      %v3285 = vpop.f32.mrb[0].mxu0
      %v3286 = vpop.f32.mrb[0].mxu0
      %v3287 = vpop.f32.mrb[0].mxu0
      %v3288 = vadd.f32 0.0, %v3287
      %v3289 = vpop.f32.mrb[0].mxu0
      %3290 = vmatprep.mubr.bf16.mxu0 0
      %3291 = vmatmul.mubr.bf16.gmra.mrb[0].mxu0 %v701
      %v3292 = vpop.f32.mrb[0].mxu0
      %v3293 = vadd.f32 0.0, %v3292
      %v3294 = vpop.f32.mrb[0].mxu0
      %v3295 = vpop.f32.mrb[0].mxu0
      %v3296 = vpop.f32.mrb[0].mxu0
      %3297 = vmatprep.mubr.bf16.mxu0 0
      %3298 = vmatmul.mubr.bf16.gmra.mrb[0].mxu0 %v702
      %v3299 = vpop.f32.mrb[0].mxu0
      %v3300 = vadd.f32 0.0, %v3299
      %v3301 = vpop.f32.mrb[0].mxu0
      %v3302 = vpop.f32.mrb[0].mxu0
      %v3303 = vadd.f32 0.0, %v3302
      %v3304 = vpop.f32.mrb[0].mxu0
      %3305 = vmatprep.mubr.bf16.mxu0 0
      %3306 = vmatmul.mubr.bf16.gmra.mrb[0].mxu0 %v703
      %v3307 = vpop.f32.mrb[0].mxu0
      %v3308 = vpop.f32.mrb[0].mxu0
      %v3309 = vpop.f32.mrb[0].mxu0
      %v3310 = vadd.f32 0.0, %v3309
      %v3311 = vpop.f32.mrb[0].mxu0
      %3312 = vmatprep.mubr.bf16.mxu0 0
      %3313 = vmatmul.mubr.bf16.gmra.mrb[0].mxu0 %v704
      %v3314 = vpop.f32.mrb[0].mxu0
      %v3315 = vadd.f32 0.0, %v3314
      %v3316 = vpop.f32.mrb[0].mxu0
      %v3317 = vpop.f32.mrb[0].mxu0
      %v3318 = vpop.f32.mrb[0].mxu0
      %3319 = vmatprep.mubr.bf16.mxu0 0
      %3320 = vmatmul.mubr.bf16.gmra.mrb[0].mxu0 %v705
      %v3321 = vpop.f32.mrb[0].mxu0
      %v3322 = vadd.f32 0.0, %v3321
      %v3323 = vpop.f32.mrb[0].mxu0
      %v3324 = vpop.f32.mrb[0].mxu0
      %v3325 = vadd.f32 0.0, %v3324
      %v3326 = vpop.f32.mrb[0].mxu0
      %3327 = vmatprep.mubr.bf16.mxu0 0
      %3328 = vmatmul.mubr.bf16.gmra.mrb[0].mxu0 %v706
      %v3329 = vpop.f32.mrb[0].mxu0
      %v3330 = vpop.f32.mrb[0].mxu0
      %v3331 = vpop.f32.mrb[0].mxu0
      %v3332 = vadd.f32 0.0, %v3331
      %v3333 = vpop.f32.mrb[0].mxu0
      %3334 = vmatprep.mubr.bf16.mxu0 0
      %3335 = vmatmul.mubr.bf16.gmra.mrb[0].mxu0 %v707
      %v3336 = vpop.f32.mrb[0].mxu0
      %v3337 = vadd.f32 0.0, %v3336
      %v3338 = vpop.f32.mrb[0].mxu0
      %v3339 = vpop.f32.mrb[0].mxu0
      %v3340 = vpop.f32.mrb[0].mxu0
      %3341 = vmatprep.mubr.bf16.mxu0 0
      %3342 = vmatmul.mubr.bf16.gmra.mrb[0].mxu0 %v708
      %v3343 = vpop.f32.mrb[0].mxu0
      %v3344 = vadd.f32 0.0, %v3343
      %v3345 = vpop.f32.mrb[0].mxu0
      %v3346 = vpop.f32.mrb[0].mxu0
      %v3347 = vadd.f32 0.0, %v3346
      %v3348 = vpop.f32.mrb[0].mxu0
      %3349 = vmatprep.mubr.bf16.mxu0 0
      %3350 = vmatmul.mubr.bf16.gmra.mrb[0].mxu0 %v709
      %v3351 = vpop.f32.mrb[0].mxu0
      %v3352 = vpop.f32.mrb[0].mxu0
      %v3353 = vpop.f32.mrb[0].mxu0
      %v3354 = vadd.f32 0.0, %v3353
      %v3355 = vpop.f32.mrb[0].mxu0
      %3356 = vmatprep.mubr.bf16.mxu0 0
      %3357 = vmatmul.mubr.bf16.gmra.mrb[0].mxu0 %v710
      %v3358 = vpop.f32.mrb[0].mxu0
      %v3359 = vadd.f32 0.0, %v3358
      %v3360 = vpop.f32.mrb[0].mxu0
      %v3361 = vpop.f32.mrb[0].mxu0
      %v3362 = vpop.f32.mrb[0].mxu0
      %3363 = vmatprep.mubr.bf16.mxu0 0
      %3364 = vmatmul.mubr.bf16.gmra.mrb[0].mxu0 %v3123
      %v3365 = vpop.f32.mrb[0].mxu0
      %v3366 = vadd.f32 0.0, %v3365
      %v3367 = vpop.f32.mrb[0].mxu0
      %v3368 = vpop.f32.mrb[0].mxu0
      %v3369 = vadd.f32 0.0, %v3368
      %v3370 = vpop.f32.mrb[0].mxu0
      %3371 = vmatprep.mubr.bf16.mxu0 0
      %3372 = vmatmul.mubr.bf16.gmra.mrb[0].mxu0 %v3124
      %v3373 = vpop.f32.mrb[0].mxu0
      %v3374 = vpop.f32.mrb[0].mxu0
      %v3375 = vpop.f32.mrb[0].mxu0
      %v3376 = vadd.f32 0.0, %v3375
      %v3377 = vpop.f32.mrb[0].mxu0
      %3378 = vmatprep.mubr.bf16.mxu0 0
      %3379 = vmatmul.mubr.bf16.gmra.mrb[0].mxu0 %v3125
      %v3380 = vpop.f32.mrb[0].mxu0
      %v3381 = vadd.f32 0.0, %v3380
      %v3382 = vpop.f32.mrb[0].mxu0
      %v3383 = vpop.f32.mrb[0].mxu0
      %v3384 = vpop.f32.mrb[0].mxu0
      %3385 = vdwg.mxu0
      %v3386 = vadd.f32 %v3075, %v3212
      %v3387 = vadd.f32 %v3076, %v3215
      %v3388 = vadd.f32 %v3077, %v3222
      %v3389 = vadd.f32 %v3078, %v3227
      %v3390 = vadd.f32 %v3079, %v3234
      %v3391 = vadd.f32 %v3080, %v3237
      %v3392 = vadd.f32 %v3081, %v3244
      %v3393 = vadd.f32 %v3082, %v3249
      %v3394 = vadd.f32 %v3083, %v3256
      %v3395 = vadd.f32 %v3084, %v3259
      %v3396 = vadd.f32 %v3085, %v3266
      %v3397 = vadd.f32 %v3086, %v3271
      %v3398 = vadd.f32 %v3087, %v3278
      %v3399 = vadd.f32 %v3088, %v3281
      %v3400 = vadd.f32 %v3089, %v3288
      %v3401 = vadd.f32 %v3090, %v3293
      %v3402 = vadd.f32 %v3091, %v3300
      %v3403 = vadd.f32 %v3092, %v3303
      %v3404 = vadd.f32 %v3093, %v3310
      %v3405 = vadd.f32 %v3094, %v3315
      %v3406 = vadd.f32 %v3095, %v3322
      %v3407 = vadd.f32 %v3096, %v3325
      %v3408 = vadd.f32 %v3097, %v3332
      %v3409 = vadd.f32 %v3098, %v3337
      %v3410 = vadd.f32 %v3099, %v3344
      %v3411 = vadd.f32 %v3100, %v3347
      %v3412 = vadd.f32 %v3101, %v3354
      %v3413 = vadd.f32 %v3102, %v3359
      %v3414 = vadd.f32 %v3103, %v3366
      %v3415 = vadd.f32 %v3104, %v3369
      %v3416 = vadd.f32 %v3105, %v3376
      %v3417 = vadd.f32 %v3106, %v3381
      %v3418 = vld [vmem:[%s260 + $0x1c0] sm:$0xf]
      %v3419 = vld [vmem:[%s260 + $0x1c4] sm:$0xf]
      %v3420 = vld [vmem:[%s260 + $0x1c8] sm:$0xf]
      %v3421 = vld [vmem:[%s260 + $0x1cc] sm:$0xf]
      %v3422 = vld [vmem:[%s260 + $0x1d0] sm:$0xf]
      %v3423 = vld [vmem:[%s260 + $0x1d4] sm:$0xf]
      %v3424 = vld [vmem:[%s260 + $0x1d8] sm:$0xf]
      %v3425 = vld [vmem:[%s260 + $0x1dc] sm:$0xf]
      %v3426 = vld [vmem:[%s260 + $0x1e0] sm:$0xf]
      %v3427 = vld [vmem:[%s260 + $0x1e4] sm:$0xf]
      %v3428 = vld [vmem:[%s260 + $0x1e8] sm:$0xf]
      %v3429 = vld [vmem:[%s260 + $0x1ec] sm:$0xf]
      %v3430 = vld [vmem:[%s260 + $0x1f0] sm:$0xf]
      %v3431 = vld [vmem:[%s260 + $0x1f4] sm:$0xf]
      %v3432 = vld [vmem:[%s260 + $0x1f8] sm:$0xf]
      %v3433 = vld [vmem:[%s260 + $0x1fc] sm:$0xf]
      %v3435 = vshll.u32 %v3123, 16
      %v3437 = vrot.slane %v3435, 1
      %v3438 = vsel %vm712, %v903, %v3437
      %v3439 = vshrl.u32 %v3123, 16
      %v3441 = vor.u32 %v3439, %v3437
      %v3443 = vshll.u32 %v3124, 16
      %v3445 = vrot.slane %v3443, 1
      %v3446 = vsel %vm712, %v3441, %v3445
      %v3447 = vshrl.u32 %v3124, 16
      %v3449 = vor.u32 %v3447, %v3445
      %v3451 = vshll.u32 %v3125, 16
      %v3453 = vrot.slane %v3451, 1
      %v3454 = vsel %vm712, %v3449, %v3453
      %v3455 = vshrl.u32 %v3125, 16
      %v3457 = vor.u32 %v3455, %v3453
      %v3458 = vsel %vm712, %v3457, %v2414
      %v3479 = vunpack.c.l.b16 %v3418
      %v3480 = vunpack.c.l.b16 %v3419
      %v3481 = vunpack.c.l.b16 %v3420
      %v3482 = vunpack.c.l.b16 %v3421
      %v3483 = vunpack.c.l.b16 %v3422
      %v3484 = vunpack.c.l.b16 %v3423
      %v3485 = vunpack.c.l.b16 %v3424
      %v3486 = vunpack.c.l.b16 %v3425
      %v3487 = vunpack.c.l.b16 %v3426
      %v3488 = vunpack.c.l.b16 %v3427
      %v3489 = vunpack.c.l.b16 %v3428
      %v3490 = vunpack.c.l.b16 %v3429
      %v3491 = vunpack.c.l.b16 %v3430
      %v3492 = vunpack.c.l.b16 %v3431
      %v3493 = vunpack.c.l.b16 %v3432
      %v3494 = vunpack.c.l.b16 %v3433
      %v3495 = vpack.c.b16 %v3480, %v3479
      %v3496 = vpack.c.b16 %v3482, %v3481
      %v3497 = vpack.c.b16 %v3484, %v3483
      %v3498 = vpack.c.b16 %v3486, %v3485
      %v3499 = vpack.c.b16 %v3488, %v3487
      %v3500 = vpack.c.b16 %v3490, %v3489
      %v3501 = vpack.c.b16 %v3492, %v3491
      %v3502 = vpack.c.b16 %v3494, %v3493
      %3511 = vmatprep.subr.bf16.mxu0 0
      %3512 = vmatpush1.bf16.msra.mxu0 %v3495
      %3513 = vmatprep.subr.bf16.mxu0 0
      %3514 = vmatpush1.bf16.msra.mxu0 %v3496
      %3515 = vmatprep.subr.bf16.mxu0 0
      %3516 = vmatpush1.bf16.msra.mxu0 %v3497
      %3517 = vmatprep.subr.bf16.mxu0 0
      %3518 = vmatpush1.bf16.msra.mxu0 %v3498
      %3519 = vmatprep.subr.bf16.mxu0 0
      %3520 = vmatpush1.bf16.msra.mxu0 %v3499
      %3521 = vmatprep.subr.bf16.mxu0 0
      %3522 = vmatpush1.bf16.msra.mxu0 %v3500
      %3523 = vmatprep.subr.bf16.mxu0 0
      %3524 = vmatpush1.bf16.msra.mxu0 %v3501
      %3525 = vmatprep.subr.bf16.mxu0 0
      %3526 = vmatpush1.bf16.msra.mxu0 %v3502
      %3527 = vmatprep.subr.bf16.mxu0 0
      %3528 = vmatpush1.bf16.msra.mxu0 0
      %3529 = vmatprep.subr.bf16.mxu0 0
      %3530 = vmatpush1.bf16.msra.mxu0 0
      %3531 = vmatprep.subr.bf16.mxu0 0
      %3532 = vmatpush1.bf16.msra.mxu0 0
      %3533 = vmatprep.subr.bf16.mxu0 0
      %3534 = vmatpush1.bf16.msra.mxu0 0
      %3535 = vmatprep.subr.bf16.mxu0 0
      %3536 = vmatpush1.bf16.msra.mxu0 0
      %3537 = vmatprep.subr.bf16.mxu0 0
      %3538 = vmatpush1.bf16.msra.mxu0 0
      %3539 = vmatprep.subr.bf16.mxu0 0
      %3540 = vmatpush1.bf16.msra.mxu0 0
      %3541 = vmatprep.subr.bf16.mxu0 0
      %3542 = vmatpush1.bf16.msra.mxu0 0
      %3543 = vmatprep.mubr.bf16.mxu0 0
      %3544 = vmatmul.mubr.bf16.gmra.mrb[0].mxu0 %v748
      %v3545 = vpop.f32.mrb[0].mxu0
      %v3546 = vadd.f32 0.0, %v3545
      %v3547 = vpop.f32.mrb[0].mxu0
      %v3548 = vpop.f32.mrb[0].mxu0
      %v3549 = vadd.f32 0.0, %v3548
      %v3550 = vpop.f32.mrb[0].mxu0
      %3551 = vmatprep.mubr.bf16.mxu0 0
      %3552 = vmatmul.mubr.bf16.gmra.mrb[0].mxu0 %v756
      %v3553 = vpop.f32.mrb[0].mxu0
      %v3554 = vpop.f32.mrb[0].mxu0
      %v3555 = vpop.f32.mrb[0].mxu0
      %v3556 = vadd.f32 0.0, %v3555
      %v3557 = vpop.f32.mrb[0].mxu0
      %3558 = vmatprep.mubr.bf16.mxu0 0
      %3559 = vmatmul.mubr.bf16.gmra.mrb[0].mxu0 %v764
      %v3560 = vpop.f32.mrb[0].mxu0
      %v3561 = vadd.f32 0.0, %v3560
      %v3562 = vpop.f32.mrb[0].mxu0
      %v3563 = vpop.f32.mrb[0].mxu0
      %v3564 = vpop.f32.mrb[0].mxu0
      %3565 = vmatprep.mubr.bf16.mxu0 0
      %3566 = vmatmul.mubr.bf16.gmra.mrb[0].mxu0 %v772
      %v3567 = vpop.f32.mrb[0].mxu0
      %v3568 = vadd.f32 0.0, %v3567
      %v3569 = vpop.f32.mrb[0].mxu0
      %v3570 = vpop.f32.mrb[0].mxu0
      %v3571 = vadd.f32 0.0, %v3570
      %v3572 = vpop.f32.mrb[0].mxu0
      %3573 = vmatprep.mubr.bf16.mxu0 0
      %3574 = vmatmul.mubr.bf16.gmra.mrb[0].mxu0 %v780
      %v3575 = vpop.f32.mrb[0].mxu0
      %v3576 = vpop.f32.mrb[0].mxu0
      %v3577 = vpop.f32.mrb[0].mxu0
      %v3578 = vadd.f32 0.0, %v3577
      %v3579 = vpop.f32.mrb[0].mxu0
      %3580 = vmatprep.mubr.bf16.mxu0 0
      %3581 = vmatmul.mubr.bf16.gmra.mrb[0].mxu0 %v788
      %v3582 = vpop.f32.mrb[0].mxu0
      %v3583 = vadd.f32 0.0, %v3582
      %v3584 = vpop.f32.mrb[0].mxu0
      %v3585 = vpop.f32.mrb[0].mxu0
      %v3586 = vpop.f32.mrb[0].mxu0
      %3587 = vmatprep.mubr.bf16.mxu0 0
      %3588 = vmatmul.mubr.bf16.gmra.mrb[0].mxu0 %v796
      %v3589 = vpop.f32.mrb[0].mxu0
      %v3590 = vadd.f32 0.0, %v3589
      %v3591 = vpop.f32.mrb[0].mxu0
      %v3592 = vpop.f32.mrb[0].mxu0
      %v3593 = vadd.f32 0.0, %v3592
      %v3594 = vpop.f32.mrb[0].mxu0
      %3595 = vmatprep.mubr.bf16.mxu0 0
      %3596 = vmatmul.mubr.bf16.gmra.mrb[0].mxu0 %v804
      %v3597 = vpop.f32.mrb[0].mxu0
      %v3598 = vpop.f32.mrb[0].mxu0
      %v3599 = vpop.f32.mrb[0].mxu0
      %v3600 = vadd.f32 0.0, %v3599
      %v3601 = vpop.f32.mrb[0].mxu0
      %3602 = vmatprep.mubr.bf16.mxu0 0
      %3603 = vmatmul.mubr.bf16.gmra.mrb[0].mxu0 %v812
      %v3604 = vpop.f32.mrb[0].mxu0
      %v3605 = vadd.f32 0.0, %v3604
      %v3606 = vpop.f32.mrb[0].mxu0
      %v3607 = vpop.f32.mrb[0].mxu0
      %v3608 = vpop.f32.mrb[0].mxu0
      %3609 = vmatprep.mubr.bf16.mxu0 0
      %3610 = vmatmul.mubr.bf16.gmra.mrb[0].mxu0 %v820
      %v3611 = vpop.f32.mrb[0].mxu0
      %v3612 = vadd.f32 0.0, %v3611
      %v3613 = vpop.f32.mrb[0].mxu0
      %v3614 = vpop.f32.mrb[0].mxu0
      %v3615 = vadd.f32 0.0, %v3614
      %v3616 = vpop.f32.mrb[0].mxu0
      %3617 = vmatprep.mubr.bf16.mxu0 0
      %3618 = vmatmul.mubr.bf16.gmra.mrb[0].mxu0 %v828
      %v3619 = vpop.f32.mrb[0].mxu0
      %v3620 = vpop.f32.mrb[0].mxu0
      %v3621 = vpop.f32.mrb[0].mxu0
      %v3622 = vadd.f32 0.0, %v3621
      %v3623 = vpop.f32.mrb[0].mxu0
      %3624 = vmatprep.mubr.bf16.mxu0 0
      %3625 = vmatmul.mubr.bf16.gmra.mrb[0].mxu0 %v836
      %v3626 = vpop.f32.mrb[0].mxu0
      %v3627 = vadd.f32 0.0, %v3626
      %v3628 = vpop.f32.mrb[0].mxu0
      %v3629 = vpop.f32.mrb[0].mxu0
      %v3630 = vpop.f32.mrb[0].mxu0
      %3631 = vmatprep.mubr.bf16.mxu0 0
      %3632 = vmatmul.mubr.bf16.gmra.mrb[0].mxu0 %v844
      %v3633 = vpop.f32.mrb[0].mxu0
      %v3634 = vadd.f32 0.0, %v3633
      %v3635 = vpop.f32.mrb[0].mxu0
      %v3636 = vpop.f32.mrb[0].mxu0
      %v3637 = vadd.f32 0.0, %v3636
      %v3638 = vpop.f32.mrb[0].mxu0
      %3639 = vmatprep.mubr.bf16.mxu0 0
      %3640 = vmatmul.mubr.bf16.gmra.mrb[0].mxu0 %v852
      %v3641 = vpop.f32.mrb[0].mxu0
      %v3642 = vpop.f32.mrb[0].mxu0
      %v3643 = vpop.f32.mrb[0].mxu0
      %v3644 = vadd.f32 0.0, %v3643
      %v3645 = vpop.f32.mrb[0].mxu0
      %3646 = vmatprep.mubr.bf16.mxu0 0
      %3647 = vmatmul.mubr.bf16.gmra.mrb[0].mxu0 %v860
      %v3648 = vpop.f32.mrb[0].mxu0
      %v3649 = vadd.f32 0.0, %v3648
      %v3650 = vpop.f32.mrb[0].mxu0
      %v3651 = vpop.f32.mrb[0].mxu0
      %v3652 = vpop.f32.mrb[0].mxu0
      %3653 = vmatprep.mubr.bf16.mxu0 0
      %3654 = vmatmul.mubr.bf16.gmra.mrb[0].mxu0 %v868
      %v3655 = vpop.f32.mrb[0].mxu0
      %v3656 = vadd.f32 0.0, %v3655
      %v3657 = vpop.f32.mrb[0].mxu0
      %v3658 = vpop.f32.mrb[0].mxu0
      %v3659 = vadd.f32 0.0, %v3658
      %v3660 = vpop.f32.mrb[0].mxu0
      %3661 = vmatprep.mubr.bf16.mxu0 0
      %3662 = vmatmul.mubr.bf16.gmra.mrb[0].mxu0 %v876
      %v3663 = vpop.f32.mrb[0].mxu0
      %v3664 = vpop.f32.mrb[0].mxu0
      %v3665 = vpop.f32.mrb[0].mxu0
      %v3666 = vadd.f32 0.0, %v3665
      %v3667 = vpop.f32.mrb[0].mxu0
      %3668 = vmatprep.mubr.bf16.mxu0 0
      %3669 = vmatmul.mubr.bf16.gmra.mrb[0].mxu0 %v884
      %v3670 = vpop.f32.mrb[0].mxu0
      %v3671 = vadd.f32 0.0, %v3670
      %v3672 = vpop.f32.mrb[0].mxu0
      %v3673 = vpop.f32.mrb[0].mxu0
      %v3674 = vpop.f32.mrb[0].mxu0
      %3675 = vmatprep.mubr.bf16.mxu0 0
      %3676 = vmatmul.mubr.bf16.gmra.mrb[0].mxu0 %v892
      %v3677 = vpop.f32.mrb[0].mxu0
      %v3678 = vadd.f32 0.0, %v3677
      %v3679 = vpop.f32.mrb[0].mxu0
      %v3680 = vpop.f32.mrb[0].mxu0
      %v3681 = vadd.f32 0.0, %v3680
      %v3682 = vpop.f32.mrb[0].mxu0
      %3683 = vmatprep.mubr.bf16.mxu0 0
      %3684 = vmatmul.mubr.bf16.gmra.mrb[0].mxu0 %v900
      %v3685 = vpop.f32.mrb[0].mxu0
      %v3686 = vpop.f32.mrb[0].mxu0
      %v3687 = vpop.f32.mrb[0].mxu0
      %v3688 = vadd.f32 0.0, %v3687
      %v3689 = vpop.f32.mrb[0].mxu0
      %3690 = vmatprep.mubr.bf16.mxu0 0
      %3691 = vmatmul.mubr.bf16.gmra.mrb[0].mxu0 %v3438
      %v3692 = vpop.f32.mrb[0].mxu0
      %v3693 = vadd.f32 0.0, %v3692
      %v3694 = vpop.f32.mrb[0].mxu0
      %v3695 = vpop.f32.mrb[0].mxu0
      %v3696 = vpop.f32.mrb[0].mxu0
      %3697 = vmatprep.mubr.bf16.mxu0 0
      %3698 = vmatmul.mubr.bf16.gmra.mrb[0].mxu0 %v3446
      %v3699 = vpop.f32.mrb[0].mxu0
      %v3700 = vadd.f32 0.0, %v3699
      %v3701 = vpop.f32.mrb[0].mxu0
      %v3702 = vpop.f32.mrb[0].mxu0
      %v3703 = vadd.f32 0.0, %v3702
      %v3704 = vpop.f32.mrb[0].mxu0
      %3705 = vmatprep.mubr.bf16.mxu0 0
      %3706 = vmatmul.mubr.bf16.gmra.mrb[0].mxu0 %v3454
      %v3707 = vpop.f32.mrb[0].mxu0
      %v3708 = vpop.f32.mrb[0].mxu0
      %v3709 = vpop.f32.mrb[0].mxu0
      %v3710 = vadd.f32 0.0, %v3709
      %v3711 = vpop.f32.mrb[0].mxu0
      %3712 = vmatprep.mubr.bf16.mxu0 0
      %3713 = vmatmul.mubr.bf16.gmra.mrb[0].mxu0 %v3458
      %v3714 = vpop.f32.mrb[0].mxu0
      %v3715 = vadd.f32 0.0, %v3714
      %v3716 = vpop.f32.mrb[0].mxu0
      %v3717 = vpop.f32.mrb[0].mxu0
      %v3718 = vpop.f32.mrb[0].mxu0
      %3719 = vdwg.mxu0
      %v3720 = vadd.f32 %v3386, %v3546
      %v3721 = vadd.f32 %v3387, %v3549
      %v3722 = vadd.f32 %v3388, %v3556
      %v3723 = vadd.f32 %v3389, %v3561
      %v3724 = vadd.f32 %v3390, %v3568
      %v3725 = vadd.f32 %v3391, %v3571
      %v3726 = vadd.f32 %v3392, %v3578
      %v3727 = vadd.f32 %v3393, %v3583
      %v3728 = vadd.f32 %v3394, %v3590
      %v3729 = vadd.f32 %v3395, %v3593
      %v3730 = vadd.f32 %v3396, %v3600
      %v3731 = vadd.f32 %v3397, %v3605
      %v3732 = vadd.f32 %v3398, %v3612
      %v3733 = vadd.f32 %v3399, %v3615
      %v3734 = vadd.f32 %v3400, %v3622
      %v3735 = vadd.f32 %v3401, %v3627
      %v3736 = vadd.f32 %v3402, %v3634
      %v3737 = vadd.f32 %v3403, %v3637
      %v3738 = vadd.f32 %v3404, %v3644
      %v3739 = vadd.f32 %v3405, %v3649
      %v3740 = vadd.f32 %v3406, %v3656
      %v3741 = vadd.f32 %v3407, %v3659
      %v3742 = vadd.f32 %v3408, %v3666
      %v3743 = vadd.f32 %v3409, %v3671
      %v3744 = vadd.f32 %v3410, %v3678
      %v3745 = vadd.f32 %v3411, %v3681
      %v3746 = vadd.f32 %v3412, %v3688
      %v3747 = vadd.f32 %v3413, %v3693
      %v3748 = vadd.f32 %v3414, %v3700
      %v3749 = vadd.f32 %v3415, %v3703
      %v3750 = vadd.f32 %v3416, %v3710
      %v3751 = vadd.f32 %v3417, %v3715
      %v3752 = vld [vmem:[%s260 + $0x200] sm:$0xf]
      %v3753 = vld [vmem:[%s260 + $0x204] sm:$0xf]
      %v3754 = vld [vmem:[%s260 + $0x208] sm:$0xf]
      %v3755 = vld [vmem:[%s260 + $0x20c] sm:$0xf]
      %v3756 = vld [vmem:[%s260 + $0x210] sm:$0xf]
      %v3757 = vld [vmem:[%s260 + $0x214] sm:$0xf]
      %v3758 = vld [vmem:[%s260 + $0x218] sm:$0xf]
      %v3759 = vld [vmem:[%s260 + $0x21c] sm:$0xf]
      %v3760 = vld [vmem:[%s260 + $0x220] sm:$0xf]
      %v3761 = vld [vmem:[%s260 + $0x224] sm:$0xf]
      %v3762 = vld [vmem:[%s260 + $0x228] sm:$0xf]
      %v3763 = vld [vmem:[%s260 + $0x22c] sm:$0xf]
      %v3764 = vld [vmem:[%s260 + $0x230] sm:$0xf]
      %v3765 = vld [vmem:[%s260 + $0x234] sm:$0xf]
      %v3766 = vld [vmem:[%s260 + $0x238] sm:$0xf]
      %v3767 = vld [vmem:[%s260 + $0x23c] sm:$0xf]
      %v3768 = vrot.slane %v3123, 1
      %v3769 = vsel %vm1487, %v1533, %v3768
      %v3770 = vrot.slane %v3124, 1
      %v3771 = vsel %vm1487, %v3768, %v3770
      %v3772 = vrot.slane %v3125, 1
      %v3773 = vsel %vm1487, %v3770, %v3772
      %v3774 = vsel %vm1487, %v3772, %v2792
      %v3795 = vunpack.c.l.b16 %v3752
      %v3796 = vunpack.c.l.b16 %v3753
      %v3797 = vunpack.c.l.b16 %v3754
      %v3798 = vunpack.c.l.b16 %v3755
      %v3799 = vunpack.c.l.b16 %v3756
      %v3800 = vunpack.c.l.b16 %v3757
      %v3801 = vunpack.c.l.b16 %v3758
      %v3802 = vunpack.c.l.b16 %v3759
      %v3803 = vunpack.c.l.b16 %v3760
      %v3804 = vunpack.c.l.b16 %v3761
      %v3805 = vunpack.c.l.b16 %v3762
      %v3806 = vunpack.c.l.b16 %v3763
      %v3807 = vunpack.c.l.b16 %v3764
      %v3808 = vunpack.c.l.b16 %v3765
      %v3809 = vunpack.c.l.b16 %v3766
      %v3810 = vunpack.c.l.b16 %v3767
      %v3811 = vpack.c.b16 %v3796, %v3795
      %v3812 = vpack.c.b16 %v3798, %v3797
      %v3813 = vpack.c.b16 %v3800, %v3799
      %v3814 = vpack.c.b16 %v3802, %v3801
      %v3815 = vpack.c.b16 %v3804, %v3803
      %v3816 = vpack.c.b16 %v3806, %v3805
      %v3817 = vpack.c.b16 %v3808, %v3807
      %v3818 = vpack.c.b16 %v3810, %v3809
      %3827 = vmatprep.subr.bf16.mxu0 0
      %3828 = vmatpush1.bf16.msra.mxu0 %v3811
      %3829 = vmatprep.subr.bf16.mxu0 0
      %3830 = vmatpush1.bf16.msra.mxu0 %v3812
      %3831 = vmatprep.subr.bf16.mxu0 0
      %3832 = vmatpush1.bf16.msra.mxu0 %v3813
      %3833 = vmatprep.subr.bf16.mxu0 0
      %3834 = vmatpush1.bf16.msra.mxu0 %v3814
      %3835 = vmatprep.subr.bf16.mxu0 0
      %3836 = vmatpush1.bf16.msra.mxu0 %v3815
      %3837 = vmatprep.subr.bf16.mxu0 0
      %3838 = vmatpush1.bf16.msra.mxu0 %v3816
      %3839 = vmatprep.subr.bf16.mxu0 0
      %3840 = vmatpush1.bf16.msra.mxu0 %v3817
      %3841 = vmatprep.subr.bf16.mxu0 0
      %3842 = vmatpush1.bf16.msra.mxu0 %v3818
      %3843 = vmatprep.subr.bf16.mxu0 0
      %3844 = vmatpush1.bf16.msra.mxu0 0
      %3845 = vmatprep.subr.bf16.mxu0 0
      %3846 = vmatpush1.bf16.msra.mxu0 0
      %3847 = vmatprep.subr.bf16.mxu0 0
      %3848 = vmatpush1.bf16.msra.mxu0 0
      %3849 = vmatprep.subr.bf16.mxu0 0
      %3850 = vmatpush1.bf16.msra.mxu0 0
      %3851 = vmatprep.subr.bf16.mxu0 0
      %3852 = vmatpush1.bf16.msra.mxu0 0
      %3853 = vmatprep.subr.bf16.mxu0 0
      %3854 = vmatpush1.bf16.msra.mxu0 0
      %3855 = vmatprep.subr.bf16.mxu0 0
      %3856 = vmatpush1.bf16.msra.mxu0 0
      %3857 = vmatprep.subr.bf16.mxu0 0
      %3858 = vmatpush1.bf16.msra.mxu0 0
      %3859 = vmatprep.mubr.bf16.mxu0 0
      %3860 = vmatmul.mubr.bf16.gmra.mrb[0].mxu0 %v1496
      %v3861 = vpop.f32.mrb[0].mxu0
      %v3862 = vadd.f32 0.0, %v3861
      %v3863 = vpop.f32.mrb[0].mxu0
      %v3864 = vpop.f32.mrb[0].mxu0
      %v3865 = vadd.f32 0.0, %v3864
      %v3866 = vpop.f32.mrb[0].mxu0
      %3867 = vmatprep.mubr.bf16.mxu0 0
      %3868 = vmatmul.mubr.bf16.gmra.mrb[0].mxu0 %v1498
      %v3869 = vpop.f32.mrb[0].mxu0
      %v3870 = vpop.f32.mrb[0].mxu0
      %v3871 = vpop.f32.mrb[0].mxu0
      %v3872 = vadd.f32 0.0, %v3871
      %v3873 = vpop.f32.mrb[0].mxu0
      %3874 = vmatprep.mubr.bf16.mxu0 0
      %3875 = vmatmul.mubr.bf16.gmra.mrb[0].mxu0 %v1500
      %v3876 = vpop.f32.mrb[0].mxu0
      %v3877 = vadd.f32 0.0, %v3876
      %v3878 = vpop.f32.mrb[0].mxu0
      %v3879 = vpop.f32.mrb[0].mxu0
      %v3880 = vpop.f32.mrb[0].mxu0
      %3881 = vmatprep.mubr.bf16.mxu0 0
      %3882 = vmatmul.mubr.bf16.gmra.mrb[0].mxu0 %v1502
      %v3883 = vpop.f32.mrb[0].mxu0
      %v3884 = vadd.f32 0.0, %v3883
      %v3885 = vpop.f32.mrb[0].mxu0
      %v3886 = vpop.f32.mrb[0].mxu0
      %v3887 = vadd.f32 0.0, %v3886
      %v3888 = vpop.f32.mrb[0].mxu0
      %3889 = vmatprep.mubr.bf16.mxu0 0
      %3890 = vmatmul.mubr.bf16.gmra.mrb[0].mxu0 %v1504
      %v3891 = vpop.f32.mrb[0].mxu0
      %v3892 = vpop.f32.mrb[0].mxu0
      %v3893 = vpop.f32.mrb[0].mxu0
      %v3894 = vadd.f32 0.0, %v3893
      %v3895 = vpop.f32.mrb[0].mxu0
      %3896 = vmatprep.mubr.bf16.mxu0 0
      %3897 = vmatmul.mubr.bf16.gmra.mrb[0].mxu0 %v1506
      %v3898 = vpop.f32.mrb[0].mxu0
      %v3899 = vadd.f32 0.0, %v3898
      %v3900 = vpop.f32.mrb[0].mxu0
      %v3901 = vpop.f32.mrb[0].mxu0
      %v3902 = vpop.f32.mrb[0].mxu0
      %3903 = vmatprep.mubr.bf16.mxu0 0
      %3904 = vmatmul.mubr.bf16.gmra.mrb[0].mxu0 %v1508
      %v3905 = vpop.f32.mrb[0].mxu0
      %v3906 = vadd.f32 0.0, %v3905
      %v3907 = vpop.f32.mrb[0].mxu0
      %v3908 = vpop.f32.mrb[0].mxu0
      %v3909 = vadd.f32 0.0, %v3908
      %v3910 = vpop.f32.mrb[0].mxu0
      %3911 = vmatprep.mubr.bf16.mxu0 0
      %3912 = vmatmul.mubr.bf16.gmra.mrb[0].mxu0 %v1510
      %v3913 = vpop.f32.mrb[0].mxu0
      %v3914 = vpop.f32.mrb[0].mxu0
      %v3915 = vpop.f32.mrb[0].mxu0
      %v3916 = vadd.f32 0.0, %v3915
      %v3917 = vpop.f32.mrb[0].mxu0
      %3918 = vmatprep.mubr.bf16.mxu0 0
      %3919 = vmatmul.mubr.bf16.gmra.mrb[0].mxu0 %v1512
      %v3920 = vpop.f32.mrb[0].mxu0
      %v3921 = vadd.f32 0.0, %v3920
      %v3922 = vpop.f32.mrb[0].mxu0
      %v3923 = vpop.f32.mrb[0].mxu0
      %v3924 = vpop.f32.mrb[0].mxu0
      %3925 = vmatprep.mubr.bf16.mxu0 0
      %3926 = vmatmul.mubr.bf16.gmra.mrb[0].mxu0 %v1514
      %v3927 = vpop.f32.mrb[0].mxu0
      %v3928 = vadd.f32 0.0, %v3927
      %v3929 = vpop.f32.mrb[0].mxu0
      %v3930 = vpop.f32.mrb[0].mxu0
      %v3931 = vadd.f32 0.0, %v3930
      %v3932 = vpop.f32.mrb[0].mxu0
      %3933 = vmatprep.mubr.bf16.mxu0 0
      %3934 = vmatmul.mubr.bf16.gmra.mrb[0].mxu0 %v1516
      %v3935 = vpop.f32.mrb[0].mxu0
      %v3936 = vpop.f32.mrb[0].mxu0
      %v3937 = vpop.f32.mrb[0].mxu0
      %v3938 = vadd.f32 0.0, %v3937
      %v3939 = vpop.f32.mrb[0].mxu0
      %3940 = vmatprep.mubr.bf16.mxu0 0
      %3941 = vmatmul.mubr.bf16.gmra.mrb[0].mxu0 %v1518
      %v3942 = vpop.f32.mrb[0].mxu0
      %v3943 = vadd.f32 0.0, %v3942
      %v3944 = vpop.f32.mrb[0].mxu0
      %v3945 = vpop.f32.mrb[0].mxu0
      %v3946 = vpop.f32.mrb[0].mxu0
      %3947 = vmatprep.mubr.bf16.mxu0 0
      %3948 = vmatmul.mubr.bf16.gmra.mrb[0].mxu0 %v1520
      %v3949 = vpop.f32.mrb[0].mxu0
      %v3950 = vadd.f32 0.0, %v3949
      %v3951 = vpop.f32.mrb[0].mxu0
      %v3952 = vpop.f32.mrb[0].mxu0
      %v3953 = vadd.f32 0.0, %v3952
      %v3954 = vpop.f32.mrb[0].mxu0
      %3955 = vmatprep.mubr.bf16.mxu0 0
      %3956 = vmatmul.mubr.bf16.gmra.mrb[0].mxu0 %v1522
      %v3957 = vpop.f32.mrb[0].mxu0
      %v3958 = vpop.f32.mrb[0].mxu0
      %v3959 = vpop.f32.mrb[0].mxu0
      %v3960 = vadd.f32 0.0, %v3959
      %v3961 = vpop.f32.mrb[0].mxu0
      %3962 = vmatprep.mubr.bf16.mxu0 0
      %3963 = vmatmul.mubr.bf16.gmra.mrb[0].mxu0 %v1524
      %v3964 = vpop.f32.mrb[0].mxu0
      %v3965 = vadd.f32 0.0, %v3964
      %v3966 = vpop.f32.mrb[0].mxu0
      %v3967 = vpop.f32.mrb[0].mxu0
      %v3968 = vpop.f32.mrb[0].mxu0
      %3969 = vmatprep.mubr.bf16.mxu0 0
      %3970 = vmatmul.mubr.bf16.gmra.mrb[0].mxu0 %v1526
      %v3971 = vpop.f32.mrb[0].mxu0
      %v3972 = vadd.f32 0.0, %v3971
      %v3973 = vpop.f32.mrb[0].mxu0
      %v3974 = vpop.f32.mrb[0].mxu0
      %v3975 = vadd.f32 0.0, %v3974
      %v3976 = vpop.f32.mrb[0].mxu0
      %3977 = vmatprep.mubr.bf16.mxu0 0
      %3978 = vmatmul.mubr.bf16.gmra.mrb[0].mxu0 %v1528
      %v3979 = vpop.f32.mrb[0].mxu0
      %v3980 = vpop.f32.mrb[0].mxu0
      %v3981 = vpop.f32.mrb[0].mxu0
      %v3982 = vadd.f32 0.0, %v3981
      %v3983 = vpop.f32.mrb[0].mxu0
      %3984 = vmatprep.mubr.bf16.mxu0 0
      %3985 = vmatmul.mubr.bf16.gmra.mrb[0].mxu0 %v1530
      %v3986 = vpop.f32.mrb[0].mxu0
      %v3987 = vadd.f32 0.0, %v3986
      %v3988 = vpop.f32.mrb[0].mxu0
      %v3989 = vpop.f32.mrb[0].mxu0
      %v3990 = vpop.f32.mrb[0].mxu0
      %3991 = vmatprep.mubr.bf16.mxu0 0
      %3992 = vmatmul.mubr.bf16.gmra.mrb[0].mxu0 %v1532
      %v3993 = vpop.f32.mrb[0].mxu0
      %v3994 = vadd.f32 0.0, %v3993
      %v3995 = vpop.f32.mrb[0].mxu0
      %v3996 = vpop.f32.mrb[0].mxu0
      %v3997 = vadd.f32 0.0, %v3996
      %v3998 = vpop.f32.mrb[0].mxu0
      %3999 = vmatprep.mubr.bf16.mxu0 0
      %4000 = vmatmul.mubr.bf16.gmra.mrb[0].mxu0 %v1534
      %v4001 = vpop.f32.mrb[0].mxu0
      %v4002 = vpop.f32.mrb[0].mxu0
      %v4003 = vpop.f32.mrb[0].mxu0
      %v4004 = vadd.f32 0.0, %v4003
      %v4005 = vpop.f32.mrb[0].mxu0
      %4006 = vmatprep.mubr.bf16.mxu0 0
      %4007 = vmatmul.mubr.bf16.gmra.mrb[0].mxu0 %v3769
      %v4008 = vpop.f32.mrb[0].mxu0
      %v4009 = vadd.f32 0.0, %v4008
      %v4010 = vpop.f32.mrb[0].mxu0
      %v4011 = vpop.f32.mrb[0].mxu0
      %v4012 = vpop.f32.mrb[0].mxu0
      %4013 = vmatprep.mubr.bf16.mxu0 0
      %4014 = vmatmul.mubr.bf16.gmra.mrb[0].mxu0 %v3771
      %v4015 = vpop.f32.mrb[0].mxu0
      %v4016 = vadd.f32 0.0, %v4015
      %v4017 = vpop.f32.mrb[0].mxu0
      %v4018 = vpop.f32.mrb[0].mxu0
      %v4019 = vadd.f32 0.0, %v4018
      %v4020 = vpop.f32.mrb[0].mxu0
      %4021 = vmatprep.mubr.bf16.mxu0 0
      %4022 = vmatmul.mubr.bf16.gmra.mrb[0].mxu0 %v3773
      %v4023 = vpop.f32.mrb[0].mxu0
      %v4024 = vpop.f32.mrb[0].mxu0
      %v4025 = vpop.f32.mrb[0].mxu0
      %v4026 = vadd.f32 0.0, %v4025
      %v4027 = vpop.f32.mrb[0].mxu0
      %4028 = vmatprep.mubr.bf16.mxu0 0
      %4029 = vmatmul.mubr.bf16.gmra.mrb[0].mxu0 %v3774
      %v4030 = vpop.f32.mrb[0].mxu0
      %v4031 = vadd.f32 0.0, %v4030
      %v4032 = vpop.f32.mrb[0].mxu0
      %v4033 = vpop.f32.mrb[0].mxu0
      %v4034 = vpop.f32.mrb[0].mxu0
      %4035 = vdwg.mxu0
      %v4036 = vadd.f32 %v3720, %v3862
      %v4037 = vadd.f32 %v3721, %v3865
      %v4038 = vadd.f32 %v3722, %v3872
      %v4039 = vadd.f32 %v3723, %v3877
      %v4040 = vadd.f32 %v3724, %v3884
      %v4041 = vadd.f32 %v3725, %v3887
      %v4042 = vadd.f32 %v3726, %v3894
      %v4043 = vadd.f32 %v3727, %v3899
      %v4044 = vadd.f32 %v3728, %v3906
      %v4045 = vadd.f32 %v3729, %v3909
      %v4046 = vadd.f32 %v3730, %v3916
      %v4047 = vadd.f32 %v3731, %v3921
      %v4048 = vadd.f32 %v3732, %v3928
      %v4049 = vadd.f32 %v3733, %v3931
      %v4050 = vadd.f32 %v3734, %v3938
      %v4051 = vadd.f32 %v3735, %v3943
      %v4052 = vadd.f32 %v3736, %v3950
      %v4053 = vadd.f32 %v3737, %v3953
      %v4054 = vadd.f32 %v3738, %v3960
      %v4055 = vadd.f32 %v3739, %v3965
      %v4056 = vadd.f32 %v3740, %v3972
      %v4057 = vadd.f32 %v3741, %v3975
      %v4058 = vadd.f32 %v3742, %v3982
      %v4059 = vadd.f32 %v3743, %v3987
      %v4060 = vadd.f32 %v3744, %v3994
      %v4061 = vadd.f32 %v3745, %v3997
      %v4062 = vadd.f32 %v3746, %v4004
      %v4063 = vadd.f32 %v3747, %v4009
      %v4064 = vadd.f32 %v3748, %v4016
      %v4065 = vadd.f32 %v3749, %v4019
      %v4066 = vadd.f32 %v3750, %v4026
      %v4067 = vadd.f32 %v3751, %v4031
      %v4068 = vld [vmem:[%s263] sm:$0x1]
      %v4070 = vlaneseq
      %v4071 = vshrl.u32 %v4070, 7
      %v4072 = vsub.s32 0, %v4071
      %v4073 = vrot.slane %v4068, %v4072
      %v4075 = vadd.f32 %v4036, %v4073
      %v4076 = vadd.f32 %v4037, %v4073
      %v4077 = vadd.f32 %v4038, %v4073
      %v4078 = vadd.f32 %v4039, %v4073
      %v4079 = vadd.f32 %v4040, %v4073
      %v4080 = vadd.f32 %v4041, %v4073
      %v4081 = vadd.f32 %v4042, %v4073
      %v4082 = vadd.f32 %v4043, %v4073
      %v4083 = vadd.f32 %v4044, %v4073
      %v4084 = vadd.f32 %v4045, %v4073
      %v4085 = vadd.f32 %v4046, %v4073
      %v4086 = vadd.f32 %v4047, %v4073
      %v4087 = vadd.f32 %v4048, %v4073
      %v4088 = vadd.f32 %v4049, %v4073
      %v4089 = vadd.f32 %v4050, %v4073
      %v4090 = vadd.f32 %v4051, %v4073
      %v4091 = vadd.f32 %v4052, %v4073
      %v4092 = vadd.f32 %v4053, %v4073
      %v4093 = vadd.f32 %v4054, %v4073
      %v4094 = vadd.f32 %v4055, %v4073
      %v4095 = vadd.f32 %v4056, %v4073
      %v4096 = vadd.f32 %v4057, %v4073
      %v4097 = vadd.f32 %v4058, %v4073
      %v4098 = vadd.f32 %v4059, %v4073
      %v4099 = vadd.f32 %v4060, %v4073
      %v4100 = vadd.f32 %v4061, %v4073
      %v4101 = vadd.f32 %v4062, %v4073
      %v4102 = vadd.f32 %v4063, %v4073
      %v4103 = vadd.f32 %v4064, %v4073
      %v4104 = vadd.f32 %v4065, %v4073
      %v4105 = vadd.f32 %v4066, %v4073
      %v4106 = vadd.f32 %v4067, %v4073
      %v4139 = vcombine.high %v4075, %v4075
      %v4141 = vunpack.c.l.s4 1983009808
      %v4142 = vunpack.c.0.s8 %v4141
      %v4143 = vlaneseq
      %v4144 = vshrl.u32 %v4143, 7
      %v4145 = vsub.s32 %v4142, %v4144
      %v4146 = vrot.slane %v4075, %v4145
      %v4148 = vunpack.c.l.s4 1983009808
      %v4149 = vunpack.c.0.s8 %v4148
      %v4150 = vlaneseq
      %v4151 = vshrl.u32 %v4150, 7
      %v4152 = vsub.s32 %v4149, %v4151
      %v4153 = vrot.slane %v4139, %v4152
      %v4154 = vcombine.high %v4146, %v4146
      %v4155 = vcombine.high %v4153, %v4153
      %v4156 = vcombine.high %v4076, %v4076
      %v4158 = vunpack.c.l.s4 1983009808
      %v4159 = vunpack.c.0.s8 %v4158
      %v4160 = vlaneseq
      %v4161 = vshrl.u32 %v4160, 7
      %v4162 = vsub.s32 %v4159, %v4161
      %v4163 = vrot.slane %v4076, %v4162
      %v4165 = vunpack.c.l.s4 1983009808
      %v4166 = vunpack.c.0.s8 %v4165
      %v4167 = vlaneseq
      %v4168 = vshrl.u32 %v4167, 7
      %v4169 = vsub.s32 %v4166, %v4168
      %v4170 = vrot.slane %v4156, %v4169
      %v4171 = vcombine.high %v4163, %v4163
      %v4172 = vcombine.high %v4170, %v4170
      %v4173 = vcombine.high %v4077, %v4077
      %v4175 = vunpack.c.l.s4 1983009808
      %v4176 = vunpack.c.0.s8 %v4175
      %v4177 = vlaneseq
      %v4178 = vshrl.u32 %v4177, 7
      %v4179 = vsub.s32 %v4176, %v4178
      %v4180 = vrot.slane %v4077, %v4179
      %v4182 = vunpack.c.l.s4 1983009808
      %v4183 = vunpack.c.0.s8 %v4182
      %v4184 = vlaneseq
      %v4185 = vshrl.u32 %v4184, 7
      %v4186 = vsub.s32 %v4183, %v4185
      %v4187 = vrot.slane %v4173, %v4186
      %v4188 = vcombine.high %v4180, %v4180
      %v4189 = vcombine.high %v4187, %v4187
      %v4190 = vcombine.high %v4078, %v4078
      %v4192 = vunpack.c.l.s4 1983009808
      %v4193 = vunpack.c.0.s8 %v4192
      %v4194 = vlaneseq
      %v4195 = vshrl.u32 %v4194, 7
      %v4196 = vsub.s32 %v4193, %v4195
      %v4197 = vrot.slane %v4078, %v4196
      %v4199 = vunpack.c.l.s4 1983009808
      %v4200 = vunpack.c.0.s8 %v4199
      %v4201 = vlaneseq
      %v4202 = vshrl.u32 %v4201, 7
      %v4203 = vsub.s32 %v4200, %v4202
      %v4204 = vrot.slane %v4190, %v4203
      %v4205 = vcombine.high %v4197, %v4197
      %v4206 = vcombine.high %v4204, %v4204
      %v4207 = vcombine.high %v4079, %v4079
      %v4209 = vunpack.c.l.s4 1983009808
      %v4210 = vunpack.c.0.s8 %v4209
      %v4211 = vlaneseq
      %v4212 = vshrl.u32 %v4211, 7
      %v4213 = vsub.s32 %v4210, %v4212
      %v4214 = vrot.slane %v4079, %v4213
      %v4216 = vunpack.c.l.s4 1983009808
      %v4217 = vunpack.c.0.s8 %v4216
      %v4218 = vlaneseq
      %v4219 = vshrl.u32 %v4218, 7
      %v4220 = vsub.s32 %v4217, %v4219
      %v4221 = vrot.slane %v4207, %v4220
      %v4222 = vcombine.high %v4214, %v4214
      %v4223 = vcombine.high %v4221, %v4221
      %v4224 = vcombine.high %v4080, %v4080
      %v4226 = vunpack.c.l.s4 1983009808
      %v4227 = vunpack.c.0.s8 %v4226
      %v4228 = vlaneseq
      %v4229 = vshrl.u32 %v4228, 7
      %v4230 = vsub.s32 %v4227, %v4229
      %v4231 = vrot.slane %v4080, %v4230
      %v4233 = vunpack.c.l.s4 1983009808
      %v4234 = vunpack.c.0.s8 %v4233
      %v4235 = vlaneseq
      %v4236 = vshrl.u32 %v4235, 7
      %v4237 = vsub.s32 %v4234, %v4236
      %v4238 = vrot.slane %v4224, %v4237
      %v4239 = vcombine.high %v4231, %v4231
      %v4240 = vcombine.high %v4238, %v4238
      %v4241 = vcombine.high %v4081, %v4081
      %v4243 = vunpack.c.l.s4 1983009808
      %v4244 = vunpack.c.0.s8 %v4243
      %v4245 = vlaneseq
      %v4246 = vshrl.u32 %v4245, 7
      %v4247 = vsub.s32 %v4244, %v4246
      %v4248 = vrot.slane %v4081, %v4247
      %v4250 = vunpack.c.l.s4 1983009808
      %v4251 = vunpack.c.0.s8 %v4250
      %v4252 = vlaneseq
      %v4253 = vshrl.u32 %v4252, 7
      %v4254 = vsub.s32 %v4251, %v4253
      %v4255 = vrot.slane %v4241, %v4254
      %v4256 = vcombine.high %v4248, %v4248
      %v4257 = vcombine.high %v4255, %v4255
      %v4258 = vcombine.high %v4082, %v4082
      %v4260 = vunpack.c.l.s4 1983009808
      %v4261 = vunpack.c.0.s8 %v4260
      %v4262 = vlaneseq
      %v4263 = vshrl.u32 %v4262, 7
      %v4264 = vsub.s32 %v4261, %v4263
      %v4265 = vrot.slane %v4082, %v4264
      %v4267 = vunpack.c.l.s4 1983009808
      %v4268 = vunpack.c.0.s8 %v4267
      %v4269 = vlaneseq
      %v4270 = vshrl.u32 %v4269, 7
      %v4271 = vsub.s32 %v4268, %v4270
      %v4272 = vrot.slane %v4258, %v4271
      %v4273 = vcombine.high %v4265, %v4265
      %v4274 = vcombine.high %v4272, %v4272
      %v4275 = vcombine.high %v4083, %v4083
      %v4277 = vunpack.c.l.s4 1983009808
      %v4278 = vunpack.c.0.s8 %v4277
      %v4279 = vlaneseq
      %v4280 = vshrl.u32 %v4279, 7
      %v4281 = vsub.s32 %v4278, %v4280
      %v4282 = vrot.slane %v4083, %v4281
      %v4284 = vunpack.c.l.s4 1983009808
      %v4285 = vunpack.c.0.s8 %v4284
      %v4286 = vlaneseq
      %v4287 = vshrl.u32 %v4286, 7
      %v4288 = vsub.s32 %v4285, %v4287
      %v4289 = vrot.slane %v4275, %v4288
      %v4290 = vcombine.high %v4282, %v4282
      %v4291 = vcombine.high %v4289, %v4289
      %v4292 = vcombine.high %v4084, %v4084
      %v4294 = vunpack.c.l.s4 1983009808
      %v4295 = vunpack.c.0.s8 %v4294
      %v4296 = vlaneseq
      %v4297 = vshrl.u32 %v4296, 7
      %v4298 = vsub.s32 %v4295, %v4297
      %v4299 = vrot.slane %v4084, %v4298
      %v4301 = vunpack.c.l.s4 1983009808
      %v4302 = vunpack.c.0.s8 %v4301
      %v4303 = vlaneseq
      %v4304 = vshrl.u32 %v4303, 7
      %v4305 = vsub.s32 %v4302, %v4304
      %v4306 = vrot.slane %v4292, %v4305
      %v4307 = vcombine.high %v4299, %v4299
      %v4308 = vcombine.high %v4306, %v4306
      %v4309 = vcombine.high %v4085, %v4085
      %v4311 = vunpack.c.l.s4 1983009808
      %v4312 = vunpack.c.0.s8 %v4311
      %v4313 = vlaneseq
      %v4314 = vshrl.u32 %v4313, 7
      %v4315 = vsub.s32 %v4312, %v4314
      %v4316 = vrot.slane %v4085, %v4315
      %v4318 = vunpack.c.l.s4 1983009808
      %v4319 = vunpack.c.0.s8 %v4318
      %v4320 = vlaneseq
      %v4321 = vshrl.u32 %v4320, 7
      %v4322 = vsub.s32 %v4319, %v4321
      %v4323 = vrot.slane %v4309, %v4322
      %v4324 = vcombine.high %v4316, %v4316
      %v4325 = vcombine.high %v4323, %v4323
      %v4326 = vcombine.high %v4086, %v4086
      %v4328 = vunpack.c.l.s4 1983009808
      %v4329 = vunpack.c.0.s8 %v4328
      %v4330 = vlaneseq
      %v4331 = vshrl.u32 %v4330, 7
      %v4332 = vsub.s32 %v4329, %v4331
      %v4333 = vrot.slane %v4086, %v4332
      %v4335 = vunpack.c.l.s4 1983009808
      %v4336 = vunpack.c.0.s8 %v4335
      %v4337 = vlaneseq
      %v4338 = vshrl.u32 %v4337, 7
      %v4339 = vsub.s32 %v4336, %v4338
      %v4340 = vrot.slane %v4326, %v4339
      %v4341 = vcombine.high %v4333, %v4333
      %v4342 = vcombine.high %v4340, %v4340
      %v4343 = vcombine.high %v4087, %v4087
      %v4345 = vunpack.c.l.s4 1983009808
      %v4346 = vunpack.c.0.s8 %v4345
      %v4347 = vlaneseq
      %v4348 = vshrl.u32 %v4347, 7
      %v4349 = vsub.s32 %v4346, %v4348
      %v4350 = vrot.slane %v4087, %v4349
      %v4352 = vunpack.c.l.s4 1983009808
      %v4353 = vunpack.c.0.s8 %v4352
      %v4354 = vlaneseq
      %v4355 = vshrl.u32 %v4354, 7
      %v4356 = vsub.s32 %v4353, %v4355
      %v4357 = vrot.slane %v4343, %v4356
      %v4358 = vcombine.high %v4350, %v4350
      %v4359 = vcombine.high %v4357, %v4357
      %v4360 = vcombine.high %v4088, %v4088
      %v4362 = vunpack.c.l.s4 1983009808
      %v4363 = vunpack.c.0.s8 %v4362
      %v4364 = vlaneseq
      %v4365 = vshrl.u32 %v4364, 7
      %v4366 = vsub.s32 %v4363, %v4365
      %v4367 = vrot.slane %v4088, %v4366
      %v4369 = vunpack.c.l.s4 1983009808
      %v4370 = vunpack.c.0.s8 %v4369
      %v4371 = vlaneseq
      %v4372 = vshrl.u32 %v4371, 7
      %v4373 = vsub.s32 %v4370, %v4372
      %v4374 = vrot.slane %v4360, %v4373
      %v4375 = vcombine.high %v4367, %v4367
      %v4376 = vcombine.high %v4374, %v4374
      %v4377 = vcombine.high %v4089, %v4089
      %v4379 = vunpack.c.l.s4 1983009808
      %v4380 = vunpack.c.0.s8 %v4379
      %v4381 = vlaneseq
      %v4382 = vshrl.u32 %v4381, 7
      %v4383 = vsub.s32 %v4380, %v4382
      %v4384 = vrot.slane %v4089, %v4383
      %v4386 = vunpack.c.l.s4 1983009808
      %v4387 = vunpack.c.0.s8 %v4386
      %v4388 = vlaneseq
      %v4389 = vshrl.u32 %v4388, 7
      %v4390 = vsub.s32 %v4387, %v4389
      %v4391 = vrot.slane %v4377, %v4390
      %v4392 = vcombine.high %v4384, %v4384
      %v4393 = vcombine.high %v4391, %v4391
      %v4394 = vcombine.high %v4090, %v4090
      %v4396 = vunpack.c.l.s4 1983009808
      %v4397 = vunpack.c.0.s8 %v4396
      %v4398 = vlaneseq
      %v4399 = vshrl.u32 %v4398, 7
      %v4400 = vsub.s32 %v4397, %v4399
      %v4401 = vrot.slane %v4090, %v4400
      %v4403 = vunpack.c.l.s4 1983009808
      %v4404 = vunpack.c.0.s8 %v4403
      %v4405 = vlaneseq
      %v4406 = vshrl.u32 %v4405, 7
      %v4407 = vsub.s32 %v4404, %v4406
      %v4408 = vrot.slane %v4394, %v4407
      %v4409 = vcombine.high %v4401, %v4401
      %v4410 = vcombine.high %v4408, %v4408
      %v4411 = vcombine.high %v4091, %v4091
      %v4413 = vunpack.c.l.s4 1983009808
      %v4414 = vunpack.c.0.s8 %v4413
      %v4415 = vlaneseq
      %v4416 = vshrl.u32 %v4415, 7
      %v4417 = vsub.s32 %v4414, %v4416
      %v4418 = vrot.slane %v4091, %v4417
      %v4420 = vunpack.c.l.s4 1983009808
      %v4421 = vunpack.c.0.s8 %v4420
      %v4422 = vlaneseq
      %v4423 = vshrl.u32 %v4422, 7
      %v4424 = vsub.s32 %v4421, %v4423
      %v4425 = vrot.slane %v4411, %v4424
      %v4426 = vcombine.high %v4418, %v4418
      %v4427 = vcombine.high %v4425, %v4425
      %v4428 = vcombine.high %v4092, %v4092
      %v4430 = vunpack.c.l.s4 1983009808
      %v4431 = vunpack.c.0.s8 %v4430
      %v4432 = vlaneseq
      %v4433 = vshrl.u32 %v4432, 7
      %v4434 = vsub.s32 %v4431, %v4433
      %v4435 = vrot.slane %v4092, %v4434
      %v4437 = vunpack.c.l.s4 1983009808
      %v4438 = vunpack.c.0.s8 %v4437
      %v4439 = vlaneseq
      %v4440 = vshrl.u32 %v4439, 7
      %v4441 = vsub.s32 %v4438, %v4440
      %v4442 = vrot.slane %v4428, %v4441
      %v4443 = vcombine.high %v4435, %v4435
      %v4444 = vcombine.high %v4442, %v4442
      %v4445 = vcombine.high %v4093, %v4093
      %v4447 = vunpack.c.l.s4 1983009808
      %v4448 = vunpack.c.0.s8 %v4447
      %v4449 = vlaneseq
      %v4450 = vshrl.u32 %v4449, 7
      %v4451 = vsub.s32 %v4448, %v4450
      %v4452 = vrot.slane %v4093, %v4451
      %v4454 = vunpack.c.l.s4 1983009808
      %v4455 = vunpack.c.0.s8 %v4454
      %v4456 = vlaneseq
      %v4457 = vshrl.u32 %v4456, 7
      %v4458 = vsub.s32 %v4455, %v4457
      %v4459 = vrot.slane %v4445, %v4458
      %v4460 = vcombine.high %v4452, %v4452
      %v4461 = vcombine.high %v4459, %v4459
      %v4462 = vcombine.high %v4094, %v4094
      %v4464 = vunpack.c.l.s4 1983009808
      %v4465 = vunpack.c.0.s8 %v4464
      %v4466 = vlaneseq
      %v4467 = vshrl.u32 %v4466, 7
      %v4468 = vsub.s32 %v4465, %v4467
      %v4469 = vrot.slane %v4094, %v4468
      %v4471 = vunpack.c.l.s4 1983009808
      %v4472 = vunpack.c.0.s8 %v4471
      %v4473 = vlaneseq
      %v4474 = vshrl.u32 %v4473, 7
      %v4475 = vsub.s32 %v4472, %v4474
      %v4476 = vrot.slane %v4462, %v4475
      %v4477 = vcombine.high %v4469, %v4469
      %v4478 = vcombine.high %v4476, %v4476
      %v4479 = vcombine.high %v4095, %v4095
      %v4481 = vunpack.c.l.s4 1983009808
      %v4482 = vunpack.c.0.s8 %v4481
      %v4483 = vlaneseq
      %v4484 = vshrl.u32 %v4483, 7
      %v4485 = vsub.s32 %v4482, %v4484
      %v4486 = vrot.slane %v4095, %v4485
      %v4488 = vunpack.c.l.s4 1983009808
      %v4489 = vunpack.c.0.s8 %v4488
      %v4490 = vlaneseq
      %v4491 = vshrl.u32 %v4490, 7
      %v4492 = vsub.s32 %v4489, %v4491
      %v4493 = vrot.slane %v4479, %v4492
      %v4494 = vcombine.high %v4486, %v4486
      %v4495 = vcombine.high %v4493, %v4493
      %v4496 = vcombine.high %v4096, %v4096
      %v4498 = vunpack.c.l.s4 1983009808
      %v4499 = vunpack.c.0.s8 %v4498
      %v4500 = vlaneseq
      %v4501 = vshrl.u32 %v4500, 7
      %v4502 = vsub.s32 %v4499, %v4501
      %v4503 = vrot.slane %v4096, %v4502
      %v4505 = vunpack.c.l.s4 1983009808
      %v4506 = vunpack.c.0.s8 %v4505
      %v4507 = vlaneseq
      %v4508 = vshrl.u32 %v4507, 7
      %v4509 = vsub.s32 %v4506, %v4508
      %v4510 = vrot.slane %v4496, %v4509
      %v4511 = vcombine.high %v4503, %v4503
      %v4512 = vcombine.high %v4510, %v4510
      %v4513 = vcombine.high %v4097, %v4097
      %v4515 = vunpack.c.l.s4 1983009808
      %v4516 = vunpack.c.0.s8 %v4515
      %v4517 = vlaneseq
      %v4518 = vshrl.u32 %v4517, 7
      %v4519 = vsub.s32 %v4516, %v4518
      %v4520 = vrot.slane %v4097, %v4519
      %v4522 = vunpack.c.l.s4 1983009808
      %v4523 = vunpack.c.0.s8 %v4522
      %v4524 = vlaneseq
      %v4525 = vshrl.u32 %v4524, 7
      %v4526 = vsub.s32 %v4523, %v4525
      %v4527 = vrot.slane %v4513, %v4526
      %v4528 = vcombine.high %v4520, %v4520
      %v4529 = vcombine.high %v4527, %v4527
      %v4530 = vcombine.high %v4098, %v4098
      %v4532 = vunpack.c.l.s4 1983009808
      %v4533 = vunpack.c.0.s8 %v4532
      %v4534 = vlaneseq
      %v4535 = vshrl.u32 %v4534, 7
      %v4536 = vsub.s32 %v4533, %v4535
      %v4537 = vrot.slane %v4098, %v4536
      %v4539 = vunpack.c.l.s4 1983009808
      %v4540 = vunpack.c.0.s8 %v4539
      %v4541 = vlaneseq
      %v4542 = vshrl.u32 %v4541, 7
      %v4543 = vsub.s32 %v4540, %v4542
      %v4544 = vrot.slane %v4530, %v4543
      %v4545 = vcombine.high %v4537, %v4537
      %v4546 = vcombine.high %v4544, %v4544
      %v4547 = vcombine.high %v4099, %v4099
      %v4549 = vunpack.c.l.s4 1983009808
      %v4550 = vunpack.c.0.s8 %v4549
      %v4551 = vlaneseq
      %v4552 = vshrl.u32 %v4551, 7
      %v4553 = vsub.s32 %v4550, %v4552
      %v4554 = vrot.slane %v4099, %v4553
      %v4556 = vunpack.c.l.s4 1983009808
      %v4557 = vunpack.c.0.s8 %v4556
      %v4558 = vlaneseq
      %v4559 = vshrl.u32 %v4558, 7
      %v4560 = vsub.s32 %v4557, %v4559
      %v4561 = vrot.slane %v4547, %v4560
      %v4562 = vcombine.high %v4554, %v4554
      %v4563 = vcombine.high %v4561, %v4561
      %v4564 = vcombine.high %v4100, %v4100
      %v4566 = vunpack.c.l.s4 1983009808
      %v4567 = vunpack.c.0.s8 %v4566
      %v4568 = vlaneseq
      %v4569 = vshrl.u32 %v4568, 7
      %v4570 = vsub.s32 %v4567, %v4569
      %v4571 = vrot.slane %v4100, %v4570
      %v4573 = vunpack.c.l.s4 1983009808
      %v4574 = vunpack.c.0.s8 %v4573
      %v4575 = vlaneseq
      %v4576 = vshrl.u32 %v4575, 7
      %v4577 = vsub.s32 %v4574, %v4576
      %v4578 = vrot.slane %v4564, %v4577
      %v4579 = vcombine.high %v4571, %v4571
      %v4580 = vcombine.high %v4578, %v4578
      %v4581 = vcombine.high %v4101, %v4101
      %v4583 = vunpack.c.l.s4 1983009808
      %v4584 = vunpack.c.0.s8 %v4583
      %v4585 = vlaneseq
      %v4586 = vshrl.u32 %v4585, 7
      %v4587 = vsub.s32 %v4584, %v4586
      %v4588 = vrot.slane %v4101, %v4587
      %v4590 = vunpack.c.l.s4 1983009808
      %v4591 = vunpack.c.0.s8 %v4590
      %v4592 = vlaneseq
      %v4593 = vshrl.u32 %v4592, 7
      %v4594 = vsub.s32 %v4591, %v4593
      %v4595 = vrot.slane %v4581, %v4594
      %v4596 = vcombine.high %v4588, %v4588
      %v4597 = vcombine.high %v4595, %v4595
      %v4598 = vcombine.high %v4102, %v4102
      %v4600 = vunpack.c.l.s4 1983009808
      %v4601 = vunpack.c.0.s8 %v4600
      %v4602 = vlaneseq
      %v4603 = vshrl.u32 %v4602, 7
      %v4604 = vsub.s32 %v4601, %v4603
      %v4605 = vrot.slane %v4102, %v4604
      %v4607 = vunpack.c.l.s4 1983009808
      %v4608 = vunpack.c.0.s8 %v4607
      %v4609 = vlaneseq
      %v4610 = vshrl.u32 %v4609, 7
      %v4611 = vsub.s32 %v4608, %v4610
      %v4612 = vrot.slane %v4598, %v4611
      %v4613 = vcombine.high %v4605, %v4605
      %v4614 = vcombine.high %v4612, %v4612
      %v4615 = vcombine.high %v4103, %v4103
      %v4617 = vunpack.c.l.s4 1983009808
      %v4618 = vunpack.c.0.s8 %v4617
      %v4619 = vlaneseq
      %v4620 = vshrl.u32 %v4619, 7
      %v4621 = vsub.s32 %v4618, %v4620
      %v4622 = vrot.slane %v4103, %v4621
      %v4624 = vunpack.c.l.s4 1983009808
      %v4625 = vunpack.c.0.s8 %v4624
      %v4626 = vlaneseq
      %v4627 = vshrl.u32 %v4626, 7
      %v4628 = vsub.s32 %v4625, %v4627
      %v4629 = vrot.slane %v4615, %v4628
      %v4630 = vcombine.high %v4622, %v4622
      %v4631 = vcombine.high %v4629, %v4629
      %v4632 = vcombine.high %v4104, %v4104
      %v4634 = vunpack.c.l.s4 1983009808
      %v4635 = vunpack.c.0.s8 %v4634
      %v4636 = vlaneseq
      %v4637 = vshrl.u32 %v4636, 7
      %v4638 = vsub.s32 %v4635, %v4637
      %v4639 = vrot.slane %v4104, %v4638
      %v4641 = vunpack.c.l.s4 1983009808
      %v4642 = vunpack.c.0.s8 %v4641
      %v4643 = vlaneseq
      %v4644 = vshrl.u32 %v4643, 7
      %v4645 = vsub.s32 %v4642, %v4644
      %v4646 = vrot.slane %v4632, %v4645
      %v4647 = vcombine.high %v4639, %v4639
      %v4648 = vcombine.high %v4646, %v4646
      %v4649 = vcombine.high %v4105, %v4105
      %v4651 = vunpack.c.l.s4 1983009808
      %v4652 = vunpack.c.0.s8 %v4651
      %v4653 = vlaneseq
      %v4654 = vshrl.u32 %v4653, 7
      %v4655 = vsub.s32 %v4652, %v4654
      %v4656 = vrot.slane %v4105, %v4655
      %v4658 = vunpack.c.l.s4 1983009808
      %v4659 = vunpack.c.0.s8 %v4658
      %v4660 = vlaneseq
      %v4661 = vshrl.u32 %v4660, 7
      %v4662 = vsub.s32 %v4659, %v4661
      %v4663 = vrot.slane %v4649, %v4662
      %v4664 = vcombine.high %v4656, %v4656
      %v4665 = vcombine.high %v4663, %v4663
      %v4666 = vcombine.high %v4106, %v4106
      %v4668 = vunpack.c.l.s4 1983009808
      %v4669 = vunpack.c.0.s8 %v4668
      %v4670 = vlaneseq
      %v4671 = vshrl.u32 %v4670, 7
      %v4672 = vsub.s32 %v4669, %v4671
      %v4673 = vrot.slane %v4106, %v4672
      %v4675 = vunpack.c.l.s4 1983009808
      %v4676 = vunpack.c.0.s8 %v4675
      %v4677 = vlaneseq
      %v4678 = vshrl.u32 %v4677, 7
      %v4679 = vsub.s32 %v4676, %v4678
      %v4680 = vrot.slane %v4666, %v4679
      %v4681 = vcombine.high %v4673, %v4673
      %v4682 = vcombine.high %v4680, %v4680
      %v4811 = vrot.slane %v4146, 7
      %v4812 = vrot.slane %v4811, 2
      %v4813 = vrot.slane %v4154, 7
      %v4814 = vrot.slane %v4813, 2
      %v4815 = vrot.slane %v4153, 7
      %v4816 = vrot.slane %v4815, 2
      %v4817 = vrot.slane %v4155, 7
      %v4818 = vrot.slane %v4817, 2
      %v4819 = vrot.slane %v4163, 7
      %v4820 = vrot.slane %v4819, 2
      %v4821 = vrot.slane %v4171, 7
      %v4822 = vrot.slane %v4821, 2
      %v4823 = vrot.slane %v4170, 7
      %v4824 = vrot.slane %v4823, 2
      %v4825 = vrot.slane %v4172, 7
      %v4826 = vrot.slane %v4825, 2
      %v4827 = vrot.slane %v4180, 7
      %v4828 = vrot.slane %v4827, 2
      %v4829 = vrot.slane %v4188, 7
      %v4830 = vrot.slane %v4829, 2
      %v4831 = vrot.slane %v4187, 7
      %v4832 = vrot.slane %v4831, 2
      %v4833 = vrot.slane %v4189, 7
      %v4834 = vrot.slane %v4833, 2
      %v4835 = vrot.slane %v4197, 7
      %v4836 = vrot.slane %v4835, 2
      %v4837 = vrot.slane %v4205, 7
      %v4838 = vrot.slane %v4837, 2
      %v4839 = vrot.slane %v4204, 7
      %v4840 = vrot.slane %v4839, 2
      %v4841 = vrot.slane %v4206, 7
      %v4842 = vrot.slane %v4841, 2
      %v4843 = vrot.slane %v4214, 7
      %v4844 = vrot.slane %v4843, 2
      %v4845 = vrot.slane %v4222, 7
      %v4846 = vrot.slane %v4845, 2
      %v4847 = vrot.slane %v4221, 7
      %v4848 = vrot.slane %v4847, 2
      %v4849 = vrot.slane %v4223, 7
      %v4850 = vrot.slane %v4849, 2
      %v4851 = vrot.slane %v4231, 7
      %v4852 = vrot.slane %v4851, 2
      %v4853 = vrot.slane %v4239, 7
      %v4854 = vrot.slane %v4853, 2
      %v4855 = vrot.slane %v4238, 7
      %v4856 = vrot.slane %v4855, 2
      %v4857 = vrot.slane %v4240, 7
      %v4858 = vrot.slane %v4857, 2
      %v4859 = vrot.slane %v4248, 7
      %v4860 = vrot.slane %v4859, 2
      %v4861 = vrot.slane %v4256, 7
      %v4862 = vrot.slane %v4861, 2
      %v4863 = vrot.slane %v4255, 7
      %v4864 = vrot.slane %v4863, 2
      %v4865 = vrot.slane %v4257, 7
      %v4866 = vrot.slane %v4865, 2
      %v4867 = vrot.slane %v4265, 7
      %v4868 = vrot.slane %v4867, 2
      %v4869 = vrot.slane %v4273, 7
      %v4870 = vrot.slane %v4869, 2
      %v4871 = vrot.slane %v4272, 7
      %v4872 = vrot.slane %v4871, 2
      %v4873 = vrot.slane %v4274, 7
      %v4874 = vrot.slane %v4873, 2
      %v4875 = vrot.slane %v4282, 7
      %v4876 = vrot.slane %v4875, 2
      %v4877 = vrot.slane %v4290, 7
      %v4878 = vrot.slane %v4877, 2
      %v4879 = vrot.slane %v4289, 7
      %v4880 = vrot.slane %v4879, 2
      %v4881 = vrot.slane %v4291, 7
      %v4882 = vrot.slane %v4881, 2
      %v4883 = vrot.slane %v4299, 7
      %v4884 = vrot.slane %v4883, 2
      %v4885 = vrot.slane %v4307, 7
      %v4886 = vrot.slane %v4885, 2
      %v4887 = vrot.slane %v4306, 7
      %v4888 = vrot.slane %v4887, 2
      %v4889 = vrot.slane %v4308, 7
      %v4890 = vrot.slane %v4889, 2
      %v4891 = vrot.slane %v4316, 7
      %v4892 = vrot.slane %v4891, 2
      %v4893 = vrot.slane %v4324, 7
      %v4894 = vrot.slane %v4893, 2
      %v4895 = vrot.slane %v4323, 7
      %v4896 = vrot.slane %v4895, 2
      %v4897 = vrot.slane %v4325, 7
      %v4898 = vrot.slane %v4897, 2
      %v4899 = vrot.slane %v4333, 7
      %v4900 = vrot.slane %v4899, 2
      %v4901 = vrot.slane %v4341, 7
      %v4902 = vrot.slane %v4901, 2
      %v4903 = vrot.slane %v4340, 7
      %v4904 = vrot.slane %v4903, 2
      %v4905 = vrot.slane %v4342, 7
      %v4906 = vrot.slane %v4905, 2
      %v4907 = vrot.slane %v4350, 7
      %v4908 = vrot.slane %v4907, 2
      %v4909 = vrot.slane %v4358, 7
      %v4910 = vrot.slane %v4909, 2
      %v4911 = vrot.slane %v4357, 7
      %v4912 = vrot.slane %v4911, 2
      %v4913 = vrot.slane %v4359, 7
      %v4914 = vrot.slane %v4913, 2
      %v4915 = vrot.slane %v4367, 7
      %v4916 = vrot.slane %v4915, 2
      %v4917 = vrot.slane %v4375, 7
      %v4918 = vrot.slane %v4917, 2
      %v4919 = vrot.slane %v4374, 7
      %v4920 = vrot.slane %v4919, 2
      %v4921 = vrot.slane %v4376, 7
      %v4922 = vrot.slane %v4921, 2
      %v4923 = vrot.slane %v4384, 7
      %v4924 = vrot.slane %v4923, 2
      %v4925 = vrot.slane %v4392, 7
      %v4926 = vrot.slane %v4925, 2
      %v4927 = vrot.slane %v4391, 7
      %v4928 = vrot.slane %v4927, 2
      %v4929 = vrot.slane %v4393, 7
      %v4930 = vrot.slane %v4929, 2
      %v4931 = vrot.slane %v4401, 7
      %v4932 = vrot.slane %v4931, 2
      %v4933 = vrot.slane %v4409, 7
      %v4934 = vrot.slane %v4933, 2
      %v4935 = vrot.slane %v4408, 7
      %v4936 = vrot.slane %v4935, 2
      %v4937 = vrot.slane %v4410, 7
      %v4938 = vrot.slane %v4937, 2
      %v4939 = vrot.slane %v4418, 7
      %v4940 = vrot.slane %v4939, 2
      %v4941 = vrot.slane %v4426, 7
      %v4942 = vrot.slane %v4941, 2
      %v4943 = vrot.slane %v4425, 7
      %v4944 = vrot.slane %v4943, 2
      %v4945 = vrot.slane %v4427, 7
      %v4946 = vrot.slane %v4945, 2
      %v4947 = vrot.slane %v4435, 7
      %v4948 = vrot.slane %v4947, 2
      %v4949 = vrot.slane %v4443, 7
      %v4950 = vrot.slane %v4949, 2
      %v4951 = vrot.slane %v4442, 7
      %v4952 = vrot.slane %v4951, 2
      %v4953 = vrot.slane %v4444, 7
      %v4954 = vrot.slane %v4953, 2
      %v4955 = vrot.slane %v4452, 7
      %v4956 = vrot.slane %v4955, 2
      %v4957 = vrot.slane %v4460, 7
      %v4958 = vrot.slane %v4957, 2
      %v4959 = vrot.slane %v4459, 7
      %v4960 = vrot.slane %v4959, 2
      %v4961 = vrot.slane %v4461, 7
      %v4962 = vrot.slane %v4961, 2
      %v4963 = vrot.slane %v4469, 7
      %v4964 = vrot.slane %v4963, 2
      %v4965 = vrot.slane %v4477, 7
      %v4966 = vrot.slane %v4965, 2
      %v4967 = vrot.slane %v4476, 7
      %v4968 = vrot.slane %v4967, 2
      %v4969 = vrot.slane %v4478, 7
      %v4970 = vrot.slane %v4969, 2
      %v4971 = vrot.slane %v4486, 7
      %v4972 = vrot.slane %v4971, 2
      %v4973 = vrot.slane %v4494, 7
      %v4974 = vrot.slane %v4973, 2
      %v4975 = vrot.slane %v4493, 7
      %v4976 = vrot.slane %v4975, 2
      %v4977 = vrot.slane %v4495, 7
      %v4978 = vrot.slane %v4977, 2
      %v4979 = vrot.slane %v4503, 7
      %v4980 = vrot.slane %v4979, 2
      %v4981 = vrot.slane %v4511, 7
      %v4982 = vrot.slane %v4981, 2
      %v4983 = vrot.slane %v4510, 7
      %v4984 = vrot.slane %v4983, 2
      %v4985 = vrot.slane %v4512, 7
      %v4986 = vrot.slane %v4985, 2
      %v4987 = vrot.slane %v4520, 7
      %v4988 = vrot.slane %v4987, 2
      %v4989 = vrot.slane %v4528, 7
      %v4990 = vrot.slane %v4989, 2
      %v4991 = vrot.slane %v4527, 7
      %v4992 = vrot.slane %v4991, 2
      %v4993 = vrot.slane %v4529, 7
      %v4994 = vrot.slane %v4993, 2
      %v4995 = vrot.slane %v4537, 7
      %v4996 = vrot.slane %v4995, 2
      %v4997 = vrot.slane %v4545, 7
      %v4998 = vrot.slane %v4997, 2
      %v4999 = vrot.slane %v4544, 7
      %v5000 = vrot.slane %v4999, 2
      %v5001 = vrot.slane %v4546, 7
      %v5002 = vrot.slane %v5001, 2
      %v5003 = vrot.slane %v4554, 7
      %v5004 = vrot.slane %v5003, 2
      %v5005 = vrot.slane %v4562, 7
      %v5006 = vrot.slane %v5005, 2
      %v5007 = vrot.slane %v4561, 7
      %v5008 = vrot.slane %v5007, 2
      %v5009 = vrot.slane %v4563, 7
      %v5010 = vrot.slane %v5009, 2
      %v5011 = vrot.slane %v4571, 7
      %v5012 = vrot.slane %v5011, 2
      %v5013 = vrot.slane %v4579, 7
      %v5014 = vrot.slane %v5013, 2
      %v5015 = vrot.slane %v4578, 7
      %v5016 = vrot.slane %v5015, 2
      %v5017 = vrot.slane %v4580, 7
      %v5018 = vrot.slane %v5017, 2
      %v5019 = vrot.slane %v4588, 7
      %v5020 = vrot.slane %v5019, 2
      %v5021 = vrot.slane %v4596, 7
      %v5022 = vrot.slane %v5021, 2
      %v5023 = vrot.slane %v4595, 7
      %v5024 = vrot.slane %v5023, 2
      %v5025 = vrot.slane %v4597, 7
      %v5026 = vrot.slane %v5025, 2
      %v5027 = vrot.slane %v4605, 7
      %v5028 = vrot.slane %v5027, 2
      %v5029 = vrot.slane %v4613, 7
      %v5030 = vrot.slane %v5029, 2
      %v5031 = vrot.slane %v4612, 7
      %v5032 = vrot.slane %v5031, 2
      %v5033 = vrot.slane %v4614, 7
      %v5034 = vrot.slane %v5033, 2
      %v5035 = vrot.slane %v4622, 7
      %v5036 = vrot.slane %v5035, 2
      %v5037 = vrot.slane %v4630, 7
      %v5038 = vrot.slane %v5037, 2
      %v5039 = vrot.slane %v4629, 7
      %v5040 = vrot.slane %v5039, 2
      %v5041 = vrot.slane %v4631, 7
      %v5042 = vrot.slane %v5041, 2
      %v5043 = vrot.slane %v4639, 7
      %v5044 = vrot.slane %v5043, 2
      %v5045 = vrot.slane %v4647, 7
      %v5046 = vrot.slane %v5045, 2
      %v5047 = vrot.slane %v4646, 7
      %v5048 = vrot.slane %v5047, 2
      %v5049 = vrot.slane %v4648, 7
      %v5050 = vrot.slane %v5049, 2
      %v5051 = vrot.slane %v4656, 7
      %v5052 = vrot.slane %v5051, 2
      %v5053 = vrot.slane %v4664, 7
      %v5054 = vrot.slane %v5053, 2
      %v5055 = vrot.slane %v4663, 7
      %v5056 = vrot.slane %v5055, 2
      %v5057 = vrot.slane %v4665, 7
      %v5058 = vrot.slane %v5057, 2
      %v5059 = vrot.slane %v4673, 7
      %v5060 = vrot.slane %v5059, 2
      %v5061 = vrot.slane %v4681, 7
      %v5062 = vrot.slane %v5061, 2
      %v5063 = vrot.slane %v4680, 7
      %v5064 = vrot.slane %v5063, 2
      %v5065 = vrot.slane %v4682, 7
      %v5066 = vrot.slane %v5065, 2
      %v5195 = vadd.f32 %v4146, %v4812
      %v5196 = vadd.f32 %v4154, %v4814
      %v5197 = vadd.f32 %v4153, %v4816
      %v5198 = vadd.f32 %v4155, %v4818
      %v5199 = vadd.f32 %v4163, %v4820
      %v5200 = vadd.f32 %v4171, %v4822
      %v5201 = vadd.f32 %v4170, %v4824
      %v5202 = vadd.f32 %v4172, %v4826
      %v5203 = vadd.f32 %v4180, %v4828
      %v5204 = vadd.f32 %v4188, %v4830
      %v5205 = vadd.f32 %v4187, %v4832
      %v5206 = vadd.f32 %v4189, %v4834
      %v5207 = vadd.f32 %v4197, %v4836
      %v5208 = vadd.f32 %v4205, %v4838
      %v5209 = vadd.f32 %v4204, %v4840
      %v5210 = vadd.f32 %v4206, %v4842
      %v5211 = vadd.f32 %v4214, %v4844
      %v5212 = vadd.f32 %v4222, %v4846
      %v5213 = vadd.f32 %v4221, %v4848
      %v5214 = vadd.f32 %v4223, %v4850
      %v5215 = vadd.f32 %v4231, %v4852
      %v5216 = vadd.f32 %v4239, %v4854
      %v5217 = vadd.f32 %v4238, %v4856
      %v5218 = vadd.f32 %v4240, %v4858
      %v5219 = vadd.f32 %v4248, %v4860
      %v5220 = vadd.f32 %v4256, %v4862
      %v5221 = vadd.f32 %v4255, %v4864
      %v5222 = vadd.f32 %v4257, %v4866
      %v5223 = vadd.f32 %v4265, %v4868
      %v5224 = vadd.f32 %v4273, %v4870
      %v5225 = vadd.f32 %v4272, %v4872
      %v5226 = vadd.f32 %v4274, %v4874
      %v5227 = vadd.f32 %v4282, %v4876
      %v5228 = vadd.f32 %v4290, %v4878
      %v5229 = vadd.f32 %v4289, %v4880
      %v5230 = vadd.f32 %v4291, %v4882
      %v5231 = vadd.f32 %v4299, %v4884
      %v5232 = vadd.f32 %v4307, %v4886
      %v5233 = vadd.f32 %v4306, %v4888
      %v5234 = vadd.f32 %v4308, %v4890
      %v5235 = vadd.f32 %v4316, %v4892
      %v5236 = vadd.f32 %v4324, %v4894
      %v5237 = vadd.f32 %v4323, %v4896
      %v5238 = vadd.f32 %v4325, %v4898
      %v5239 = vadd.f32 %v4333, %v4900
      %v5240 = vadd.f32 %v4341, %v4902
      %v5241 = vadd.f32 %v4340, %v4904
      %v5242 = vadd.f32 %v4342, %v4906
      %v5243 = vadd.f32 %v4350, %v4908
      %v5244 = vadd.f32 %v4358, %v4910
      %v5245 = vadd.f32 %v4357, %v4912
      %v5246 = vadd.f32 %v4359, %v4914
      %v5247 = vadd.f32 %v4367, %v4916
      %v5248 = vadd.f32 %v4375, %v4918
      %v5249 = vadd.f32 %v4374, %v4920
      %v5250 = vadd.f32 %v4376, %v4922
      %v5251 = vadd.f32 %v4384, %v4924
      %v5252 = vadd.f32 %v4392, %v4926
      %v5253 = vadd.f32 %v4391, %v4928
      %v5254 = vadd.f32 %v4393, %v4930
      %v5255 = vadd.f32 %v4401, %v4932
      %v5256 = vadd.f32 %v4409, %v4934
      %v5257 = vadd.f32 %v4408, %v4936
      %v5258 = vadd.f32 %v4410, %v4938
      %v5259 = vadd.f32 %v4418, %v4940
      %v5260 = vadd.f32 %v4426, %v4942
      %v5261 = vadd.f32 %v4425, %v4944
      %v5262 = vadd.f32 %v4427, %v4946
      %v5263 = vadd.f32 %v4435, %v4948
      %v5264 = vadd.f32 %v4443, %v4950
      %v5265 = vadd.f32 %v4442, %v4952
      %v5266 = vadd.f32 %v4444, %v4954
      %v5267 = vadd.f32 %v4452, %v4956
      %v5268 = vadd.f32 %v4460, %v4958
      %v5269 = vadd.f32 %v4459, %v4960
      %v5270 = vadd.f32 %v4461, %v4962
      %v5271 = vadd.f32 %v4469, %v4964
      %v5272 = vadd.f32 %v4477, %v4966
      %v5273 = vadd.f32 %v4476, %v4968
      %v5274 = vadd.f32 %v4478, %v4970
      %v5275 = vadd.f32 %v4486, %v4972
      %v5276 = vadd.f32 %v4494, %v4974
      %v5277 = vadd.f32 %v4493, %v4976
      %v5278 = vadd.f32 %v4495, %v4978
      %v5279 = vadd.f32 %v4503, %v4980
      %v5280 = vadd.f32 %v4511, %v4982
      %v5281 = vadd.f32 %v4510, %v4984
      %v5282 = vadd.f32 %v4512, %v4986
      %v5283 = vadd.f32 %v4520, %v4988
      %v5284 = vadd.f32 %v4528, %v4990
      %v5285 = vadd.f32 %v4527, %v4992
      %v5286 = vadd.f32 %v4529, %v4994
      %v5287 = vadd.f32 %v4537, %v4996
      %v5288 = vadd.f32 %v4545, %v4998
      %v5289 = vadd.f32 %v4544, %v5000
      %v5290 = vadd.f32 %v4546, %v5002
      %v5291 = vadd.f32 %v4554, %v5004
      %v5292 = vadd.f32 %v4562, %v5006
      %v5293 = vadd.f32 %v4561, %v5008
      %v5294 = vadd.f32 %v4563, %v5010
      %v5295 = vadd.f32 %v4571, %v5012
      %v5296 = vadd.f32 %v4579, %v5014
      %v5297 = vadd.f32 %v4578, %v5016
      %v5298 = vadd.f32 %v4580, %v5018
      %v5299 = vadd.f32 %v4588, %v5020
      %v5300 = vadd.f32 %v4596, %v5022
      %v5301 = vadd.f32 %v4595, %v5024
      %v5302 = vadd.f32 %v4597, %v5026
      %v5303 = vadd.f32 %v4605, %v5028
      %v5304 = vadd.f32 %v4613, %v5030
      %v5305 = vadd.f32 %v4612, %v5032
      %v5306 = vadd.f32 %v4614, %v5034
      %v5307 = vadd.f32 %v4622, %v5036
      %v5308 = vadd.f32 %v4630, %v5038
      %v5309 = vadd.f32 %v4629, %v5040
      %v5310 = vadd.f32 %v4631, %v5042
      %v5311 = vadd.f32 %v4639, %v5044
      %v5312 = vadd.f32 %v4647, %v5046
      %v5313 = vadd.f32 %v4646, %v5048
      %v5314 = vadd.f32 %v4648, %v5050
      %v5315 = vadd.f32 %v4656, %v5052
      %v5316 = vadd.f32 %v4664, %v5054
      %v5317 = vadd.f32 %v4663, %v5056
      %v5318 = vadd.f32 %v4665, %v5058
      %v5319 = vadd.f32 %v4673, %v5060
      %v5320 = vadd.f32 %v4681, %v5062
      %v5321 = vadd.f32 %v4680, %v5064
      %v5322 = vadd.f32 %v4682, %v5066
      %v5323 = vadd.f32 %v5195, %v5203
      %v5324 = vadd.f32 %v5196, %v5204
      %v5325 = vadd.f32 %v5197, %v5205
      %v5326 = vadd.f32 %v5198, %v5206
      %v5327 = vadd.f32 %v5199, %v5207
      %v5328 = vadd.f32 %v5200, %v5208
      %v5329 = vadd.f32 %v5201, %v5209
      %v5330 = vadd.f32 %v5202, %v5210
      %v5331 = vadd.f32 %v5211, %v5219
      %v5332 = vadd.f32 %v5212, %v5220
      %v5333 = vadd.f32 %v5213, %v5221
      %v5334 = vadd.f32 %v5214, %v5222
      %v5335 = vadd.f32 %v5215, %v5223
      %v5336 = vadd.f32 %v5216, %v5224
      %v5337 = vadd.f32 %v5217, %v5225
      %v5338 = vadd.f32 %v5218, %v5226
      %v5339 = vadd.f32 %v5227, %v5235
      %v5340 = vadd.f32 %v5228, %v5236
      %v5341 = vadd.f32 %v5229, %v5237
      %v5342 = vadd.f32 %v5230, %v5238
      %v5343 = vadd.f32 %v5231, %v5239
      %v5344 = vadd.f32 %v5232, %v5240
      %v5345 = vadd.f32 %v5233, %v5241
      %v5346 = vadd.f32 %v5234, %v5242
      %v5347 = vadd.f32 %v5243, %v5251
      %v5348 = vadd.f32 %v5244, %v5252
      %v5349 = vadd.f32 %v5245, %v5253
      %v5350 = vadd.f32 %v5246, %v5254
      %v5351 = vadd.f32 %v5247, %v5255
      %v5352 = vadd.f32 %v5248, %v5256
      %v5353 = vadd.f32 %v5249, %v5257
      %v5354 = vadd.f32 %v5250, %v5258
      %v5355 = vadd.f32 %v5259, %v5267
      %v5356 = vadd.f32 %v5260, %v5268
      %v5357 = vadd.f32 %v5261, %v5269
      %v5358 = vadd.f32 %v5262, %v5270
      %v5359 = vadd.f32 %v5263, %v5271
      %v5360 = vadd.f32 %v5264, %v5272
      %v5361 = vadd.f32 %v5265, %v5273
      %v5362 = vadd.f32 %v5266, %v5274
      %v5363 = vadd.f32 %v5275, %v5283
      %v5364 = vadd.f32 %v5276, %v5284
      %v5365 = vadd.f32 %v5277, %v5285
      %v5366 = vadd.f32 %v5278, %v5286
      %v5367 = vadd.f32 %v5279, %v5287
      %v5368 = vadd.f32 %v5280, %v5288
      %v5369 = vadd.f32 %v5281, %v5289
      %v5370 = vadd.f32 %v5282, %v5290
      %v5371 = vadd.f32 %v5291, %v5299
      %v5372 = vadd.f32 %v5292, %v5300
      %v5373 = vadd.f32 %v5293, %v5301
      %v5374 = vadd.f32 %v5294, %v5302
      %v5375 = vadd.f32 %v5295, %v5303
      %v5376 = vadd.f32 %v5296, %v5304
      %v5377 = vadd.f32 %v5297, %v5305
      %v5378 = vadd.f32 %v5298, %v5306
      %v5379 = vadd.f32 %v5307, %v5315
      %v5380 = vadd.f32 %v5308, %v5316
      %v5381 = vadd.f32 %v5309, %v5317
      %v5382 = vadd.f32 %v5310, %v5318
      %v5383 = vadd.f32 %v5311, %v5319
      %v5384 = vadd.f32 %v5312, %v5320
      %v5385 = vadd.f32 %v5313, %v5321
      %v5386 = vadd.f32 %v5314, %v5322
      %v5387 = vld [vmem:[%s271] sm:$0xf]
      %v5388 = vld [vmem:[%s271 + $0x4] sm:$0xf]
      %v5389 = vld [vmem:[%s271 + $0x8] sm:$0xf]
      %v5390 = vld [vmem:[%s271 + $0xc] sm:$0xf]
      %v5391 = vld [vmem:[%s271 + $0x10] sm:$0xf]
      %v5392 = vld [vmem:[%s271 + $0x14] sm:$0xf]
      %v5393 = vld [vmem:[%s271 + $0x18] sm:$0xf]
      %v5394 = vld [vmem:[%s271 + $0x1c] sm:$0xf]
      %v5395 = vunpack.c.l.bf16 %v5387
      %v5396 = vunpack.c.l.bf16 %v5388
      %v5397 = vunpack.c.l.bf16 %v5389
      %v5398 = vunpack.c.l.bf16 %v5390
      %v5399 = vunpack.c.l.bf16 %v5391
      %v5400 = vunpack.c.l.bf16 %v5392
      %v5401 = vunpack.c.l.bf16 %v5393
      %v5402 = vunpack.c.l.bf16 %v5394
      %v5411 = vcombine.high %v5395, %v5395
      %v5413 = vunpack.c.l.s4 1983009808
      %v5414 = vunpack.c.0.s8 %v5413
      %v5415 = vlaneseq
      %v5416 = vshrl.u32 %v5415, 7
      %v5417 = vsub.s32 %v5414, %v5416
      %v5418 = vrot.slane %v5395, %v5417
      %v5420 = vunpack.c.l.s4 1983009808
      %v5421 = vunpack.c.0.s8 %v5420
      %v5422 = vlaneseq
      %v5423 = vshrl.u32 %v5422, 7
      %v5424 = vsub.s32 %v5421, %v5423
      %v5425 = vrot.slane %v5411, %v5424
      %v5426 = vcombine.high %v5418, %v5418
      %v5427 = vcombine.high %v5425, %v5425
      %v5428 = vcombine.high %v5396, %v5396
      %v5430 = vunpack.c.l.s4 1983009808
      %v5431 = vunpack.c.0.s8 %v5430
      %v5432 = vlaneseq
      %v5433 = vshrl.u32 %v5432, 7
      %v5434 = vsub.s32 %v5431, %v5433
      %v5435 = vrot.slane %v5396, %v5434
      %v5437 = vunpack.c.l.s4 1983009808
      %v5438 = vunpack.c.0.s8 %v5437
      %v5439 = vlaneseq
      %v5440 = vshrl.u32 %v5439, 7
      %v5441 = vsub.s32 %v5438, %v5440
      %v5442 = vrot.slane %v5428, %v5441
      %v5443 = vcombine.high %v5435, %v5435
      %v5444 = vcombine.high %v5442, %v5442
      %v5445 = vcombine.high %v5397, %v5397
      %v5447 = vunpack.c.l.s4 1983009808
      %v5448 = vunpack.c.0.s8 %v5447
      %v5449 = vlaneseq
      %v5450 = vshrl.u32 %v5449, 7
      %v5451 = vsub.s32 %v5448, %v5450
      %v5452 = vrot.slane %v5397, %v5451
      %v5454 = vunpack.c.l.s4 1983009808
      %v5455 = vunpack.c.0.s8 %v5454
      %v5456 = vlaneseq
      %v5457 = vshrl.u32 %v5456, 7
      %v5458 = vsub.s32 %v5455, %v5457
      %v5459 = vrot.slane %v5445, %v5458
      %v5460 = vcombine.high %v5452, %v5452
      %v5461 = vcombine.high %v5459, %v5459
      %v5462 = vcombine.high %v5398, %v5398
      %v5464 = vunpack.c.l.s4 1983009808
      %v5465 = vunpack.c.0.s8 %v5464
      %v5466 = vlaneseq
      %v5467 = vshrl.u32 %v5466, 7
      %v5468 = vsub.s32 %v5465, %v5467
      %v5469 = vrot.slane %v5398, %v5468
      %v5471 = vunpack.c.l.s4 1983009808
      %v5472 = vunpack.c.0.s8 %v5471
      %v5473 = vlaneseq
      %v5474 = vshrl.u32 %v5473, 7
      %v5475 = vsub.s32 %v5472, %v5474
      %v5476 = vrot.slane %v5462, %v5475
      %v5477 = vcombine.high %v5469, %v5469
      %v5478 = vcombine.high %v5476, %v5476
      %v5479 = vcombine.high %v5399, %v5399
      %v5481 = vunpack.c.l.s4 1983009808
      %v5482 = vunpack.c.0.s8 %v5481
      %v5483 = vlaneseq
      %v5484 = vshrl.u32 %v5483, 7
      %v5485 = vsub.s32 %v5482, %v5484
      %v5486 = vrot.slane %v5399, %v5485
      %v5488 = vunpack.c.l.s4 1983009808
      %v5489 = vunpack.c.0.s8 %v5488
      %v5490 = vlaneseq
      %v5491 = vshrl.u32 %v5490, 7
      %v5492 = vsub.s32 %v5489, %v5491
      %v5493 = vrot.slane %v5479, %v5492
      %v5494 = vcombine.high %v5486, %v5486
      %v5495 = vcombine.high %v5493, %v5493
      %v5496 = vcombine.high %v5400, %v5400
      %v5498 = vunpack.c.l.s4 1983009808
      %v5499 = vunpack.c.0.s8 %v5498
      %v5500 = vlaneseq
      %v5501 = vshrl.u32 %v5500, 7
      %v5502 = vsub.s32 %v5499, %v5501
      %v5503 = vrot.slane %v5400, %v5502
      %v5505 = vunpack.c.l.s4 1983009808
      %v5506 = vunpack.c.0.s8 %v5505
      %v5507 = vlaneseq
      %v5508 = vshrl.u32 %v5507, 7
      %v5509 = vsub.s32 %v5506, %v5508
      %v5510 = vrot.slane %v5496, %v5509
      %v5511 = vcombine.high %v5503, %v5503
      %v5512 = vcombine.high %v5510, %v5510
      %v5513 = vcombine.high %v5401, %v5401
      %v5515 = vunpack.c.l.s4 1983009808
      %v5516 = vunpack.c.0.s8 %v5515
      %v5517 = vlaneseq
      %v5518 = vshrl.u32 %v5517, 7
      %v5519 = vsub.s32 %v5516, %v5518
      %v5520 = vrot.slane %v5401, %v5519
      %v5522 = vunpack.c.l.s4 1983009808
      %v5523 = vunpack.c.0.s8 %v5522
      %v5524 = vlaneseq
      %v5525 = vshrl.u32 %v5524, 7
      %v5526 = vsub.s32 %v5523, %v5525
      %v5527 = vrot.slane %v5513, %v5526
      %v5528 = vcombine.high %v5520, %v5520
      %v5529 = vcombine.high %v5527, %v5527
      %v5530 = vcombine.high %v5402, %v5402
      %v5532 = vunpack.c.l.s4 1983009808
      %v5533 = vunpack.c.0.s8 %v5532
      %v5534 = vlaneseq
      %v5535 = vshrl.u32 %v5534, 7
      %v5536 = vsub.s32 %v5533, %v5535
      %v5537 = vrot.slane %v5402, %v5536
      %v5539 = vunpack.c.l.s4 1983009808
      %v5540 = vunpack.c.0.s8 %v5539
      %v5541 = vlaneseq
      %v5542 = vshrl.u32 %v5541, 7
      %v5543 = vsub.s32 %v5540, %v5542
      %v5544 = vrot.slane %v5530, %v5543
      %v5545 = vcombine.high %v5537, %v5537
      %v5546 = vcombine.high %v5544, %v5544
      %v5547 = vrot.slane %v5418, 1
      %v5548 = vrot.slane %v5426, 1
      %v5549 = vrot.slane %v5425, 1
      %v5550 = vrot.slane %v5427, 1
      %v5551 = vrot.slane %v5435, 1
      %v5552 = vrot.slane %v5443, 1
      %v5553 = vrot.slane %v5442, 1
      %v5554 = vrot.slane %v5444, 1
      %v5555 = vrot.slane %v5452, 1
      %v5556 = vrot.slane %v5460, 1
      %v5557 = vrot.slane %v5459, 1
      %v5558 = vrot.slane %v5461, 1
      %v5559 = vrot.slane %v5469, 1
      %v5560 = vrot.slane %v5477, 1
      %v5561 = vrot.slane %v5476, 1
      %v5562 = vrot.slane %v5478, 1
      %v5563 = vrot.slane %v5486, 1
      %v5564 = vrot.slane %v5494, 1
      %v5565 = vrot.slane %v5493, 1
      %v5566 = vrot.slane %v5495, 1
      %v5567 = vrot.slane %v5503, 1
      %v5568 = vrot.slane %v5511, 1
      %v5569 = vrot.slane %v5510, 1
      %v5570 = vrot.slane %v5512, 1
      %v5571 = vrot.slane %v5520, 1
      %v5572 = vrot.slane %v5528, 1
      %v5573 = vrot.slane %v5527, 1
      %v5574 = vrot.slane %v5529, 1
      %v5575 = vrot.slane %v5537, 1
      %v5576 = vrot.slane %v5545, 1
      %v5577 = vrot.slane %v5544, 1
      %v5578 = vrot.slane %v5546, 1
      %v5643 = vadd.f32 %v5323, %v5418
      %v5644 = vadd.f32 %v5324, %v5547
      %v5645 = vadd.f32 %v5325, %v5426
      %v5646 = vadd.f32 %v5326, %v5548
      %v5647 = vadd.f32 %v5327, %v5425
      %v5648 = vadd.f32 %v5328, %v5549
      %v5649 = vadd.f32 %v5329, %v5427
      %v5650 = vadd.f32 %v5330, %v5550
      %v5651 = vadd.f32 %v5331, %v5435
      %v5652 = vadd.f32 %v5332, %v5551
      %v5653 = vadd.f32 %v5333, %v5443
      %v5654 = vadd.f32 %v5334, %v5552
      %v5655 = vadd.f32 %v5335, %v5442
      %v5656 = vadd.f32 %v5336, %v5553
      %v5657 = vadd.f32 %v5337, %v5444
      %v5658 = vadd.f32 %v5338, %v5554
      %v5659 = vadd.f32 %v5339, %v5452
      %v5660 = vadd.f32 %v5340, %v5555
      %v5661 = vadd.f32 %v5341, %v5460
      %v5662 = vadd.f32 %v5342, %v5556
      %v5663 = vadd.f32 %v5343, %v5459
      %v5664 = vadd.f32 %v5344, %v5557
      %v5665 = vadd.f32 %v5345, %v5461
      %v5666 = vadd.f32 %v5346, %v5558
      %v5667 = vadd.f32 %v5347, %v5469
      %v5668 = vadd.f32 %v5348, %v5559
      %v5669 = vadd.f32 %v5349, %v5477
      %v5670 = vadd.f32 %v5350, %v5560
      %v5671 = vadd.f32 %v5351, %v5476
      %v5672 = vadd.f32 %v5352, %v5561
      %v5673 = vadd.f32 %v5353, %v5478
      %v5674 = vadd.f32 %v5354, %v5562
      %v5675 = vadd.f32 %v5355, %v5486
      %v5676 = vadd.f32 %v5356, %v5563
      %v5677 = vadd.f32 %v5357, %v5494
      %v5678 = vadd.f32 %v5358, %v5564
      %v5679 = vadd.f32 %v5359, %v5493
      %v5680 = vadd.f32 %v5360, %v5565
      %v5681 = vadd.f32 %v5361, %v5495
      %v5682 = vadd.f32 %v5362, %v5566
      %v5683 = vadd.f32 %v5363, %v5503
      %v5684 = vadd.f32 %v5364, %v5567
      %v5685 = vadd.f32 %v5365, %v5511
      %v5686 = vadd.f32 %v5366, %v5568
      %v5687 = vadd.f32 %v5367, %v5510
      %v5688 = vadd.f32 %v5368, %v5569
      %v5689 = vadd.f32 %v5369, %v5512
      %v5690 = vadd.f32 %v5370, %v5570
      %v5691 = vadd.f32 %v5371, %v5520
      %v5692 = vadd.f32 %v5372, %v5571
      %v5693 = vadd.f32 %v5373, %v5528
      %v5694 = vadd.f32 %v5374, %v5572
      %v5695 = vadd.f32 %v5375, %v5527
      %v5696 = vadd.f32 %v5376, %v5573
      %v5697 = vadd.f32 %v5377, %v5529
      %v5698 = vadd.f32 %v5378, %v5574
      %v5699 = vadd.f32 %v5379, %v5537
      %v5700 = vadd.f32 %v5380, %v5575
      %v5701 = vadd.f32 %v5381, %v5545
      %v5702 = vadd.f32 %v5382, %v5576
      %v5703 = vadd.f32 %v5383, %v5544
      %v5704 = vadd.f32 %v5384, %v5577
      %v5705 = vadd.f32 %v5385, %v5546
      %v5706 = vadd.f32 %v5386, %v5578
      %v5771 = vlaneseq
      %v5772 = vshrl.u32 %v5771, 7
      %v5773 = vsub.s32 0, %v5772
      %v5774 = vrot.slane %v5643, %v5773
      %v5775 = vlaneseq
      %v5776 = vshrl.u32 %v5775, 7
      %v5777 = vsub.s32 0, %v5776
      %v5778 = vrot.slane %v5644, %v5777
      %v5779 = vlaneseq
      %v5780 = vshrl.u32 %v5779, 7
      %v5781 = vsub.s32 0, %v5780
      %v5782 = vrot.slane %v5645, %v5781
      %v5783 = vlaneseq
      %v5784 = vshrl.u32 %v5783, 7
      %v5785 = vsub.s32 0, %v5784
      %v5786 = vrot.slane %v5646, %v5785
      %v5787 = vlaneseq
      %v5788 = vshrl.u32 %v5787, 7
      %v5789 = vsub.s32 0, %v5788
      %v5790 = vrot.slane %v5647, %v5789
      %v5791 = vlaneseq
      %v5792 = vshrl.u32 %v5791, 7
      %v5793 = vsub.s32 0, %v5792
      %v5794 = vrot.slane %v5648, %v5793
      %v5795 = vlaneseq
      %v5796 = vshrl.u32 %v5795, 7
      %v5797 = vsub.s32 0, %v5796
      %v5798 = vrot.slane %v5649, %v5797
      %v5799 = vlaneseq
      %v5800 = vshrl.u32 %v5799, 7
      %v5801 = vsub.s32 0, %v5800
      %v5802 = vrot.slane %v5650, %v5801
      %v5803 = vlaneseq
      %v5804 = vshrl.u32 %v5803, 7
      %v5805 = vsub.s32 0, %v5804
      %v5806 = vrot.slane %v5651, %v5805
      %v5807 = vlaneseq
      %v5808 = vshrl.u32 %v5807, 7
      %v5809 = vsub.s32 0, %v5808
      %v5810 = vrot.slane %v5652, %v5809
      %v5811 = vlaneseq
      %v5812 = vshrl.u32 %v5811, 7
      %v5813 = vsub.s32 0, %v5812
      %v5814 = vrot.slane %v5653, %v5813
      %v5815 = vlaneseq
      %v5816 = vshrl.u32 %v5815, 7
      %v5817 = vsub.s32 0, %v5816
      %v5818 = vrot.slane %v5654, %v5817
      %v5819 = vlaneseq
      %v5820 = vshrl.u32 %v5819, 7
      %v5821 = vsub.s32 0, %v5820
      %v5822 = vrot.slane %v5655, %v5821
      %v5823 = vlaneseq
      %v5824 = vshrl.u32 %v5823, 7
      %v5825 = vsub.s32 0, %v5824
      %v5826 = vrot.slane %v5656, %v5825
      %v5827 = vlaneseq
      %v5828 = vshrl.u32 %v5827, 7
      %v5829 = vsub.s32 0, %v5828
      %v5830 = vrot.slane %v5657, %v5829
      %v5831 = vlaneseq
      %v5832 = vshrl.u32 %v5831, 7
      %v5833 = vsub.s32 0, %v5832
      %v5834 = vrot.slane %v5658, %v5833
      %v5835 = vlaneseq
      %v5836 = vshrl.u32 %v5835, 7
      %v5837 = vsub.s32 0, %v5836
      %v5838 = vrot.slane %v5659, %v5837
      %v5839 = vlaneseq
      %v5840 = vshrl.u32 %v5839, 7
      %v5841 = vsub.s32 0, %v5840
      %v5842 = vrot.slane %v5660, %v5841
      %v5843 = vlaneseq
      %v5844 = vshrl.u32 %v5843, 7
      %v5845 = vsub.s32 0, %v5844
      %v5846 = vrot.slane %v5661, %v5845
      %v5847 = vlaneseq
      %v5848 = vshrl.u32 %v5847, 7
      %v5849 = vsub.s32 0, %v5848
      %v5850 = vrot.slane %v5662, %v5849
      %v5851 = vlaneseq
      %v5852 = vshrl.u32 %v5851, 7
      %v5853 = vsub.s32 0, %v5852
      %v5854 = vrot.slane %v5663, %v5853
      %v5855 = vlaneseq
      %v5856 = vshrl.u32 %v5855, 7
      %v5857 = vsub.s32 0, %v5856
      %v5858 = vrot.slane %v5664, %v5857
      %v5859 = vlaneseq
      %v5860 = vshrl.u32 %v5859, 7
      %v5861 = vsub.s32 0, %v5860
      %v5862 = vrot.slane %v5665, %v5861
      %v5863 = vlaneseq
      %v5864 = vshrl.u32 %v5863, 7
      %v5865 = vsub.s32 0, %v5864
      %v5866 = vrot.slane %v5666, %v5865
      %v5867 = vlaneseq
      %v5868 = vshrl.u32 %v5867, 7
      %v5869 = vsub.s32 0, %v5868
      %v5870 = vrot.slane %v5667, %v5869
      %v5871 = vlaneseq
      %v5872 = vshrl.u32 %v5871, 7
      %v5873 = vsub.s32 0, %v5872
      %v5874 = vrot.slane %v5668, %v5873
      %v5875 = vlaneseq
      %v5876 = vshrl.u32 %v5875, 7
      %v5877 = vsub.s32 0, %v5876
      %v5878 = vrot.slane %v5669, %v5877
      %v5879 = vlaneseq
      %v5880 = vshrl.u32 %v5879, 7
      %v5881 = vsub.s32 0, %v5880
      %v5882 = vrot.slane %v5670, %v5881
      %v5883 = vlaneseq
      %v5884 = vshrl.u32 %v5883, 7
      %v5885 = vsub.s32 0, %v5884
      %v5886 = vrot.slane %v5671, %v5885
      %v5887 = vlaneseq
      %v5888 = vshrl.u32 %v5887, 7
      %v5889 = vsub.s32 0, %v5888
      %v5890 = vrot.slane %v5672, %v5889
      %v5891 = vlaneseq
      %v5892 = vshrl.u32 %v5891, 7
      %v5893 = vsub.s32 0, %v5892
      %v5894 = vrot.slane %v5673, %v5893
      %v5895 = vlaneseq
      %v5896 = vshrl.u32 %v5895, 7
      %v5897 = vsub.s32 0, %v5896
      %v5898 = vrot.slane %v5674, %v5897
      %v5899 = vlaneseq
      %v5900 = vshrl.u32 %v5899, 7
      %v5901 = vsub.s32 0, %v5900
      %v5902 = vrot.slane %v5675, %v5901
      %v5903 = vlaneseq
      %v5904 = vshrl.u32 %v5903, 7
      %v5905 = vsub.s32 0, %v5904
      %v5906 = vrot.slane %v5676, %v5905
      %v5907 = vlaneseq
      %v5908 = vshrl.u32 %v5907, 7
      %v5909 = vsub.s32 0, %v5908
      %v5910 = vrot.slane %v5677, %v5909
      %v5911 = vlaneseq
      %v5912 = vshrl.u32 %v5911, 7
      %v5913 = vsub.s32 0, %v5912
      %v5914 = vrot.slane %v5678, %v5913
      %v5915 = vlaneseq
      %v5916 = vshrl.u32 %v5915, 7
      %v5917 = vsub.s32 0, %v5916
      %v5918 = vrot.slane %v5679, %v5917
      %v5919 = vlaneseq
      %v5920 = vshrl.u32 %v5919, 7
      %v5921 = vsub.s32 0, %v5920
      %v5922 = vrot.slane %v5680, %v5921
      %v5923 = vlaneseq
      %v5924 = vshrl.u32 %v5923, 7
      %v5925 = vsub.s32 0, %v5924
      %v5926 = vrot.slane %v5681, %v5925
      %v5927 = vlaneseq
      %v5928 = vshrl.u32 %v5927, 7
      %v5929 = vsub.s32 0, %v5928
      %v5930 = vrot.slane %v5682, %v5929
      %v5931 = vlaneseq
      %v5932 = vshrl.u32 %v5931, 7
      %v5933 = vsub.s32 0, %v5932
      %v5934 = vrot.slane %v5683, %v5933
      %v5935 = vlaneseq
      %v5936 = vshrl.u32 %v5935, 7
      %v5937 = vsub.s32 0, %v5936
      %v5938 = vrot.slane %v5684, %v5937
      %v5939 = vlaneseq
      %v5940 = vshrl.u32 %v5939, 7
      %v5941 = vsub.s32 0, %v5940
      %v5942 = vrot.slane %v5685, %v5941
      %v5943 = vlaneseq
      %v5944 = vshrl.u32 %v5943, 7
      %v5945 = vsub.s32 0, %v5944
      %v5946 = vrot.slane %v5686, %v5945
      %v5947 = vlaneseq
      %v5948 = vshrl.u32 %v5947, 7
      %v5949 = vsub.s32 0, %v5948
      %v5950 = vrot.slane %v5687, %v5949
      %v5951 = vlaneseq
      %v5952 = vshrl.u32 %v5951, 7
      %v5953 = vsub.s32 0, %v5952
      %v5954 = vrot.slane %v5688, %v5953
      %v5955 = vlaneseq
      %v5956 = vshrl.u32 %v5955, 7
      %v5957 = vsub.s32 0, %v5956
      %v5958 = vrot.slane %v5689, %v5957
      %v5959 = vlaneseq
      %v5960 = vshrl.u32 %v5959, 7
      %v5961 = vsub.s32 0, %v5960
      %v5962 = vrot.slane %v5690, %v5961
      %v5963 = vlaneseq
      %v5964 = vshrl.u32 %v5963, 7
      %v5965 = vsub.s32 0, %v5964
      %v5966 = vrot.slane %v5691, %v5965
      %v5967 = vlaneseq
      %v5968 = vshrl.u32 %v5967, 7
      %v5969 = vsub.s32 0, %v5968
      %v5970 = vrot.slane %v5692, %v5969
      %v5971 = vlaneseq
      %v5972 = vshrl.u32 %v5971, 7
      %v5973 = vsub.s32 0, %v5972
      %v5974 = vrot.slane %v5693, %v5973
      %v5975 = vlaneseq
      %v5976 = vshrl.u32 %v5975, 7
      %v5977 = vsub.s32 0, %v5976
      %v5978 = vrot.slane %v5694, %v5977
      %v5979 = vlaneseq
      %v5980 = vshrl.u32 %v5979, 7
      %v5981 = vsub.s32 0, %v5980
      %v5982 = vrot.slane %v5695, %v5981
      %v5983 = vlaneseq
      %v5984 = vshrl.u32 %v5983, 7
      %v5985 = vsub.s32 0, %v5984
      %v5986 = vrot.slane %v5696, %v5985
      %v5987 = vlaneseq
      %v5988 = vshrl.u32 %v5987, 7
      %v5989 = vsub.s32 0, %v5988
      %v5990 = vrot.slane %v5697, %v5989
      %v5991 = vlaneseq
      %v5992 = vshrl.u32 %v5991, 7
      %v5993 = vsub.s32 0, %v5992
      %v5994 = vrot.slane %v5698, %v5993
      %v5995 = vlaneseq
      %v5996 = vshrl.u32 %v5995, 7
      %v5997 = vsub.s32 0, %v5996
      %v5998 = vrot.slane %v5699, %v5997
      %v5999 = vlaneseq
      %v6000 = vshrl.u32 %v5999, 7
      %v6001 = vsub.s32 0, %v6000
      %v6002 = vrot.slane %v5700, %v6001
      %v6003 = vlaneseq
      %v6004 = vshrl.u32 %v6003, 7
      %v6005 = vsub.s32 0, %v6004
      %v6006 = vrot.slane %v5701, %v6005
      %v6007 = vlaneseq
      %v6008 = vshrl.u32 %v6007, 7
      %v6009 = vsub.s32 0, %v6008
      %v6010 = vrot.slane %v5702, %v6009
      %v6011 = vlaneseq
      %v6012 = vshrl.u32 %v6011, 7
      %v6013 = vsub.s32 0, %v6012
      %v6014 = vrot.slane %v5703, %v6013
      %v6015 = vlaneseq
      %v6016 = vshrl.u32 %v6015, 7
      %v6017 = vsub.s32 0, %v6016
      %v6018 = vrot.slane %v5704, %v6017
      %v6019 = vlaneseq
      %v6020 = vshrl.u32 %v6019, 7
      %v6021 = vsub.s32 0, %v6020
      %v6022 = vrot.slane %v5705, %v6021
      %v6023 = vlaneseq
      %v6024 = vshrl.u32 %v6023, 7
      %v6025 = vsub.s32 0, %v6024
      %v6026 = vrot.slane %v5706, %v6025
      %vm6027 = vcmask 1041409
      %v6028 = vsel %vm6027, %v5778, %v5774
      %vm6029 = vcmask 1042434
      %v6030 = vsel %vm6029, %v5782, %v6028
      %vm6031 = vcmask 1043459
      %v6032 = vsel %vm6031, %v5786, %v6030
      %vm6033 = vcmask 1044484
      %v6034 = vsel %vm6033, %v5790, %v6032
      %vm6035 = vcmask 1045509
      %v6036 = vsel %vm6035, %v5794, %v6034
      %vm6037 = vcmask 1046534
      %v6038 = vsel %vm6037, %v5798, %v6036
      %vm6039 = vcmask 1047559
      %v6040 = vsel %vm6039, %v5802, %v6038
      %v6041 = vsel %vm6027, %v5810, %v5806
      %v6042 = vsel %vm6029, %v5814, %v6041
      %v6043 = vsel %vm6031, %v5818, %v6042
      %v6044 = vsel %vm6033, %v5822, %v6043
      %v6045 = vsel %vm6035, %v5826, %v6044
      %v6046 = vsel %vm6037, %v5830, %v6045
      %v6047 = vsel %vm6039, %v5834, %v6046
      %v6048 = vsel %vm6027, %v5842, %v5838
      %v6049 = vsel %vm6029, %v5846, %v6048
      %v6050 = vsel %vm6031, %v5850, %v6049
      %v6051 = vsel %vm6033, %v5854, %v6050
      %v6052 = vsel %vm6035, %v5858, %v6051
      %v6053 = vsel %vm6037, %v5862, %v6052
      %v6054 = vsel %vm6039, %v5866, %v6053
      %v6055 = vsel %vm6027, %v5874, %v5870
      %v6056 = vsel %vm6029, %v5878, %v6055
      %v6057 = vsel %vm6031, %v5882, %v6056
      %v6058 = vsel %vm6033, %v5886, %v6057
      %v6059 = vsel %vm6035, %v5890, %v6058
      %v6060 = vsel %vm6037, %v5894, %v6059
      %v6061 = vsel %vm6039, %v5898, %v6060
      %v6062 = vsel %vm6027, %v5906, %v5902
      %v6063 = vsel %vm6029, %v5910, %v6062
      %v6064 = vsel %vm6031, %v5914, %v6063
      %v6065 = vsel %vm6033, %v5918, %v6064
      %v6066 = vsel %vm6035, %v5922, %v6065
      %v6067 = vsel %vm6037, %v5926, %v6066
      %v6068 = vsel %vm6039, %v5930, %v6067
      %v6069 = vsel %vm6027, %v5938, %v5934
      %v6070 = vsel %vm6029, %v5942, %v6069
      %v6071 = vsel %vm6031, %v5946, %v6070
      %v6072 = vsel %vm6033, %v5950, %v6071
      %v6073 = vsel %vm6035, %v5954, %v6072
      %v6074 = vsel %vm6037, %v5958, %v6073
      %v6075 = vsel %vm6039, %v5962, %v6074
      %v6076 = vsel %vm6027, %v5970, %v5966
      %v6077 = vsel %vm6029, %v5974, %v6076
      %v6078 = vsel %vm6031, %v5978, %v6077
      %v6079 = vsel %vm6033, %v5982, %v6078
      %v6080 = vsel %vm6035, %v5986, %v6079
      %v6081 = vsel %vm6037, %v5990, %v6080
      %v6082 = vsel %vm6039, %v5994, %v6081
      %v6083 = vsel %vm6027, %v6002, %v5998
      %v6084 = vsel %vm6029, %v6006, %v6083
      %v6085 = vsel %vm6031, %v6010, %v6084
      %v6086 = vsel %vm6033, %v6014, %v6085
      %v6087 = vsel %vm6035, %v6018, %v6086
      %v6088 = vsel %vm6037, %v6022, %v6087
      %v6089 = vsel %vm6039, %v6026, %v6088
      %6098 = vst [vmem:[%s279] sm:$0xff] %v6040
      %6099 = vst [vmem:[%s279 + $0x8] sm:$0xff] %v6047
      %6100 = vst [vmem:[%s279 + $0x10] sm:$0xff] %v6054
      %6101 = vst [vmem:[%s279 + $0x18] sm:$0xff] %v6061
      %6102 = vst [vmem:[%s279 + $0x20] sm:$0xff] %v6068
      %6103 = vst [vmem:[%s279 + $0x28] sm:$0xff] %v6075
      %6104 = vst [vmem:[%s279 + $0x30] sm:$0xff] %v6082
      %6105 = vst [vmem:[%s279 + $0x38] sm:$0xff] %v6089
      %p6106 = scmp.lt.s32.totalorder %s19, 1
      %s6107 = scalar_select %p6106, %s19, 1
      %p6108 = scmp.lt.s32.totalorder %s20, 0
      %s6109 = scalar_select %p6108, %s20, 0
      %s6110 = smul.addr %s6107, 8
      %s6111 = sadd.s32 %s6109, %s6110
      %s6112 = smul.addr %s6111, 8
      %s6113 = scalar_lea.vmem %s4, %s6112
      // Predicated region
      $region37: #{disc_block_forward.3} parent=35 // pred_check
        %p6114 = pneg %p153
      $region38: #{disc_block_forward.3} parent=35 // pred_check_branch
        %6116 = sbr.rel (%p6114) target = $region40
      $region39: #{disc_block_forward.3} parent=35 // pred_region
        _
      $region40: #{disc_block_forward.3} parent=35 // pred_fallthru
        _
    $region36: #{disc_block_forward.3} parent=5 // pred_fallthru
      _
    %p6117 = scmp.le.s32.totalorder 2, %s10
    // Predicated region
    $region41: #{disc_block_forward.3} parent=5 // pred_check
      %p6118 = pneg %p6117
    $region42: #{disc_block_forward.3} parent=5 // pred_check_branch
      %6120 = sbr.rel (%p6118) target = $region44
    $region43: #{disc_block_forward.3} parent=5 // pred_region
      %s6121 = ssub.s32 %s10, 2
      // Predicated region
      $region45: #{disc_block_forward.3} parent=43 // pred_check
        %p6122 = pneg %p159
      $region46: #{disc_block_forward.3} parent=43 // pred_check_branch
        %6124 = sbr.rel (%p6122) target = $region48
      $region47: #{disc_block_forward.3} parent=43 // pred_region
        %p6125 = scmp.lt.s32.totalorder %s21, 1
        %s6126 = scalar_select %p6125, %s21, 1
        %p6127 = scmp.lt.s32.totalorder %s22, 0
        %s6128 = scalar_select %p6127, %s22, 0
        %s6129 = smul.addr %s6126, 8
        %s6130 = sadd.s32 %s6128, %s6129
        %s6131 = smul.addr %s6130, 8
        %s6132 = scalar_lea.vmem %s4, %s6131
      $region48: #{disc_block_forward.3} parent=43 // pred_fallthru
        _
    $region44: #{disc_block_forward.3} parent=5 // pred_fallthru
      _
  $region6: #{disc_block_forward.3} parent=0 // loop_footer
    %s14 = sadd.s32 1, %s10
  $region7: #{disc_block_forward.3} parent=0 // loop_footer_branch
    %9 = sbr.rel target = $region3
  $region8: #{disc_block_forward.3} parent=0 // loop_exit
    _

</llo_original>
